<compile_context>
chip_gen: v7x
topology: tpu7x:2x2x1
jax: 0.10.0
libtpu: 0.0.40
codegen_flags: <defaults>
</compile_context>

<pallas_src>
import functools
import math

import jax
import jax.numpy as jnp
from jax.experimental import pallas as pl
from jax.experimental.pallas import tpu as pltpu


def _vmem_limit_bytes():
    """Physical VMEM minus headroom (=> ~48 MiB on v7x, 112 MiB on v5e/v6e)."""
    try:
        cap = int(pltpu.get_tpu_info().vmem_capacity_bytes)
    except Exception:
        cap = 64 * 1024 * 1024
    return int(max(min(cap - 16 * 1024 * 1024, 112 * 1024 * 1024), 32 * 1024 * 1024))


_VMEM_LIMIT = _vmem_limit_bytes()


def _pick_tile(dim, target, mult):
    """Largest divisor of `dim` that is a multiple of `mult` and <= target.
    Falls back to the full extent, which is always a legal block shape."""
    t = min(target, dim)
    t -= t % mult
    for cand in range(t, 0, -mult):
        if dim % cand == 0:
            return cand
    return dim


def _pick_head_group(nhead, hd):
    """Largest head group whose fused lane width is a multiple of 128 (<=512)."""
    for hg in range(nhead, 0, -1):
        if nhead % hg == 0 and (hg * hd) % 128 == 0 and hg * hd <= 512:
            return hg
    return nhead


def _gelu_erf(x):
    """Exact-erf GELU (matches torch.nn.functional.gelu default), built from
    Mosaic-safe ops: Abramowitz & Stegun 7.1.26 erf (|err| < 1.5e-7), f32."""
    a1, a2, a3, a4, a5 = 0.254829592, -0.284496736, 1.421413741, -1.453152027, 1.061405429
    z = x * 0.7071067811865476
    az = jnp.abs(z)
    t = 1.0 / (1.0 + 0.3275911 * az)
    poly = t * (a1 + t * (a2 + t * (a3 + t * (a4 + t * a5))))
    erf = 1.0 - poly * jnp.exp(-az * az)
    erf = jnp.where(z >= 0, erf, -erf)
    return 0.5 * x * (1.0 + erf)


def _layernorm_rows(x_f32, g_ref, b_ref):
    mean = jnp.mean(x_f32, axis=-1, keepdims=True)
    xc = x_f32 - mean
    var = jnp.mean(xc * xc, axis=-1, keepdims=True)
    return xc * jax.lax.rsqrt(var + 1e-6) * g_ref[...] + b_ref[...]


# --------------------------------------------------------------------------- LN + QKV
def _ln_matmul_kernel(x_ref, g_ref, bt_ref, w_ref, b_ref, o_ref, xn_ref):
    """LayerNorm fused into the prologue of a bf16-operand / f32-accumulate matmul.
    Grid = (row tiles, output-column tiles); LN rows cached in bf16 scratch."""
    j = pl.program_id(1)

    @pl.when(j == 0)
    def _():
        y = _layernorm_rows(x_ref[...].astype(jnp.float32), g_ref, bt_ref)
        xn_ref[...] = y.astype(jnp.bfloat16)

    y = jnp.dot(xn_ref[...], w_ref[...], preferred_element_type=jnp.float32)
    o_ref[...] = (y + b_ref[...]).astype(o_ref.dtype)


def fused_ln_qkv(x2d, gamma, beta, w_qkv_t, b_qkv, *, tile_m):
    n, d = x2d.shape
    out_dim = w_qkv_t.shape[1]                     # 3 * d_model
    tile_n = _pick_tile(out_dim, 512, 128)
    return pl.pallas_call(
        _ln_matmul_kernel,
        out_shape=jax.ShapeDtypeStruct((n, out_dim), jnp.float32),
        grid_spec=pltpu.PrefetchScalarGridSpec(
            num_scalar_prefetch=0,
            grid=(n // tile_m, out_dim // tile_n),
            in_specs=[
                pl.BlockSpec((tile_m, d), lambda i, j: (i, 0)),    # x rows
                pl.BlockSpec((1, d), lambda i, j: (0, 0)),         # LN gamma
                pl.BlockSpec((1, d), lambda i, j: (0, 0)),         # LN beta
                pl.BlockSpec((d, tile_n), lambda i, j: (0, j)),    # W_qkv^T slab (bf16)
                pl.BlockSpec((1, tile_n), lambda i, j: (0, j)),    # bias slab
            ],
            out_specs=pl.BlockSpec((tile_m, tile_n), lambda i, j: (i, j)),
            scratch_shapes=[pltpu.VMEM((tile_m, d), jnp.bfloat16)],
        ),
        compiler_params=pltpu.CompilerParams(
            dimension_semantics=("parallel", "arbitrary"),
            vmem_limit_bytes=_VMEM_LIMIT,
        ),
        cost_estimate=pl.CostEstimate(
            flops=2 * n * d * out_dim, transcendentals=n,
            bytes_accessed=4 * n * d + 2 * d * out_dim + 4 * n * out_dim),
    )(x2d, gamma, beta, w_qkv_t, b_qkv)


# --------------------------------------------------------------------------- attention
def _attn_kernel(q_ref, k_ref, v_ref, o_ref, *, scale, hd, hg):
    """Softmax attention for one batch element and one head group.
    Blocks are (L, hg*hd) -- heads packed along lanes, lane-dense I/O."""
    for h in range(hg):
        sl = slice(h * hd, (h + 1) * hd)
        qh = q_ref[:, sl].astype(jnp.bfloat16)
        kh = k_ref[:, sl].astype(jnp.bfloat16)
        vh = v_ref[:, sl].astype(jnp.bfloat16)
        s = jax.lax.dot_general(qh, kh, (((1,), (1,)), ((), ())),
                                preferred_element_type=jnp.float32) * scale
        s = s - jnp.max(s, axis=-1, keepdims=True)
        p = jnp.exp(s)
        p = p * pl.reciprocal(jnp.sum(p, axis=-1, keepdims=True), approx=True)
        # attention dropout -> identity (p = 0.0 in the module defaults)
        ctx = jnp.dot(p.astype(jnp.bfloat16), vh, preferred_element_type=jnp.float32)
        o_ref[:, sl] = ctx.astype(o_ref.dtype)


def attention(qkv3d, *, nhead):
    """qkv3d: [B, L, 3D] (q | k | v along lanes) -> context [B, L, D].
    Head selection happens purely through index_maps (no XLA transposes)."""
    B, L, three_d = qkv3d.shape
    D = three_d // 3
    hd = D // nhead
    hg = _pick_head_group(nhead, hd)
    gw = hg * hd
    assert gw % 128 == 0, "head grouping requires d_model to be a multiple of 128"
    ng = nhead // hg
    scale = 1.0 / math.sqrt(hd)
    kern = functools.partial(_attn_kernel, scale=scale, hd=hd, hg=hg)
    blk = (None, L, gw)
    return pl.pallas_call(
        kern,
        out_shape=jax.ShapeDtypeStruct((B, L, D), jnp.float32),
        grid_spec=pltpu.PrefetchScalarGridSpec(
            num_scalar_prefetch=0,
            grid=(B, ng),
            in_specs=[
                pl.BlockSpec(blk, lambda b, g: (b, 0, g)),           # q group
                pl.BlockSpec(blk, lambda b, g: (b, 0, ng + g)),      # k group
                pl.BlockSpec(blk, lambda b, g: (b, 0, 2 * ng + g)),  # v group
            ],
            out_specs=pl.BlockSpec(blk, lambda b, g: (b, 0, g)),
        ),
        compiler_params=pltpu.CompilerParams(
            dimension_semantics=("parallel", "parallel"),
            vmem_limit_bytes=_VMEM_LIMIT,
        ),
        cost_estimate=pl.CostEstimate(
            flops=4 * B * nhead * L * L * hd, transcendentals=B * nhead * L * L,
            bytes_accessed=4 * B * L * three_d + 4 * B * L * D),
    )(qkv3d, qkv3d, qkv3d)


# --------------------------------------------------------------------------- proj + residual
def _matmul_residual_kernel(x_ref, w_ref, b_ref, res_ref, o_ref):
    x = x_ref[...].astype(jnp.bfloat16)
    y = jnp.dot(x, w_ref[...], preferred_element_type=jnp.float32)
    o_ref[...] = (y + b_ref[...] + res_ref[...].astype(jnp.float32)).astype(o_ref.dtype)


def proj_residual(x2d, res2d, w_t, b, *, tile_m):
    n, k = x2d.shape
    m = w_t.shape[1]
    tile_n = _pick_tile(m, 512, 128)
    return pl.pallas_call(
        _matmul_residual_kernel,
        out_shape=jax.ShapeDtypeStruct((n, m), jnp.float32),
        grid_spec=pltpu.PrefetchScalarGridSpec(
            num_scalar_prefetch=0,
            grid=(n // tile_m, m // tile_n),
            in_specs=[
                pl.BlockSpec((tile_m, k), lambda i, j: (i, 0)),      # ctx rows
                pl.BlockSpec((k, tile_n), lambda i, j: (0, j)),      # W_proj^T slab (bf16)
                pl.BlockSpec((1, tile_n), lambda i, j: (0, j)),      # bias slab
                pl.BlockSpec((tile_m, tile_n), lambda i, j: (i, j)), # residual rows
            ],
            out_specs=pl.BlockSpec((tile_m, tile_n), lambda i, j: (i, j)),
        ),
        compiler_params=pltpu.CompilerParams(
            dimension_semantics=("parallel", "parallel"),
            vmem_limit_bytes=_VMEM_LIMIT,
        ),
        cost_estimate=pl.CostEstimate(
            flops=2 * n * k * m, transcendentals=0,
            bytes_accessed=4 * n * k + 2 * k * m + 8 * n * m),
    )(x2d, w_t, b, res2d)


# --------------------------------------------------------------------------- LN + FFN + residual
def _ln_ffn_residual_kernel(x_ref, g_ref, bt_ref, w1_ref, b1_ref, w2_ref, b2_ref,
                            o_ref, xn_ref):
    """LayerNorm -> fc1 -> GELU -> fc2 -> (+bias, +residual).
    F axis tiled as an inner reduction; the resident f32 output block is the
    accumulator (initialized with residual + fc2 bias at f == 0)."""
    f = pl.program_id(1)

    @pl.when(f == 0)
    def _():
        x = x_ref[...].astype(jnp.float32)
        xn_ref[...] = _layernorm_rows(x, g_ref, bt_ref).astype(jnp.bfloat16)
        o_ref[...] = x + b2_ref[...]            # residual + fc2 bias (f32)

    h = jnp.dot(xn_ref[...], w1_ref[...], preferred_element_type=jnp.float32) + b1_ref[...]
    h = _gelu_erf(h)
    # ffn dropout -> identity (p = 0.0 in the module defaults)
    o_ref[...] += jnp.dot(h.astype(jnp.bfloat16), w2_ref[...],
                          preferred_element_type=jnp.float32)


def ln_ffn_residual(x2d, gamma, beta, w1_t, b1, w2_t, b2, *, tile_m):
    n, d = x2d.shape
    f_dim = w1_t.shape[1]
    tile_f = _pick_tile(f_dim, 512, 128)
    return pl.pallas_call(
        _ln_ffn_residual_kernel,
        out_shape=jax.ShapeDtypeStruct((n, d), jnp.float32),
        grid_spec=pltpu.PrefetchScalarGridSpec(
            num_scalar_prefetch=0,
            grid=(n // tile_m, f_dim // tile_f),
            in_specs=[
                pl.BlockSpec((tile_m, d), lambda i, f: (i, 0)),   # x rows (LN in + residual)
                pl.BlockSpec((1, d), lambda i, f: (0, 0)),        # LN gamma
                pl.BlockSpec((1, d), lambda i, f: (0, 0)),        # LN beta
                pl.BlockSpec((d, tile_f), lambda i, f: (0, f)),   # W1^T slab (bf16)
                pl.BlockSpec((1, tile_f), lambda i, f: (0, f)),   # b1 slab
                pl.BlockSpec((tile_f, d), lambda i, f: (f, 0)),   # W2^T slab (bf16)
                pl.BlockSpec((1, d), lambda i, f: (0, 0)),        # b2
            ],
            out_specs=pl.BlockSpec((tile_m, d), lambda i, f: (i, 0)),
            scratch_shapes=[pltpu.VMEM((tile_m, d), jnp.bfloat16)],
        ),
        compiler_params=pltpu.CompilerParams(
            dimension_semantics=("parallel", "arbitrary"),
            vmem_limit_bytes=_VMEM_LIMIT,
        ),
        cost_estimate=pl.CostEstimate(
            flops=4 * n * d * f_dim, transcendentals=n * f_dim,
            bytes_accessed=8 * n * d + 4 * d * f_dim),
    )(x2d, gamma, beta, w1_t, b1, w2_t, b2)


# --------------------------------------------------------------------------- final LayerNorm
def _layernorm_kernel(x_ref, g_ref, b_ref, o_ref):
    y = _layernorm_rows(x_ref[...].astype(jnp.float32), g_ref, b_ref)
    o_ref[...] = y.astype(o_ref.dtype)


def layernorm(x2d, gamma, beta, *, tile_m):
    n, d = x2d.shape
    return pl.pallas_call(
        _layernorm_kernel,
        out_shape=jax.ShapeDtypeStruct((n, d), jnp.float32),
        grid_spec=pltpu.PrefetchScalarGridSpec(
            num_scalar_prefetch=0,
            grid=(n // tile_m,),
            in_specs=[
                pl.BlockSpec((tile_m, d), lambda i: (i, 0)),
                pl.BlockSpec((1, d), lambda i: (0, 0)),
                pl.BlockSpec((1, d), lambda i: (0, 0)),
            ],
            out_specs=pl.BlockSpec((tile_m, d), lambda i: (i, 0)),
        ),
        compiler_params=pltpu.CompilerParams(
            dimension_semantics=("parallel",),
            vmem_limit_bytes=_VMEM_LIMIT,
        ),
    )(x2d, gamma, beta)


# --------------------------------------------------------------------------- forward
def encoder_forward(x, prepped, *, nhead, row_tile_target=256):
    """Mirrors Encoder.forward (dropout = identity). x: [B, L, D] -> [B, L, D]."""
    B, L, D = x.shape
    n = B * L
    tile_m = _pick_tile(n, row_tile_target, 8)     # divisor of n -> no row padding
    x2d = x.reshape(n, D).astype(jnp.float32)
    for lp in prepped["layers"]:
        res = x2d
        qkv = fused_ln_qkv(x2d, lp["att_g"], lp["att_b"],
                           lp["w_qkv_t"], lp["b_qkv"], tile_m=tile_m)     # (n, 3D)
        ctx = attention(qkv.reshape(B, L, 3 * D), nhead=nhead)            # (B, L, D)
        x2d = proj_residual(ctx.reshape(n, D), res, lp["wproj_t"], lp["bproj"],
                            tile_m=tile_m)                                # proj (+res)
        x2d = ln_ffn_residual(x2d, lp["ffn_g"], lp["ffn_b"],
                              lp["w1_t"], lp["b1"], lp["w2_t"], lp["b2"],
                              tile_m=tile_m)                              # LN+FFN (+res)
    x2d = layernorm(x2d, prepped["norm_g"], prepped["norm_b"], tile_m=tile_m)
    return x2d.reshape(B, L, D)


# --------------------------------------------------------------------------- param prep / init
def prepare_params(params):
    """One-time prep: transpose to [in, out], cast matmul weights to bf16,
    fuse q/k/v weights, reshape biases / LN params to (1, .) f32."""
    out = {"layers": []}
    for lp in params["layers"]:
        d = lp["wq"].shape[0]
        f = lp["w1"].shape[0]
        out["layers"].append({
            "att_g": lp["att_norm_g"].reshape(1, d).astype(jnp.float32),
            "att_b": lp["att_norm_b"].reshape(1, d).astype(jnp.float32),
            "w_qkv_t": jnp.concatenate([lp["wq"], lp["wk"], lp["wv"]], axis=0)
                          .T.astype(jnp.bfloat16),                        # (D, 3D)
            "b_qkv": jnp.concatenate([lp["bq"], lp["bk"], lp["bv"]])
                        .reshape(1, 3 * d).astype(jnp.float32),
            "wproj_t": lp["wproj"].T.astype(jnp.bfloat16),                # (D, D)
            "bproj": lp["bproj"].reshape(1, d).astype(jnp.float32),
            "ffn_g": lp["ffn_norm_g"].reshape(1, d).astype(jnp.float32),
            "ffn_b": lp["ffn_norm_b"].reshape(1, d).astype(jnp.float32),
            "w1_t": lp["w1"].T.astype(jnp.bfloat16),                      # (D, F)
            "b1": lp["b1"].reshape(1, f).astype(jnp.float32),
            "w2_t": lp["w2"].T.astype(jnp.bfloat16),                      # (F, D)
            "b2": lp["b2"].reshape(1, d).astype(jnp.float32),
        })
    out["norm_g"] = params["norm_g"].reshape(1, -1).astype(jnp.float32)
    out["norm_b"] = params["norm_b"].reshape(1, -1).astype(jnp.float32)
    return out


def _xavier_uniform(key, shape, dtype=jnp.float32):
    fan_out, fan_in = shape
    limit = math.sqrt(6.0 / (fan_in + fan_out))
    return jax.random.uniform(key, shape, dtype, minval=-limit, maxval=limit)


def init_encoder_params(key, *, num_layers, d_model, nhead, dim_feedforward):
    layers = []
    for _ in range(num_layers):
        key, *ks = jax.random.split(key, 13)
        layers.append({
            "att_norm_g": jnp.ones((d_model,), jnp.float32),
            "att_norm_b": jnp.zeros((d_model,), jnp.float32),
            "wq": _xavier_uniform(ks[0], (d_model, d_model)),
            "bq": 1e-6 * jax.random.normal(ks[1], (d_model,), jnp.float32),
            "wk": _xavier_uniform(ks[2], (d_model, d_model)),
            "bk": 1e-6 * jax.random.normal(ks[3], (d_model,), jnp.float32),
            "wv": _xavier_uniform(ks[4], (d_model, d_model)),
            "bv": 1e-6 * jax.random.normal(ks[5], (d_model,), jnp.float32),
            "wproj": _xavier_uniform(ks[6], (d_model, d_model)),
            "bproj": 1e-6 * jax.random.normal(ks[7], (d_model,), jnp.float32),
            "ffn_norm_g": jnp.ones((d_model,), jnp.float32),
            "ffn_norm_b": jnp.zeros((d_model,), jnp.float32),
            "w1": _xavier_uniform(ks[8], (dim_feedforward, d_model)),
            "b1": 1e-6 * jax.random.normal(ks[9], (dim_feedforward,), jnp.float32),
            "w2": _xavier_uniform(ks[10], (d_model, dim_feedforward)),
            "b2": 1e-6 * jax.random.normal(ks[11], (d_model,), jnp.float32),
        })
    return {"layers": layers,
            "norm_g": jnp.ones((d_model,), jnp.float32),
            "norm_b": jnp.zeros((d_model,), jnp.float32)}


# --------------------------------------------------------------------------- pure-JAX reference
def _ref_encoder(x, params, *, nhead, cast_bf16):
    """Reference matching the torch module. cast_bf16=True mirrors the kernels'
    precision policy (bf16 MXU operands, f32 accumulation)."""
    def cast(a):
        return a.astype(jnp.bfloat16) if cast_bf16 else a

    def lin(a, w, b):
        return jnp.einsum("...k,mk->...m", cast(a), cast(w),
                          preferred_element_type=jnp.float32) + b

    def ln(a, g, b):
        m = jnp.mean(a, axis=-1, keepdims=True)
        v = jnp.mean((a - m) ** 2, axis=-1, keepdims=True)
        return (a - m) / jnp.sqrt(v + 1e-6) * g + b

    B, L, D = x.shape
    hd = D // nhead
    for lp in params["layers"]:
        h = x
        y = ln(x, lp["att_norm_g"], lp["att_norm_b"])
        q = lin(y, lp["wq"], lp["bq"]).reshape(B, L, nhead, hd).transpose(0, 2, 1, 3)
        k = lin(y, lp["wk"], lp["bk"]).reshape(B, L, nhead, hd).transpose(0, 2, 1, 3)
        v = lin(y, lp["wv"], lp["bv"]).reshape(B, L, nhead, hd).transpose(0, 2, 1, 3)
        s = jnp.einsum("bhld,bhmd->bhlm", cast(q), cast(k),
                       preferred_element_type=jnp.float32) / math.sqrt(hd)
        p = jax.nn.softmax(s, axis=-1)
        ctx = jnp.einsum("bhlm,bhmd->bhld", cast(p), cast(v),
                         preferred_element_type=jnp.float32)
        ctx = ctx.transpose(0, 2, 1, 3).reshape(B, L, D)
        x = lin(ctx, lp["wproj"], lp["bproj"]) + h
        h = x
        y = ln(x, lp["ffn_norm_g"], lp["ffn_norm_b"])
        y = lin(y, lp["w1"], lp["b1"])
        y = 0.5 * y * (1.0 + jax.lax.erf(y * 0.7071067811865476))
        x = lin(y, lp["w2"], lp["b2"]) + h
    return ln(x, params["norm_g"], params["norm_b"])


if __name__ == "__main__":
    # Small, lane-dense shapes: d_model multiple of 128, dim_feedforward = 4*d_model.
    num_layers = 2
    d_model = 128
    nhead = 4
    dim_feedforward = 4 * d_model      # 512
    batch, seq = 2, 64                 # N = batch*seq = 128 rows

    key = jax.random.PRNGKey(0)
    key, xkey = jax.random.split(key)
    params = init_encoder_params(key, num_layers=num_layers, d_model=d_model,
                                 nhead=nhead, dim_feedforward=dim_feedforward)
    x = jax.random.normal(xkey, (batch, seq, d_model), jnp.float32)

    prepped = prepare_params(params)   # one-time: transpose + bf16 cast + QKV fuse
    fwd = jax.jit(functools.partial(encoder_forward, nhead=nhead))
    y = fwd(x, prepped)
    jax.block_until_ready(y)

    assert y.shape == (batch, seq, d_model)
    assert bool(jnp.all(jnp.isfinite(y))), "non-finite output"

    # Check vs a pure-JAX reference using the same bf16-operand / f32-accumulate policy
    # (remaining differences: approx softmax reciprocal + accumulation order).
    y_match = _ref_encoder(x, params, nhead=nhead, cast_bf16=True)
    mean_err = float(jnp.mean(jnp.abs(y - y_match)))
    max_err = float(jnp.max(jnp.abs(y - y_match)))
    assert mean_err < 1e-2 and max_err < 1e-1, \
        f"mismatch vs bf16-matched reference (mean={mean_err}, max={max_err})"

    # Loose check vs the exact f32 reference (bf16 MXU operands dominate the error).
    y_f32 = _ref_encoder(x, params, nhead=nhead, cast_bf16=False)
    mean_err_f32 = float(jnp.mean(jnp.abs(y - y_f32)))
    assert mean_err_f32 < 5e-2, f"mismatch vs f32 reference (mean={mean_err_f32})"

    print("KERNEL_OK")
</pallas_src>

<mosaic_0001>
module attributes {stable_mosaic.version = 11 : i64} {
  func.func @_ln_matmul_kernel(%arg0: i32, %arg1: i32, %arg2: memref<128x128xf32, #tpu.memory_space<vmem>>, %arg3: memref<1x128xf32, #tpu.memory_space<vmem>>, %arg4: memref<1x128xf32, #tpu.memory_space<vmem>>, %arg5: memref<128x384xbf16, #tpu.memory_space<vmem>>, %arg6: memref<1x384xf32, #tpu.memory_space<vmem>>, %arg7: memref<128x384xf32, #tpu.memory_space<vmem>>, %arg8: memref<128x128xbf16, #tpu.memory_space<vmem>>) attributes {dimension_semantics = [#tpu.dimension_semantics<parallel>, #tpu.dimension_semantics<arbitrary>], iteration_bounds = array<i64: 1, 1>, scalar_prefetch = 0 : i64, scratch_operands = 1 : i64, tpu.core_type = #tpu.core_type<tc>, window_params = [{transform_indices = @transform_0, window_bounds = array<i64: 128, 128>}, {pipeline_mode = #tpu.pipeline_mode<synchronous>, transform_indices = @transform_1, window_bounds = array<i64: 1, 128>}, {pipeline_mode = #tpu.pipeline_mode<synchronous>, transform_indices = @transform_2, window_bounds = array<i64: 1, 128>}, {transform_indices = @transform_3, window_bounds = array<i64: 128, 384>}, {transform_indices = @transform_4, window_bounds = array<i64: 1, 384>}, {transform_indices = @transform_5, window_bounds = array<i64: 128, 384>}]} {
    %c0_i32 = arith.constant 0 : i32
    %0 = arith.cmpi eq, %arg1, %c0_i32 : i32
    %1 = arith.extui %0 : i1 to i32
    %c0_i32_0 = arith.constant 0 : i32
    %2 = arith.cmpi ne, %1, %c0_i32_0 : i32
    scf.if %2 {
      %c0_8 = arith.constant 0 : index
      %c0_9 = arith.constant 0 : index
      %10 = vector.load %arg2[%c0_8, %c0_9] : memref<128x128xf32, #tpu.memory_space<vmem>>, vector<128x128xf32>
      %cst_10 = arith.constant dense<0.000000e+00> : vector<128xf32>
      %11 = vector.multi_reduction <add>, %10, %cst_10 [1] : vector<128x128xf32> to vector<128xf32>
      %12 = vector.shape_cast %11 : vector<128xf32> to vector<128x1xf32>
      %cst_11 = arith.constant 1.280000e+02 : f32
      %13 = vector.broadcast %cst_11 : f32 to vector<128x1xf32>
      %14 = arith.divf %12, %13 : vector<128x1xf32>
      %15 = vector.broadcast %14 : vector<128x1xf32> to vector<128x128xf32>
      %16 = arith.subf %10, %15 : vector<128x128xf32>
      %17 = arith.mulf %16, %16 : vector<128x128xf32>
      %cst_12 = arith.constant dense<0.000000e+00> : vector<128xf32>
      %18 = vector.multi_reduction <add>, %17, %cst_12 [1] : vector<128x128xf32> to vector<128xf32>
      %19 = vector.shape_cast %18 : vector<128xf32> to vector<128x1xf32>
      %cst_13 = arith.constant 1.280000e+02 : f32
      %20 = vector.broadcast %cst_13 : f32 to vector<128x1xf32>
      %21 = arith.divf %19, %20 : vector<128x1xf32>
      %cst_14 = arith.constant 9.99999997E-7 : f32
      %22 = vector.broadcast %cst_14 : f32 to vector<128x1xf32>
      %23 = arith.addf %21, %22 : vector<128x1xf32>
      %24 = math.rsqrt %23 : vector<128x1xf32>
      %25 = vector.broadcast %24 : vector<128x1xf32> to vector<128x128xf32>
      %26 = arith.mulf %16, %25 : vector<128x128xf32>
      %c0_15 = arith.constant 0 : index
      %c0_16 = arith.constant 0 : index
      %27 = vector.load %arg3[%c0_15, %c0_16] : memref<1x128xf32, #tpu.memory_space<vmem>>, vector<1x128xf32>
      %28 = vector.broadcast %27 : vector<1x128xf32> to vector<128x128xf32>
      %29 = arith.mulf %26, %28 : vector<128x128xf32>
      %c0_17 = arith.constant 0 : index
      %c0_18 = arith.constant 0 : index
      %30 = vector.load %arg4[%c0_17, %c0_18] : memref<1x128xf32, #tpu.memory_space<vmem>>, vector<1x128xf32>
      %31 = vector.broadcast %30 : vector<1x128xf32> to vector<128x128xf32>
      %32 = arith.addf %29, %31 : vector<128x128xf32>
      %33 = arith.truncf %32 : vector<128x128xf32> to vector<128x128xbf16>
      %c0_19 = arith.constant 0 : index
      %c0_20 = arith.constant 0 : index
      %34 = vector.load %arg8[%c0_19, %c0_20] : memref<128x128xbf16, #tpu.memory_space<vmem>>, vector<128x128xbf16>
      tpu.vector_store %arg8[%c0_19, %c0_20], %33 {strides = array<i32>} : memref<128x128xbf16, #tpu.memory_space<vmem>>, vector<128x128xbf16>,
    } else {
    }
    %c0 = arith.constant 0 : index
    %c0_1 = arith.constant 0 : index
    %3 = vector.load %arg8[%c0, %c0_1] : memref<128x128xbf16, #tpu.memory_space<vmem>>, vector<128x128xbf16>
    %c0_2 = arith.constant 0 : index
    %c0_3 = arith.constant 0 : index
    %4 = vector.load %arg5[%c0_2, %c0_3] : memref<128x384xbf16, #tpu.memory_space<vmem>>, vector<128x384xbf16>
    %cst = arith.constant dense<0.000000e+00> : vector<128x384xf32>
    %5 = tpu.matmul %3, %4, %cst {dimension_numbers = #tpu.dot_dimension_numbers<[1], [0], [0], [1], [0, 0, 1, 1], [], []>} : vector<128x128xbf16>, vector<128x384xbf16>, vector<128x384xf32> -> vector<128x384xf32>
    %c0_4 = arith.constant 0 : index
    %c0_5 = arith.constant 0 : index
    %6 = vector.load %arg6[%c0_4, %c0_5] : memref<1x384xf32, #tpu.memory_space<vmem>>, vector<1x384xf32>
    %7 = vector.broadcast %6 : vector<1x384xf32> to vector<128x384xf32>
    %8 = arith.addf %5, %7 : vector<128x384xf32>
    %c0_6 = arith.constant 0 : index
    %c0_7 = arith.constant 0 : index
    %9 = vector.load %arg7[%c0_6, %c0_7] : memref<128x384xf32, #tpu.memory_space<vmem>>, vector<128x384xf32>
    tpu.vector_store %arg7[%c0_6, %c0_7], %8 {strides = array<i32>} : memref<128x384xf32, #tpu.memory_space<vmem>>, vector<128x384xf32>,
    return
  }
  func.func @transform_0(%arg0: i32, %arg1: i32) -> (i32, i32) {
    %c0_i32 = arith.constant 0 : i32
    %c0_i32_0 = arith.constant 0 : i32
    return %arg0, %c0_i32 : i32, i32
  }
  func.func @transform_1(%arg0: i32, %arg1: i32) -> (i32, i32) {
    %c0_i32 = arith.constant 0 : i32
    %c0_i32_0 = arith.constant 0 : i32
    %c0_i32_1 = arith.constant 0 : i32
    return %c0_i32, %c0_i32_0 : i32, i32
  }
  func.func @transform_2(%arg0: i32, %arg1: i32) -> (i32, i32) {
    %c0_i32 = arith.constant 0 : i32
    %c0_i32_0 = arith.constant 0 : i32
    %c0_i32_1 = arith.constant 0 : i32
    return %c0_i32, %c0_i32_0 : i32, i32
  }
  func.func @transform_3(%arg0: i32, %arg1: i32) -> (i32, i32) {
    %c0_i32 = arith.constant 0 : i32
    %c0_i32_0 = arith.constant 0 : i32
    return %c0_i32, %arg1 : i32, i32
  }
  func.func @transform_4(%arg0: i32, %arg1: i32) -> (i32, i32) {
    %c0_i32 = arith.constant 0 : i32
    %c0_i32_0 = arith.constant 0 : i32
    return %c0_i32, %arg1 : i32, i32
  }
  func.func @transform_5(%arg0: i32, %arg1: i32) -> (i32, i32) {
    %c0_i32 = arith.constant 0 : i32
    return %arg0, %arg1 : i32, i32
  }
}

module attributes {stable_mosaic.version = 11 : i64} {
  func.func @_matmul_residual_kernel(%arg0: i32, %arg1: i32, %arg2: memref<128x128xf32, #tpu.memory_space<vmem>>, %arg3: memref<128x128xbf16, #tpu.memory_space<vmem>>, %arg4: memref<1x128xf32, #tpu.memory_space<vmem>>, %arg5: memref<128x128xf32, #tpu.memory_space<vmem>>, %arg6: memref<128x128xf32, #tpu.memory_space<vmem>>) attributes {dimension_semantics = [#tpu.dimension_semantics<parallel>, #tpu.dimension_semantics<parallel>], iteration_bounds = array<i64: 1, 1>, scalar_prefetch = 0 : i64, scratch_operands = 0 : i64, tpu.core_type = #tpu.core_type<tc>, window_params = [{transform_indices = @transform_0, window_bounds = array<i64: 128, 128>}, {transform_indices = @transform_1, window_bounds = array<i64: 128, 128>}, {transform_indices = @transform_2, window_bounds = array<i64: 1, 128>}, {transform_indices = @transform_3, window_bounds = array<i64: 128, 128>}, {transform_indices = @transform_4, window_bounds = array<i64: 128, 128>}]} {
    %c0 = arith.constant 0 : index
    %c0_0 = arith.constant 0 : index
    %0 = vector.load %arg2[%c0, %c0_0] : memref<128x128xf32, #tpu.memory_space<vmem>>, vector<128x128xf32>
    %1 = arith.truncf %0 : vector<128x128xf32> to vector<128x128xbf16>
    %c0_1 = arith.constant 0 : index
    %c0_2 = arith.constant 0 : index
    %2 = vector.load %arg3[%c0_1, %c0_2] : memref<128x128xbf16, #tpu.memory_space<vmem>>, vector<128x128xbf16>
    %cst = arith.constant dense<0.000000e+00> : vector<128x128xf32>
    %3 = tpu.matmul %1, %2, %cst {dimension_numbers = #tpu.dot_dimension_numbers<[1], [0], [0], [1], [0, 0, 1, 1], [], []>} : vector<128x128xbf16>, vector<128x128xbf16>, vector<128x128xf32> -> vector<128x128xf32>
    %c0_3 = arith.constant 0 : index
    %c0_4 = arith.constant 0 : index
    %4 = vector.load %arg4[%c0_3, %c0_4] : memref<1x128xf32, #tpu.memory_space<vmem>>, vector<1x128xf32>
    %5 = vector.broadcast %4 : vector<1x128xf32> to vector<128x128xf32>
    %6 = arith.addf %3, %5 : vector<128x128xf32>
    %c0_5 = arith.constant 0 : index
    %c0_6 = arith.constant 0 : index
    %7 = vector.load %arg5[%c0_5, %c0_6] : memref<128x128xf32, #tpu.memory_space<vmem>>, vector<128x128xf32>
    %8 = arith.addf %6, %7 : vector<128x128xf32>
    %c0_7 = arith.constant 0 : index
    %c0_8 = arith.constant 0 : index
    %9 = vector.load %arg6[%c0_7, %c0_8] : memref<128x128xf32, #tpu.memory_space<vmem>>, vector<128x128xf32>
    tpu.vector_store %arg6[%c0_7, %c0_8], %8 {strides = array<i32>} : memref<128x128xf32, #tpu.memory_space<vmem>>, vector<128x128xf32>,
    return
  }
  func.func @transform_0(%arg0: i32, %arg1: i32) -> (i32, i32) {
    %c0_i32 = arith.constant 0 : i32
    %c0_i32_0 = arith.constant 0 : i32
    return %arg0, %c0_i32 : i32, i32
  }
  func.func @transform_1(%arg0: i32, %arg1: i32) -> (i32, i32) {
    %c0_i32 = arith.constant 0 : i32
    %c0_i32_0 = arith.constant 0 : i32
    return %c0_i32, %arg1 : i32, i32
  }
  func.func @transform_2(%arg0: i32, %arg1: i32) -> (i32, i32) {
    %c0_i32 = arith.constant 0 : i32
    %c0_i32_0 = arith.constant 0 : i32
    return %c0_i32, %arg1 : i32, i32
  }
  func.func @transform_3(%arg0: i32, %arg1: i32) -> (i32, i32) {
    %c0_i32 = arith.constant 0 : i32
    return %arg0, %arg1 : i32, i32
  }
  func.func @transform_4(%arg0: i32, %arg1: i32) -> (i32, i32) {
    %c0_i32 = arith.constant 0 : i32
    return %arg0, %arg1 : i32, i32
  }
}

module attributes {stable_mosaic.version = 11 : i64} {
  func.func @_ln_ffn_residual_kernel(%arg0: i32, %arg1: i32, %arg2: memref<128x128xf32, #tpu.memory_space<vmem>>, %arg3: memref<1x128xf32, #tpu.memory_space<vmem>>, %arg4: memref<1x128xf32, #tpu.memory_space<vmem>>, %arg5: memref<128x512xbf16, #tpu.memory_space<vmem>>, %arg6: memref<1x512xf32, #tpu.memory_space<vmem>>, %arg7: memref<512x128xbf16, #tpu.memory_space<vmem>>, %arg8: memref<1x128xf32, #tpu.memory_space<vmem>>, %arg9: memref<128x128xf32, #tpu.memory_space<vmem>>, %arg10: memref<128x128xbf16, #tpu.memory_space<vmem>>) attributes {dimension_semantics = [#tpu.dimension_semantics<parallel>, #tpu.dimension_semantics<arbitrary>], iteration_bounds = array<i64: 1, 1>, scalar_prefetch = 0 : i64, scratch_operands = 1 : i64, tpu.core_type = #tpu.core_type<tc>, window_params = [{transform_indices = @transform_0, window_bounds = array<i64: 128, 128>}, {pipeline_mode = #tpu.pipeline_mode<synchronous>, transform_indices = @transform_1, window_bounds = array<i64: 1, 128>}, {pipeline_mode = #tpu.pipeline_mode<synchronous>, transform_indices = @transform_2, window_bounds = array<i64: 1, 128>}, {transform_indices = @transform_3, window_bounds = array<i64: 128, 512>}, {transform_indices = @transform_4, window_bounds = array<i64: 1, 512>}, {transform_indices = @transform_5, window_bounds = array<i64: 512, 128>}, {pipeline_mode = #tpu.pipeline_mode<synchronous>, transform_indices = @transform_6, window_bounds = array<i64: 1, 128>}, {transform_indices = @transform_7, window_bounds = array<i64: 128, 128>}]} {
    %c0_i32 = arith.constant 0 : i32
    %0 = arith.cmpi eq, %arg1, %c0_i32 : i32
    %1 = arith.extui %0 : i1 to i32
    %c0_i32_0 = arith.constant 0 : i32
    %2 = arith.cmpi ne, %1, %c0_i32_0 : i32
    scf.if %2 {
      %c0_28 = arith.constant 0 : index
      %c0_29 = arith.constant 0 : index
      %55 = vector.load %arg2[%c0_28, %c0_29] : memref<128x128xf32, #tpu.memory_space<vmem>>, vector<128x128xf32>
      %cst_30 = arith.constant dense<0.000000e+00> : vector<128xf32>
      %56 = vector.multi_reduction <add>, %55, %cst_30 [1] : vector<128x128xf32> to vector<128xf32>
      %57 = vector.shape_cast %56 : vector<128xf32> to vector<128x1xf32>
      %cst_31 = arith.constant 1.280000e+02 : f32
      %58 = vector.broadcast %cst_31 : f32 to vector<128x1xf32>
      %59 = arith.divf %57, %58 : vector<128x1xf32>
      %60 = vector.broadcast %59 : vector<128x1xf32> to vector<128x128xf32>
      %61 = arith.subf %55, %60 : vector<128x128xf32>
      %62 = arith.mulf %61, %61 : vector<128x128xf32>
      %cst_32 = arith.constant dense<0.000000e+00> : vector<128xf32>
      %63 = vector.multi_reduction <add>, %62, %cst_32 [1] : vector<128x128xf32> to vector<128xf32>
      %64 = vector.shape_cast %63 : vector<128xf32> to vector<128x1xf32>
      %cst_33 = arith.constant 1.280000e+02 : f32
      %65 = vector.broadcast %cst_33 : f32 to vector<128x1xf32>
      %66 = arith.divf %64, %65 : vector<128x1xf32>
      %cst_34 = arith.constant 9.99999997E-7 : f32
      %67 = vector.broadcast %cst_34 : f32 to vector<128x1xf32>
      %68 = arith.addf %66, %67 : vector<128x1xf32>
      %69 = math.rsqrt %68 : vector<128x1xf32>
      %70 = vector.broadcast %69 : vector<128x1xf32> to vector<128x128xf32>
      %71 = arith.mulf %61, %70 : vector<128x128xf32>
      %c0_35 = arith.constant 0 : index
      %c0_36 = arith.constant 0 : index
      %72 = vector.load %arg3[%c0_35, %c0_36] : memref<1x128xf32, #tpu.memory_space<vmem>>, vector<1x128xf32>
      %73 = vector.broadcast %72 : vector<1x128xf32> to vector<128x128xf32>
      %74 = arith.mulf %71, %73 : vector<128x128xf32>
      %c0_37 = arith.constant 0 : index
      %c0_38 = arith.constant 0 : index
      %75 = vector.load %arg4[%c0_37, %c0_38] : memref<1x128xf32, #tpu.memory_space<vmem>>, vector<1x128xf32>
      %76 = vector.broadcast %75 : vector<1x128xf32> to vector<128x128xf32>
      %77 = arith.addf %74, %76 : vector<128x128xf32>
      %78 = arith.truncf %77 : vector<128x128xf32> to vector<128x128xbf16>
      %c0_39 = arith.constant 0 : index
      %c0_40 = arith.constant 0 : index
      %79 = vector.load %arg10[%c0_39, %c0_40] : memref<128x128xbf16, #tpu.memory_space<vmem>>, vector<128x128xbf16>
      tpu.vector_store %arg10[%c0_39, %c0_40], %78 {strides = array<i32>} : memref<128x128xbf16, #tpu.memory_space<vmem>>, vector<128x128xbf16>,
      %c0_41 = arith.constant 0 : index
      %c0_42 = arith.constant 0 : index
      %80 = vector.load %arg8[%c0_41, %c0_42] : memref<1x128xf32, #tpu.memory_space<vmem>>, vector<1x128xf32>
      %81 = vector.broadcast %80 : vector<1x128xf32> to vector<128x128xf32>
      %82 = arith.addf %55, %81 : vector<128x128xf32>
      %c0_43 = arith.constant 0 : index
      %c0_44 = arith.constant 0 : index
      %83 = vector.load %arg9[%c0_43, %c0_44] : memref<128x128xf32, #tpu.memory_space<vmem>>, vector<128x128xf32>
      tpu.vector_store %arg9[%c0_43, %c0_44], %82 {strides = array<i32>} : memref<128x128xf32, #tpu.memory_space<vmem>>, vector<128x128xf32>,
    } else {
    }
    %c0 = arith.constant 0 : index
    %c0_1 = arith.constant 0 : index
    %3 = vector.load %arg10[%c0, %c0_1] : memref<128x128xbf16, #tpu.memory_space<vmem>>, vector<128x128xbf16>
    %c0_2 = arith.constant 0 : index
    %c0_3 = arith.constant 0 : index
    %4 = vector.load %arg5[%c0_2, %c0_3] : memref<128x512xbf16, #tpu.memory_space<vmem>>, vector<128x512xbf16>
    %cst = arith.constant dense<0.000000e+00> : vector<128x512xf32>
    %5 = tpu.matmul %3, %4, %cst {dimension_numbers = #tpu.dot_dimension_numbers<[1], [0], [0], [1], [0, 0, 1, 1], [], []>} : vector<128x128xbf16>, vector<128x512xbf16>, vector<128x512xf32> -> vector<128x512xf32>
    %c0_4 = arith.constant 0 : index
    %c0_5 = arith.constant 0 : index
    %6 = vector.load %arg6[%c0_4, %c0_5] : memref<1x512xf32, #tpu.memory_space<vmem>>, vector<1x512xf32>
    %7 = vector.broadcast %6 : vector<1x512xf32> to vector<128x512xf32>
    %8 = arith.addf %5, %7 : vector<128x512xf32>
    %cst_6 = arith.constant 0.707106769 : f32
    %9 = vector.broadcast %cst_6 : f32 to vector<128x512xf32>
    %10 = arith.mulf %8, %9 : vector<128x512xf32>
    %11 = math.absf %10 : vector<128x512xf32>
    %cst_7 = arith.constant 0.327591091 : f32
    %12 = vector.broadcast %cst_7 : f32 to vector<128x512xf32>
    %13 = arith.mulf %12, %11 : vector<128x512xf32>
    %cst_8 = arith.constant 1.000000e+00 : f32
    %14 = vector.broadcast %cst_8 : f32 to vector<128x512xf32>
    %15 = arith.addf %14, %13 : vector<128x512xf32>
    %cst_9 = arith.constant 1.000000e+00 : f32
    %16 = vector.broadcast %cst_9 : f32 to vector<128x512xf32>
    %17 = arith.divf %16, %15 : vector<128x512xf32>
    %cst_10 = arith.constant 1.06140542 : f32
    %18 = vector.broadcast %cst_10 : f32 to vector<128x512xf32>
    %19 = arith.mulf %17, %18 : vector<128x512xf32>
    %cst_11 = arith.constant -1.45315206 : f32
    %20 = vector.broadcast %cst_11 : f32 to vector<128x512xf32>
    %21 = arith.addf %20, %19 : vector<128x512xf32>
    %22 = arith.mulf %17, %21 : vector<128x512xf32>
    %cst_12 = arith.constant 1.42141378 : f32
    %23 = vector.broadcast %cst_12 : f32 to vector<128x512xf32>
    %24 = arith.addf %23, %22 : vector<128x512xf32>
    %25 = arith.mulf %17, %24 : vector<128x512xf32>
    %cst_13 = arith.constant -0.284496725 : f32
    %26 = vector.broadcast %cst_13 : f32 to vector<128x512xf32>
    %27 = arith.addf %26, %25 : vector<128x512xf32>
    %28 = arith.mulf %17, %27 : vector<128x512xf32>
    %cst_14 = arith.constant 0.254829586 : f32
    %29 = vector.broadcast %cst_14 : f32 to vector<128x512xf32>
    %30 = arith.addf %29, %28 : vector<128x512xf32>
    %31 = arith.mulf %17, %30 : vector<128x512xf32>
    %cst_15 = arith.constant 0.000000e+00 : f32
    %32 = vector.broadcast %cst_15 : f32 to vector<128x512xf32>
    %33 = arith.subf %32, %11 : vector<128x512xf32>
    %34 = arith.mulf %33, %11 : vector<128x512xf32>
    %35 = math.exp %34 : vector<128x512xf32>
    %36 = arith.mulf %31, %35 : vector<128x512xf32>
    %cst_16 = arith.constant 1.000000e+00 : f32
    %37 = vector.broadcast %cst_16 : f32 to vector<128x512xf32>
    %38 = arith.subf %37, %36 : vector<128x512xf32>
    %cst_17 = arith.constant 0.000000e+00 : f32
    %39 = vector.broadcast %cst_17 : f32 to vector<128x512xf32>
    %40 = arith.cmpf oge, %10, %39 : vector<128x512xf32>
    %cst_18 = arith.constant 0.000000e+00 : f32
    %41 = vector.broadcast %cst_18 : f32 to vector<128x512xf32>
    %42 = arith.subf %41, %38 : vector<128x512xf32>
    %43 = arith.select %40, %38, %42 : vector<128x512xi1>, vector<128x512xf32>
    %cst_19 = arith.constant 5.000000e-01 : f32
    %44 = vector.broadcast %cst_19 : f32 to vector<128x512xf32>
    %45 = arith.mulf %44, %8 : vector<128x512xf32>
    %cst_20 = arith.constant 1.000000e+00 : f32
    %46 = vector.broadcast %cst_20 : f32 to vector<128x512xf32>
    %47 = arith.addf %46, %43 : vector<128x512xf32>
    %48 = arith.mulf %45, %47 : vector<128x512xf32>
    %c0_21 = arith.constant 0 : index
    %c0_22 = arith.constant 0 : index
    %49 = vector.load %arg9[%c0_21, %c0_22] : memref<128x128xf32, #tpu.memory_space<vmem>>, vector<128x128xf32>
    %50 = arith.truncf %48 : vector<128x512xf32> to vector<128x512xbf16>
    %c0_23 = arith.constant 0 : index
    %c0_24 = arith.constant 0 : index
    %51 = vector.load %arg7[%c0_23, %c0_24] : memref<512x128xbf16, #tpu.memory_space<vmem>>, vector<512x128xbf16>
    %cst_25 = arith.constant dense<0.000000e+00> : vector<128x128xf32>
    %52 = tpu.matmul %50, %51, %cst_25 {dimension_numbers = #tpu.dot_dimension_numbers<[1], [0], [0], [1], [0, 0, 1, 1], [], []>} : vector<128x512xbf16>, vector<512x128xbf16>, vector<128x128xf32> -> vector<128x128xf32>
    %53 = arith.addf %49, %52 : vector<128x128xf32>
    %c0_26 = arith.constant 0 : index
    %c0_27 = arith.constant 0 : index
    %54 = vector.load %arg9[%c0_26, %c0_27] : memref<128x128xf32, #tpu.memory_space<vmem>>, vector<128x128xf32>
    tpu.vector_store %arg9[%c0_26, %c0_27], %53 {strides = array<i32>} : memref<128x128xf32, #tpu.memory_space<vmem>>, vector<128x128xf32>,
    return
  }
  func.func @transform_0(%arg0: i32, %arg1: i32) -> (i32, i32) {
    %c0_i32 = arith.constant 0 : i32
    %c0_i32_0 = arith.constant 0 : i32
    return %arg0, %c0_i32 : i32, i32
  }
  func.func @transform_1(%arg0: i32, %arg1: i32) -> (i32, i32) {
    %c0_i32 = arith.constant 0 : i32
    %c0_i32_0 = arith.constant 0 : i32
    %c0_i32_1 = arith.constant 0 : i32
    return %c0_i32, %c0_i32_0 : i32, i32
  }
  func.func @transform_2(%arg0: i32, %arg1: i32) -> (i32, i32) {
    %c0_i32 = arith.constant 0 : i32
    %c0_i32_0 = arith.constant 0 : i32
    %c0_i32_1 = arith.constant 0 : i32
    return %c0_i32, %c0_i32_0 : i32, i32
  }
  func.func @transform_3(%arg0: i32, %arg1: i32) -> (i32, i32) {
    %c0_i32 = arith.constant 0 : i32
    %c0_i32_0 = arith.constant 0 : i32
    return %c0_i32, %arg1 : i32, i32
  }
  func.func @transform_4(%arg0: i32, %arg1: i32) -> (i32, i32) {
    %c0_i32 = arith.constant 0 : i32
    %c0_i32_0 = arith.constant 0 : i32
    return %c0_i32, %arg1 : i32, i32
  }
  func.func @transform_5(%arg0: i32, %arg1: i32) -> (i32, i32) {
    %c0_i32 = arith.constant 0 : i32
    %c0_i32_0 = arith.constant 0 : i32
    return %arg1, %c0_i32 : i32, i32
  }
  func.func @transform_6(%arg0: i32, %arg1: i32) -> (i32, i32) {
    %c0_i32 = arith.constant 0 : i32
    %c0_i32_0 = arith.constant 0 : i32
    %c0_i32_1 = arith.constant 0 : i32
    return %c0_i32, %c0_i32_0 : i32, i32
  }
  func.func @transform_7(%arg0: i32, %arg1: i32) -> (i32, i32) {
    %c0_i32 = arith.constant 0 : i32
    %c0_i32_0 = arith.constant 0 : i32
    return %arg0, %c0_i32 : i32, i32
  }
}

module attributes {stable_mosaic.version = 11 : i64} {
  func.func @_attn_kernel(%arg0: i32, %arg1: i32, %arg2: memref<1x64x128xf32, #tpu.memory_space<vmem>>, %arg3: memref<1x64x128xf32, #tpu.memory_space<vmem>>, %arg4: memref<1x64x128xf32, #tpu.memory_space<vmem>>, %arg5: memref<1x64x128xf32, #tpu.memory_space<vmem>>) attributes {dimension_semantics = [#tpu.dimension_semantics<parallel>, #tpu.dimension_semantics<parallel>], iteration_bounds = array<i64: 2, 1>, scalar_prefetch = 0 : i64, scratch_operands = 0 : i64, tpu.core_type = #tpu.core_type<tc>, window_params = [{transform_indices = @transform_0, window_bounds = array<i64: 1, 64, 128>}, {transform_indices = @transform_1, window_bounds = array<i64: 1, 64, 128>}, {transform_indices = @transform_2, window_bounds = array<i64: 1, 64, 128>}, {transform_indices = @transform_3, window_bounds = array<i64: 1, 64, 128>}]} {
    %c0 = arith.constant 0 : index
    %c0_0 = arith.constant 0 : index
    %c0_1 = arith.constant 0 : index
    %0 = vector.load %arg2[%c0, %c0_0, %c0_1] : memref<1x64x128xf32, #tpu.memory_space<vmem>>, vector<1x64x32xf32>
    %1 = vector.shape_cast %0 : vector<1x64x32xf32> to vector<64x32xf32>
    %2 = arith.truncf %1 : vector<64x32xf32> to vector<64x32xbf16>
    %c0_2 = arith.constant 0 : index
    %c0_3 = arith.constant 0 : index
    %c0_4 = arith.constant 0 : index
    %3 = vector.load %arg3[%c0_2, %c0_3, %c0_4] : memref<1x64x128xf32, #tpu.memory_space<vmem>>, vector<1x64x32xf32>
    %4 = vector.shape_cast %3 : vector<1x64x32xf32> to vector<64x32xf32>
    %5 = arith.truncf %4 : vector<64x32xf32> to vector<64x32xbf16>
    %c0_5 = arith.constant 0 : index
    %c0_6 = arith.constant 0 : index
    %c0_7 = arith.constant 0 : index
    %6 = vector.load %arg4[%c0_5, %c0_6, %c0_7] : memref<1x64x128xf32, #tpu.memory_space<vmem>>, vector<1x64x32xf32>
    %7 = vector.shape_cast %6 : vector<1x64x32xf32> to vector<64x32xf32>
    %8 = arith.truncf %7 : vector<64x32xf32> to vector<64x32xbf16>
    %cst = arith.constant dense<0.000000e+00> : vector<64x64xf32>
    %9 = tpu.matmul %2, %5, %cst {dimension_numbers = #tpu.dot_dimension_numbers<[1], [1], [0], [0], [0, 0, 1, 0], [], []>} : vector<64x32xbf16>, vector<64x32xbf16>, vector<64x64xf32> -> vector<64x64xf32>
    %cst_8 = arith.constant 0.176776692 : f32
    %10 = vector.broadcast %cst_8 : f32 to vector<64x64xf32>
    %11 = arith.mulf %9, %10 : vector<64x64xf32>
    %cst_9 = arith.constant dense<0xFF800000> : vector<64xf32>
    %12 = vector.multi_reduction <maximumf>, %11, %cst_9 [1] : vector<64x64xf32> to vector<64xf32>
    %13 = vector.shape_cast %12 : vector<64xf32> to vector<64x1xf32>
    %14 = vector.broadcast %13 : vector<64x1xf32> to vector<64x64xf32>
    %15 = arith.subf %11, %14 : vector<64x64xf32>
    %16 = math.exp %15 : vector<64x64xf32>
    %cst_10 = arith.constant dense<0.000000e+00> : vector<64xf32>
    %17 = vector.multi_reduction <add>, %16, %cst_10 [1] : vector<64x64xf32> to vector<64xf32>
    %18 = vector.shape_cast %17 : vector<64xf32> to vector<64x1xf32>
    %19 = tpu.reciprocal %18 {approx = true} : vector<64x1xf32> -> vector<64x1xf32>
    %20 = vector.broadcast %19 : vector<64x1xf32> to vector<64x64xf32>
    %21 = arith.mulf %16, %20 : vector<64x64xf32>
    %22 = arith.truncf %21 : vector<64x64xf32> to vector<64x64xbf16>
    %cst_11 = arith.constant dense<0.000000e+00> : vector<64x32xf32>
    %23 = tpu.matmul %22, %8, %cst_11 {dimension_numbers = #tpu.dot_dimension_numbers<[1], [0], [0], [1], [0, 0, 1, 1], [], []>} : vector<64x64xbf16>, vector<64x32xbf16>, vector<64x32xf32> -> vector<64x32xf32>
    %c0_12 = arith.constant 0 : index
    %c0_13 = arith.constant 0 : index
    %c0_14 = arith.constant 0 : index
    %24 = vector.load %arg5[%c0_12, %c0_13, %c0_14] : memref<1x64x128xf32, #tpu.memory_space<vmem>>, vector<1x64x32xf32>
    %25 = vector.shape_cast %24 : vector<1x64x32xf32> to vector<64x32xf32>
    %26 = vector.shape_cast %23 : vector<64x32xf32> to vector<1x64x32xf32>
    tpu.vector_store %arg5[%c0_12, %c0_13, %c0_14], %26 {strides = array<i32>} : memref<1x64x128xf32, #tpu.memory_space<vmem>>, vector<1x64x32xf32>,
    %c0_15 = arith.constant 0 : index
    %c0_16 = arith.constant 0 : index
    %c32 = arith.constant 32 : index
    %27 = vector.load %arg2[%c0_15, %c0_16, %c32] : memref<1x64x128xf32, #tpu.memory_space<vmem>>, vector<1x64x32xf32>
    %28 = vector.shape_cast %27 : vector<1x64x32xf32> to vector<64x32xf32>
    %29 = arith.truncf %28 : vector<64x32xf32> to vector<64x32xbf16>
    %c0_17 = arith.constant 0 : index
    %c0_18 = arith.constant 0 : index
    %c32_19 = arith.constant 32 : index
    %30 = vector.load %arg3[%c0_17, %c0_18, %c32_19] : memref<1x64x128xf32, #tpu.memory_space<vmem>>, vector<1x64x32xf32>
    %31 = vector.shape_cast %30 : vector<1x64x32xf32> to vector<64x32xf32>
    %32 = arith.truncf %31 : vector<64x32xf32> to vector<64x32xbf16>
    %c0_20 = arith.constant 0 : index
    %c0_21 = arith.constant 0 : index
    %c32_22 = arith.constant 32 : index
    %33 = vector.load %arg4[%c0_20, %c0_21, %c32_22] : memref<1x64x128xf32, #tpu.memory_space<vmem>>, vector<1x64x32xf32>
    %34 = vector.shape_cast %33 : vector<1x64x32xf32> to vector<64x32xf32>
    %35 = arith.truncf %34 : vector<64x32xf32> to vector<64x32xbf16>
    %cst_23 = arith.constant dense<0.000000e+00> : vector<64x64xf32>
    %36 = tpu.matmul %29, %32, %cst_23 {dimension_numbers = #tpu.dot_dimension_numbers<[1], [1], [0], [0], [0, 0, 1, 0], [], []>} : vector<64x32xbf16>, vector<64x32xbf16>, vector<64x64xf32> -> vector<64x64xf32>
    %cst_24 = arith.constant 0.176776692 : f32
    %37 = vector.broadcast %cst_24 : f32 to vector<64x64xf32>
    %38 = arith.mulf %36, %37 : vector<64x64xf32>
    %cst_25 = arith.constant dense<0xFF800000> : vector<64xf32>
    %39 = vector.multi_reduction <maximumf>, %38, %cst_25 [1] : vector<64x64xf32> to vector<64xf32>
    %40 = vector.shape_cast %39 : vector<64xf32> to vector<64x1xf32>
    %41 = vector.broadcast %40 : vector<64x1xf32> to vector<64x64xf32>
    %42 = arith.subf %38, %41 : vector<64x64xf32>
    %43 = math.exp %42 : vector<64x64xf32>
    %cst_26 = arith.constant dense<0.000000e+00> : vector<64xf32>
    %44 = vector.multi_reduction <add>, %43, %cst_26 [1] : vector<64x64xf32> to vector<64xf32>
    %45 = vector.shape_cast %44 : vector<64xf32> to vector<64x1xf32>
    %46 = tpu.reciprocal %45 {approx = true} : vector<64x1xf32> -> vector<64x1xf32>
    %47 = vector.broadcast %46 : vector<64x1xf32> to vector<64x64xf32>
    %48 = arith.mulf %43, %47 : vector<64x64xf32>
    %49 = arith.truncf %48 : vector<64x64xf32> to vector<64x64xbf16>
    %cst_27 = arith.constant dense<0.000000e+00> : vector<64x32xf32>
    %50 = tpu.matmul %49, %35, %cst_27 {dimension_numbers = #tpu.dot_dimension_numbers<[1], [0], [0], [1], [0, 0, 1, 1], [], []>} : vector<64x64xbf16>, vector<64x32xbf16>, vector<64x32xf32> -> vector<64x32xf32>
    %c0_28 = arith.constant 0 : index
    %c0_29 = arith.constant 0 : index
    %c32_30 = arith.constant 32 : index
    %51 = vector.load %arg5[%c0_28, %c0_29, %c32_30] : memref<1x64x128xf32, #tpu.memory_space<vmem>>, vector<1x64x32xf32>
    %52 = vector.shape_cast %51 : vector<1x64x32xf32> to vector<64x32xf32>
    %53 = vector.shape_cast %50 : vector<64x32xf32> to vector<1x64x32xf32>
    tpu.vector_store %arg5[%c0_28, %c0_29, %c32_30], %53 {strides = array<i32>} : memref<1x64x128xf32, #tpu.memory_space<vmem>>, vector<1x64x32xf32>,
    %c0_31 = arith.constant 0 : index
    %c0_32 = arith.constant 0 : index
    %c64 = arith.constant 64 : index
    %54 = vector.load %arg2[%c0_31, %c0_32, %c64] : memref<1x64x128xf32, #tpu.memory_space<vmem>>, vector<1x64x32xf32>
    %55 = vector.shape_cast %54 : vector<1x64x32xf32> to vector<64x32xf32>
    %56 = arith.truncf %55 : vector<64x32xf32> to vector<64x32xbf16>
    %c0_33 = arith.constant 0 : index
    %c0_34 = arith.constant 0 : index
    %c64_35 = arith.constant 64 : index
    %57 = vector.load %arg3[%c0_33, %c0_34, %c64_35] : memref<1x64x128xf32, #tpu.memory_space<vmem>>, vector<1x64x32xf32>
    %58 = vector.shape_cast %57 : vector<1x64x32xf32> to vector<64x32xf32>
    %59 = arith.truncf %58 : vector<64x32xf32> to vector<64x32xbf16>
    %c0_36 = arith.constant 0 : index
    %c0_37 = arith.constant 0 : index
    %c64_38 = arith.constant 64 : index
    %60 = vector.load %arg4[%c0_36, %c0_37, %c64_38] : memref<1x64x128xf32, #tpu.memory_space<vmem>>, vector<1x64x32xf32>
    %61 = vector.shape_cast %60 : vector<1x64x32xf32> to vector<64x32xf32>
    %62 = arith.truncf %61 : vector<64x32xf32> to vector<64x32xbf16>
    %cst_39 = arith.constant dense<0.000000e+00> : vector<64x64xf32>
    %63 = tpu.matmul %56, %59, %cst_39 {dimension_numbers = #tpu.dot_dimension_numbers<[1], [1], [0], [0], [0, 0, 1, 0], [], []>} : vector<64x32xbf16>, vector<64x32xbf16>, vector<64x64xf32> -> vector<64x64xf32>
    %cst_40 = arith.constant 0.176776692 : f32
    %64 = vector.broadcast %cst_40 : f32 to vector<64x64xf32>
    %65 = arith.mulf %63, %64 : vector<64x64xf32>
    %cst_41 = arith.constant dense<0xFF800000> : vector<64xf32>
    %66 = vector.multi_reduction <maximumf>, %65, %cst_41 [1] : vector<64x64xf32> to vector<64xf32>
    %67 = vector.shape_cast %66 : vector<64xf32> to vector<64x1xf32>
    %68 = vector.broadcast %67 : vector<64x1xf32> to vector<64x64xf32>
    %69 = arith.subf %65, %68 : vector<64x64xf32>
    %70 = math.exp %69 : vector<64x64xf32>
    %cst_42 = arith.constant dense<0.000000e+00> : vector<64xf32>
    %71 = vector.multi_reduction <add>, %70, %cst_42 [1] : vector<64x64xf32> to vector<64xf32>
    %72 = vector.shape_cast %71 : vector<64xf32> to vector<64x1xf32>
    %73 = tpu.reciprocal %72 {approx = true} : vector<64x1xf32> -> vector<64x1xf32>
    %74 = vector.broadcast %73 : vector<64x1xf32> to vector<64x64xf32>
    %75 = arith.mulf %70, %74 : vector<64x64xf32>
    %76 = arith.truncf %75 : vector<64x64xf32> to vector<64x64xbf16>
    %cst_43 = arith.constant dense<0.000000e+00> : vector<64x32xf32>
    %77 = tpu.matmul %76, %62, %cst_43 {dimension_numbers = #tpu.dot_dimension_numbers<[1], [0], [0], [1], [0, 0, 1, 1], [], []>} : vector<64x64xbf16>, vector<64x32xbf16>, vector<64x32xf32> -> vector<64x32xf32>
    %c0_44 = arith.constant 0 : index
    %c0_45 = arith.constant 0 : index
    %c64_46 = arith.constant 64 : index
    %78 = vector.load %arg5[%c0_44, %c0_45, %c64_46] : memref<1x64x128xf32, #tpu.memory_space<vmem>>, vector<1x64x32xf32>
    %79 = vector.shape_cast %78 : vector<1x64x32xf32> to vector<64x32xf32>
    %80 = vector.shape_cast %77 : vector<64x32xf32> to vector<1x64x32xf32>
    tpu.vector_store %arg5[%c0_44, %c0_45, %c64_46], %80 {strides = array<i32>} : memref<1x64x128xf32, #tpu.memory_space<vmem>>, vector<1x64x32xf32>,
    %c0_47 = arith.constant 0 : index
    %c0_48 = arith.constant 0 : index
    %c96 = arith.constant 96 : index
    %81 = vector.load %arg2[%c0_47, %c0_48, %c96] : memref<1x64x128xf32, #tpu.memory_space<vmem>>, vector<1x64x32xf32>
    %82 = vector.shape_cast %81 : vector<1x64x32xf32> to vector<64x32xf32>
    %83 = arith.truncf %82 : vector<64x32xf32> to vector<64x32xbf16>
    %c0_49 = arith.constant 0 : index
    %c0_50 = arith.constant 0 : index
    %c96_51 = arith.constant 96 : index
    %84 = vector.load %arg3[%c0_49, %c0_50, %c96_51] : memref<1x64x128xf32, #tpu.memory_space<vmem>>, vector<1x64x32xf32>
    %85 = vector.shape_cast %84 : vector<1x64x32xf32> to vector<64x32xf32>
    %86 = arith.truncf %85 : vector<64x32xf32> to vector<64x32xbf16>
    %c0_52 = arith.constant 0 : index
    %c0_53 = arith.constant 0 : index
    %c96_54 = arith.constant 96 : index
    %87 = vector.load %arg4[%c0_52, %c0_53, %c96_54] : memref<1x64x128xf32, #tpu.memory_space<vmem>>, vector<1x64x32xf32>
    %88 = vector.shape_cast %87 : vector<1x64x32xf32> to vector<64x32xf32>
    %89 = arith.truncf %88 : vector<64x32xf32> to vector<64x32xbf16>
    %cst_55 = arith.constant dense<0.000000e+00> : vector<64x64xf32>
    %90 = tpu.matmul %83, %86, %cst_55 {dimension_numbers = #tpu.dot_dimension_numbers<[1], [1], [0], [0], [0, 0, 1, 0], [], []>} : vector<64x32xbf16>, vector<64x32xbf16>, vector<64x64xf32> -> vector<64x64xf32>
    %cst_56 = arith.constant 0.176776692 : f32
    %91 = vector.broadcast %cst_56 : f32 to vector<64x64xf32>
    %92 = arith.mulf %90, %91 : vector<64x64xf32>
    %cst_57 = arith.constant dense<0xFF800000> : vector<64xf32>
    %93 = vector.multi_reduction <maximumf>, %92, %cst_57 [1] : vector<64x64xf32> to vector<64xf32>
    %94 = vector.shape_cast %93 : vector<64xf32> to vector<64x1xf32>
    %95 = vector.broadcast %94 : vector<64x1xf32> to vector<64x64xf32>
    %96 = arith.subf %92, %95 : vector<64x64xf32>
    %97 = math.exp %96 : vector<64x64xf32>
    %cst_58 = arith.constant dense<0.000000e+00> : vector<64xf32>
    %98 = vector.multi_reduction <add>, %97, %cst_58 [1] : vector<64x64xf32> to vector<64xf32>
    %99 = vector.shape_cast %98 : vector<64xf32> to vector<64x1xf32>
    %100 = tpu.reciprocal %99 {approx = true} : vector<64x1xf32> -> vector<64x1xf32>
    %101 = vector.broadcast %100 : vector<64x1xf32> to vector<64x64xf32>
    %102 = arith.mulf %97, %101 : vector<64x64xf32>
    %103 = arith.truncf %102 : vector<64x64xf32> to vector<64x64xbf16>
    %cst_59 = arith.constant dense<0.000000e+00> : vector<64x32xf32>
    %104 = tpu.matmul %103, %89, %cst_59 {dimension_numbers = #tpu.dot_dimension_numbers<[1], [0], [0], [1], [0, 0, 1, 1], [], []>} : vector<64x64xbf16>, vector<64x32xbf16>, vector<64x32xf32> -> vector<64x32xf32>
    %c0_60 = arith.constant 0 : index
    %c0_61 = arith.constant 0 : index
    %c96_62 = arith.constant 96 : index
    %105 = vector.load %arg5[%c0_60, %c0_61, %c96_62] : memref<1x64x128xf32, #tpu.memory_space<vmem>>, vector<1x64x32xf32>
    %106 = vector.shape_cast %105 : vector<1x64x32xf32> to vector<64x32xf32>
    %107 = vector.shape_cast %104 : vector<64x32xf32> to vector<1x64x32xf32>
    tpu.vector_store %arg5[%c0_60, %c0_61, %c96_62], %107 {strides = array<i32>} : memref<1x64x128xf32, #tpu.memory_space<vmem>>, vector<1x64x32xf32>,
    return
  }
  func.func @transform_0(%arg0: i32, %arg1: i32) -> (i32, i32, i32) {
    %c0_i32 = arith.constant 0 : i32
    %c0_i32_0 = arith.constant 0 : i32
    return %arg0, %c0_i32, %arg1 : i32, i32, i32
  }
  func.func @transform_1(%arg0: i32, %arg1: i32) -> (i32, i32, i32) {
    %c1_i32 = arith.constant 1 : i32
    %0 = arith.addi %c1_i32, %arg1 : i32
    %c0_i32 = arith.constant 0 : i32
    %c0_i32_0 = arith.constant 0 : i32
    return %arg0, %c0_i32, %0 : i32, i32, i32
  }
  func.func @transform_2(%arg0: i32, %arg1: i32) -> (i32, i32, i32) {
    %c2_i32 = arith.constant 2 : i32
    %0 = arith.addi %c2_i32, %arg1 : i32
    %c0_i32 = arith.constant 0 : i32
    %c0_i32_0 = arith.constant 0 : i32
    return %arg0, %c0_i32, %0 : i32, i32, i32
  }
  func.func @transform_3(%arg0: i32, %arg1: i32) -> (i32, i32, i32) {
    %c0_i32 = arith.constant 0 : i32
    %c0_i32_0 = arith.constant 0 : i32
    return %arg0, %c0_i32, %arg1 : i32, i32, i32
  }
}

module attributes {stable_mosaic.version = 11 : i64} {
  func.func @_ln_matmul_kernel(%arg0: i32, %arg1: i32, %arg2: memref<128x128xf32, #tpu.memory_space<vmem>>, %arg3: memref<1x128xf32, #tpu.memory_space<vmem>>, %arg4: memref<1x128xf32, #tpu.memory_space<vmem>>, %arg5: memref<128x384xbf16, #tpu.memory_space<vmem>>, %arg6: memref<1x384xf32, #tpu.memory_space<vmem>>, %arg7: memref<128x384xf32, #tpu.memory_space<vmem>>, %arg8: memref<128x128xbf16, #tpu.memory_space<vmem>>) attributes {dimension_semantics = [#tpu.dimension_semantics<parallel>, #tpu.dimension_semantics<arbitrary>], iteration_bounds = array<i64: 1, 1>, scalar_prefetch = 0 : i64, scratch_operands = 1 : i64, tpu.core_type = #tpu.core_type<tc>, window_params = [{transform_indices = @transform_0, window_bounds = array<i64: 128, 128>}, {pipeline_mode = #tpu.pipeline_mode<synchronous>, transform_indices = @transform_1, window_bounds = array<i64: 1, 128>}, {pipeline_mode = #tpu.pipeline_mode<synchronous>, transform_indices = @transform_2, window_bounds = array<i64: 1, 128>}, {transform_indices = @transform_3, window_bounds = array<i64: 128, 384>}, {transform_indices = @transform_4, window_bounds = array<i64: 1, 384>}, {transform_indices = @transform_5, window_bounds = array<i64: 128, 384>}]} {
    %c0_i32 = arith.constant 0 : i32
    %0 = arith.cmpi eq, %arg1, %c0_i32 : i32
    %1 = arith.extui %0 : i1 to i32
    %c0_i32_0 = arith.constant 0 : i32
    %2 = arith.cmpi ne, %1, %c0_i32_0 : i32
    scf.if %2 {
      %c0_8 = arith.constant 0 : index
      %c0_9 = arith.constant 0 : index
      %10 = vector.load %arg2[%c0_8, %c0_9] : memref<128x128xf32, #tpu.memory_space<vmem>>, vector<128x128xf32>
      %cst_10 = arith.constant dense<0.000000e+00> : vector<128xf32>
      %11 = vector.multi_reduction <add>, %10, %cst_10 [1] : vector<128x128xf32> to vector<128xf32>
      %12 = vector.shape_cast %11 : vector<128xf32> to vector<128x1xf32>
      %cst_11 = arith.constant 1.280000e+02 : f32
      %13 = vector.broadcast %cst_11 : f32 to vector<128x1xf32>
      %14 = arith.divf %12, %13 : vector<128x1xf32>
      %15 = vector.broadcast %14 : vector<128x1xf32> to vector<128x128xf32>
      %16 = arith.subf %10, %15 : vector<128x128xf32>
      %17 = arith.mulf %16, %16 : vector<128x128xf32>
      %cst_12 = arith.constant dense<0.000000e+00> : vector<128xf32>
      %18 = vector.multi_reduction <add>, %17, %cst_12 [1] : vector<128x128xf32> to vector<128xf32>
      %19 = vector.shape_cast %18 : vector<128xf32> to vector<128x1xf32>
      %cst_13 = arith.constant 1.280000e+02 : f32
      %20 = vector.broadcast %cst_13 : f32 to vector<128x1xf32>
      %21 = arith.divf %19, %20 : vector<128x1xf32>
      %cst_14 = arith.constant 9.99999997E-7 : f32
      %22 = vector.broadcast %cst_14 : f32 to vector<128x1xf32>
      %23 = arith.addf %21, %22 : vector<128x1xf32>
      %24 = math.rsqrt %23 : vector<128x1xf32>
      %25 = vector.broadcast %24 : vector<128x1xf32> to vector<128x128xf32>
      %26 = arith.mulf %16, %25 : vector<128x128xf32>
      %c0_15 = arith.constant 0 : index
      %c0_16 = arith.constant 0 : index
      %27 = vector.load %arg3[%c0_15, %c0_16] : memref<1x128xf32, #tpu.memory_space<vmem>>, vector<1x128xf32>
      %28 = vector.broadcast %27 : vector<1x128xf32> to vector<128x128xf32>
      %29 = arith.mulf %26, %28 : vector<128x128xf32>
      %c0_17 = arith.constant 0 : index
      %c0_18 = arith.constant 0 : index
      %30 = vector.load %arg4[%c0_17, %c0_18] : memref<1x128xf32, #tpu.memory_space<vmem>>, vector<1x128xf32>
      %31 = vector.broadcast %30 : vector<1x128xf32> to vector<128x128xf32>
      %32 = arith.addf %29, %31 : vector<128x128xf32>
      %33 = arith.truncf %32 : vector<128x128xf32> to vector<128x128xbf16>
      %c0_19 = arith.constant 0 : index
      %c0_20 = arith.constant 0 : index
      %34 = vector.load %arg8[%c0_19, %c0_20] : memref<128x128xbf16, #tpu.memory_space<vmem>>, vector<128x128xbf16>
      tpu.vector_store %arg8[%c0_19, %c0_20], %33 {strides = array<i32>} : memref<128x128xbf16, #tpu.memory_space<vmem>>, vector<128x128xbf16>,
    } else {
    }
    %c0 = arith.constant 0 : index
    %c0_1 = arith.constant 0 : index
    %3 = vector.load %arg8[%c0, %c0_1] : memref<128x128xbf16, #tpu.memory_space<vmem>>, vector<128x128xbf16>
    %c0_2 = arith.constant 0 : index
    %c0_3 = arith.constant 0 : index
    %4 = vector.load %arg5[%c0_2, %c0_3] : memref<128x384xbf16, #tpu.memory_space<vmem>>, vector<128x384xbf16>
    %cst = arith.constant dense<0.000000e+00> : vector<128x384xf32>
    %5 = tpu.matmul %3, %4, %cst {dimension_numbers = #tpu.dot_dimension_numbers<[1], [0], [0], [1], [0, 0, 1, 1], [], []>} : vector<128x128xbf16>, vector<128x384xbf16>, vector<128x384xf32> -> vector<128x384xf32>
    %c0_4 = arith.constant 0 : index
    %c0_5 = arith.constant 0 : index
    %6 = vector.load %arg6[%c0_4, %c0_5] : memref<1x384xf32, #tpu.memory_space<vmem>>, vector<1x384xf32>
    %7 = vector.broadcast %6 : vector<1x384xf32> to vector<128x384xf32>
    %8 = arith.addf %5, %7 : vector<128x384xf32>
    %c0_6 = arith.constant 0 : index
    %c0_7 = arith.constant 0 : index
    %9 = vector.load %arg7[%c0_6, %c0_7] : memref<128x384xf32, #tpu.memory_space<vmem>>, vector<128x384xf32>
    tpu.vector_store %arg7[%c0_6, %c0_7], %8 {strides = array<i32>} : memref<128x384xf32, #tpu.memory_space<vmem>>, vector<128x384xf32>,
    return
  }
  func.func @transform_0(%arg0: i32, %arg1: i32) -> (i32, i32) {
    %c0_i32 = arith.constant 0 : i32
    %c0_i32_0 = arith.constant 0 : i32
    return %arg0, %c0_i32 : i32, i32
  }
  func.func @transform_1(%arg0: i32, %arg1: i32) -> (i32, i32) {
    %c0_i32 = arith.constant 0 : i32
    %c0_i32_0 = arith.constant 0 : i32
    %c0_i32_1 = arith.constant 0 : i32
    return %c0_i32, %c0_i32_0 : i32, i32
  }
  func.func @transform_2(%arg0: i32, %arg1: i32) -> (i32, i32) {
    %c0_i32 = arith.constant 0 : i32
    %c0_i32_0 = arith.constant 0 : i32
    %c0_i32_1 = arith.constant 0 : i32
    return %c0_i32, %c0_i32_0 : i32, i32
  }
  func.func @transform_3(%arg0: i32, %arg1: i32) -> (i32, i32) {
    %c0_i32 = arith.constant 0 : i32
    %c0_i32_0 = arith.constant 0 : i32
    return %c0_i32, %arg1 : i32, i32
  }
  func.func @transform_4(%arg0: i32, %arg1: i32) -> (i32, i32) {
    %c0_i32 = arith.constant 0 : i32
    %c0_i32_0 = arith.constant 0 : i32
    return %c0_i32, %arg1 : i32, i32
  }
  func.func @transform_5(%arg0: i32, %arg1: i32) -> (i32, i32) {
    %c0_i32 = arith.constant 0 : i32
    return %arg0, %arg1 : i32, i32
  }
}

module attributes {stable_mosaic.version = 11 : i64} {
  func.func @_layernorm_kernel(%arg0: i32, %arg1: memref<128x128xf32, #tpu.memory_space<vmem>>, %arg2: memref<1x128xf32, #tpu.memory_space<vmem>>, %arg3: memref<1x128xf32, #tpu.memory_space<vmem>>, %arg4: memref<128x128xf32, #tpu.memory_space<vmem>>) attributes {dimension_semantics = [#tpu.dimension_semantics<parallel>], iteration_bounds = array<i64: 1>, scalar_prefetch = 0 : i64, scratch_operands = 0 : i64, tpu.core_type = #tpu.core_type<tc>, window_params = [{transform_indices = @transform_0, window_bounds = array<i64: 128, 128>}, {pipeline_mode = #tpu.pipeline_mode<synchronous>, transform_indices = @transform_1, window_bounds = array<i64: 1, 128>}, {pipeline_mode = #tpu.pipeline_mode<synchronous>, transform_indices = @transform_2, window_bounds = array<i64: 1, 128>}, {transform_indices = @transform_3, window_bounds = array<i64: 128, 128>}]} {
    %c0 = arith.constant 0 : index
    %c0_0 = arith.constant 0 : index
    %0 = vector.load %arg1[%c0, %c0_0] : memref<128x128xf32, #tpu.memory_space<vmem>>, vector<128x128xf32>
    %cst = arith.constant dense<0.000000e+00> : vector<128xf32>
    %1 = vector.multi_reduction <add>, %0, %cst [1] : vector<128x128xf32> to vector<128xf32>
    %2 = vector.shape_cast %1 : vector<128xf32> to vector<128x1xf32>
    %cst_1 = arith.constant 1.280000e+02 : f32
    %3 = vector.broadcast %cst_1 : f32 to vector<128x1xf32>
    %4 = arith.divf %2, %3 : vector<128x1xf32>
    %5 = vector.broadcast %4 : vector<128x1xf32> to vector<128x128xf32>
    %6 = arith.subf %0, %5 : vector<128x128xf32>
    %7 = arith.mulf %6, %6 : vector<128x128xf32>
    %cst_2 = arith.constant dense<0.000000e+00> : vector<128xf32>
    %8 = vector.multi_reduction <add>, %7, %cst_2 [1] : vector<128x128xf32> to vector<128xf32>
    %9 = vector.shape_cast %8 : vector<128xf32> to vector<128x1xf32>
    %cst_3 = arith.constant 1.280000e+02 : f32
    %10 = vector.broadcast %cst_3 : f32 to vector<128x1xf32>
    %11 = arith.divf %9, %10 : vector<128x1xf32>
    %cst_4 = arith.constant 9.99999997E-7 : f32
    %12 = vector.broadcast %cst_4 : f32 to vector<128x1xf32>
    %13 = arith.addf %11, %12 : vector<128x1xf32>
    %14 = math.rsqrt %13 : vector<128x1xf32>
    %15 = vector.broadcast %14 : vector<128x1xf32> to vector<128x128xf32>
    %16 = arith.mulf %6, %15 : vector<128x128xf32>
    %c0_5 = arith.constant 0 : index
    %c0_6 = arith.constant 0 : index
    %17 = vector.load %arg2[%c0_5, %c0_6] : memref<1x128xf32, #tpu.memory_space<vmem>>, vector<1x128xf32>
    %18 = vector.broadcast %17 : vector<1x128xf32> to vector<128x128xf32>
    %19 = arith.mulf %16, %18 : vector<128x128xf32>
    %c0_7 = arith.constant 0 : index
    %c0_8 = arith.constant 0 : index
    %20 = vector.load %arg3[%c0_7, %c0_8] : memref<1x128xf32, #tpu.memory_space<vmem>>, vector<1x128xf32>
    %21 = vector.broadcast %20 : vector<1x128xf32> to vector<128x128xf32>
    %22 = arith.addf %19, %21 : vector<128x128xf32>
    %c0_9 = arith.constant 0 : index
    %c0_10 = arith.constant 0 : index
    %23 = vector.load %arg4[%c0_9, %c0_10] : memref<128x128xf32, #tpu.memory_space<vmem>>, vector<128x128xf32>
    tpu.vector_store %arg4[%c0_9, %c0_10], %22 {strides = array<i32>} : memref<128x128xf32, #tpu.memory_space<vmem>>, vector<128x128xf32>,
    return
  }
  func.func @transform_0(%arg0: i32) -> (i32, i32) {
    %c0_i32 = arith.constant 0 : i32
    %c0_i32_0 = arith.constant 0 : i32
    return %arg0, %c0_i32 : i32, i32
  }
  func.func @transform_1(%arg0: i32) -> (i32, i32) {
    %c0_i32 = arith.constant 0 : i32
    %c0_i32_0 = arith.constant 0 : i32
    %c0_i32_1 = arith.constant 0 : i32
    return %c0_i32, %c0_i32_0 : i32, i32
  }
  func.func @transform_2(%arg0: i32) -> (i32, i32) {
    %c0_i32 = arith.constant 0 : i32
    %c0_i32_0 = arith.constant 0 : i32
    %c0_i32_1 = arith.constant 0 : i32
    return %c0_i32, %c0_i32_0 : i32, i32
  }
  func.func @transform_3(%arg0: i32) -> (i32, i32) {
    %c0_i32 = arith.constant 0 : i32
    %c0_i32_0 = arith.constant 0 : i32
    return %arg0, %c0_i32 : i32, i32
  }
}

</mosaic_0001>

<llo_original>
// kernel: encoder_forward.11
$region0: #{encoder_forward.11}
  #allocation0 [shape = 'u32[]', space=smem, size = 0x4, offset = 0x4, fixed_abs, tag = 'smem constant byte address 0x4 - core index']
  #allocation1 [shape = 'u32[144,128]{1,0:T(1,128)}', space=vmem, size = 0x12000, scoped, tag = 'internal scratch']
  %s0 = inlined_call_operand.vmem [shape: f32[128,128], index: 0, kind: input, shape index: {}]
  %s1 = inlined_call_operand.vmem [shape: bf16[128,128], index: 1, kind: input, shape index: {}]
  %s2 = inlined_call_operand.vmem [shape: f32[1,128], index: 2, kind: input, shape index: {}]
  %s3 = inlined_call_operand.vmem [shape: f32[128,128], index: 3, kind: input, shape index: {}]
  %s4 = inlined_call_operand.vmem [shape: f32[128,128], index: 4, kind: output, shape index: {}]
  %s5 = sld [smem:[#allocation0]]
  $region26: #{encoder_forward.11} parent=0
    _
  %s7 = ssub.s32 1, %s5
  %s8 = scalar_select 0, %s7, %s5
  // Predicated region
  $region2: #{encoder_forward.11} parent=0 // pred_check
    _
  $region3: #{encoder_forward.11} parent=0 // pred_check_branch
    %10 = sbr.rel (0) target = $region5
  $region4: #{encoder_forward.11} parent=0 // pred_region
    _
  $region5: #{encoder_forward.11} parent=0 // pred_fallthru
    _
  // Predicated region
  $region6: #{encoder_forward.11} parent=0 // pred_check
    _
  $region7: #{encoder_forward.11} parent=0 // pred_check_branch
    %12 = sbr.rel (0) target = $region9
  $region8: #{encoder_forward.11} parent=0 // pred_region
    _
  $region9: #{encoder_forward.11} parent=0 // pred_fallthru
    _
  // Predicated region
  $region10: #{encoder_forward.11} parent=0 // pred_check
    _
  $region11: #{encoder_forward.11} parent=0 // pred_check_branch
    %14 = sbr.rel (0) target = $region13
  $region12: #{encoder_forward.11} parent=0 // pred_region
    _
  $region13: #{encoder_forward.11} parent=0 // pred_fallthru
    _
  // Predicated region
  $region14: #{encoder_forward.11} parent=0 // pred_check
    _
  $region15: #{encoder_forward.11} parent=0 // pred_check_branch
    %16 = sbr.rel (0) target = $region17
  $region16: #{encoder_forward.11} parent=0 // pred_region
    _
  $region17: #{encoder_forward.11} parent=0 // pred_fallthru
    _
  %v18 = vld [vmem:[%s0] sm:$0xff]
  %v19 = vld [vmem:[%s0 + $0x8] sm:$0xff]
  %v20 = vld [vmem:[%s0 + $0x10] sm:$0xff]
  %v21 = vld [vmem:[%s0 + $0x18] sm:$0xff]
  %v22 = vld [vmem:[%s0 + $0x20] sm:$0xff]
  %v23 = vld [vmem:[%s0 + $0x28] sm:$0xff]
  %v24 = vld [vmem:[%s0 + $0x30] sm:$0xff]
  %v25 = vld [vmem:[%s0 + $0x38] sm:$0xff]
  %v26 = vld [vmem:[%s0 + $0x40] sm:$0xff]
  %v27 = vld [vmem:[%s0 + $0x48] sm:$0xff]
  %v28 = vld [vmem:[%s0 + $0x50] sm:$0xff]
  %v29 = vld [vmem:[%s0 + $0x58] sm:$0xff]
  %v30 = vld [vmem:[%s0 + $0x60] sm:$0xff]
  %v31 = vld [vmem:[%s0 + $0x68] sm:$0xff]
  %v32 = vld [vmem:[%s0 + $0x70] sm:$0xff]
  %v33 = vld [vmem:[%s0 + $0x78] sm:$0xff]
  %v34 = vpack.c.bf16 %v19, %v18
  %v35 = vpack.c.bf16 %v21, %v20
  %v36 = vpack.c.bf16 %v23, %v22
  %v37 = vpack.c.bf16 %v25, %v24
  %v38 = vpack.c.bf16 %v27, %v26
  %v39 = vpack.c.bf16 %v29, %v28
  %v40 = vpack.c.bf16 %v31, %v30
  %v41 = vpack.c.bf16 %v33, %v32
  %v42 = vld [vmem:[%s1] sm:$0xf]
  %v43 = vld [vmem:[%s1 + $0x4] sm:$0xf]
  %v44 = vld [vmem:[%s1 + $0x8] sm:$0xf]
  %v45 = vld [vmem:[%s1 + $0xc] sm:$0xf]
  %v46 = vld [vmem:[%s1 + $0x10] sm:$0xf]
  %v47 = vld [vmem:[%s1 + $0x14] sm:$0xf]
  %v48 = vld [vmem:[%s1 + $0x18] sm:$0xf]
  %v49 = vld [vmem:[%s1 + $0x1c] sm:$0xf]
  %v50 = vld [vmem:[%s1 + $0x20] sm:$0xf]
  %v51 = vld [vmem:[%s1 + $0x24] sm:$0xf]
  %v52 = vld [vmem:[%s1 + $0x28] sm:$0xf]
  %v53 = vld [vmem:[%s1 + $0x2c] sm:$0xf]
  %v54 = vld [vmem:[%s1 + $0x30] sm:$0xf]
  %v55 = vld [vmem:[%s1 + $0x34] sm:$0xf]
  %v56 = vld [vmem:[%s1 + $0x38] sm:$0xf]
  %v57 = vld [vmem:[%s1 + $0x3c] sm:$0xf]
  %v58 = vld [vmem:[%s2] sm:$0x1]
  %v60 = vlaneseq
  %v61 = vshrl.u32 %v60, 7
  %v62 = vsub.s32 0, %v61
  %v63 = vrot.slane %v58, %v62
  %v81 = vunpack.c.l.b16 %v42
  %v82 = vunpack.c.l.b16 %v43
  %v83 = vunpack.c.l.b16 %v44
  %v84 = vunpack.c.l.b16 %v45
  %v85 = vunpack.c.l.b16 %v46
  %v86 = vunpack.c.l.b16 %v47
  %v87 = vunpack.c.l.b16 %v48
  %v88 = vunpack.c.l.b16 %v49
  %v89 = vunpack.c.l.b16 %v50
  %v90 = vunpack.c.l.b16 %v51
  %v91 = vunpack.c.l.b16 %v52
  %v92 = vunpack.c.l.b16 %v53
  %v93 = vunpack.c.l.b16 %v54
  %v94 = vunpack.c.l.b16 %v55
  %v95 = vunpack.c.l.b16 %v56
  %v96 = vunpack.c.l.b16 %v57
  %v97 = vpack.c.b16 %v82, %v81
  %v98 = vpack.c.b16 %v84, %v83
  %v99 = vpack.c.b16 %v86, %v85
  %v100 = vpack.c.b16 %v88, %v87
  %v101 = vpack.c.b16 %v90, %v89
  %v102 = vpack.c.b16 %v92, %v91
  %v103 = vpack.c.b16 %v94, %v93
  %v104 = vpack.c.b16 %v96, %v95
  %113 = vmatprep.subr.bf16.mxu0 0
  %114 = vmatpush1.bf16.msra.mxu0 %v97
  %115 = vmatprep.subr.bf16.mxu0 0
  %116 = vmatpush1.bf16.msra.mxu0 %v98
  %117 = vmatprep.subr.bf16.mxu0 0
  %118 = vmatpush1.bf16.msra.mxu0 %v99
  %119 = vmatprep.subr.bf16.mxu0 0
  %120 = vmatpush1.bf16.msra.mxu0 %v100
  %121 = vmatprep.subr.bf16.mxu0 0
  %122 = vmatpush1.bf16.msra.mxu0 %v101
  %123 = vmatprep.subr.bf16.mxu0 0
  %124 = vmatpush1.bf16.msra.mxu0 %v102
  %125 = vmatprep.subr.bf16.mxu0 0
  %126 = vmatpush1.bf16.msra.mxu0 %v103
  %127 = vmatprep.subr.bf16.mxu0 0
  %128 = vmatpush1.bf16.msra.mxu0 %v104
  %129 = vmatprep.subr.bf16.mxu0 0
  %130 = vmatpush1.bf16.msra.mxu0 0
  %131 = vmatprep.subr.bf16.mxu0 0
  %132 = vmatpush1.bf16.msra.mxu0 0
  %133 = vmatprep.subr.bf16.mxu0 0
  %134 = vmatpush1.bf16.msra.mxu0 0
  %135 = vmatprep.subr.bf16.mxu0 0
  %136 = vmatpush1.bf16.msra.mxu0 0
  %137 = vmatprep.subr.bf16.mxu0 0
  %138 = vmatpush1.bf16.msra.mxu0 0
  %139 = vmatprep.subr.bf16.mxu0 0
  %140 = vmatpush1.bf16.msra.mxu0 0
  %141 = vmatprep.subr.bf16.mxu0 0
  %142 = vmatpush1.bf16.msra.mxu0 0
  %143 = vmatprep.subr.bf16.mxu0 0
  %144 = vmatpush1.bf16.msra.mxu0 0
  %145 = vmatprep.mubr.bf16.mxu0 0
  %146 = vmatmul.mubr.bf16.gmra.mrb[0].mxu0 %v34
  %v147 = vpop.f32.mrb[0].mxu0
  %v148 = vadd.f32 %v63, %v147
  %v149 = vpop.f32.mrb[0].mxu0
  %v150 = vpop.f32.mrb[0].mxu0
  %v151 = vadd.f32 %v63, %v150
  %v152 = vpop.f32.mrb[0].mxu0
  %153 = vmatprep.mubr.bf16.mxu0 0
  %154 = vmatmul.mubr.bf16.gmra.mrb[0].mxu0 %v35
  %v155 = vpop.f32.mrb[0].mxu0
  %v156 = vadd.f32 %v63, %v155
  %v157 = vpop.f32.mrb[0].mxu0
  %v158 = vpop.f32.mrb[0].mxu0
  %v159 = vadd.f32 %v63, %v158
  %v160 = vpop.f32.mrb[0].mxu0
  %161 = vmatprep.mubr.bf16.mxu0 0
  %162 = vmatmul.mubr.bf16.gmra.mrb[0].mxu0 %v36
  %v163 = vpop.f32.mrb[0].mxu0
  %v164 = vadd.f32 %v63, %v163
  %v165 = vpop.f32.mrb[0].mxu0
  %v166 = vpop.f32.mrb[0].mxu0
  %v167 = vadd.f32 %v63, %v166
  %v168 = vpop.f32.mrb[0].mxu0
  %169 = vmatprep.mubr.bf16.mxu0 0
  %170 = vmatmul.mubr.bf16.gmra.mrb[0].mxu0 %v37
  %v171 = vpop.f32.mrb[0].mxu0
  %v172 = vadd.f32 %v63, %v171
  %v173 = vpop.f32.mrb[0].mxu0
  %v174 = vpop.f32.mrb[0].mxu0
  %v175 = vadd.f32 %v63, %v174
  %v176 = vpop.f32.mrb[0].mxu0
  %177 = vmatprep.mubr.bf16.mxu0 0
  %178 = vmatmul.mubr.bf16.gmra.mrb[0].mxu0 %v38
  %v179 = vpop.f32.mrb[0].mxu0
  %v180 = vadd.f32 %v63, %v179
  %v181 = vpop.f32.mrb[0].mxu0
  %v182 = vpop.f32.mrb[0].mxu0
  %v183 = vadd.f32 %v63, %v182
  %v184 = vpop.f32.mrb[0].mxu0
  %185 = vmatprep.mubr.bf16.mxu0 0
  %186 = vmatmul.mubr.bf16.gmra.mrb[0].mxu0 %v39
  %v187 = vpop.f32.mrb[0].mxu0
  %v188 = vadd.f32 %v63, %v187
  %v189 = vpop.f32.mrb[0].mxu0
  %v190 = vpop.f32.mrb[0].mxu0
  %v191 = vadd.f32 %v63, %v190
  %v192 = vpop.f32.mrb[0].mxu0
  %193 = vmatprep.mubr.bf16.mxu0 0
  %194 = vmatmul.mubr.bf16.gmra.mrb[0].mxu0 %v40
  %v195 = vpop.f32.mrb[0].mxu0
  %v196 = vadd.f32 %v63, %v195
  %v197 = vpop.f32.mrb[0].mxu0
  %v198 = vpop.f32.mrb[0].mxu0
  %v199 = vadd.f32 %v63, %v198
  %v200 = vpop.f32.mrb[0].mxu0
  %201 = vmatprep.mubr.bf16.mxu0 0
  %202 = vmatmul.mubr.bf16.gmra.mrb[0].mxu0 %v41
  %v203 = vpop.f32.mrb[0].mxu0
  %v204 = vadd.f32 %v63, %v203
  %v205 = vpop.f32.mrb[0].mxu0
  %v206 = vpop.f32.mrb[0].mxu0
  %v207 = vadd.f32 %v63, %v206
  %v208 = vpop.f32.mrb[0].mxu0
  %209 = vdwg.mxu0
  %v210 = vld [vmem:[%s3] sm:$0xff]
  %v211 = vld [vmem:[%s3 + $0x8] sm:$0xff]
  %v212 = vld [vmem:[%s3 + $0x10] sm:$0xff]
  %v213 = vld [vmem:[%s3 + $0x18] sm:$0xff]
  %v214 = vld [vmem:[%s3 + $0x20] sm:$0xff]
  %v215 = vld [vmem:[%s3 + $0x28] sm:$0xff]
  %v216 = vld [vmem:[%s3 + $0x30] sm:$0xff]
  %v217 = vld [vmem:[%s3 + $0x38] sm:$0xff]
  %v218 = vld [vmem:[%s3 + $0x40] sm:$0xff]
  %v219 = vld [vmem:[%s3 + $0x48] sm:$0xff]
  %v220 = vld [vmem:[%s3 + $0x50] sm:$0xff]
  %v221 = vld [vmem:[%s3 + $0x58] sm:$0xff]
  %v222 = vld [vmem:[%s3 + $0x60] sm:$0xff]
  %v223 = vld [vmem:[%s3 + $0x68] sm:$0xff]
  %v224 = vld [vmem:[%s3 + $0x70] sm:$0xff]
  %v225 = vld [vmem:[%s3 + $0x78] sm:$0xff]
  %v226 = vadd.f32 %v148, %v210
  %v227 = vadd.f32 %v151, %v211
  %v228 = vadd.f32 %v156, %v212
  %v229 = vadd.f32 %v159, %v213
  %v230 = vadd.f32 %v164, %v214
  %v231 = vadd.f32 %v167, %v215
  %v232 = vadd.f32 %v172, %v216
  %v233 = vadd.f32 %v175, %v217
  %v234 = vadd.f32 %v180, %v218
  %v235 = vadd.f32 %v183, %v219
  %v236 = vadd.f32 %v188, %v220
  %v237 = vadd.f32 %v191, %v221
  %v238 = vadd.f32 %v196, %v222
  %v239 = vadd.f32 %v199, %v223
  %v240 = vadd.f32 %v204, %v224
  %v241 = vadd.f32 %v207, %v225
  %242 = vst [vmem:[%s4] sm:$0xff] %v226
  %243 = vst [vmem:[%s4 + $0x8] sm:$0xff] %v227
  %244 = vst [vmem:[%s4 + $0x10] sm:$0xff] %v228
  %245 = vst [vmem:[%s4 + $0x18] sm:$0xff] %v229
  %246 = vst [vmem:[%s4 + $0x20] sm:$0xff] %v230
  %247 = vst [vmem:[%s4 + $0x28] sm:$0xff] %v231
  %248 = vst [vmem:[%s4 + $0x30] sm:$0xff] %v232
  %249 = vst [vmem:[%s4 + $0x38] sm:$0xff] %v233
  %250 = vst [vmem:[%s4 + $0x40] sm:$0xff] %v234
  %251 = vst [vmem:[%s4 + $0x48] sm:$0xff] %v235
  %252 = vst [vmem:[%s4 + $0x50] sm:$0xff] %v236
  %253 = vst [vmem:[%s4 + $0x58] sm:$0xff] %v237
  %254 = vst [vmem:[%s4 + $0x60] sm:$0xff] %v238
  %255 = vst [vmem:[%s4 + $0x68] sm:$0xff] %v239
  %256 = vst [vmem:[%s4 + $0x70] sm:$0xff] %v240
  %257 = vst [vmem:[%s4 + $0x78] sm:$0xff] %v241
  // Predicated region
  $region18: #{encoder_forward.11} parent=0 // pred_check
    _
  $region19: #{encoder_forward.11} parent=0 // pred_check_branch
    %259 = sbr.rel (0) target = $region21
  $region20: #{encoder_forward.11} parent=0 // pred_region
    _
  $region21: #{encoder_forward.11} parent=0 // pred_fallthru
    _
  // Predicated region
  $region22: #{encoder_forward.11} parent=0 // pred_check
    _
  $region23: #{encoder_forward.11} parent=0 // pred_check_branch
    %261 = sbr.rel (0) target = $region25
  $region24: #{encoder_forward.11} parent=0 // pred_region
    _
  $region25: #{encoder_forward.11} parent=0 // pred_fallthru
    _

// kernel: encoder_forward.9
$region0: #{encoder_forward.9}
  #allocation0 [shape = 'u32[]', space=smem, size = 0x4, offset = 0x4, fixed_abs, tag = 'smem constant byte address 0x4 - core index']
  #allocation1 [shape = 'u32[144,128]{1,0:T(1,128)}', space=vmem, size = 0x12000, scoped, tag = 'internal scratch']
  #allocation2 [shape = 'bf16[128,128]{1,0:T(16,128)(2,1)}', space=vmem, size = 0x8000, scoped, tag = 'scratch operand']
  %s0 = inlined_call_operand.hbm [shape: f32[128,128], index: 0, kind: input, shape index: {}]
  %s1 = inlined_call_operand.vmem [shape: f32[1,128], index: 1, kind: input, shape index: {}]
  %s2 = inlined_call_operand.vmem [shape: f32[1,128], index: 2, kind: input, shape index: {}]
  %s3 = inlined_call_operand.hbm [shape: bf16[128,384], index: 3, kind: input, shape index: {}]
  %s4 = inlined_call_operand.vmem [shape: f32[1,384], index: 4, kind: input, shape index: {}]
  %s5 = inlined_call_operand.vmem [shape: f32[128,384], index: 5, kind: output, shape index: {}]
  %s6 = sld [smem:[#allocation0]]
  $region42: #{encoder_forward.9} parent=0
    _
  %s8 = ssub.s32 1, %s6
  %s9 = scalar_select 0, %s8, %s6
  $region1: #{encoder_forward.9} parent=0
    #allocation3 [shape = 'u8[65536]{0}', space=vmem, size = 0x10000, scoped, tag = 'input window, operand 0, single buffered']
    #allocation4 [shape = 's32[1]{0}', space=sflag, size = 0x4, scoped, tag = 'scoped memory for encoder_forward.9']
    #allocation5 [shape = 'u8[98304]{0}', space=vmem, size = 0x18000, scoped, tag = 'input window, operand 3, single buffered']
    #allocation6 [shape = 's32[1]{0}', space=sflag, size = 0x4, scoped, tag = 'scoped memory for encoder_forward.9']
    %10 = vsyncpa [#allocation4], 0
    %11 = vsyncpa [#allocation6], 0
    // Predicated region
    $region2: #{encoder_forward.9} parent=1 // pred_check
      _
    $region3: #{encoder_forward.9} parent=1 // pred_check_branch
      %13 = sbr.rel (0) target = $region5
    $region4: #{encoder_forward.9} parent=1 // pred_region
      %s15 = ssub.s32 2048, 2048
      %16 = vsyncadd [#allocation4], %s15
      %s17 = sshll.u32 [#allocation3], 4
      %s18 = int_to_ptr.vmem [resolvable:$true] %s17
      %23 = dma.hbm_to_vmem [thread:$0]  %s0, 2048, %s18, [#allocation4], 128, 128, 8
    $region5: #{encoder_forward.9} parent=1 // pred_fallthru
      _
    // Predicated region
    $region6: #{encoder_forward.9} parent=1 // pred_check
      _
    $region7: #{encoder_forward.9} parent=1 // pred_check_branch
      %25 = sbr.rel (0) target = $region9
    $region8: #{encoder_forward.9} parent=1 // pred_region
      _
    $region9: #{encoder_forward.9} parent=1 // pred_fallthru
      _
    // Predicated region
    $region10: #{encoder_forward.9} parent=1 // pred_check
      _
    $region11: #{encoder_forward.9} parent=1 // pred_check_branch
      %27 = sbr.rel (0) target = $region13
    $region12: #{encoder_forward.9} parent=1 // pred_region
      _
    $region13: #{encoder_forward.9} parent=1 // pred_fallthru
      _
    // Predicated region
    $region14: #{encoder_forward.9} parent=1 // pred_check
      _
    $region15: #{encoder_forward.9} parent=1 // pred_check_branch
      %29 = sbr.rel (0) target = $region17
    $region16: #{encoder_forward.9} parent=1 // pred_region
      %s31 = ssub.s32 3072, 3072
      %32 = vsyncadd [#allocation6], %s31
      %s33 = sshll.u32 [#allocation5], 4
      %s34 = int_to_ptr.vmem [resolvable:$true] %s33
      %39 = dma.hbm_to_vmem [thread:$0]  %s3, 3072, %s34, [#allocation6], 192, 192, 12
    $region17: #{encoder_forward.9} parent=1 // pred_fallthru
      _
    // Predicated region
    $region18: #{encoder_forward.9} parent=1 // pred_check
      _
    $region19: #{encoder_forward.9} parent=1 // pred_check_branch
      %41 = sbr.rel (0) target = $region21
    $region20: #{encoder_forward.9} parent=1 // pred_region
      _
    $region21: #{encoder_forward.9} parent=1 // pred_fallthru
      _
    // Predicated region
    $region22: #{encoder_forward.9} parent=1 // pred_check
      _
    $region23: #{encoder_forward.9} parent=1 // pred_check_branch
      %43 = sbr.rel (0) target = $region25
    $region24: #{encoder_forward.9} parent=1 // pred_region
      %44 = dma.done [#allocation4], 2048
    $region25: #{encoder_forward.9} parent=1 // pred_fallthru
      _
    // Predicated region
    $region26: #{encoder_forward.9} parent=1 // pred_check
      _
    $region27: #{encoder_forward.9} parent=1 // pred_check_branch
      %46 = sbr.rel (0) target = $region29
    $region28: #{encoder_forward.9} parent=1 // pred_region
      %47 = dma.done [#allocation6], 3072
    $region29: #{encoder_forward.9} parent=1 // pred_fallthru
      _
    %p49 = scmp.eq.s32.totalorder 0, 0
    // Predicated region
    $region30: #{encoder_forward.9} parent=1 // pred_check
      %p50 = pneg %p49
    $region31: #{encoder_forward.9} parent=1 // pred_check_branch
      %52 = sbr.rel (%p50) target = $region33
    $region32: #{encoder_forward.9} parent=1 // pred_region
      %v53 = vld [vmem:[#allocation3] sm:$0xff]
      %v54 = vld [vmem:[#allocation3 + $0x8] sm:$0xff]
      %v55 = vld [vmem:[#allocation3 + $0x10] sm:$0xff]
      %v56 = vld [vmem:[#allocation3 + $0x18] sm:$0xff]
      %v57 = vld [vmem:[#allocation3 + $0x20] sm:$0xff]
      %v58 = vld [vmem:[#allocation3 + $0x28] sm:$0xff]
      %v59 = vld [vmem:[#allocation3 + $0x30] sm:$0xff]
      %v60 = vld [vmem:[#allocation3 + $0x38] sm:$0xff]
      %v61 = vld [vmem:[#allocation3 + $0x40] sm:$0xff]
      %v62 = vld [vmem:[#allocation3 + $0x48] sm:$0xff]
      %v63 = vld [vmem:[#allocation3 + $0x50] sm:$0xff]
      %v64 = vld [vmem:[#allocation3 + $0x58] sm:$0xff]
      %v65 = vld [vmem:[#allocation3 + $0x60] sm:$0xff]
      %v66 = vld [vmem:[#allocation3 + $0x68] sm:$0xff]
      %v67 = vld [vmem:[#allocation3 + $0x70] sm:$0xff]
      %v68 = vld [vmem:[#allocation3 + $0x78] sm:$0xff]
      %69 = vadd.xlane.f32.xlu0 %v53
      %v70 = vpop.xlane.xlu0 %69
      %71 = vadd.xlane.f32.xlu0 %v54
      %v72 = vpop.xlane.xlu0 %71
      %73 = vadd.xlane.f32.xlu0 %v55
      %v74 = vpop.xlane.xlu0 %73
      %75 = vadd.xlane.f32.xlu0 %v56
      %v76 = vpop.xlane.xlu0 %75
      %77 = vadd.xlane.f32.xlu0 %v57
      %v78 = vpop.xlane.xlu0 %77
      %79 = vadd.xlane.f32.xlu0 %v58
      %v80 = vpop.xlane.xlu0 %79
      %81 = vadd.xlane.f32.xlu0 %v59
      %v82 = vpop.xlane.xlu0 %81
      %83 = vadd.xlane.f32.xlu0 %v60
      %v84 = vpop.xlane.xlu0 %83
      %85 = vadd.xlane.f32.xlu0 %v61
      %v86 = vpop.xlane.xlu0 %85
      %87 = vadd.xlane.f32.xlu0 %v62
      %v88 = vpop.xlane.xlu0 %87
      %89 = vadd.xlane.f32.xlu0 %v63
      %v90 = vpop.xlane.xlu0 %89
      %91 = vadd.xlane.f32.xlu0 %v64
      %v92 = vpop.xlane.xlu0 %91
      %93 = vadd.xlane.f32.xlu0 %v65
      %v94 = vpop.xlane.xlu0 %93
      %95 = vadd.xlane.f32.xlu0 %v66
      %v96 = vpop.xlane.xlu0 %95
      %97 = vadd.xlane.f32.xlu0 %v67
      %v98 = vpop.xlane.xlu0 %97
      %99 = vadd.xlane.f32.xlu0 %v68
      %v100 = vpop.xlane.xlu0 %99
      %v101 = vrcp.pop 128.0
      %v102 = vmul.f32 %v70, %v101
      %v103 = vmul.f32 %v72, %v101
      %v104 = vmul.f32 %v74, %v101
      %v105 = vmul.f32 %v76, %v101
      %v106 = vmul.f32 %v78, %v101
      %v107 = vmul.f32 %v80, %v101
      %v108 = vmul.f32 %v82, %v101
      %v109 = vmul.f32 %v84, %v101
      %v110 = vmul.f32 %v86, %v101
      %v111 = vmul.f32 %v88, %v101
      %v112 = vmul.f32 %v90, %v101
      %v113 = vmul.f32 %v92, %v101
      %v114 = vmul.f32 %v94, %v101
      %v115 = vmul.f32 %v96, %v101
      %v116 = vmul.f32 %v98, %v101
      %v117 = vmul.f32 %v100, %v101
      %v118 = vsub.f32 %v53, %v102
      %v119 = vsub.f32 %v54, %v103
      %v120 = vsub.f32 %v55, %v104
      %v121 = vsub.f32 %v56, %v105
      %v122 = vsub.f32 %v57, %v106
      %v123 = vsub.f32 %v58, %v107
      %v124 = vsub.f32 %v59, %v108
      %v125 = vsub.f32 %v60, %v109
      %v126 = vsub.f32 %v61, %v110
      %v127 = vsub.f32 %v62, %v111
      %v128 = vsub.f32 %v63, %v112
      %v129 = vsub.f32 %v64, %v113
      %v130 = vsub.f32 %v65, %v114
      %v131 = vsub.f32 %v66, %v115
      %v132 = vsub.f32 %v67, %v116
      %v133 = vsub.f32 %v68, %v117
      %v134 = vmul.f32 %v118, %v118
      %v135 = vmul.f32 %v119, %v119
      %v136 = vmul.f32 %v120, %v120
      %v137 = vmul.f32 %v121, %v121
      %v138 = vmul.f32 %v122, %v122
      %v139 = vmul.f32 %v123, %v123
      %v140 = vmul.f32 %v124, %v124
      %v141 = vmul.f32 %v125, %v125
      %v142 = vmul.f32 %v126, %v126
      %v143 = vmul.f32 %v127, %v127
      %v144 = vmul.f32 %v128, %v128
      %v145 = vmul.f32 %v129, %v129
      %v146 = vmul.f32 %v130, %v130
      %v147 = vmul.f32 %v131, %v131
      %v148 = vmul.f32 %v132, %v132
      %v149 = vmul.f32 %v133, %v133
      %150 = vadd.xlane.f32.xlu0 %v134
      %v151 = vpop.xlane.xlu0 %150
      %152 = vadd.xlane.f32.xlu0 %v135
      %v153 = vpop.xlane.xlu0 %152
      %154 = vadd.xlane.f32.xlu0 %v136
      %v155 = vpop.xlane.xlu0 %154
      %156 = vadd.xlane.f32.xlu0 %v137
      %v157 = vpop.xlane.xlu0 %156
      %158 = vadd.xlane.f32.xlu0 %v138
      %v159 = vpop.xlane.xlu0 %158
      %160 = vadd.xlane.f32.xlu0 %v139
      %v161 = vpop.xlane.xlu0 %160
      %162 = vadd.xlane.f32.xlu0 %v140
      %v163 = vpop.xlane.xlu0 %162
      %164 = vadd.xlane.f32.xlu0 %v141
      %v165 = vpop.xlane.xlu0 %164
      %166 = vadd.xlane.f32.xlu0 %v142
      %v167 = vpop.xlane.xlu0 %166
      %168 = vadd.xlane.f32.xlu0 %v143
      %v169 = vpop.xlane.xlu0 %168
      %170 = vadd.xlane.f32.xlu0 %v144
      %v171 = vpop.xlane.xlu0 %170
      %172 = vadd.xlane.f32.xlu0 %v145
      %v173 = vpop.xlane.xlu0 %172
      %174 = vadd.xlane.f32.xlu0 %v146
      %v175 = vpop.xlane.xlu0 %174
      %176 = vadd.xlane.f32.xlu0 %v147
      %v177 = vpop.xlane.xlu0 %176
      %178 = vadd.xlane.f32.xlu0 %v148
      %v179 = vpop.xlane.xlu0 %178
      %180 = vadd.xlane.f32.xlu0 %v149
      %v181 = vpop.xlane.xlu0 %180
      %v182 = vmul.f32 %v151, %v101
      %v183 = vmul.f32 %v153, %v101
      %v184 = vmul.f32 %v155, %v101
      %v185 = vmul.f32 %v157, %v101
      %v186 = vmul.f32 %v159, %v101
      %v187 = vmul.f32 %v161, %v101
      %v188 = vmul.f32 %v163, %v101
      %v189 = vmul.f32 %v165, %v101
      %v190 = vmul.f32 %v167, %v101
      %v191 = vmul.f32 %v169, %v101
      %v192 = vmul.f32 %v171, %v101
      %v193 = vmul.f32 %v173, %v101
      %v194 = vmul.f32 %v175, %v101
      %v195 = vmul.f32 %v177, %v101
      %v196 = vmul.f32 %v179, %v101
      %v197 = vmul.f32 %v181, %v101
      %v198 = vadd.f32 %v182, 1e-06
      %v199 = vadd.f32 %v183, 1e-06
      %v200 = vadd.f32 %v184, 1e-06
      %v201 = vadd.f32 %v185, 1e-06
      %v202 = vadd.f32 %v186, 1e-06
      %v203 = vadd.f32 %v187, 1e-06
      %v204 = vadd.f32 %v188, 1e-06
      %v205 = vadd.f32 %v189, 1e-06
      %v206 = vadd.f32 %v190, 1e-06
      %v207 = vadd.f32 %v191, 1e-06
      %v208 = vadd.f32 %v192, 1e-06
      %v209 = vadd.f32 %v193, 1e-06
      %v210 = vadd.f32 %v194, 1e-06
      %v211 = vadd.f32 %v195, 1e-06
      %v212 = vadd.f32 %v196, 1e-06
      %v213 = vadd.f32 %v197, 1e-06
      %v214 = vrsqrt.pop %v198
      %v215 = vrsqrt.pop %v199
      %v216 = vrsqrt.pop %v200
      %v217 = vrsqrt.pop %v201
      %v218 = vrsqrt.pop %v202
      %v219 = vrsqrt.pop %v203
      %v220 = vrsqrt.pop %v204
      %v221 = vrsqrt.pop %v205
      %v222 = vrsqrt.pop %v206
      %v223 = vrsqrt.pop %v207
      %v224 = vrsqrt.pop %v208
      %v225 = vrsqrt.pop %v209
      %v226 = vrsqrt.pop %v210
      %v227 = vrsqrt.pop %v211
      %v228 = vrsqrt.pop %v212
      %v229 = vrsqrt.pop %v213
      %v230 = vmul.f32 %v118, %v214
      %v231 = vmul.f32 %v119, %v215
      %v232 = vmul.f32 %v120, %v216
      %v233 = vmul.f32 %v121, %v217
      %v234 = vmul.f32 %v122, %v218
      %v235 = vmul.f32 %v123, %v219
      %v236 = vmul.f32 %v124, %v220
      %v237 = vmul.f32 %v125, %v221
      %v238 = vmul.f32 %v126, %v222
      %v239 = vmul.f32 %v127, %v223
      %v240 = vmul.f32 %v128, %v224
      %v241 = vmul.f32 %v129, %v225
      %v242 = vmul.f32 %v130, %v226
      %v243 = vmul.f32 %v131, %v227
      %v244 = vmul.f32 %v132, %v228
      %v245 = vmul.f32 %v133, %v229
      %v246 = vld [vmem:[%s1] sm:$0x1]
      %v248 = vlaneseq
      %v249 = vshrl.u32 %v248, 7
      %v250 = vsub.s32 0, %v249
      %v251 = vrot.slane %v246, %v250
      %v253 = vmul.f32 %v230, %v251
      %v254 = vmul.f32 %v231, %v251
      %v255 = vmul.f32 %v232, %v251
      %v256 = vmul.f32 %v233, %v251
      %v257 = vmul.f32 %v234, %v251
      %v258 = vmul.f32 %v235, %v251
      %v259 = vmul.f32 %v236, %v251
      %v260 = vmul.f32 %v237, %v251
      %v261 = vmul.f32 %v238, %v251
      %v262 = vmul.f32 %v239, %v251
      %v263 = vmul.f32 %v240, %v251
      %v264 = vmul.f32 %v241, %v251
      %v265 = vmul.f32 %v242, %v251
      %v266 = vmul.f32 %v243, %v251
      %v267 = vmul.f32 %v244, %v251
      %v268 = vmul.f32 %v245, %v251
      %v269 = vld [vmem:[%s2] sm:$0x1]
      %v271 = vlaneseq
      %v272 = vshrl.u32 %v271, 7
      %v273 = vsub.s32 0, %v272
      %v274 = vrot.slane %v269, %v273
      %v276 = vadd.f32 %v253, %v274
      %v277 = vadd.f32 %v254, %v274
      %v278 = vadd.f32 %v255, %v274
      %v279 = vadd.f32 %v256, %v274
      %v280 = vadd.f32 %v257, %v274
      %v281 = vadd.f32 %v258, %v274
      %v282 = vadd.f32 %v259, %v274
      %v283 = vadd.f32 %v260, %v274
      %v284 = vadd.f32 %v261, %v274
      %v285 = vadd.f32 %v262, %v274
      %v286 = vadd.f32 %v263, %v274
      %v287 = vadd.f32 %v264, %v274
      %v288 = vadd.f32 %v265, %v274
      %v289 = vadd.f32 %v266, %v274
      %v290 = vadd.f32 %v267, %v274
      %v291 = vadd.f32 %v268, %v274
      %v292 = vpack.c.bf16 %v277, %v276
      %v293 = vpack.c.bf16 %v279, %v278
      %v294 = vpack.c.bf16 %v281, %v280
      %v295 = vpack.c.bf16 %v283, %v282
      %v296 = vpack.c.bf16 %v285, %v284
      %v297 = vpack.c.bf16 %v287, %v286
      %v298 = vpack.c.bf16 %v289, %v288
      %v299 = vpack.c.bf16 %v291, %v290
      %300 = vst [vmem:[#allocation2] sm:$0xff] %v292
      %301 = vst [vmem:[#allocation2 + $0x8] sm:$0xff] %v293
      %302 = vst [vmem:[#allocation2 + $0x10] sm:$0xff] %v294
      %303 = vst [vmem:[#allocation2 + $0x18] sm:$0xff] %v295
      %304 = vst [vmem:[#allocation2 + $0x20] sm:$0xff] %v296
      %305 = vst [vmem:[#allocation2 + $0x28] sm:$0xff] %v297
      %306 = vst [vmem:[#allocation2 + $0x30] sm:$0xff] %v298
      %307 = vst [vmem:[#allocation2 + $0x38] sm:$0xff] %v299
    $region33: #{encoder_forward.9} parent=1 // pred_fallthru
      _
    %v308 = vld [vmem:[#allocation2] sm:$0xff]
    %v309 = vld [vmem:[#allocation2 + $0x8] sm:$0xff]
    %v310 = vld [vmem:[#allocation2 + $0x10] sm:$0xff]
    %v311 = vld [vmem:[#allocation2 + $0x18] sm:$0xff]
    %v312 = vld [vmem:[#allocation2 + $0x20] sm:$0xff]
    %v313 = vld [vmem:[#allocation2 + $0x28] sm:$0xff]
    %v314 = vld [vmem:[#allocation2 + $0x30] sm:$0xff]
    %v315 = vld [vmem:[#allocation2 + $0x38] sm:$0xff]
    %v316 = vld [vmem:[#allocation5] sm:$0xff]
    %v317 = vld [vmem:[#allocation5 + $0x8] sm:$0xf]
    %v318 = vld [vmem:[#allocation5 + $0xc] sm:$0xff]
    %v319 = vld [vmem:[#allocation5 + $0x14] sm:$0xf]
    %v320 = vld [vmem:[#allocation5 + $0x18] sm:$0xff]
    %v321 = vld [vmem:[#allocation5 + $0x20] sm:$0xf]
    %v322 = vld [vmem:[#allocation5 + $0x24] sm:$0xff]
    %v323 = vld [vmem:[#allocation5 + $0x2c] sm:$0xf]
    %v324 = vld [vmem:[#allocation5 + $0x30] sm:$0xff]
    %v325 = vld [vmem:[#allocation5 + $0x38] sm:$0xf]
    %v326 = vld [vmem:[#allocation5 + $0x3c] sm:$0xff]
    %v327 = vld [vmem:[#allocation5 + $0x44] sm:$0xf]
    %v328 = vld [vmem:[#allocation5 + $0x48] sm:$0xff]
    %v329 = vld [vmem:[#allocation5 + $0x50] sm:$0xf]
    %v330 = vld [vmem:[#allocation5 + $0x54] sm:$0xff]
    %v331 = vld [vmem:[#allocation5 + $0x5c] sm:$0xf]
    %v332 = vld [vmem:[#allocation5 + $0x60] sm:$0xff]
    %v333 = vld [vmem:[#allocation5 + $0x68] sm:$0xf]
    %v334 = vld [vmem:[#allocation5 + $0x6c] sm:$0xff]
    %v335 = vld [vmem:[#allocation5 + $0x74] sm:$0xf]
    %v336 = vld [vmem:[#allocation5 + $0x78] sm:$0xff]
    %v337 = vld [vmem:[#allocation5 + $0x80] sm:$0xf]
    %v338 = vld [vmem:[#allocation5 + $0x84] sm:$0xff]
    %v339 = vld [vmem:[#allocation5 + $0x8c] sm:$0xf]
    %v340 = vld [vmem:[#allocation5 + $0x90] sm:$0xff]
    %v341 = vld [vmem:[#allocation5 + $0x98] sm:$0xf]
    %v342 = vld [vmem:[#allocation5 + $0x9c] sm:$0xff]
    %v343 = vld [vmem:[#allocation5 + $0xa4] sm:$0xf]
    %v344 = vld [vmem:[#allocation5 + $0xa8] sm:$0xff]
    %v345 = vld [vmem:[#allocation5 + $0xb0] sm:$0xf]
    %v346 = vld [vmem:[#allocation5 + $0xb4] sm:$0xff]
    %v347 = vld [vmem:[#allocation5 + $0xbc] sm:$0xf]
    %v348 = vld [vmem:[%s4] sm:$0x7]
    %v350 = vlaneseq
    %v351 = vshrl.u32 %v350, 7
    %v352 = vsub.s32 0, %v351
    %v353 = vrot.slane %v348, %v352
    %v354 = vlaneseq
    %v355 = vshrl.u32 %v354, 7
    %v356 = vsub.s32 1, %v355
    %v357 = vrot.slane %v348, %v356
    %v358 = vlaneseq
    %v359 = vshrl.u32 %v358, 7
    %v360 = vsub.s32 2, %v359
    %v361 = vrot.slane %v348, %v360
    %v397 = vunpack.c.l.b16 %v316
    %v398 = vunpack.c.h.b16 %v316
    %v399 = vunpack.c.l.b16 %v317
    %v400 = vunpack.c.l.b16 %v318
    %v401 = vunpack.c.h.b16 %v318
    %v402 = vunpack.c.l.b16 %v319
    %v403 = vunpack.c.l.b16 %v320
    %v404 = vunpack.c.h.b16 %v320
    %v405 = vunpack.c.l.b16 %v321
    %v406 = vunpack.c.l.b16 %v322
    %v407 = vunpack.c.h.b16 %v322
    %v408 = vunpack.c.l.b16 %v323
    %v409 = vunpack.c.l.b16 %v324
    %v410 = vunpack.c.h.b16 %v324
    %v411 = vunpack.c.l.b16 %v325
    %v412 = vunpack.c.l.b16 %v326
    %v413 = vunpack.c.h.b16 %v326
    %v414 = vunpack.c.l.b16 %v327
    %v415 = vunpack.c.l.b16 %v328
    %v416 = vunpack.c.h.b16 %v328
    %v417 = vunpack.c.l.b16 %v329
    %v418 = vunpack.c.l.b16 %v330
    %v419 = vunpack.c.h.b16 %v330
    %v420 = vunpack.c.l.b16 %v331
    %v421 = vunpack.c.l.b16 %v332
    %v422 = vunpack.c.h.b16 %v332
    %v423 = vunpack.c.l.b16 %v333
    %v424 = vunpack.c.l.b16 %v334
    %v425 = vunpack.c.h.b16 %v334
    %v426 = vunpack.c.l.b16 %v335
    %v427 = vunpack.c.l.b16 %v336
    %v428 = vunpack.c.h.b16 %v336
    %v429 = vunpack.c.l.b16 %v337
    %v430 = vunpack.c.l.b16 %v338
    %v431 = vunpack.c.h.b16 %v338
    %v432 = vunpack.c.l.b16 %v339
    %v433 = vunpack.c.l.b16 %v340
    %v434 = vunpack.c.h.b16 %v340
    %v435 = vunpack.c.l.b16 %v341
    %v436 = vunpack.c.l.b16 %v342
    %v437 = vunpack.c.h.b16 %v342
    %v438 = vunpack.c.l.b16 %v343
    %v439 = vunpack.c.l.b16 %v344
    %v440 = vunpack.c.h.b16 %v344
    %v441 = vunpack.c.l.b16 %v345
    %v442 = vunpack.c.l.b16 %v346
    %v443 = vunpack.c.h.b16 %v346
    %v444 = vunpack.c.l.b16 %v347
    %v445 = vpack.c.b16 %v400, %v397
    %v446 = vpack.c.b16 %v401, %v398
    %v447 = vpack.c.b16 %v402, %v399
    %v448 = vpack.c.b16 %v406, %v403
    %v449 = vpack.c.b16 %v407, %v404
    %v450 = vpack.c.b16 %v408, %v405
    %v451 = vpack.c.b16 %v412, %v409
    %v452 = vpack.c.b16 %v413, %v410
    %v453 = vpack.c.b16 %v414, %v411
    %v454 = vpack.c.b16 %v418, %v415
    %v455 = vpack.c.b16 %v419, %v416
    %v456 = vpack.c.b16 %v420, %v417
    %v457 = vpack.c.b16 %v424, %v421
    %v458 = vpack.c.b16 %v425, %v422
    %v459 = vpack.c.b16 %v426, %v423
    %v460 = vpack.c.b16 %v430, %v427
    %v461 = vpack.c.b16 %v431, %v428
    %v462 = vpack.c.b16 %v432, %v429
    %v463 = vpack.c.b16 %v436, %v433
    %v464 = vpack.c.b16 %v437, %v434
    %v465 = vpack.c.b16 %v438, %v435
    %v466 = vpack.c.b16 %v442, %v439
    %v467 = vpack.c.b16 %v443, %v440
    %v468 = vpack.c.b16 %v444, %v441
    %493 = vmatprep.subr.bf16.mxu0 %v446
    %494 = vmatpush1.bf16.msra.mxu0 %v445
    %495 = vmatprep.subr.bf16.mxu0 %v449
    %496 = vmatpush1.bf16.msra.mxu0 %v448
    %497 = vmatprep.subr.bf16.mxu0 %v452
    %498 = vmatpush1.bf16.msra.mxu0 %v451
    %499 = vmatprep.subr.bf16.mxu0 %v455
    %500 = vmatpush1.bf16.msra.mxu0 %v454
    %501 = vmatprep.subr.bf16.mxu0 %v458
    %502 = vmatpush1.bf16.msra.mxu0 %v457
    %503 = vmatprep.subr.bf16.mxu0 %v461
    %504 = vmatpush1.bf16.msra.mxu0 %v460
    %505 = vmatprep.subr.bf16.mxu0 %v464
    %506 = vmatpush1.bf16.msra.mxu0 %v463
    %507 = vmatprep.subr.bf16.mxu0 %v467
    %508 = vmatpush1.bf16.msra.mxu0 %v466
    %509 = vmatprep.subr.bf16.mxu0 0
    %510 = vmatpush1.bf16.msra.mxu0 0
    %511 = vmatprep.subr.bf16.mxu0 0
    %512 = vmatpush1.bf16.msra.mxu0 0
    %513 = vmatprep.subr.bf16.mxu0 0
    %514 = vmatpush1.bf16.msra.mxu0 0
    %515 = vmatprep.subr.bf16.mxu0 0
    %516 = vmatpush1.bf16.msra.mxu0 0
    %517 = vmatprep.subr.bf16.mxu0 0
    %518 = vmatpush1.bf16.msra.mxu0 0
    %519 = vmatprep.subr.bf16.mxu0 0
    %520 = vmatpush1.bf16.msra.mxu0 0
    %521 = vmatprep.subr.bf16.mxu0 0
    %522 = vmatpush1.bf16.msra.mxu0 0
    %523 = vmatprep.subr.bf16.mxu0 0
    %524 = vmatpush1.bf16.msra.mxu0 0
    %525 = vmatprep.mubr.bf16.mxu0 0
    %526 = vmatmul.mubr.bf16.gmra.mrb[0].mxu0 %v308
    %v527 = vpop.f32.mrb[0].mxu0
    %v528 = vadd.f32 %v353, %v527
    %v529 = vpop.f32.mrb[0].mxu0
    %v530 = vadd.f32 %v357, %v529
    %v531 = vpop.f32.mrb[0].mxu0
    %v532 = vadd.f32 %v353, %v531
    %v533 = vpop.f32.mrb[0].mxu0
    %v534 = vadd.f32 %v357, %v533
    %535 = vmatprep.mubr.bf16.mxu0 0
    %536 = vmatmul.mubr.bf16.gmra.mrb[0].mxu0 %v309
    %v537 = vpop.f32.mrb[0].mxu0
    %v538 = vadd.f32 %v353, %v537
    %v539 = vpop.f32.mrb[0].mxu0
    %v540 = vadd.f32 %v357, %v539
    %v541 = vpop.f32.mrb[0].mxu0
    %v542 = vadd.f32 %v353, %v541
    %v543 = vpop.f32.mrb[0].mxu0
    %v544 = vadd.f32 %v357, %v543
    %545 = vmatprep.mubr.bf16.mxu0 0
    %546 = vmatmul.mubr.bf16.gmra.mrb[0].mxu0 %v310
    %v547 = vpop.f32.mrb[0].mxu0
    %v548 = vadd.f32 %v353, %v547
    %v549 = vpop.f32.mrb[0].mxu0
    %v550 = vadd.f32 %v357, %v549
    %v551 = vpop.f32.mrb[0].mxu0
    %v552 = vadd.f32 %v353, %v551
    %v553 = vpop.f32.mrb[0].mxu0
    %v554 = vadd.f32 %v357, %v553
    %555 = vmatprep.mubr.bf16.mxu0 0
    %556 = vmatmul.mubr.bf16.gmra.mrb[0].mxu0 %v311
    %v557 = vpop.f32.mrb[0].mxu0
    %v558 = vadd.f32 %v353, %v557
    %v559 = vpop.f32.mrb[0].mxu0
    %v560 = vadd.f32 %v357, %v559
    %v561 = vpop.f32.mrb[0].mxu0
    %v562 = vadd.f32 %v353, %v561
    %v563 = vpop.f32.mrb[0].mxu0
    %v564 = vadd.f32 %v357, %v563
    %565 = vmatprep.mubr.bf16.mxu0 0
    %566 = vmatmul.mubr.bf16.gmra.mrb[0].mxu0 %v312
    %v567 = vpop.f32.mrb[0].mxu0
    %v568 = vadd.f32 %v353, %v567
    %v569 = vpop.f32.mrb[0].mxu0
    %v570 = vadd.f32 %v357, %v569
    %v571 = vpop.f32.mrb[0].mxu0
    %v572 = vadd.f32 %v353, %v571
    %v573 = vpop.f32.mrb[0].mxu0
    %v574 = vadd.f32 %v357, %v573
    %575 = vmatprep.mubr.bf16.mxu0 0
    %576 = vmatmul.mubr.bf16.gmra.mrb[0].mxu0 %v313
    %v577 = vpop.f32.mrb[0].mxu0
    %v578 = vadd.f32 %v353, %v577
    %v579 = vpop.f32.mrb[0].mxu0
    %v580 = vadd.f32 %v357, %v579
    %v581 = vpop.f32.mrb[0].mxu0
    %v582 = vadd.f32 %v353, %v581
    %v583 = vpop.f32.mrb[0].mxu0
    %v584 = vadd.f32 %v357, %v583
    %585 = vmatprep.mubr.bf16.mxu0 0
    %586 = vmatmul.mubr.bf16.gmra.mrb[0].mxu0 %v314
    %v587 = vpop.f32.mrb[0].mxu0
    %v588 = vadd.f32 %v353, %v587
    %v589 = vpop.f32.mrb[0].mxu0
    %v590 = vadd.f32 %v357, %v589
    %v591 = vpop.f32.mrb[0].mxu0
    %v592 = vadd.f32 %v353, %v591
    %v593 = vpop.f32.mrb[0].mxu0
    %v594 = vadd.f32 %v357, %v593
    %595 = vmatprep.mubr.bf16.mxu0 0
    %596 = vmatmul.mubr.bf16.gmra.mrb[0].mxu0 %v315
    %v597 = vpop.f32.mrb[0].mxu0
    %v598 = vadd.f32 %v353, %v597
    %v599 = vpop.f32.mrb[0].mxu0
    %v600 = vadd.f32 %v357, %v599
    %v601 = vpop.f32.mrb[0].mxu0
    %v602 = vadd.f32 %v353, %v601
    %v603 = vpop.f32.mrb[0].mxu0
    %v604 = vadd.f32 %v357, %v603
    %605 = vdwg.mxu0
    %606 = vmatprep.subr.bf16.mxu0 0
    %607 = vmatpush1.bf16.msra.mxu0 %v447
    %608 = vmatprep.subr.bf16.mxu0 0
    %609 = vmatpush1.bf16.msra.mxu0 %v450
    %610 = vmatprep.subr.bf16.mxu0 0
    %611 = vmatpush1.bf16.msra.mxu0 %v453
    %612 = vmatprep.subr.bf16.mxu0 0
    %613 = vmatpush1.bf16.msra.mxu0 %v456
    %614 = vmatprep.subr.bf16.mxu0 0
    %615 = vmatpush1.bf16.msra.mxu0 %v459
    %616 = vmatprep.subr.bf16.mxu0 0
    %617 = vmatpush1.bf16.msra.mxu0 %v462
    %618 = vmatprep.subr.bf16.mxu0 0
    %619 = vmatpush1.bf16.msra.mxu0 %v465
    %620 = vmatprep.subr.bf16.mxu0 0
    %621 = vmatpush1.bf16.msra.mxu0 %v468
    %622 = vmatprep.subr.bf16.mxu0 0
    %623 = vmatpush1.bf16.msra.mxu0 0
    %624 = vmatprep.subr.bf16.mxu0 0
    %625 = vmatpush1.bf16.msra.mxu0 0
    %626 = vmatprep.subr.bf16.mxu0 0
    %627 = vmatpush1.bf16.msra.mxu0 0
    %628 = vmatprep.subr.bf16.mxu0 0
    %629 = vmatpush1.bf16.msra.mxu0 0
    %630 = vmatprep.subr.bf16.mxu0 0
    %631 = vmatpush1.bf16.msra.mxu0 0
    %632 = vmatprep.subr.bf16.mxu0 0
    %633 = vmatpush1.bf16.msra.mxu0 0
    %634 = vmatprep.subr.bf16.mxu0 0
    %635 = vmatpush1.bf16.msra.mxu0 0
    %636 = vmatprep.subr.bf16.mxu0 0
    %637 = vmatpush1.bf16.msra.mxu0 0
    %638 = vmatprep.mubr.bf16.mxu0 0
    %639 = vmatmul.mubr.bf16.gmra.mrb[0].mxu0 %v308
    %v640 = vpop.f32.mrb[0].mxu0
    %v641 = vadd.f32 %v361, %v640
    %v642 = vpop.f32.mrb[0].mxu0
    %v643 = vpop.f32.mrb[0].mxu0
    %v644 = vadd.f32 %v361, %v643
    %v645 = vpop.f32.mrb[0].mxu0
    %646 = vmatprep.mubr.bf16.mxu0 0
    %647 = vmatmul.mubr.bf16.gmra.mrb[0].mxu0 %v309
    %v648 = vpop.f32.mrb[0].mxu0
    %v649 = vadd.f32 %v361, %v648
    %v650 = vpop.f32.mrb[0].mxu0
    %v651 = vpop.f32.mrb[0].mxu0
    %v652 = vadd.f32 %v361, %v651
    %v653 = vpop.f32.mrb[0].mxu0
    %654 = vmatprep.mubr.bf16.mxu0 0
    %655 = vmatmul.mubr.bf16.gmra.mrb[0].mxu0 %v310
    %v656 = vpop.f32.mrb[0].mxu0
    %v657 = vadd.f32 %v361, %v656
    %v658 = vpop.f32.mrb[0].mxu0
    %v659 = vpop.f32.mrb[0].mxu0
    %v660 = vadd.f32 %v361, %v659
    %v661 = vpop.f32.mrb[0].mxu0
    %662 = vmatprep.mubr.bf16.mxu0 0
    %663 = vmatmul.mubr.bf16.gmra.mrb[0].mxu0 %v311
    %v664 = vpop.f32.mrb[0].mxu0
    %v665 = vadd.f32 %v361, %v664
    %v666 = vpop.f32.mrb[0].mxu0
    %v667 = vpop.f32.mrb[0].mxu0
    %v668 = vadd.f32 %v361, %v667
    %v669 = vpop.f32.mrb[0].mxu0
    %670 = vmatprep.mubr.bf16.mxu0 0
    %671 = vmatmul.mubr.bf16.gmra.mrb[0].mxu0 %v312
    %v672 = vpop.f32.mrb[0].mxu0
    %v673 = vadd.f32 %v361, %v672
    %v674 = vpop.f32.mrb[0].mxu0
    %v675 = vpop.f32.mrb[0].mxu0
    %v676 = vadd.f32 %v361, %v675
    %v677 = vpop.f32.mrb[0].mxu0
    %678 = vmatprep.mubr.bf16.mxu0 0
    %679 = vmatmul.mubr.bf16.gmra.mrb[0].mxu0 %v313
    %v680 = vpop.f32.mrb[0].mxu0
    %v681 = vadd.f32 %v361, %v680
    %v682 = vpop.f32.mrb[0].mxu0
    %v683 = vpop.f32.mrb[0].mxu0
    %v684 = vadd.f32 %v361, %v683
    %v685 = vpop.f32.mrb[0].mxu0
    %686 = vmatprep.mubr.bf16.mxu0 0
    %687 = vmatmul.mubr.bf16.gmra.mrb[0].mxu0 %v314
    %v688 = vpop.f32.mrb[0].mxu0
    %v689 = vadd.f32 %v361, %v688
    %v690 = vpop.f32.mrb[0].mxu0
    %v691 = vpop.f32.mrb[0].mxu0
    %v692 = vadd.f32 %v361, %v691
    %v693 = vpop.f32.mrb[0].mxu0
    %694 = vmatprep.mubr.bf16.mxu0 0
    %695 = vmatmul.mubr.bf16.gmra.mrb[0].mxu0 %v315
    %v696 = vpop.f32.mrb[0].mxu0
    %v697 = vadd.f32 %v361, %v696
    %v698 = vpop.f32.mrb[0].mxu0
    %v699 = vpop.f32.mrb[0].mxu0
    %v700 = vadd.f32 %v361, %v699
    %v701 = vpop.f32.mrb[0].mxu0
    %702 = vdwg.mxu0
    %703 = vst [vmem:[%s5] sm:$0xff] %v528
    %704 = vst [vmem:[%s5 + $0x8] sm:$0xff] %v530
    %705 = vst [vmem:[%s5 + $0x10] sm:$0xff] %v641
    %706 = vst [vmem:[%s5 + $0x18] sm:$0xff] %v532
    %707 = vst [vmem:[%s5 + $0x20] sm:$0xff] %v534
    %708 = vst [vmem:[%s5 + $0x28] sm:$0xff] %v644
    %709 = vst [vmem:[%s5 + $0x30] sm:$0xff] %v538
    %710 = vst [vmem:[%s5 + $0x38] sm:$0xff] %v540
    %711 = vst [vmem:[%s5 + $0x40] sm:$0xff] %v649
    %712 = vst [vmem:[%s5 + $0x48] sm:$0xff] %v542
    %713 = vst [vmem:[%s5 + $0x50] sm:$0xff] %v544
    %714 = vst [vmem:[%s5 + $0x58] sm:$0xff] %v652
    %715 = vst [vmem:[%s5 + $0x60] sm:$0xff] %v548
    %716 = vst [vmem:[%s5 + $0x68] sm:$0xff] %v550
    %717 = vst [vmem:[%s5 + $0x70] sm:$0xff] %v657
    %718 = vst [vmem:[%s5 + $0x78] sm:$0xff] %v552
    %719 = vst [vmem:[%s5 + $0x80] sm:$0xff] %v554
    %720 = vst [vmem:[%s5 + $0x88] sm:$0xff] %v660
    %721 = vst [vmem:[%s5 + $0x90] sm:$0xff] %v558
    %722 = vst [vmem:[%s5 + $0x98] sm:$0xff] %v560
    %723 = vst [vmem:[%s5 + $0xa0] sm:$0xff] %v665
    %724 = vst [vmem:[%s5 + $0xa8] sm:$0xff] %v562
    %725 = vst [vmem:[%s5 + $0xb0] sm:$0xff] %v564
    %726 = vst [vmem:[%s5 + $0xb8] sm:$0xff] %v668
    %727 = vst [vmem:[%s5 + $0xc0] sm:$0xff] %v568
    %728 = vst [vmem:[%s5 + $0xc8] sm:$0xff] %v570
    %729 = vst [vmem:[%s5 + $0xd0] sm:$0xff] %v673
    %730 = vst [vmem:[%s5 + $0xd8] sm:$0xff] %v572
    %731 = vst [vmem:[%s5 + $0xe0] sm:$0xff] %v574
    %732 = vst [vmem:[%s5 + $0xe8] sm:$0xff] %v676
    %733 = vst [vmem:[%s5 + $0xf0] sm:$0xff] %v578
    %734 = vst [vmem:[%s5 + $0xf8] sm:$0xff] %v580
    %735 = vst [vmem:[%s5 + $0x100] sm:$0xff] %v681
    %736 = vst [vmem:[%s5 + $0x108] sm:$0xff] %v582
    %737 = vst [vmem:[%s5 + $0x110] sm:$0xff] %v584
    %738 = vst [vmem:[%s5 + $0x118] sm:$0xff] %v684
    %739 = vst [vmem:[%s5 + $0x120] sm:$0xff] %v588
    %740 = vst [vmem:[%s5 + $0x128] sm:$0xff] %v590
    %741 = vst [vmem:[%s5 + $0x130] sm:$0xff] %v689
    %742 = vst [vmem:[%s5 + $0x138] sm:$0xff] %v592
    %743 = vst [vmem:[%s5 + $0x140] sm:$0xff] %v594
    %744 = vst [vmem:[%s5 + $0x148] sm:$0xff] %v692
    %745 = vst [vmem:[%s5 + $0x150] sm:$0xff] %v598
    %746 = vst [vmem:[%s5 + $0x158] sm:$0xff] %v600
    %747 = vst [vmem:[%s5 + $0x160] sm:$0xff] %v697
    %748 = vst [vmem:[%s5 + $0x168] sm:$0xff] %v602
    %749 = vst [vmem:[%s5 + $0x170] sm:$0xff] %v604
    %750 = vst [vmem:[%s5 + $0x178] sm:$0xff] %v700
    // Predicated region
    $region34: #{encoder_forward.9} parent=1 // pred_check
      _
    $region35: #{encoder_forward.9} parent=1 // pred_check_branch
      %752 = sbr.rel (0) target = $region37
    $region36: #{encoder_forward.9} parent=1 // pred_region
      _
    $region37: #{encoder_forward.9} parent=1 // pred_fallthru
      _
    // Predicated region
    $region38: #{encoder_forward.9} parent=1 // pred_check
      _
    $region39: #{encoder_forward.9} parent=1 // pred_check_branch
      %754 = sbr.rel (0) target = $region41
    $region40: #{encoder_forward.9} parent=1 // pred_region
      _
    $region41: #{encoder_forward.9} parent=1 // pred_fallthru
      _
    %755 = vsyncpa [#allocation4], 1
    %756 = vsyncpa [#allocation6], 1

// kernel: encoder_forward.10
$region0: #{encoder_forward.10}
  #allocation0 [shape = 'u32[]', space=smem, size = 0x4, offset = 0x4, fixed_abs, tag = 'smem constant byte address 0x4 - core index']
  #allocation1 [shape = 'u32[144,128]{1,0:T(1,128)}', space=vmem, size = 0x12000, scoped, tag = 'internal scratch']
  %s0 = inlined_call_operand.vmem [shape: f32[2,64,384], index: 0, kind: input, shape index: {}, may-alias: {0,1,2}]
  %s1 = inlined_call_operand.vmem [shape: f32[2,64,384], index: 1, kind: input, shape index: {}, may-alias: {0,1,2}]
  %s2 = inlined_call_operand.vmem [shape: f32[2,64,384], index: 2, kind: input, shape index: {}, may-alias: {0,1,2}]
  %s3 = inlined_call_operand.vmem [shape: f32[2,64,128], index: 3, kind: output, shape index: {}]
  %s4 = sld [smem:[#allocation0]]
  $region159: #{encoder_forward.10} parent=0
    _
  %s6 = ssub.s32 1, %s4
  %s7 = scalar_select 0, %s6, %s4
  $region1: #{encoder_forward.10} parent=0
    #allocation2 [shape = 'u8[65536]{0}', space=vmem, size = 0x10000, scoped, tag = 'input window, operand 0']
    #allocation3 [shape = 'u8[65536]{0}', space=vmem, size = 0x10000, scoped, tag = 'input window, operand 1']
    #allocation4 [shape = 'u8[65536]{0}', space=vmem, size = 0x10000, scoped, tag = 'input window, operand 2']
    loop: start=0, step=1, limit=4
    $region2: #{encoder_forward.10} parent=1 // loop_pre_header
      _
    $region3: #{encoder_forward.10} parent=1 // loop_header
      %s9 = sphi 0, %s13
      %p10 = scmp.ge.s32.totalorder %s9, 4
      %s16 = sphi 0, %s28
      %s17 = sphi 0, %s24
      %s18 = sphi 0, %s16
      %s19 = sphi 0, %s17
      %s20 = sphi 0, %s18
      %s21 = sphi 0, %s19
      %s33 = sphi 0, %s35
      %s36 = sphi 0, %s33
      %s37 = sphi 0, %s36
      %s53 = sphi 0, %s37
      %s63 = sphi 0, %s65
      %s66 = sphi 0, %s63
      %s67 = sphi 0, %s66
      %s83 = sphi 0, %s67
      %s93 = sphi 0, %s95
      %s96 = sphi 0, %s93
      %s97 = sphi 0, %s96
      %s113 = sphi 0, %s97
      %s121 = sphi 0, %s123
      %s124 = sphi 0, %s121
      %s125 = sphi 0, %s124
      %s141 = sphi 0, %s125
    $region4: #{encoder_forward.10} parent=1 // loop_header_branch
      %12 = sbr.rel (%p10) target = $region8
    $region5: #{encoder_forward.10} parent=1 // loop_body
      %s14 = ssub.s32 %s9, 1
      %s15 = ssub.s32 %s9, 2
      %s22 = sadd.s32 1, %s17
      %p23 = scmp.ge.s32.totalorder %s22, 1
      %s24 = scalar_select %p23, 0, %s22
      %s25 = sadd.s32 1, %s16
      %s26 = scalar_select %p23, %s25, %s16
      %p27 = scmp.ge.s32.totalorder %s26, 2
      %s28 = scalar_select %p27, 0, %s26
      %s29 = ssub.s32 %s16, %s28
      %s30 = ssub.s32 %s17, %s24
      %s31 = sor.u32 %s29, %s30
      %p32 = scmp.eq.s32.totalorder %s31, 0
      %s34 = sadd.s32 %s33, 1
      %s35 = scalar_select %p32, %s33, %s34
      %p38 = pneg %p32
      %p39 = scmp.eq.s32.totalorder %s9, 1
      %p40 = por %p38, %p39
      %p41 = scmp.ne.s32.totalorder %s33, %s36
      %p42 = scmp.eq.s32.totalorder %s9, 0
      %p43 = por %p41, %p42
      %p44 = scmp.ne.s32.totalorder %s33, %s36
      %p45 = scmp.eq.s32.totalorder %s14, 1
      %p46 = por %p44, %p45
      %p47 = scmp.ne.s32.totalorder %s36, %s37
      %p48 = scmp.eq.s32.totalorder %s14, 0
      %p49 = por %p47, %p48
      %p50 = scmp.ne.s32.totalorder %s36, %s37
      %p51 = scmp.eq.s32.totalorder %s15, 1
      %p52 = por %p50, %p51
      %p54 = scmp.ne.s32.totalorder %s37, %s53
      %p55 = scmp.eq.s32.totalorder %s15, 0
      %p56 = por %p54, %p55
      %s57 = sadd.s32 %s17, 1
      %s58 = sadd.s32 %s24, 1
      %s59 = ssub.s32 %s16, %s28
      %s60 = ssub.s32 %s57, %s58
      %s61 = sor.u32 %s59, %s60
      %p62 = scmp.eq.s32.totalorder %s61, 0
      %s64 = sadd.s32 %s63, 1
      %s65 = scalar_select %p62, %s63, %s64
      %p68 = pneg %p62
      %p69 = scmp.eq.s32.totalorder %s9, 1
      %p70 = por %p68, %p69
      %p71 = scmp.ne.s32.totalorder %s63, %s66
      %p72 = scmp.eq.s32.totalorder %s9, 0
      %p73 = por %p71, %p72
      %p74 = scmp.ne.s32.totalorder %s63, %s66
      %p75 = scmp.eq.s32.totalorder %s14, 1
      %p76 = por %p74, %p75
      %p77 = scmp.ne.s32.totalorder %s66, %s67
      %p78 = scmp.eq.s32.totalorder %s14, 0
      %p79 = por %p77, %p78
      %p80 = scmp.ne.s32.totalorder %s66, %s67
      %p81 = scmp.eq.s32.totalorder %s15, 1
      %p82 = por %p80, %p81
      %p84 = scmp.ne.s32.totalorder %s67, %s83
      %p85 = scmp.eq.s32.totalorder %s15, 0
      %p86 = por %p84, %p85
      %s87 = sadd.s32 %s17, 2
      %s88 = sadd.s32 %s24, 2
      %s89 = ssub.s32 %s16, %s28
      %s90 = ssub.s32 %s87, %s88
      %s91 = sor.u32 %s89, %s90
      %p92 = scmp.eq.s32.totalorder %s91, 0
      %s94 = sadd.s32 %s93, 1
      %s95 = scalar_select %p92, %s93, %s94
      %p98 = pneg %p92
      %p99 = scmp.eq.s32.totalorder %s9, 1
      %p100 = por %p98, %p99
      %p101 = scmp.ne.s32.totalorder %s93, %s96
      %p102 = scmp.eq.s32.totalorder %s9, 0
      %p103 = por %p101, %p102
      %p104 = scmp.ne.s32.totalorder %s93, %s96
      %p105 = scmp.eq.s32.totalorder %s14, 1
      %p106 = por %p104, %p105
      %p107 = scmp.ne.s32.totalorder %s96, %s97
      %p108 = scmp.eq.s32.totalorder %s14, 0
      %p109 = por %p107, %p108
      %p110 = scmp.ne.s32.totalorder %s96, %s97
      %p111 = scmp.eq.s32.totalorder %s15, 1
      %p112 = por %p110, %p111
      %p114 = scmp.ne.s32.totalorder %s97, %s113
      %p115 = scmp.eq.s32.totalorder %s15, 0
      %p116 = por %p114, %p115
      %s117 = ssub.s32 %s16, %s28
      %s118 = ssub.s32 %s17, %s24
      %s119 = sor.u32 %s117, %s118
      %p120 = scmp.eq.s32.totalorder %s119, 0
      %s122 = sadd.s32 %s121, 1
      %s123 = scalar_select %p120, %s121, %s122
      %p126 = pneg %p120
      %p127 = scmp.eq.s32.totalorder %s9, 1
      %p128 = por %p126, %p127
      %p129 = scmp.ne.s32.totalorder %s121, %s124
      %p130 = scmp.eq.s32.totalorder %s9, 0
      %p131 = por %p129, %p130
      %p132 = scmp.ne.s32.totalorder %s121, %s124
      %p133 = scmp.eq.s32.totalorder %s14, 1
      %p134 = por %p132, %p133
      %p135 = scmp.ne.s32.totalorder %s124, %s125
      %p136 = scmp.eq.s32.totalorder %s14, 0
      %p137 = por %p135, %p136
      %p138 = scmp.ne.s32.totalorder %s124, %s125
      %p139 = scmp.eq.s32.totalorder %s15, 1
      %p140 = por %p138, %p139
      %p142 = scmp.ne.s32.totalorder %s125, %s141
      %p143 = scmp.eq.s32.totalorder %s15, 0
      %p144 = por %p142, %p143
      %p145 = scmp.le.s32.totalorder 1, %s9
      %p146 = scmp.lt.s32.totalorder %s9, 3
      %p147 = pnand %p145, %p146
      %p148 = pneg %p147
      // Predicated region
      $region9: #{encoder_forward.10} parent=5 // pred_check
        _
      $region10: #{encoder_forward.10} parent=5 // pred_check_branch
        %150 = sbr.rel (%p147) target = $region12
      $region11: #{encoder_forward.10} parent=5 // pred_region
        %s151 = ssub.s32 %s9, 1
      $region12: #{encoder_forward.10} parent=5 // pred_fallthru
        _
      %p152 = scmp.lt.s32.totalorder %s9, 2
      // Predicated region
      $region13: #{encoder_forward.10} parent=5 // pred_check
        %p153 = pneg %p152
      $region14: #{encoder_forward.10} parent=5 // pred_check_branch
        %155 = sbr.rel (%p153) target = $region16
      $region15: #{encoder_forward.10} parent=5 // pred_region
        // Predicated region
        $region17: #{encoder_forward.10} parent=15 // pred_check
          %p156 = pneg %p43
        $region18: #{encoder_forward.10} parent=15 // pred_check_branch
          %158 = sbr.rel (%p156) target = $region20
        $region19: #{encoder_forward.10} parent=15 // pred_region
          %s159 = sand.u32 %s33, 1
          %s160 = sand.u32 %s33, 1
          %s161 = smul.addr %s160, 64
          %s162 = scalar_lea.vmem [#allocation2], %s161
          %s163 = smul.addr %s16, 24
          %s164 = sadd.s32 %s17, %s163
          %s165 = smul.addr %s164, 8
          %s166 = scalar_lea.vmem %s0, %s165
          // Predicated region
          $region21: #{encoder_forward.10} parent=19 // pred_check
            _
          $region22: #{encoder_forward.10} parent=19 // pred_check_branch
            %168 = sbr.rel (0) target = $region24
          $region23: #{encoder_forward.10} parent=19 // pred_region
            // Predicated region
            $region25: #{encoder_forward.10} parent=23 // pred_check
              _
            $region26: #{encoder_forward.10} parent=23 // pred_check_branch
              %170 = sbr.rel (0) target = $region28
            $region27: #{encoder_forward.10} parent=23 // pred_region
              // Predicated region
              $region40: #{encoder_forward.10} parent=27 // pred_check
                _
              $region41: #{encoder_forward.10} parent=27 // pred_check_branch
                %199 = sbr.rel (0) target = $region43
              $region42: #{encoder_forward.10} parent=27 // pred_region
                loop: start=0, step=1, limit=1
                $region44: #{encoder_forward.10} parent=42 // loop_pre_header
                  _
                $region45: #{encoder_forward.10} parent=42 // loop_header
                  %s201 = sphi 0, %s205
                  %p202 = scmp.ge.s32.totalorder %s201, 1
                  %s206 = sphi %s166, %s166
                  %s207 = sphi %s162, %s162
                $region46: #{encoder_forward.10} parent=42 // loop_header_branch
                  %204 = sbr.rel (%p202) target = $region50
                $region47: #{encoder_forward.10} parent=42 // loop_body
                  %v208 = vld [vmem:[%s206] sm:$0xff]
                  %209 = vst [vmem:[%s207] sm:$0xff] %v208
                  %v210 = vld [vmem:[%s206 + $0x18] sm:$0xff]
                  %211 = vst [vmem:[%s207 + $0x8] sm:$0xff] %v210
                  %v212 = vld [vmem:[%s206 + $0x30] sm:$0xff]
                  %213 = vst [vmem:[%s207 + $0x10] sm:$0xff] %v212
                  %v214 = vld [vmem:[%s206 + $0x48] sm:$0xff]
                  %215 = vst [vmem:[%s207 + $0x18] sm:$0xff] %v214
                  %v216 = vld [vmem:[%s206 + $0x60] sm:$0xff]
                  %217 = vst [vmem:[%s207 + $0x20] sm:$0xff] %v216
                  %v218 = vld [vmem:[%s206 + $0x78] sm:$0xff]
                  %219 = vst [vmem:[%s207 + $0x28] sm:$0xff] %v218
                  %v220 = vld [vmem:[%s206 + $0x90] sm:$0xff]
                  %221 = vst [vmem:[%s207 + $0x30] sm:$0xff] %v220
                  %v222 = vld [vmem:[%s206 + $0xa8] sm:$0xff]
                  %223 = vst [vmem:[%s207 + $0x38] sm:$0xff] %v222
                $region48: #{encoder_forward.10} parent=42 // loop_footer
                  %s205 = sadd.s32 1, %s201
                $region49: #{encoder_forward.10} parent=42 // loop_footer_branch
                  %200 = sbr.rel target = $region45
                $region50: #{encoder_forward.10} parent=42 // loop_exit
                  _
              $region43: #{encoder_forward.10} parent=27 // pred_fallthru
                _
              // Predicated region
              $region51: #{encoder_forward.10} parent=27 // pred_check
                _
              $region52: #{encoder_forward.10} parent=27 // pred_check_branch
                %225 = sbr.rel target = $region54
              $region53: #{encoder_forward.10} parent=27 // pred_region
                _
              $region54: #{encoder_forward.10} parent=27 // pred_fallthru
                _
            $region28: #{encoder_forward.10} parent=23 // pred_fallthru
              _
            // Predicated region
            $region29: #{encoder_forward.10} parent=23 // pred_check
              _
            $region30: #{encoder_forward.10} parent=23 // pred_check_branch
              %172 = sbr.rel target = $region32
            $region31: #{encoder_forward.10} parent=23 // pred_region
              loop: start=0, step=1, limit=1
              $region33: #{encoder_forward.10} parent=31 // loop_pre_header
                _
              $region34: #{encoder_forward.10} parent=31 // loop_header
                %s175 = sphi 0, %s179
                %p176 = scmp.ge.s32.totalorder %s175, 1
                %s180 = sphi %s166, %s166
                %s181 = sphi %s162, %s162
              $region35: #{encoder_forward.10} parent=31 // loop_header_branch
                %178 = sbr.rel (%p176) target = $region39
              $region36: #{encoder_forward.10} parent=31 // loop_body
                %v182 = vld [vmem:[%s180] sm:$0xff]
                %183 = vst [vmem:[%s181] sm:$0xff] %v182
                %v184 = vld [vmem:[%s180 + $0x18] sm:$0xff]
                %185 = vst [vmem:[%s181 + $0x8] sm:$0xff] %v184
                %v186 = vld [vmem:[%s180 + $0x30] sm:$0xff]
                %187 = vst [vmem:[%s181 + $0x10] sm:$0xff] %v186
                %v188 = vld [vmem:[%s180 + $0x48] sm:$0xff]
                %189 = vst [vmem:[%s181 + $0x18] sm:$0xff] %v188
                %v190 = vld [vmem:[%s180 + $0x60] sm:$0xff]
                %191 = vst [vmem:[%s181 + $0x20] sm:$0xff] %v190
                %v192 = vld [vmem:[%s180 + $0x78] sm:$0xff]
                %193 = vst [vmem:[%s181 + $0x28] sm:$0xff] %v192
                %v194 = vld [vmem:[%s180 + $0x90] sm:$0xff]
                %195 = vst [vmem:[%s181 + $0x30] sm:$0xff] %v194
                %v196 = vld [vmem:[%s180 + $0xa8] sm:$0xff]
                %197 = vst [vmem:[%s181 + $0x38] sm:$0xff] %v196
              $region37: #{encoder_forward.10} parent=31 // loop_footer
                %s179 = sadd.s32 1, %s175
              $region38: #{encoder_forward.10} parent=31 // loop_footer_branch
                %174 = sbr.rel target = $region34
              $region39: #{encoder_forward.10} parent=31 // loop_exit
                _
            $region32: #{encoder_forward.10} parent=23 // pred_fallthru
              _
          $region24: #{encoder_forward.10} parent=19 // pred_fallthru
            _
          %226 = vnop
        $region20: #{encoder_forward.10} parent=15 // pred_fallthru
          _
        // Predicated region
        $region55: #{encoder_forward.10} parent=15 // pred_check
          %p227 = pneg %p73
        $region56: #{encoder_forward.10} parent=15 // pred_check_branch
          %229 = sbr.rel (%p227) target = $region58
        $region57: #{encoder_forward.10} parent=15 // pred_region
          %s230 = sand.u32 %s63, 1
          %s231 = sand.u32 %s63, 1
          %s232 = smul.addr %s231, 64
          %s233 = scalar_lea.vmem [#allocation3], %s232
          %s234 = sadd.s32 %s17, 1
          %s235 = smul.addr %s16, 24
          %s236 = sadd.s32 %s234, %s235
          %s237 = smul.addr %s236, 8
          %s238 = scalar_lea.vmem %s1, %s237
          // Predicated region
          $region59: #{encoder_forward.10} parent=57 // pred_check
            _
          $region60: #{encoder_forward.10} parent=57 // pred_check_branch
            %240 = sbr.rel (0) target = $region62
          $region61: #{encoder_forward.10} parent=57 // pred_region
            // Predicated region
            $region63: #{encoder_forward.10} parent=61 // pred_check
              _
            $region64: #{encoder_forward.10} parent=61 // pred_check_branch
              %242 = sbr.rel (0) target = $region66
            $region65: #{encoder_forward.10} parent=61 // pred_region
              // Predicated region
              $region78: #{encoder_forward.10} parent=65 // pred_check
                _
              $region79: #{encoder_forward.10} parent=65 // pred_check_branch
                %271 = sbr.rel (0) target = $region81
              $region80: #{encoder_forward.10} parent=65 // pred_region
                loop: start=0, step=1, limit=1
                $region82: #{encoder_forward.10} parent=80 // loop_pre_header
                  _
                $region83: #{encoder_forward.10} parent=80 // loop_header
                  %s273 = sphi 0, %s277
                  %p274 = scmp.ge.s32.totalorder %s273, 1
                  %s278 = sphi %s238, %s238
                  %s279 = sphi %s233, %s233
                $region84: #{encoder_forward.10} parent=80 // loop_header_branch
                  %276 = sbr.rel (%p274) target = $region88
                $region85: #{encoder_forward.10} parent=80 // loop_body
                  %v280 = vld [vmem:[%s278] sm:$0xff]
                  %281 = vst [vmem:[%s279] sm:$0xff] %v280
                  %v282 = vld [vmem:[%s278 + $0x18] sm:$0xff]
                  %283 = vst [vmem:[%s279 + $0x8] sm:$0xff] %v282
                  %v284 = vld [vmem:[%s278 + $0x30] sm:$0xff]
                  %285 = vst [vmem:[%s279 + $0x10] sm:$0xff] %v284
                  %v286 = vld [vmem:[%s278 + $0x48] sm:$0xff]
                  %287 = vst [vmem:[%s279 + $0x18] sm:$0xff] %v286
                  %v288 = vld [vmem:[%s278 + $0x60] sm:$0xff]
                  %289 = vst [vmem:[%s279 + $0x20] sm:$0xff] %v288
                  %v290 = vld [vmem:[%s278 + $0x78] sm:$0xff]
                  %291 = vst [vmem:[%s279 + $0x28] sm:$0xff] %v290
                  %v292 = vld [vmem:[%s278 + $0x90] sm:$0xff]
                  %293 = vst [vmem:[%s279 + $0x30] sm:$0xff] %v292
                  %v294 = vld [vmem:[%s278 + $0xa8] sm:$0xff]
                  %295 = vst [vmem:[%s279 + $0x38] sm:$0xff] %v294
                $region86: #{encoder_forward.10} parent=80 // loop_footer
                  %s277 = sadd.s32 1, %s273
                $region87: #{encoder_forward.10} parent=80 // loop_footer_branch
                  %272 = sbr.rel target = $region83
                $region88: #{encoder_forward.10} parent=80 // loop_exit
                  _
              $region81: #{encoder_forward.10} parent=65 // pred_fallthru
                _
              // Predicated region
              $region89: #{encoder_forward.10} parent=65 // pred_check
                _
              $region90: #{encoder_forward.10} parent=65 // pred_check_branch
                %297 = sbr.rel target = $region92
              $region91: #{encoder_forward.10} parent=65 // pred_region
                _
              $region92: #{encoder_forward.10} parent=65 // pred_fallthru
                _
            $region66: #{encoder_forward.10} parent=61 // pred_fallthru
              _
            // Predicated region
            $region67: #{encoder_forward.10} parent=61 // pred_check
              _
            $region68: #{encoder_forward.10} parent=61 // pred_check_branch
              %244 = sbr.rel target = $region70
            $region69: #{encoder_forward.10} parent=61 // pred_region
              loop: start=0, step=1, limit=1
              $region71: #{encoder_forward.10} parent=69 // loop_pre_header
                _
              $region72: #{encoder_forward.10} parent=69 // loop_header
                %s247 = sphi 0, %s251
                %p248 = scmp.ge.s32.totalorder %s247, 1
                %s252 = sphi %s238, %s238
                %s253 = sphi %s233, %s233
              $region73: #{encoder_forward.10} parent=69 // loop_header_branch
                %250 = sbr.rel (%p248) target = $region77
              $region74: #{encoder_forward.10} parent=69 // loop_body
                %v254 = vld [vmem:[%s252] sm:$0xff]
                %255 = vst [vmem:[%s253] sm:$0xff] %v254
                %v256 = vld [vmem:[%s252 + $0x18] sm:$0xff]
                %257 = vst [vmem:[%s253 + $0x8] sm:$0xff] %v256
                %v258 = vld [vmem:[%s252 + $0x30] sm:$0xff]
                %259 = vst [vmem:[%s253 + $0x10] sm:$0xff] %v258
                %v260 = vld [vmem:[%s252 + $0x48] sm:$0xff]
                %261 = vst [vmem:[%s253 + $0x18] sm:$0xff] %v260
                %v262 = vld [vmem:[%s252 + $0x60] sm:$0xff]
                %263 = vst [vmem:[%s253 + $0x20] sm:$0xff] %v262
                %v264 = vld [vmem:[%s252 + $0x78] sm:$0xff]
                %265 = vst [vmem:[%s253 + $0x28] sm:$0xff] %v264
                %v266 = vld [vmem:[%s252 + $0x90] sm:$0xff]
                %267 = vst [vmem:[%s253 + $0x30] sm:$0xff] %v266
                %v268 = vld [vmem:[%s252 + $0xa8] sm:$0xff]
                %269 = vst [vmem:[%s253 + $0x38] sm:$0xff] %v268
              $region75: #{encoder_forward.10} parent=69 // loop_footer
                %s251 = sadd.s32 1, %s247
              $region76: #{encoder_forward.10} parent=69 // loop_footer_branch
                %246 = sbr.rel target = $region72
              $region77: #{encoder_forward.10} parent=69 // loop_exit
                _
            $region70: #{encoder_forward.10} parent=61 // pred_fallthru
              _
          $region62: #{encoder_forward.10} parent=57 // pred_fallthru
            _
          %298 = vnop
        $region58: #{encoder_forward.10} parent=15 // pred_fallthru
          _
        // Predicated region
        $region93: #{encoder_forward.10} parent=15 // pred_check
          %p299 = pneg %p103
        $region94: #{encoder_forward.10} parent=15 // pred_check_branch
          %301 = sbr.rel (%p299) target = $region96
        $region95: #{encoder_forward.10} parent=15 // pred_region
          %s302 = sand.u32 %s93, 1
          %s303 = sand.u32 %s93, 1
          %s304 = smul.addr %s303, 64
          %s305 = scalar_lea.vmem [#allocation4], %s304
          %s306 = sadd.s32 %s17, 2
          %s307 = smul.addr %s16, 24
          %s308 = sadd.s32 %s306, %s307
          %s309 = smul.addr %s308, 8
          %s310 = scalar_lea.vmem %s2, %s309
          // Predicated region
          $region97: #{encoder_forward.10} parent=95 // pred_check
            _
          $region98: #{encoder_forward.10} parent=95 // pred_check_branch
            %312 = sbr.rel (0) target = $region100
          $region99: #{encoder_forward.10} parent=95 // pred_region
            // Predicated region
            $region101: #{encoder_forward.10} parent=99 // pred_check
              _
            $region102: #{encoder_forward.10} parent=99 // pred_check_branch
              %314 = sbr.rel (0) target = $region104
            $region103: #{encoder_forward.10} parent=99 // pred_region
              // Predicated region
              $region116: #{encoder_forward.10} parent=103 // pred_check
                _
              $region117: #{encoder_forward.10} parent=103 // pred_check_branch
                %343 = sbr.rel (0) target = $region119
              $region118: #{encoder_forward.10} parent=103 // pred_region
                loop: start=0, step=1, limit=1
                $region120: #{encoder_forward.10} parent=118 // loop_pre_header
                  _
                $region121: #{encoder_forward.10} parent=118 // loop_header
                  %s345 = sphi 0, %s349
                  %p346 = scmp.ge.s32.totalorder %s345, 1
                  %s350 = sphi %s310, %s310
                  %s351 = sphi %s305, %s305
                $region122: #{encoder_forward.10} parent=118 // loop_header_branch
                  %348 = sbr.rel (%p346) target = $region126
                $region123: #{encoder_forward.10} parent=118 // loop_body
                  %v352 = vld [vmem:[%s350] sm:$0xff]
                  %353 = vst [vmem:[%s351] sm:$0xff] %v352
                  %v354 = vld [vmem:[%s350 + $0x18] sm:$0xff]
                  %355 = vst [vmem:[%s351 + $0x8] sm:$0xff] %v354
                  %v356 = vld [vmem:[%s350 + $0x30] sm:$0xff]
                  %357 = vst [vmem:[%s351 + $0x10] sm:$0xff] %v356
                  %v358 = vld [vmem:[%s350 + $0x48] sm:$0xff]
                  %359 = vst [vmem:[%s351 + $0x18] sm:$0xff] %v358
                  %v360 = vld [vmem:[%s350 + $0x60] sm:$0xff]
                  %361 = vst [vmem:[%s351 + $0x20] sm:$0xff] %v360
                  %v362 = vld [vmem:[%s350 + $0x78] sm:$0xff]
                  %363 = vst [vmem:[%s351 + $0x28] sm:$0xff] %v362
                  %v364 = vld [vmem:[%s350 + $0x90] sm:$0xff]
                  %365 = vst [vmem:[%s351 + $0x30] sm:$0xff] %v364
                  %v366 = vld [vmem:[%s350 + $0xa8] sm:$0xff]
                  %367 = vst [vmem:[%s351 + $0x38] sm:$0xff] %v366
                $region124: #{encoder_forward.10} parent=118 // loop_footer
                  %s349 = sadd.s32 1, %s345
                $region125: #{encoder_forward.10} parent=118 // loop_footer_branch
                  %344 = sbr.rel target = $region121
                $region126: #{encoder_forward.10} parent=118 // loop_exit
                  _
              $region119: #{encoder_forward.10} parent=103 // pred_fallthru
                _
              // Predicated region
              $region127: #{encoder_forward.10} parent=103 // pred_check
                _
              $region128: #{encoder_forward.10} parent=103 // pred_check_branch
                %369 = sbr.rel target = $region130
              $region129: #{encoder_forward.10} parent=103 // pred_region
                _
              $region130: #{encoder_forward.10} parent=103 // pred_fallthru
                _
            $region104: #{encoder_forward.10} parent=99 // pred_fallthru
              _
            // Predicated region
            $region105: #{encoder_forward.10} parent=99 // pred_check
              _
            $region106: #{encoder_forward.10} parent=99 // pred_check_branch
              %316 = sbr.rel target = $region108
            $region107: #{encoder_forward.10} parent=99 // pred_region
              loop: start=0, step=1, limit=1
              $region109: #{encoder_forward.10} parent=107 // loop_pre_header
                _
              $region110: #{encoder_forward.10} parent=107 // loop_header
                %s319 = sphi 0, %s323
                %p320 = scmp.ge.s32.totalorder %s319, 1
                %s324 = sphi %s310, %s310
                %s325 = sphi %s305, %s305
              $region111: #{encoder_forward.10} parent=107 // loop_header_branch
                %322 = sbr.rel (%p320) target = $region115
              $region112: #{encoder_forward.10} parent=107 // loop_body
                %v326 = vld [vmem:[%s324] sm:$0xff]
                %327 = vst [vmem:[%s325] sm:$0xff] %v326
                %v328 = vld [vmem:[%s324 + $0x18] sm:$0xff]
                %329 = vst [vmem:[%s325 + $0x8] sm:$0xff] %v328
                %v330 = vld [vmem:[%s324 + $0x30] sm:$0xff]
                %331 = vst [vmem:[%s325 + $0x10] sm:$0xff] %v330
                %v332 = vld [vmem:[%s324 + $0x48] sm:$0xff]
                %333 = vst [vmem:[%s325 + $0x18] sm:$0xff] %v332
                %v334 = vld [vmem:[%s324 + $0x60] sm:$0xff]
                %335 = vst [vmem:[%s325 + $0x20] sm:$0xff] %v334
                %v336 = vld [vmem:[%s324 + $0x78] sm:$0xff]
                %337 = vst [vmem:[%s325 + $0x28] sm:$0xff] %v336
                %v338 = vld [vmem:[%s324 + $0x90] sm:$0xff]
                %339 = vst [vmem:[%s325 + $0x30] sm:$0xff] %v338
                %v340 = vld [vmem:[%s324 + $0xa8] sm:$0xff]
                %341 = vst [vmem:[%s325 + $0x38] sm:$0xff] %v340
              $region113: #{encoder_forward.10} parent=107 // loop_footer
                %s323 = sadd.s32 1, %s319
              $region114: #{encoder_forward.10} parent=107 // loop_footer_branch
                %318 = sbr.rel target = $region110
              $region115: #{encoder_forward.10} parent=107 // loop_exit
                _
            $region108: #{encoder_forward.10} parent=99 // pred_fallthru
              _
          $region100: #{encoder_forward.10} parent=95 // pred_fallthru
            _
          %370 = vnop
        $region96: #{encoder_forward.10} parent=15 // pred_fallthru
          _
      $region16: #{encoder_forward.10} parent=5 // pred_fallthru
        _
      %p371 = scmp.le.s32.totalorder 1, %s9
      %p372 = scmp.lt.s32.totalorder %s9, 3
      %p373 = pnand %p371, %p372
      %p374 = pneg %p373
      // Predicated region
      $region131: #{encoder_forward.10} parent=5 // pred_check
        _
      $region132: #{encoder_forward.10} parent=5 // pred_check_branch
        %376 = sbr.rel (%p373) target = $region134
      $region133: #{encoder_forward.10} parent=5 // pred_region
        %s377 = ssub.s32 %s9, 1
        %s378 = sand.u32 %s36, 1
        %s379 = sand.u32 %s36, 1
        %s380 = smul.addr %s379, 64
        %s381 = scalar_lea.vmem [#allocation2], %s380
        // Predicated region
        $region135: #{encoder_forward.10} parent=133 // pred_check
          %p382 = pneg %p49
        $region136: #{encoder_forward.10} parent=133 // pred_check_branch
          %384 = sbr.rel (%p382) target = $region138
        $region137: #{encoder_forward.10} parent=133 // pred_region
          _
        $region138: #{encoder_forward.10} parent=133 // pred_fallthru
          _
        %s385 = sand.u32 %s66, 1
        %s386 = sand.u32 %s66, 1
        %s387 = smul.addr %s386, 64
        %s388 = scalar_lea.vmem [#allocation3], %s387
        // Predicated region
        $region139: #{encoder_forward.10} parent=133 // pred_check
          %p389 = pneg %p79
        $region140: #{encoder_forward.10} parent=133 // pred_check_branch
          %391 = sbr.rel (%p389) target = $region142
        $region141: #{encoder_forward.10} parent=133 // pred_region
          _
        $region142: #{encoder_forward.10} parent=133 // pred_fallthru
          _
        %s392 = sand.u32 %s96, 1
        %s393 = sand.u32 %s96, 1
        %s394 = smul.addr %s393, 64
        %s395 = scalar_lea.vmem [#allocation4], %s394
        // Predicated region
        $region143: #{encoder_forward.10} parent=133 // pred_check
          %p396 = pneg %p109
        $region144: #{encoder_forward.10} parent=133 // pred_check_branch
          %398 = sbr.rel (%p396) target = $region146
        $region145: #{encoder_forward.10} parent=133 // pred_region
          _
        $region146: #{encoder_forward.10} parent=133 // pred_fallthru
          _
        %s399 = sand.u32 %s36, 1
        %s400 = sand.u32 %s36, 1
        %s401 = smul.addr %s400, 64
        %s402 = scalar_lea.vmem [#allocation2], %s401
        %p403 = pneg %p49
        %p404 = pneg %p46
        %s405 = sand.u32 %s66, 1
        %s406 = sand.u32 %s66, 1
        %s407 = smul.addr %s406, 64
        %s408 = scalar_lea.vmem [#allocation3], %s407
        %p409 = pneg %p79
        %p410 = pneg %p76
        %s411 = sand.u32 %s96, 1
        %s412 = sand.u32 %s96, 1
        %s413 = smul.addr %s412, 64
        %s414 = scalar_lea.vmem [#allocation4], %s413
        %p415 = pneg %p109
        %p416 = pneg %p106
        %p417 = pneg %p137
        %p418 = pneg %p134
        %p419 = scmp.lt.s32.totalorder %s18, 1
        %s420 = scalar_select %p419, %s18, 1
        %p421 = scmp.lt.s32.totalorder %s19, 0
        %s422 = scalar_select %p421, %s19, 0
        %s423 = smul.addr %s420, 8
        %s424 = sadd.s32 %s422, %s423
        %s425 = smul.addr %s424, 8
        %s426 = scalar_lea.vmem %s3, %s425
        %s427 = sadd.s32 %s19, 1
        %s428 = sadd.s32 %s19, 2
        %p429 = scmp.lt.s32.totalorder %s18, 1
        %s430 = scalar_select %p429, %s18, 1
        %p431 = scmp.lt.s32.totalorder %s19, 0
        %s432 = scalar_select %p431, %s19, 0
        %s433 = smul.addr %s430, 8
        %s434 = sadd.s32 %s432, %s433
        %s435 = smul.addr %s434, 8
        %s436 = scalar_lea.vmem %s3, %s435
        %v438 = vld [vmem:[%s381] sm:$0xff]
        %v439 = vld [vmem:[%s381 + $0x8] sm:$0xff]
        %v440 = vld [vmem:[%s381 + $0x10] sm:$0xff]
        %v441 = vld [vmem:[%s381 + $0x18] sm:$0xff]
        %v442 = vld [vmem:[%s381 + $0x20] sm:$0xff]
        %v443 = vld [vmem:[%s381 + $0x28] sm:$0xff]
        %v444 = vld [vmem:[%s381 + $0x30] sm:$0xff]
        %v445 = vld [vmem:[%s381 + $0x38] sm:$0xff]
        %v446 = vpack.c.bf16 %v439, %v438
        %v447 = vpack.c.bf16 %v441, %v440
        %v448 = vpack.c.bf16 %v443, %v442
        %v449 = vpack.c.bf16 %v445, %v444
        %v450 = vld [vmem:[%s388] sm:$0xff]
        %v451 = vld [vmem:[%s388 + $0x8] sm:$0xff]
        %v452 = vld [vmem:[%s388 + $0x10] sm:$0xff]
        %v453 = vld [vmem:[%s388 + $0x18] sm:$0xff]
        %v454 = vld [vmem:[%s388 + $0x20] sm:$0xff]
        %v455 = vld [vmem:[%s388 + $0x28] sm:$0xff]
        %v456 = vld [vmem:[%s388 + $0x30] sm:$0xff]
        %v457 = vld [vmem:[%s388 + $0x38] sm:$0xff]
        %v458 = vpack.c.bf16 %v451, %v450
        %v459 = vpack.c.bf16 %v453, %v452
        %v460 = vpack.c.bf16 %v455, %v454
        %v461 = vpack.c.bf16 %v457, %v456
        %v462 = vld [vmem:[%s395] sm:$0xff]
        %v463 = vld [vmem:[%s395 + $0x8] sm:$0xff]
        %v464 = vld [vmem:[%s395 + $0x10] sm:$0xff]
        %v465 = vld [vmem:[%s395 + $0x18] sm:$0xff]
        %v466 = vld [vmem:[%s395 + $0x20] sm:$0xff]
        %v467 = vld [vmem:[%s395 + $0x28] sm:$0xff]
        %v468 = vld [vmem:[%s395 + $0x30] sm:$0xff]
        %v469 = vld [vmem:[%s395 + $0x38] sm:$0xff]
        %v470 = vpack.c.bf16 %v463, %v462
        %v471 = vpack.c.bf16 %v465, %v464
        %v472 = vpack.c.bf16 %v467, %v466
        %v473 = vpack.c.bf16 %v469, %v468
        %vm474 = vcmask 261120
        %v476 = vsel %vm474, %v446, 0
        %v479 = vsel %vm474, %v447, 0
        %v482 = vsel %vm474, %v448, 0
        %v485 = vsel %vm474, %v449, 0
        %v488 = vsel %vm474, %v458, 0
        %v491 = vsel %vm474, %v459, 0
        %v494 = vsel %vm474, %v460, 0
        %v497 = vsel %vm474, %v461, 0
        %499 = vmatprep.subr.bf16.mxu0 0
        %500 = vmatpush1.bf16.xpose.msra.mxu0 %v488
        %501 = vmatprep.subr.bf16.mxu0 0
        %502 = vmatpush1.bf16.xpose.msra.mxu0 %v491
        %503 = vmatprep.subr.bf16.mxu0 0
        %504 = vmatpush1.bf16.xpose.msra.mxu0 %v494
        %505 = vmatprep.subr.bf16.mxu0 0
        %506 = vmatpush1.bf16.xpose.msra.mxu0 %v497
        %507 = vmatprep.subr.bf16.mxu0 0
        %508 = vmatpush1.bf16.xpose.msra.mxu0 0
        %509 = vmatprep.subr.bf16.mxu0 0
        %510 = vmatpush1.bf16.xpose.msra.mxu0 0
        %511 = vmatprep.subr.bf16.mxu0 0
        %512 = vmatpush1.bf16.xpose.msra.mxu0 0
        %513 = vmatprep.subr.bf16.mxu0 0
        %514 = vmatpush1.bf16.xpose.msra.mxu0 0
        %515 = vmatprep.subr.bf16.mxu0 0
        %516 = vmatpush1.bf16.xpose.msra.mxu0 0
        %517 = vmatprep.subr.bf16.mxu0 0
        %518 = vmatpush1.bf16.xpose.msra.mxu0 0
        %519 = vmatprep.subr.bf16.mxu0 0
        %520 = vmatpush1.bf16.xpose.msra.mxu0 0
        %521 = vmatprep.subr.bf16.mxu0 0
        %522 = vmatpush1.bf16.xpose.msra.mxu0 0
        %523 = vmatprep.subr.bf16.mxu0 0
        %524 = vmatpush1.bf16.xpose.msra.mxu0 0
        %525 = vmatprep.subr.bf16.mxu0 0
        %526 = vmatpush1.bf16.xpose.msra.mxu0 0
        %527 = vmatprep.subr.bf16.mxu0 0
        %528 = vmatpush1.bf16.xpose.msra.mxu0 0
        %529 = vmatprep.subr.bf16.mxu0 0
        %530 = vmatpush1.bf16.xpose.msra.mxu0 0
        %531 = vmatprep.mubr.bf16.mxu0 0
        %532 = vmatmul.mubr.bf16.gmra.mrb[0].mxu0 %v476
        %v533 = vpop.f32.mrb[0].mxu0
        %v534 = vadd.f32 0.0, %v533
        %v535 = vpop.f32.mrb[0].mxu0
        %v536 = vpop.f32.mrb[0].mxu0
        %v537 = vadd.f32 0.0, %v536
        %v538 = vpop.f32.mrb[0].mxu0
        %539 = vmatprep.mubr.bf16.mxu0 0
        %540 = vmatmul.mubr.bf16.gmra.mrb[0].mxu0 %v479
        %v541 = vpop.f32.mrb[0].mxu0
        %v542 = vadd.f32 0.0, %v541
        %v543 = vpop.f32.mrb[0].mxu0
        %v544 = vpop.f32.mrb[0].mxu0
        %v545 = vadd.f32 0.0, %v544
        %v546 = vpop.f32.mrb[0].mxu0
        %547 = vmatprep.mubr.bf16.mxu0 0
        %548 = vmatmul.mubr.bf16.gmra.mrb[0].mxu0 %v482
        %v549 = vpop.f32.mrb[0].mxu0
        %v550 = vadd.f32 0.0, %v549
        %v551 = vpop.f32.mrb[0].mxu0
        %v552 = vpop.f32.mrb[0].mxu0
        %v553 = vadd.f32 0.0, %v552
        %v554 = vpop.f32.mrb[0].mxu0
        %555 = vmatprep.mubr.bf16.mxu0 0
        %556 = vmatmul.mubr.bf16.gmra.mrb[0].mxu0 %v485
        %v557 = vpop.f32.mrb[0].mxu0
        %v558 = vadd.f32 0.0, %v557
        %v559 = vpop.f32.mrb[0].mxu0
        %v560 = vpop.f32.mrb[0].mxu0
        %v561 = vadd.f32 0.0, %v560
        %v562 = vpop.f32.mrb[0].mxu0
        %563 = vdwg.mxu0
        %v564 = vmul.f32 %v534, 0.17677669
        %v565 = vmul.f32 %v537, 0.17677669
        %v566 = vmul.f32 %v542, 0.17677669
        %v567 = vmul.f32 %v545, 0.17677669
        %v568 = vmul.f32 %v550, 0.17677669
        %v569 = vmul.f32 %v553, 0.17677669
        %v570 = vmul.f32 %v558, 0.17677669
        %v571 = vmul.f32 %v561, 0.17677669
        %vm572 = vcmask 523264
        %v573 = vsel %vm572, %v564, -inf
        %574 = vmax.xlane.f32.xlu0 %v573
        %v575 = vpop.xlane.xlu0 %574
        %v576 = vsel %vm572, %v565, -inf
        %577 = vmax.xlane.f32.xlu0 %v576
        %v578 = vpop.xlane.xlu0 %577
        %v579 = vsel %vm572, %v566, -inf
        %580 = vmax.xlane.f32.xlu0 %v579
        %v581 = vpop.xlane.xlu0 %580
        %v582 = vsel %vm572, %v567, -inf
        %583 = vmax.xlane.f32.xlu0 %v582
        %v584 = vpop.xlane.xlu0 %583
        %v585 = vsel %vm572, %v568, -inf
        %586 = vmax.xlane.f32.xlu0 %v585
        %v587 = vpop.xlane.xlu0 %586
        %v588 = vsel %vm572, %v569, -inf
        %589 = vmax.xlane.f32.xlu0 %v588
        %v590 = vpop.xlane.xlu0 %589
        %v591 = vsel %vm572, %v570, -inf
        %592 = vmax.xlane.f32.xlu0 %v591
        %v593 = vpop.xlane.xlu0 %592
        %v594 = vsel %vm572, %v571, -inf
        %595 = vmax.xlane.f32.xlu0 %v594
        %v596 = vpop.xlane.xlu0 %595
        %v597 = vsub.f32 %v564, %v575
        %v598 = vsub.f32 %v565, %v578
        %v599 = vsub.f32 %v566, %v581
        %v600 = vsub.f32 %v567, %v584
        %v601 = vsub.f32 %v568, %v587
        %v602 = vsub.f32 %v569, %v590
        %v603 = vsub.f32 %v570, %v593
        %v604 = vsub.f32 %v571, %v596
        %v605 = vmul.f32 %v597, 1.442695
        %v606 = vpow.pop %v605
        %v607 = vmul.f32 %v598, 1.442695
        %v608 = vpow.pop %v607
        %v609 = vmul.f32 %v599, 1.442695
        %v610 = vpow.pop %v609
        %v611 = vmul.f32 %v600, 1.442695
        %v612 = vpow.pop %v611
        %v613 = vmul.f32 %v601, 1.442695
        %v614 = vpow.pop %v613
        %v615 = vmul.f32 %v602, 1.442695
        %v616 = vpow.pop %v615
        %v617 = vmul.f32 %v603, 1.442695
        %v618 = vpow.pop %v617
        %v619 = vmul.f32 %v604, 1.442695
        %v620 = vpow.pop %v619
        %v621 = vsel %vm572, %v606, 0.0
        %622 = vadd.xlane.f32.xlu0 %v621
        %v623 = vpop.xlane.xlu0 %622
        %v624 = vsel %vm572, %v608, 0.0
        %625 = vadd.xlane.f32.xlu0 %v624
        %v626 = vpop.xlane.xlu0 %625
        %v627 = vsel %vm572, %v610, 0.0
        %628 = vadd.xlane.f32.xlu0 %v627
        %v629 = vpop.xlane.xlu0 %628
        %v630 = vsel %vm572, %v612, 0.0
        %631 = vadd.xlane.f32.xlu0 %v630
        %v632 = vpop.xlane.xlu0 %631
        %v633 = vsel %vm572, %v614, 0.0
        %634 = vadd.xlane.f32.xlu0 %v633
        %v635 = vpop.xlane.xlu0 %634
        %v636 = vsel %vm572, %v616, 0.0
        %637 = vadd.xlane.f32.xlu0 %v636
        %v638 = vpop.xlane.xlu0 %637
        %v639 = vsel %vm572, %v618, 0.0
        %640 = vadd.xlane.f32.xlu0 %v639
        %v641 = vpop.xlane.xlu0 %640
        %v642 = vsel %vm572, %v620, 0.0
        %643 = vadd.xlane.f32.xlu0 %v642
        %v644 = vpop.xlane.xlu0 %643
        %v645 = vrcp.pop %v623
        %v646 = vrcp.pop %v626
        %v647 = vrcp.pop %v629
        %v648 = vrcp.pop %v632
        %v649 = vrcp.pop %v635
        %v650 = vrcp.pop %v638
        %v651 = vrcp.pop %v641
        %v652 = vrcp.pop %v644
        %v653 = vmul.f32 %v606, %v645
        %v654 = vmul.f32 %v608, %v646
        %v655 = vmul.f32 %v610, %v647
        %v656 = vmul.f32 %v612, %v648
        %v657 = vmul.f32 %v614, %v649
        %v658 = vmul.f32 %v616, %v650
        %v659 = vmul.f32 %v618, %v651
        %v660 = vmul.f32 %v620, %v652
        %v661 = vpack.c.bf16 %v654, %v653
        %v662 = vpack.c.bf16 %v656, %v655
        %v663 = vpack.c.bf16 %v658, %v657
        %v664 = vpack.c.bf16 %v660, %v659
        %v666 = vsel %vm572, %v661, 0
        %v669 = vsel %vm572, %v662, 0
        %v672 = vsel %vm572, %v663, 0
        %v675 = vsel %vm572, %v664, 0
        %677 = vmatprep.subr.bf16.mxu0 0
        %678 = vmatpush1.bf16.msra.mxu0 %v470
        %679 = vmatprep.subr.bf16.mxu0 0
        %680 = vmatpush1.bf16.msra.mxu0 %v471
        %681 = vmatprep.subr.bf16.mxu0 0
        %682 = vmatpush1.bf16.msra.mxu0 %v472
        %683 = vmatprep.subr.bf16.mxu0 0
        %684 = vmatpush1.bf16.msra.mxu0 %v473
        %685 = vmatprep.subr.bf16.mxu0 0
        %686 = vmatpush1.bf16.msra.mxu0 0
        %687 = vmatprep.subr.bf16.mxu0 0
        %688 = vmatpush1.bf16.msra.mxu0 0
        %689 = vmatprep.subr.bf16.mxu0 0
        %690 = vmatpush1.bf16.msra.mxu0 0
        %691 = vmatprep.subr.bf16.mxu0 0
        %692 = vmatpush1.bf16.msra.mxu0 0
        %693 = vmatprep.subr.bf16.mxu0 0
        %694 = vmatpush1.bf16.msra.mxu0 0
        %695 = vmatprep.subr.bf16.mxu0 0
        %696 = vmatpush1.bf16.msra.mxu0 0
        %697 = vmatprep.subr.bf16.mxu0 0
        %698 = vmatpush1.bf16.msra.mxu0 0
        %699 = vmatprep.subr.bf16.mxu0 0
        %700 = vmatpush1.bf16.msra.mxu0 0
        %701 = vmatprep.subr.bf16.mxu0 0
        %702 = vmatpush1.bf16.msra.mxu0 0
        %703 = vmatprep.subr.bf16.mxu0 0
        %704 = vmatpush1.bf16.msra.mxu0 0
        %705 = vmatprep.subr.bf16.mxu0 0
        %706 = vmatpush1.bf16.msra.mxu0 0
        %707 = vmatprep.subr.bf16.mxu0 0
        %708 = vmatpush1.bf16.msra.mxu0 0
        %709 = vmatprep.mubr.bf16.mxu0 0
        %710 = vmatmul.mubr.bf16.gmra.mrb[0].mxu0 %v666
        %v711 = vpop.f32.mrb[0].mxu0
        %v712 = vadd.f32 0.0, %v711
        %v713 = vpop.f32.mrb[0].mxu0
        %v714 = vpop.f32.mrb[0].mxu0
        %v715 = vadd.f32 0.0, %v714
        %v716 = vpop.f32.mrb[0].mxu0
        %717 = vmatprep.mubr.bf16.mxu0 0
        %718 = vmatmul.mubr.bf16.gmra.mrb[0].mxu0 %v669
        %v719 = vpop.f32.mrb[0].mxu0
        %v720 = vadd.f32 0.0, %v719
        %v721 = vpop.f32.mrb[0].mxu0
        %v722 = vpop.f32.mrb[0].mxu0
        %v723 = vadd.f32 0.0, %v722
        %v724 = vpop.f32.mrb[0].mxu0
        %725 = vmatprep.mubr.bf16.mxu0 0
        %726 = vmatmul.mubr.bf16.gmra.mrb[0].mxu0 %v672
        %v727 = vpop.f32.mrb[0].mxu0
        %v728 = vadd.f32 0.0, %v727
        %v729 = vpop.f32.mrb[0].mxu0
        %v730 = vpop.f32.mrb[0].mxu0
        %v731 = vadd.f32 0.0, %v730
        %v732 = vpop.f32.mrb[0].mxu0
        %733 = vmatprep.mubr.bf16.mxu0 0
        %734 = vmatmul.mubr.bf16.gmra.mrb[0].mxu0 %v675
        %v735 = vpop.f32.mrb[0].mxu0
        %v736 = vadd.f32 0.0, %v735
        %v737 = vpop.f32.mrb[0].mxu0
        %v738 = vpop.f32.mrb[0].mxu0
        %v739 = vadd.f32 0.0, %v738
        %v740 = vpop.f32.mrb[0].mxu0
        %741 = vdwg.mxu0
        %742 = vst.msk [vmem:[%s436] sm:$0xff] %vm474, %v712
        %743 = vst.msk [vmem:[%s436 + $0x8] sm:$0xff] %vm474, %v715
        %744 = vst.msk [vmem:[%s436 + $0x10] sm:$0xff] %vm474, %v720
        %745 = vst.msk [vmem:[%s436 + $0x18] sm:$0xff] %vm474, %v723
        %746 = vst.msk [vmem:[%s436 + $0x20] sm:$0xff] %vm474, %v728
        %747 = vst.msk [vmem:[%s436 + $0x28] sm:$0xff] %vm474, %v731
        %748 = vst.msk [vmem:[%s436 + $0x30] sm:$0xff] %vm474, %v736
        %749 = vst.msk [vmem:[%s436 + $0x38] sm:$0xff] %vm474, %v739
        %v750 = vld [vmem:[%s381] sm:$0xff]
        %v751 = vld [vmem:[%s381 + $0x8] sm:$0xff]
        %v752 = vld [vmem:[%s381 + $0x10] sm:$0xff]
        %v753 = vld [vmem:[%s381 + $0x18] sm:$0xff]
        %v754 = vld [vmem:[%s381 + $0x20] sm:$0xff]
        %v755 = vld [vmem:[%s381 + $0x28] sm:$0xff]
        %v756 = vld [vmem:[%s381 + $0x30] sm:$0xff]
        %v757 = vld [vmem:[%s381 + $0x38] sm:$0xff]
        %v758 = vpack.c.bf16 %v751, %v750
        %v759 = vpack.c.bf16 %v753, %v752
        %v760 = vpack.c.bf16 %v755, %v754
        %v761 = vpack.c.bf16 %v757, %v756
        %v762 = vld [vmem:[%s388] sm:$0xff]
        %v763 = vld [vmem:[%s388 + $0x8] sm:$0xff]
        %v764 = vld [vmem:[%s388 + $0x10] sm:$0xff]
        %v765 = vld [vmem:[%s388 + $0x18] sm:$0xff]
        %v766 = vld [vmem:[%s388 + $0x20] sm:$0xff]
        %v767 = vld [vmem:[%s388 + $0x28] sm:$0xff]
        %v768 = vld [vmem:[%s388 + $0x30] sm:$0xff]
        %v769 = vld [vmem:[%s388 + $0x38] sm:$0xff]
        %v770 = vpack.c.bf16 %v763, %v762
        %v771 = vpack.c.bf16 %v765, %v764
        %v772 = vpack.c.bf16 %v767, %v766
        %v773 = vpack.c.bf16 %v769, %v768
        %v774 = vld [vmem:[%s395] sm:$0xff]
        %v775 = vld [vmem:[%s395 + $0x8] sm:$0xff]
        %v776 = vld [vmem:[%s395 + $0x10] sm:$0xff]
        %v777 = vld [vmem:[%s395 + $0x18] sm:$0xff]
        %v778 = vld [vmem:[%s395 + $0x20] sm:$0xff]
        %v779 = vld [vmem:[%s395 + $0x28] sm:$0xff]
        %v780 = vld [vmem:[%s395 + $0x30] sm:$0xff]
        %v781 = vld [vmem:[%s395 + $0x38] sm:$0xff]
        %v782 = vpack.c.bf16 %v775, %v774
        %v783 = vpack.c.bf16 %v777, %v776
        %v784 = vpack.c.bf16 %v779, %v778
        %v785 = vpack.c.bf16 %v781, %v780
        %790 = vrot.lane.b32.xlu0 %v758, 96
        %v791 = vpop.permute.xlu0 %790
        %792 = vrot.lane.b32.xlu0 %v759, 96
        %v793 = vpop.permute.xlu0 %792
        %794 = vrot.lane.b32.xlu0 %v760, 96
        %v795 = vpop.permute.xlu0 %794
        %796 = vrot.lane.b32.xlu0 %v761, 96
        %v797 = vpop.permute.xlu0 %796
        %802 = vrot.lane.b32.xlu0 %v770, 96
        %v803 = vpop.permute.xlu0 %802
        %804 = vrot.lane.b32.xlu0 %v771, 96
        %v805 = vpop.permute.xlu0 %804
        %806 = vrot.lane.b32.xlu0 %v772, 96
        %v807 = vpop.permute.xlu0 %806
        %808 = vrot.lane.b32.xlu0 %v773, 96
        %v809 = vpop.permute.xlu0 %808
        %v811 = vsel %vm474, %v791, 0
        %v814 = vsel %vm474, %v793, 0
        %v817 = vsel %vm474, %v795, 0
        %v820 = vsel %vm474, %v797, 0
        %v823 = vsel %vm474, %v803, 0
        %v826 = vsel %vm474, %v805, 0
        %v829 = vsel %vm474, %v807, 0
        %v832 = vsel %vm474, %v809, 0
        %834 = vmatprep.subr.bf16.mxu0 0
        %835 = vmatpush1.bf16.xpose.msra.mxu0 %v823
        %836 = vmatprep.subr.bf16.mxu0 0
        %837 = vmatpush1.bf16.xpose.msra.mxu0 %v826
        %838 = vmatprep.subr.bf16.mxu0 0
        %839 = vmatpush1.bf16.xpose.msra.mxu0 %v829
        %840 = vmatprep.subr.bf16.mxu0 0
        %841 = vmatpush1.bf16.xpose.msra.mxu0 %v832
        %842 = vmatprep.subr.bf16.mxu0 0
        %843 = vmatpush1.bf16.xpose.msra.mxu0 0
        %844 = vmatprep.subr.bf16.mxu0 0
        %845 = vmatpush1.bf16.xpose.msra.mxu0 0
        %846 = vmatprep.subr.bf16.mxu0 0
        %847 = vmatpush1.bf16.xpose.msra.mxu0 0
        %848 = vmatprep.subr.bf16.mxu0 0
        %849 = vmatpush1.bf16.xpose.msra.mxu0 0
        %850 = vmatprep.subr.bf16.mxu0 0
        %851 = vmatpush1.bf16.xpose.msra.mxu0 0
        %852 = vmatprep.subr.bf16.mxu0 0
        %853 = vmatpush1.bf16.xpose.msra.mxu0 0
        %854 = vmatprep.subr.bf16.mxu0 0
        %855 = vmatpush1.bf16.xpose.msra.mxu0 0
        %856 = vmatprep.subr.bf16.mxu0 0
        %857 = vmatpush1.bf16.xpose.msra.mxu0 0
        %858 = vmatprep.subr.bf16.mxu0 0
        %859 = vmatpush1.bf16.xpose.msra.mxu0 0
        %860 = vmatprep.subr.bf16.mxu0 0
        %861 = vmatpush1.bf16.xpose.msra.mxu0 0
        %862 = vmatprep.subr.bf16.mxu0 0
        %863 = vmatpush1.bf16.xpose.msra.mxu0 0
        %864 = vmatprep.subr.bf16.mxu0 0
        %865 = vmatpush1.bf16.xpose.msra.mxu0 0
        %866 = vmatprep.mubr.bf16.mxu0 0
        %867 = vmatmul.mubr.bf16.gmra.mrb[0].mxu0 %v811
        %v868 = vpop.f32.mrb[0].mxu0
        %v869 = vadd.f32 0.0, %v868
        %v870 = vpop.f32.mrb[0].mxu0
        %v871 = vpop.f32.mrb[0].mxu0
        %v872 = vadd.f32 0.0, %v871
        %v873 = vpop.f32.mrb[0].mxu0
        %874 = vmatprep.mubr.bf16.mxu0 0
        %875 = vmatmul.mubr.bf16.gmra.mrb[0].mxu0 %v814
        %v876 = vpop.f32.mrb[0].mxu0
        %v877 = vadd.f32 0.0, %v876
        %v878 = vpop.f32.mrb[0].mxu0
        %v879 = vpop.f32.mrb[0].mxu0
        %v880 = vadd.f32 0.0, %v879
        %v881 = vpop.f32.mrb[0].mxu0
        %882 = vmatprep.mubr.bf16.mxu0 0
        %883 = vmatmul.mubr.bf16.gmra.mrb[0].mxu0 %v817
        %v884 = vpop.f32.mrb[0].mxu0
        %v885 = vadd.f32 0.0, %v884
        %v886 = vpop.f32.mrb[0].mxu0
        %v887 = vpop.f32.mrb[0].mxu0
        %v888 = vadd.f32 0.0, %v887
        %v889 = vpop.f32.mrb[0].mxu0
        %890 = vmatprep.mubr.bf16.mxu0 0
        %891 = vmatmul.mubr.bf16.gmra.mrb[0].mxu0 %v820
        %v892 = vpop.f32.mrb[0].mxu0
        %v893 = vadd.f32 0.0, %v892
        %v894 = vpop.f32.mrb[0].mxu0
        %v895 = vpop.f32.mrb[0].mxu0
        %v896 = vadd.f32 0.0, %v895
        %v897 = vpop.f32.mrb[0].mxu0
        %898 = vdwg.mxu0
        %v899 = vmul.f32 %v869, 0.17677669
        %v900 = vmul.f32 %v872, 0.17677669
        %v901 = vmul.f32 %v877, 0.17677669
        %v902 = vmul.f32 %v880, 0.17677669
        %v903 = vmul.f32 %v885, 0.17677669
        %v904 = vmul.f32 %v888, 0.17677669
        %v905 = vmul.f32 %v893, 0.17677669
        %v906 = vmul.f32 %v896, 0.17677669
        %v907 = vsel %vm572, %v899, -inf
        %908 = vmax.xlane.f32.xlu0 %v907
        %v909 = vpop.xlane.xlu0 %908
        %v910 = vsel %vm572, %v900, -inf
        %911 = vmax.xlane.f32.xlu0 %v910
        %v912 = vpop.xlane.xlu0 %911
        %v913 = vsel %vm572, %v901, -inf
        %914 = vmax.xlane.f32.xlu0 %v913
        %v915 = vpop.xlane.xlu0 %914
        %v916 = vsel %vm572, %v902, -inf
        %917 = vmax.xlane.f32.xlu0 %v916
        %v918 = vpop.xlane.xlu0 %917
        %v919 = vsel %vm572, %v903, -inf
        %920 = vmax.xlane.f32.xlu0 %v919
        %v921 = vpop.xlane.xlu0 %920
        %v922 = vsel %vm572, %v904, -inf
        %923 = vmax.xlane.f32.xlu0 %v922
        %v924 = vpop.xlane.xlu0 %923
        %v925 = vsel %vm572, %v905, -inf
        %926 = vmax.xlane.f32.xlu0 %v925
        %v927 = vpop.xlane.xlu0 %926
        %v928 = vsel %vm572, %v906, -inf
        %929 = vmax.xlane.f32.xlu0 %v928
        %v930 = vpop.xlane.xlu0 %929
        %v931 = vsub.f32 %v899, %v909
        %v932 = vsub.f32 %v900, %v912
        %v933 = vsub.f32 %v901, %v915
        %v934 = vsub.f32 %v902, %v918
        %v935 = vsub.f32 %v903, %v921
        %v936 = vsub.f32 %v904, %v924
        %v937 = vsub.f32 %v905, %v927
        %v938 = vsub.f32 %v906, %v930
        %v939 = vmul.f32 %v931, 1.442695
        %v940 = vpow.pop %v939
        %v941 = vmul.f32 %v932, 1.442695
        %v942 = vpow.pop %v941
        %v943 = vmul.f32 %v933, 1.442695
        %v944 = vpow.pop %v943
        %v945 = vmul.f32 %v934, 1.442695
        %v946 = vpow.pop %v945
        %v947 = vmul.f32 %v935, 1.442695
        %v948 = vpow.pop %v947
        %v949 = vmul.f32 %v936, 1.442695
        %v950 = vpow.pop %v949
        %v951 = vmul.f32 %v937, 1.442695
        %v952 = vpow.pop %v951
        %v953 = vmul.f32 %v938, 1.442695
        %v954 = vpow.pop %v953
        %v955 = vsel %vm572, %v940, 0.0
        %956 = vadd.xlane.f32.xlu0 %v955
        %v957 = vpop.xlane.xlu0 %956
        %v958 = vsel %vm572, %v942, 0.0
        %959 = vadd.xlane.f32.xlu0 %v958
        %v960 = vpop.xlane.xlu0 %959
        %v961 = vsel %vm572, %v944, 0.0
        %962 = vadd.xlane.f32.xlu0 %v961
        %v963 = vpop.xlane.xlu0 %962
        %v964 = vsel %vm572, %v946, 0.0
        %965 = vadd.xlane.f32.xlu0 %v964
        %v966 = vpop.xlane.xlu0 %965
        %v967 = vsel %vm572, %v948, 0.0
        %968 = vadd.xlane.f32.xlu0 %v967
        %v969 = vpop.xlane.xlu0 %968
        %v970 = vsel %vm572, %v950, 0.0
        %971 = vadd.xlane.f32.xlu0 %v970
        %v972 = vpop.xlane.xlu0 %971
        %v973 = vsel %vm572, %v952, 0.0
        %974 = vadd.xlane.f32.xlu0 %v973
        %v975 = vpop.xlane.xlu0 %974
        %v976 = vsel %vm572, %v954, 0.0
        %977 = vadd.xlane.f32.xlu0 %v976
        %v978 = vpop.xlane.xlu0 %977
        %v979 = vrcp.pop %v957
        %v980 = vrcp.pop %v960
        %v981 = vrcp.pop %v963
        %v982 = vrcp.pop %v966
        %v983 = vrcp.pop %v969
        %v984 = vrcp.pop %v972
        %v985 = vrcp.pop %v975
        %v986 = vrcp.pop %v978
        %v987 = vmul.f32 %v940, %v979
        %v988 = vmul.f32 %v942, %v980
        %v989 = vmul.f32 %v944, %v981
        %v990 = vmul.f32 %v946, %v982
        %v991 = vmul.f32 %v948, %v983
        %v992 = vmul.f32 %v950, %v984
        %v993 = vmul.f32 %v952, %v985
        %v994 = vmul.f32 %v954, %v986
        %v995 = vpack.c.bf16 %v988, %v987
        %v996 = vpack.c.bf16 %v990, %v989
        %v997 = vpack.c.bf16 %v992, %v991
        %v998 = vpack.c.bf16 %v994, %v993
        %1003 = vrot.lane.b32.xlu0 %v782, 96
        %v1004 = vpop.permute.xlu0 %1003
        %1005 = vrot.lane.b32.xlu0 %v783, 96
        %v1006 = vpop.permute.xlu0 %1005
        %1007 = vrot.lane.b32.xlu0 %v784, 96
        %v1008 = vpop.permute.xlu0 %1007
        %1009 = vrot.lane.b32.xlu0 %v785, 96
        %v1010 = vpop.permute.xlu0 %1009
        %v1016 = vsel %vm572, %v995, 0
        %v1019 = vsel %vm572, %v996, 0
        %v1022 = vsel %vm572, %v997, 0
        %v1025 = vsel %vm572, %v998, 0
        %1027 = vmatprep.subr.bf16.mxu0 0
        %1028 = vmatpush1.bf16.msra.mxu0 %v1004
        %1029 = vmatprep.subr.bf16.mxu0 0
        %1030 = vmatpush1.bf16.msra.mxu0 %v1006
        %1031 = vmatprep.subr.bf16.mxu0 0
        %1032 = vmatpush1.bf16.msra.mxu0 %v1008
        %1033 = vmatprep.subr.bf16.mxu0 0
        %1034 = vmatpush1.bf16.msra.mxu0 %v1010
        %1035 = vmatprep.subr.bf16.mxu0 0
        %1036 = vmatpush1.bf16.msra.mxu0 0
        %1037 = vmatprep.subr.bf16.mxu0 0
        %1038 = vmatpush1.bf16.msra.mxu0 0
        %1039 = vmatprep.subr.bf16.mxu0 0
        %1040 = vmatpush1.bf16.msra.mxu0 0
        %1041 = vmatprep.subr.bf16.mxu0 0
        %1042 = vmatpush1.bf16.msra.mxu0 0
        %1043 = vmatprep.subr.bf16.mxu0 0
        %1044 = vmatpush1.bf16.msra.mxu0 0
        %1045 = vmatprep.subr.bf16.mxu0 0
        %1046 = vmatpush1.bf16.msra.mxu0 0
        %1047 = vmatprep.subr.bf16.mxu0 0
        %1048 = vmatpush1.bf16.msra.mxu0 0
        %1049 = vmatprep.subr.bf16.mxu0 0
        %1050 = vmatpush1.bf16.msra.mxu0 0
        %1051 = vmatprep.subr.bf16.mxu0 0
        %1052 = vmatpush1.bf16.msra.mxu0 0
        %1053 = vmatprep.subr.bf16.mxu0 0
        %1054 = vmatpush1.bf16.msra.mxu0 0
        %1055 = vmatprep.subr.bf16.mxu0 0
        %1056 = vmatpush1.bf16.msra.mxu0 0
        %1057 = vmatprep.subr.bf16.mxu0 0
        %1058 = vmatpush1.bf16.msra.mxu0 0
        %1059 = vmatprep.mubr.bf16.mxu0 0
        %1060 = vmatmul.mubr.bf16.gmra.mrb[0].mxu0 %v1016
        %v1061 = vpop.f32.mrb[0].mxu0
        %v1062 = vadd.f32 0.0, %v1061
        %v1063 = vpop.f32.mrb[0].mxu0
        %v1064 = vpop.f32.mrb[0].mxu0
        %v1065 = vadd.f32 0.0, %v1064
        %v1066 = vpop.f32.mrb[0].mxu0
        %1067 = vmatprep.mubr.bf16.mxu0 0
        %1068 = vmatmul.mubr.bf16.gmra.mrb[0].mxu0 %v1019
        %v1069 = vpop.f32.mrb[0].mxu0
        %v1070 = vadd.f32 0.0, %v1069
        %v1071 = vpop.f32.mrb[0].mxu0
        %v1072 = vpop.f32.mrb[0].mxu0
        %v1073 = vadd.f32 0.0, %v1072
        %v1074 = vpop.f32.mrb[0].mxu0
        %1075 = vmatprep.mubr.bf16.mxu0 0
        %1076 = vmatmul.mubr.bf16.gmra.mrb[0].mxu0 %v1022
        %v1077 = vpop.f32.mrb[0].mxu0
        %v1078 = vadd.f32 0.0, %v1077
        %v1079 = vpop.f32.mrb[0].mxu0
        %v1080 = vpop.f32.mrb[0].mxu0
        %v1081 = vadd.f32 0.0, %v1080
        %v1082 = vpop.f32.mrb[0].mxu0
        %1083 = vmatprep.mubr.bf16.mxu0 0
        %1084 = vmatmul.mubr.bf16.gmra.mrb[0].mxu0 %v1025
        %v1085 = vpop.f32.mrb[0].mxu0
        %v1086 = vadd.f32 0.0, %v1085
        %v1087 = vpop.f32.mrb[0].mxu0
        %v1088 = vpop.f32.mrb[0].mxu0
        %v1089 = vadd.f32 0.0, %v1088
        %v1090 = vpop.f32.mrb[0].mxu0
        %1091 = vdwg.mxu0
        %1100 = vrot.lane.b32.xlu0 %v1062, 32
        %v1101 = vpop.permute.xlu0 %1100
        %1102 = vrot.lane.b32.xlu0 %v1065, 32
        %v1103 = vpop.permute.xlu0 %1102
        %1104 = vrot.lane.b32.xlu0 %v1070, 32
        %v1105 = vpop.permute.xlu0 %1104
        %1106 = vrot.lane.b32.xlu0 %v1073, 32
        %v1107 = vpop.permute.xlu0 %1106
        %1108 = vrot.lane.b32.xlu0 %v1078, 32
        %v1109 = vpop.permute.xlu0 %1108
        %1110 = vrot.lane.b32.xlu0 %v1081, 32
        %v1111 = vpop.permute.xlu0 %1110
        %1112 = vrot.lane.b32.xlu0 %v1086, 32
        %v1113 = vpop.permute.xlu0 %1112
        %1114 = vrot.lane.b32.xlu0 %v1089, 32
        %v1115 = vpop.permute.xlu0 %1114
        %vm1124 = vcmask 523520
        %1125 = vst.msk [vmem:[%s436] sm:$0xff] %vm1124, %v1101
        %1126 = vst.msk [vmem:[%s436 + $0x8] sm:$0xff] %vm1124, %v1103
        %1127 = vst.msk [vmem:[%s436 + $0x10] sm:$0xff] %vm1124, %v1105
        %1128 = vst.msk [vmem:[%s436 + $0x18] sm:$0xff] %vm1124, %v1107
        %1129 = vst.msk [vmem:[%s436 + $0x20] sm:$0xff] %vm1124, %v1109
        %1130 = vst.msk [vmem:[%s436 + $0x28] sm:$0xff] %vm1124, %v1111
        %1131 = vst.msk [vmem:[%s436 + $0x30] sm:$0xff] %vm1124, %v1113
        %1132 = vst.msk [vmem:[%s436 + $0x38] sm:$0xff] %vm1124, %v1115
        %v1133 = vld [vmem:[%s381] sm:$0xff]
        %v1134 = vld [vmem:[%s381 + $0x8] sm:$0xff]
        %v1135 = vld [vmem:[%s381 + $0x10] sm:$0xff]
        %v1136 = vld [vmem:[%s381 + $0x18] sm:$0xff]
        %v1137 = vld [vmem:[%s381 + $0x20] sm:$0xff]
        %v1138 = vld [vmem:[%s381 + $0x28] sm:$0xff]
        %v1139 = vld [vmem:[%s381 + $0x30] sm:$0xff]
        %v1140 = vld [vmem:[%s381 + $0x38] sm:$0xff]
        %v1141 = vpack.c.bf16 %v1134, %v1133
        %v1142 = vpack.c.bf16 %v1136, %v1135
        %v1143 = vpack.c.bf16 %v1138, %v1137
        %v1144 = vpack.c.bf16 %v1140, %v1139
        %v1145 = vld [vmem:[%s388] sm:$0xff]
        %v1146 = vld [vmem:[%s388 + $0x8] sm:$0xff]
        %v1147 = vld [vmem:[%s388 + $0x10] sm:$0xff]
        %v1148 = vld [vmem:[%s388 + $0x18] sm:$0xff]
        %v1149 = vld [vmem:[%s388 + $0x20] sm:$0xff]
        %v1150 = vld [vmem:[%s388 + $0x28] sm:$0xff]
        %v1151 = vld [vmem:[%s388 + $0x30] sm:$0xff]
        %v1152 = vld [vmem:[%s388 + $0x38] sm:$0xff]
        %v1153 = vpack.c.bf16 %v1146, %v1145
        %v1154 = vpack.c.bf16 %v1148, %v1147
        %v1155 = vpack.c.bf16 %v1150, %v1149
        %v1156 = vpack.c.bf16 %v1152, %v1151
        %v1157 = vld [vmem:[%s395] sm:$0xff]
        %v1158 = vld [vmem:[%s395 + $0x8] sm:$0xff]
        %v1159 = vld [vmem:[%s395 + $0x10] sm:$0xff]
        %v1160 = vld [vmem:[%s395 + $0x18] sm:$0xff]
        %v1161 = vld [vmem:[%s395 + $0x20] sm:$0xff]
        %v1162 = vld [vmem:[%s395 + $0x28] sm:$0xff]
        %v1163 = vld [vmem:[%s395 + $0x30] sm:$0xff]
        %v1164 = vld [vmem:[%s395 + $0x38] sm:$0xff]
        %v1165 = vpack.c.bf16 %v1158, %v1157
        %v1166 = vpack.c.bf16 %v1160, %v1159
        %v1167 = vpack.c.bf16 %v1162, %v1161
        %v1168 = vpack.c.bf16 %v1164, %v1163
        %1173 = vrot.lane.b32.xlu0 %v1141, 64
        %v1174 = vpop.permute.xlu0 %1173
        %1175 = vrot.lane.b32.xlu0 %v1142, 64
        %v1176 = vpop.permute.xlu0 %1175
        %1177 = vrot.lane.b32.xlu0 %v1143, 64
        %v1178 = vpop.permute.xlu0 %1177
        %1179 = vrot.lane.b32.xlu0 %v1144, 64
        %v1180 = vpop.permute.xlu0 %1179
        %1185 = vrot.lane.b32.xlu0 %v1153, 64
        %v1186 = vpop.permute.xlu0 %1185
        %1187 = vrot.lane.b32.xlu0 %v1154, 64
        %v1188 = vpop.permute.xlu0 %1187
        %1189 = vrot.lane.b32.xlu0 %v1155, 64
        %v1190 = vpop.permute.xlu0 %1189
        %1191 = vrot.lane.b32.xlu0 %v1156, 64
        %v1192 = vpop.permute.xlu0 %1191
        %v1194 = vsel %vm474, %v1174, 0
        %v1197 = vsel %vm474, %v1176, 0
        %v1200 = vsel %vm474, %v1178, 0
        %v1203 = vsel %vm474, %v1180, 0
        %v1206 = vsel %vm474, %v1186, 0
        %v1209 = vsel %vm474, %v1188, 0
        %v1212 = vsel %vm474, %v1190, 0
        %v1215 = vsel %vm474, %v1192, 0
        %1217 = vmatprep.subr.bf16.mxu0 0
        %1218 = vmatpush1.bf16.xpose.msra.mxu0 %v1206
        %1219 = vmatprep.subr.bf16.mxu0 0
        %1220 = vmatpush1.bf16.xpose.msra.mxu0 %v1209
        %1221 = vmatprep.subr.bf16.mxu0 0
        %1222 = vmatpush1.bf16.xpose.msra.mxu0 %v1212
        %1223 = vmatprep.subr.bf16.mxu0 0
        %1224 = vmatpush1.bf16.xpose.msra.mxu0 %v1215
        %1225 = vmatprep.subr.bf16.mxu0 0
        %1226 = vmatpush1.bf16.xpose.msra.mxu0 0
        %1227 = vmatprep.subr.bf16.mxu0 0
        %1228 = vmatpush1.bf16.xpose.msra.mxu0 0
        %1229 = vmatprep.subr.bf16.mxu0 0
        %1230 = vmatpush1.bf16.xpose.msra.mxu0 0
        %1231 = vmatprep.subr.bf16.mxu0 0
        %1232 = vmatpush1.bf16.xpose.msra.mxu0 0
        %1233 = vmatprep.subr.bf16.mxu0 0
        %1234 = vmatpush1.bf16.xpose.msra.mxu0 0
        %1235 = vmatprep.subr.bf16.mxu0 0
        %1236 = vmatpush1.bf16.xpose.msra.mxu0 0
        %1237 = vmatprep.subr.bf16.mxu0 0
        %1238 = vmatpush1.bf16.xpose.msra.mxu0 0
        %1239 = vmatprep.subr.bf16.mxu0 0
        %1240 = vmatpush1.bf16.xpose.msra.mxu0 0
        %1241 = vmatprep.subr.bf16.mxu0 0
        %1242 = vmatpush1.bf16.xpose.msra.mxu0 0
        %1243 = vmatprep.subr.bf16.mxu0 0
        %1244 = vmatpush1.bf16.xpose.msra.mxu0 0
        %1245 = vmatprep.subr.bf16.mxu0 0
        %1246 = vmatpush1.bf16.xpose.msra.mxu0 0
        %1247 = vmatprep.subr.bf16.mxu0 0
        %1248 = vmatpush1.bf16.xpose.msra.mxu0 0
        %1249 = vmatprep.mubr.bf16.mxu0 0
        %1250 = vmatmul.mubr.bf16.gmra.mrb[0].mxu0 %v1194
        %v1251 = vpop.f32.mrb[0].mxu0
        %v1252 = vadd.f32 0.0, %v1251
        %v1253 = vpop.f32.mrb[0].mxu0
        %v1254 = vpop.f32.mrb[0].mxu0
        %v1255 = vadd.f32 0.0, %v1254
        %v1256 = vpop.f32.mrb[0].mxu0
        %1257 = vmatprep.mubr.bf16.mxu0 0
        %1258 = vmatmul.mubr.bf16.gmra.mrb[0].mxu0 %v1197
        %v1259 = vpop.f32.mrb[0].mxu0
        %v1260 = vadd.f32 0.0, %v1259
        %v1261 = vpop.f32.mrb[0].mxu0
        %v1262 = vpop.f32.mrb[0].mxu0
        %v1263 = vadd.f32 0.0, %v1262
        %v1264 = vpop.f32.mrb[0].mxu0
        %1265 = vmatprep.mubr.bf16.mxu0 0
        %1266 = vmatmul.mubr.bf16.gmra.mrb[0].mxu0 %v1200
        %v1267 = vpop.f32.mrb[0].mxu0
        %v1268 = vadd.f32 0.0, %v1267
        %v1269 = vpop.f32.mrb[0].mxu0
        %v1270 = vpop.f32.mrb[0].mxu0
        %v1271 = vadd.f32 0.0, %v1270
        %v1272 = vpop.f32.mrb[0].mxu0
        %1273 = vmatprep.mubr.bf16.mxu0 0
        %1274 = vmatmul.mubr.bf16.gmra.mrb[0].mxu0 %v1203
        %v1275 = vpop.f32.mrb[0].mxu0
        %v1276 = vadd.f32 0.0, %v1275
        %v1277 = vpop.f32.mrb[0].mxu0
        %v1278 = vpop.f32.mrb[0].mxu0
        %v1279 = vadd.f32 0.0, %v1278
        %v1280 = vpop.f32.mrb[0].mxu0
        %1281 = vdwg.mxu0
        %v1282 = vmul.f32 %v1252, 0.17677669
        %v1283 = vmul.f32 %v1255, 0.17677669
        %v1284 = vmul.f32 %v1260, 0.17677669
        %v1285 = vmul.f32 %v1263, 0.17677669
        %v1286 = vmul.f32 %v1268, 0.17677669
        %v1287 = vmul.f32 %v1271, 0.17677669
        %v1288 = vmul.f32 %v1276, 0.17677669
        %v1289 = vmul.f32 %v1279, 0.17677669
        %v1290 = vsel %vm572, %v1282, -inf
        %1291 = vmax.xlane.f32.xlu0 %v1290
        %v1292 = vpop.xlane.xlu0 %1291
        %v1293 = vsel %vm572, %v1283, -inf
        %1294 = vmax.xlane.f32.xlu0 %v1293
        %v1295 = vpop.xlane.xlu0 %1294
        %v1296 = vsel %vm572, %v1284, -inf
        %1297 = vmax.xlane.f32.xlu0 %v1296
        %v1298 = vpop.xlane.xlu0 %1297
        %v1299 = vsel %vm572, %v1285, -inf
        %1300 = vmax.xlane.f32.xlu0 %v1299
        %v1301 = vpop.xlane.xlu0 %1300
        %v1302 = vsel %vm572, %v1286, -inf
        %1303 = vmax.xlane.f32.xlu0 %v1302
        %v1304 = vpop.xlane.xlu0 %1303
        %v1305 = vsel %vm572, %v1287, -inf
        %1306 = vmax.xlane.f32.xlu0 %v1305
        %v1307 = vpop.xlane.xlu0 %1306
        %v1308 = vsel %vm572, %v1288, -inf
        %1309 = vmax.xlane.f32.xlu0 %v1308
        %v1310 = vpop.xlane.xlu0 %1309
        %v1311 = vsel %vm572, %v1289, -inf
        %1312 = vmax.xlane.f32.xlu0 %v1311
        %v1313 = vpop.xlane.xlu0 %1312
        %v1314 = vsub.f32 %v1282, %v1292
        %v1315 = vsub.f32 %v1283, %v1295
        %v1316 = vsub.f32 %v1284, %v1298
        %v1317 = vsub.f32 %v1285, %v1301
        %v1318 = vsub.f32 %v1286, %v1304
        %v1319 = vsub.f32 %v1287, %v1307
        %v1320 = vsub.f32 %v1288, %v1310
        %v1321 = vsub.f32 %v1289, %v1313
        %v1322 = vmul.f32 %v1314, 1.442695
        %v1323 = vpow.pop %v1322
        %v1324 = vmul.f32 %v1315, 1.442695
        %v1325 = vpow.pop %v1324
        %v1326 = vmul.f32 %v1316, 1.442695
        %v1327 = vpow.pop %v1326
        %v1328 = vmul.f32 %v1317, 1.442695
        %v1329 = vpow.pop %v1328
        %v1330 = vmul.f32 %v1318, 1.442695
        %v1331 = vpow.pop %v1330
        %v1332 = vmul.f32 %v1319, 1.442695
        %v1333 = vpow.pop %v1332
        %v1334 = vmul.f32 %v1320, 1.442695
        %v1335 = vpow.pop %v1334
        %v1336 = vmul.f32 %v1321, 1.442695
        %v1337 = vpow.pop %v1336
        %v1338 = vsel %vm572, %v1323, 0.0
        %1339 = vadd.xlane.f32.xlu0 %v1338
        %v1340 = vpop.xlane.xlu0 %1339
        %v1341 = vsel %vm572, %v1325, 0.0
        %1342 = vadd.xlane.f32.xlu0 %v1341
        %v1343 = vpop.xlane.xlu0 %1342
        %v1344 = vsel %vm572, %v1327, 0.0
        %1345 = vadd.xlane.f32.xlu0 %v1344
        %v1346 = vpop.xlane.xlu0 %1345
        %v1347 = vsel %vm572, %v1329, 0.0
        %1348 = vadd.xlane.f32.xlu0 %v1347
        %v1349 = vpop.xlane.xlu0 %1348
        %v1350 = vsel %vm572, %v1331, 0.0
        %1351 = vadd.xlane.f32.xlu0 %v1350
        %v1352 = vpop.xlane.xlu0 %1351
        %v1353 = vsel %vm572, %v1333, 0.0
        %1354 = vadd.xlane.f32.xlu0 %v1353
        %v1355 = vpop.xlane.xlu0 %1354
        %v1356 = vsel %vm572, %v1335, 0.0
        %1357 = vadd.xlane.f32.xlu0 %v1356
        %v1358 = vpop.xlane.xlu0 %1357
        %v1359 = vsel %vm572, %v1337, 0.0
        %1360 = vadd.xlane.f32.xlu0 %v1359
        %v1361 = vpop.xlane.xlu0 %1360
        %v1362 = vrcp.pop %v1340
        %v1363 = vrcp.pop %v1343
        %v1364 = vrcp.pop %v1346
        %v1365 = vrcp.pop %v1349
        %v1366 = vrcp.pop %v1352
        %v1367 = vrcp.pop %v1355
        %v1368 = vrcp.pop %v1358
        %v1369 = vrcp.pop %v1361
        %v1370 = vmul.f32 %v1323, %v1362
        %v1371 = vmul.f32 %v1325, %v1363
        %v1372 = vmul.f32 %v1327, %v1364
        %v1373 = vmul.f32 %v1329, %v1365
        %v1374 = vmul.f32 %v1331, %v1366
        %v1375 = vmul.f32 %v1333, %v1367
        %v1376 = vmul.f32 %v1335, %v1368
        %v1377 = vmul.f32 %v1337, %v1369
        %v1378 = vpack.c.bf16 %v1371, %v1370
        %v1379 = vpack.c.bf16 %v1373, %v1372
        %v1380 = vpack.c.bf16 %v1375, %v1374
        %v1381 = vpack.c.bf16 %v1377, %v1376
        %1386 = vrot.lane.b32.xlu0 %v1165, 64
        %v1387 = vpop.permute.xlu0 %1386
        %1388 = vrot.lane.b32.xlu0 %v1166, 64
        %v1389 = vpop.permute.xlu0 %1388
        %1390 = vrot.lane.b32.xlu0 %v1167, 64
        %v1391 = vpop.permute.xlu0 %1390
        %1392 = vrot.lane.b32.xlu0 %v1168, 64
        %v1393 = vpop.permute.xlu0 %1392
        %v1399 = vsel %vm572, %v1378, 0
        %v1402 = vsel %vm572, %v1379, 0
        %v1405 = vsel %vm572, %v1380, 0
        %v1408 = vsel %vm572, %v1381, 0
        %1410 = vmatprep.subr.bf16.mxu0 0
        %1411 = vmatpush1.bf16.msra.mxu0 %v1387
        %1412 = vmatprep.subr.bf16.mxu0 0
        %1413 = vmatpush1.bf16.msra.mxu0 %v1389
        %1414 = vmatprep.subr.bf16.mxu0 0
        %1415 = vmatpush1.bf16.msra.mxu0 %v1391
        %1416 = vmatprep.subr.bf16.mxu0 0
        %1417 = vmatpush1.bf16.msra.mxu0 %v1393
        %1418 = vmatprep.subr.bf16.mxu0 0
        %1419 = vmatpush1.bf16.msra.mxu0 0
        %1420 = vmatprep.subr.bf16.mxu0 0
        %1421 = vmatpush1.bf16.msra.mxu0 0
        %1422 = vmatprep.subr.bf16.mxu0 0
        %1423 = vmatpush1.bf16.msra.mxu0 0
        %1424 = vmatprep.subr.bf16.mxu0 0
        %1425 = vmatpush1.bf16.msra.mxu0 0
        %1426 = vmatprep.subr.bf16.mxu0 0
        %1427 = vmatpush1.bf16.msra.mxu0 0
        %1428 = vmatprep.subr.bf16.mxu0 0
        %1429 = vmatpush1.bf16.msra.mxu0 0
        %1430 = vmatprep.subr.bf16.mxu0 0
        %1431 = vmatpush1.bf16.msra.mxu0 0
        %1432 = vmatprep.subr.bf16.mxu0 0
        %1433 = vmatpush1.bf16.msra.mxu0 0
        %1434 = vmatprep.subr.bf16.mxu0 0
        %1435 = vmatpush1.bf16.msra.mxu0 0
        %1436 = vmatprep.subr.bf16.mxu0 0
        %1437 = vmatpush1.bf16.msra.mxu0 0
        %1438 = vmatprep.subr.bf16.mxu0 0
        %1439 = vmatpush1.bf16.msra.mxu0 0
        %1440 = vmatprep.subr.bf16.mxu0 0
        %1441 = vmatpush1.bf16.msra.mxu0 0
        %1442 = vmatprep.mubr.bf16.mxu0 0
        %1443 = vmatmul.mubr.bf16.gmra.mrb[0].mxu0 %v1399
        %v1444 = vpop.f32.mrb[0].mxu0
        %v1445 = vadd.f32 0.0, %v1444
        %v1446 = vpop.f32.mrb[0].mxu0
        %v1447 = vpop.f32.mrb[0].mxu0
        %v1448 = vadd.f32 0.0, %v1447
        %v1449 = vpop.f32.mrb[0].mxu0
        %1450 = vmatprep.mubr.bf16.mxu0 0
        %1451 = vmatmul.mubr.bf16.gmra.mrb[0].mxu0 %v1402
        %v1452 = vpop.f32.mrb[0].mxu0
        %v1453 = vadd.f32 0.0, %v1452
        %v1454 = vpop.f32.mrb[0].mxu0
        %v1455 = vpop.f32.mrb[0].mxu0
        %v1456 = vadd.f32 0.0, %v1455
        %v1457 = vpop.f32.mrb[0].mxu0
        %1458 = vmatprep.mubr.bf16.mxu0 0
        %1459 = vmatmul.mubr.bf16.gmra.mrb[0].mxu0 %v1405
        %v1460 = vpop.f32.mrb[0].mxu0
        %v1461 = vadd.f32 0.0, %v1460
        %v1462 = vpop.f32.mrb[0].mxu0
        %v1463 = vpop.f32.mrb[0].mxu0
        %v1464 = vadd.f32 0.0, %v1463
        %v1465 = vpop.f32.mrb[0].mxu0
        %1466 = vmatprep.mubr.bf16.mxu0 0
        %1467 = vmatmul.mubr.bf16.gmra.mrb[0].mxu0 %v1408
        %v1468 = vpop.f32.mrb[0].mxu0
        %v1469 = vadd.f32 0.0, %v1468
        %v1470 = vpop.f32.mrb[0].mxu0
        %v1471 = vpop.f32.mrb[0].mxu0
        %v1472 = vadd.f32 0.0, %v1471
        %v1473 = vpop.f32.mrb[0].mxu0
        %1474 = vdwg.mxu0
        %1483 = vrot.lane.b32.xlu0 %v1445, 64
        %v1484 = vpop.permute.xlu0 %1483
        %1485 = vrot.lane.b32.xlu0 %v1448, 64
        %v1486 = vpop.permute.xlu0 %1485
        %1487 = vrot.lane.b32.xlu0 %v1453, 64
        %v1488 = vpop.permute.xlu0 %1487
        %1489 = vrot.lane.b32.xlu0 %v1456, 64
        %v1490 = vpop.permute.xlu0 %1489
        %1491 = vrot.lane.b32.xlu0 %v1461, 64
        %v1492 = vpop.permute.xlu0 %1491
        %1493 = vrot.lane.b32.xlu0 %v1464, 64
        %v1494 = vpop.permute.xlu0 %1493
        %1495 = vrot.lane.b32.xlu0 %v1469, 64
        %v1496 = vpop.permute.xlu0 %1495
        %1497 = vrot.lane.b32.xlu0 %v1472, 64
        %v1498 = vpop.permute.xlu0 %1497
        %vm1507 = vcmask 785920
        %1508 = vst.msk [vmem:[%s436] sm:$0xff] %vm1507, %v1484
        %1509 = vst.msk [vmem:[%s436 + $0x8] sm:$0xff] %vm1507, %v1486
        %1510 = vst.msk [vmem:[%s436 + $0x10] sm:$0xff] %vm1507, %v1488
        %1511 = vst.msk [vmem:[%s436 + $0x18] sm:$0xff] %vm1507, %v1490
        %1512 = vst.msk [vmem:[%s436 + $0x20] sm:$0xff] %vm1507, %v1492
        %1513 = vst.msk [vmem:[%s436 + $0x28] sm:$0xff] %vm1507, %v1494
        %1514 = vst.msk [vmem:[%s436 + $0x30] sm:$0xff] %vm1507, %v1496
        %1515 = vst.msk [vmem:[%s436 + $0x38] sm:$0xff] %vm1507, %v1498
        %v1516 = vld [vmem:[%s381] sm:$0xff]
        %v1517 = vld [vmem:[%s381 + $0x8] sm:$0xff]
        %v1518 = vld [vmem:[%s381 + $0x10] sm:$0xff]
        %v1519 = vld [vmem:[%s381 + $0x18] sm:$0xff]
        %v1520 = vld [vmem:[%s381 + $0x20] sm:$0xff]
        %v1521 = vld [vmem:[%s381 + $0x28] sm:$0xff]
        %v1522 = vld [vmem:[%s381 + $0x30] sm:$0xff]
        %v1523 = vld [vmem:[%s381 + $0x38] sm:$0xff]
        %v1524 = vpack.c.bf16 %v1517, %v1516
        %v1525 = vpack.c.bf16 %v1519, %v1518
        %v1526 = vpack.c.bf16 %v1521, %v1520
        %v1527 = vpack.c.bf16 %v1523, %v1522
        %v1528 = vld [vmem:[%s388] sm:$0xff]
        %v1529 = vld [vmem:[%s388 + $0x8] sm:$0xff]
        %v1530 = vld [vmem:[%s388 + $0x10] sm:$0xff]
        %v1531 = vld [vmem:[%s388 + $0x18] sm:$0xff]
        %v1532 = vld [vmem:[%s388 + $0x20] sm:$0xff]
        %v1533 = vld [vmem:[%s388 + $0x28] sm:$0xff]
        %v1534 = vld [vmem:[%s388 + $0x30] sm:$0xff]
        %v1535 = vld [vmem:[%s388 + $0x38] sm:$0xff]
        %v1536 = vpack.c.bf16 %v1529, %v1528
        %v1537 = vpack.c.bf16 %v1531, %v1530
        %v1538 = vpack.c.bf16 %v1533, %v1532
        %v1539 = vpack.c.bf16 %v1535, %v1534
        %v1540 = vld [vmem:[%s395] sm:$0xff]
        %v1541 = vld [vmem:[%s395 + $0x8] sm:$0xff]
        %v1542 = vld [vmem:[%s395 + $0x10] sm:$0xff]
        %v1543 = vld [vmem:[%s395 + $0x18] sm:$0xff]
        %v1544 = vld [vmem:[%s395 + $0x20] sm:$0xff]
        %v1545 = vld [vmem:[%s395 + $0x28] sm:$0xff]
        %v1546 = vld [vmem:[%s395 + $0x30] sm:$0xff]
        %v1547 = vld [vmem:[%s395 + $0x38] sm:$0xff]
        %v1548 = vpack.c.bf16 %v1541, %v1540
        %v1549 = vpack.c.bf16 %v1543, %v1542
        %v1550 = vpack.c.bf16 %v1545, %v1544
        %v1551 = vpack.c.bf16 %v1547, %v1546
        %1556 = vrot.lane.b32.xlu0 %v1524, 32
        %v1557 = vpop.permute.xlu0 %1556
        %1558 = vrot.lane.b32.xlu0 %v1525, 32
        %v1559 = vpop.permute.xlu0 %1558
        %1560 = vrot.lane.b32.xlu0 %v1526, 32
        %v1561 = vpop.permute.xlu0 %1560
        %1562 = vrot.lane.b32.xlu0 %v1527, 32
        %v1563 = vpop.permute.xlu0 %1562
        %1568 = vrot.lane.b32.xlu0 %v1536, 32
        %v1569 = vpop.permute.xlu0 %1568
        %1570 = vrot.lane.b32.xlu0 %v1537, 32
        %v1571 = vpop.permute.xlu0 %1570
        %1572 = vrot.lane.b32.xlu0 %v1538, 32
        %v1573 = vpop.permute.xlu0 %1572
        %1574 = vrot.lane.b32.xlu0 %v1539, 32
        %v1575 = vpop.permute.xlu0 %1574
        %v1577 = vsel %vm474, %v1557, 0
        %v1580 = vsel %vm474, %v1559, 0
        %v1583 = vsel %vm474, %v1561, 0
        %v1586 = vsel %vm474, %v1563, 0
        %v1589 = vsel %vm474, %v1569, 0
        %v1592 = vsel %vm474, %v1571, 0
        %v1595 = vsel %vm474, %v1573, 0
        %v1598 = vsel %vm474, %v1575, 0
        %1600 = vmatprep.subr.bf16.mxu0 0
        %1601 = vmatpush1.bf16.xpose.msra.mxu0 %v1589
        %1602 = vmatprep.subr.bf16.mxu0 0
        %1603 = vmatpush1.bf16.xpose.msra.mxu0 %v1592
        %1604 = vmatprep.subr.bf16.mxu0 0
        %1605 = vmatpush1.bf16.xpose.msra.mxu0 %v1595
        %1606 = vmatprep.subr.bf16.mxu0 0
        %1607 = vmatpush1.bf16.xpose.msra.mxu0 %v1598
        %1608 = vmatprep.subr.bf16.mxu0 0
        %1609 = vmatpush1.bf16.xpose.msra.mxu0 0
        %1610 = vmatprep.subr.bf16.mxu0 0
        %1611 = vmatpush1.bf16.xpose.msra.mxu0 0
        %1612 = vmatprep.subr.bf16.mxu0 0
        %1613 = vmatpush1.bf16.xpose.msra.mxu0 0
        %1614 = vmatprep.subr.bf16.mxu0 0
        %1615 = vmatpush1.bf16.xpose.msra.mxu0 0
        %1616 = vmatprep.subr.bf16.mxu0 0
        %1617 = vmatpush1.bf16.xpose.msra.mxu0 0
        %1618 = vmatprep.subr.bf16.mxu0 0
        %1619 = vmatpush1.bf16.xpose.msra.mxu0 0
        %1620 = vmatprep.subr.bf16.mxu0 0
        %1621 = vmatpush1.bf16.xpose.msra.mxu0 0
        %1622 = vmatprep.subr.bf16.mxu0 0
        %1623 = vmatpush1.bf16.xpose.msra.mxu0 0
        %1624 = vmatprep.subr.bf16.mxu0 0
        %1625 = vmatpush1.bf16.xpose.msra.mxu0 0
        %1626 = vmatprep.subr.bf16.mxu0 0
        %1627 = vmatpush1.bf16.xpose.msra.mxu0 0
        %1628 = vmatprep.subr.bf16.mxu0 0
        %1629 = vmatpush1.bf16.xpose.msra.mxu0 0
        %1630 = vmatprep.subr.bf16.mxu0 0
        %1631 = vmatpush1.bf16.xpose.msra.mxu0 0
        %1632 = vmatprep.mubr.bf16.mxu0 0
        %1633 = vmatmul.mubr.bf16.gmra.mrb[0].mxu0 %v1577
        %v1634 = vpop.f32.mrb[0].mxu0
        %v1635 = vadd.f32 0.0, %v1634
        %v1636 = vpop.f32.mrb[0].mxu0
        %v1637 = vpop.f32.mrb[0].mxu0
        %v1638 = vadd.f32 0.0, %v1637
        %v1639 = vpop.f32.mrb[0].mxu0
        %1640 = vmatprep.mubr.bf16.mxu0 0
        %1641 = vmatmul.mubr.bf16.gmra.mrb[0].mxu0 %v1580
        %v1642 = vpop.f32.mrb[0].mxu0
        %v1643 = vadd.f32 0.0, %v1642
        %v1644 = vpop.f32.mrb[0].mxu0
        %v1645 = vpop.f32.mrb[0].mxu0
        %v1646 = vadd.f32 0.0, %v1645
        %v1647 = vpop.f32.mrb[0].mxu0
        %1648 = vmatprep.mubr.bf16.mxu0 0
        %1649 = vmatmul.mubr.bf16.gmra.mrb[0].mxu0 %v1583
        %v1650 = vpop.f32.mrb[0].mxu0
        %v1651 = vadd.f32 0.0, %v1650
        %v1652 = vpop.f32.mrb[0].mxu0
        %v1653 = vpop.f32.mrb[0].mxu0
        %v1654 = vadd.f32 0.0, %v1653
        %v1655 = vpop.f32.mrb[0].mxu0
        %1656 = vmatprep.mubr.bf16.mxu0 0
        %1657 = vmatmul.mubr.bf16.gmra.mrb[0].mxu0 %v1586
        %v1658 = vpop.f32.mrb[0].mxu0
        %v1659 = vadd.f32 0.0, %v1658
        %v1660 = vpop.f32.mrb[0].mxu0
        %v1661 = vpop.f32.mrb[0].mxu0
        %v1662 = vadd.f32 0.0, %v1661
        %v1663 = vpop.f32.mrb[0].mxu0
        %1664 = vdwg.mxu0
        %v1665 = vmul.f32 %v1635, 0.17677669
        %v1666 = vmul.f32 %v1638, 0.17677669
        %v1667 = vmul.f32 %v1643, 0.17677669
        %v1668 = vmul.f32 %v1646, 0.17677669
        %v1669 = vmul.f32 %v1651, 0.17677669
        %v1670 = vmul.f32 %v1654, 0.17677669
        %v1671 = vmul.f32 %v1659, 0.17677669
        %v1672 = vmul.f32 %v1662, 0.17677669
        %v1673 = vsel %vm572, %v1665, -inf
        %1674 = vmax.xlane.f32.xlu0 %v1673
        %v1675 = vpop.xlane.xlu0 %1674
        %v1676 = vsel %vm572, %v1666, -inf
        %1677 = vmax.xlane.f32.xlu0 %v1676
        %v1678 = vpop.xlane.xlu0 %1677
        %v1679 = vsel %vm572, %v1667, -inf
        %1680 = vmax.xlane.f32.xlu0 %v1679
        %v1681 = vpop.xlane.xlu0 %1680
        %v1682 = vsel %vm572, %v1668, -inf
        %1683 = vmax.xlane.f32.xlu0 %v1682
        %v1684 = vpop.xlane.xlu0 %1683
        %v1685 = vsel %vm572, %v1669, -inf
        %1686 = vmax.xlane.f32.xlu0 %v1685
        %v1687 = vpop.xlane.xlu0 %1686
        %v1688 = vsel %vm572, %v1670, -inf
        %1689 = vmax.xlane.f32.xlu0 %v1688
        %v1690 = vpop.xlane.xlu0 %1689
        %v1691 = vsel %vm572, %v1671, -inf
        %1692 = vmax.xlane.f32.xlu0 %v1691
        %v1693 = vpop.xlane.xlu0 %1692
        %v1694 = vsel %vm572, %v1672, -inf
        %1695 = vmax.xlane.f32.xlu0 %v1694
        %v1696 = vpop.xlane.xlu0 %1695
        %v1697 = vsub.f32 %v1665, %v1675
        %v1698 = vsub.f32 %v1666, %v1678
        %v1699 = vsub.f32 %v1667, %v1681
        %v1700 = vsub.f32 %v1668, %v1684
        %v1701 = vsub.f32 %v1669, %v1687
        %v1702 = vsub.f32 %v1670, %v1690
        %v1703 = vsub.f32 %v1671, %v1693
        %v1704 = vsub.f32 %v1672, %v1696
        %v1705 = vmul.f32 %v1697, 1.442695
        %v1706 = vpow.pop %v1705
        %v1707 = vmul.f32 %v1698, 1.442695
        %v1708 = vpow.pop %v1707
        %v1709 = vmul.f32 %v1699, 1.442695
        %v1710 = vpow.pop %v1709
        %v1711 = vmul.f32 %v1700, 1.442695
        %v1712 = vpow.pop %v1711
        %v1713 = vmul.f32 %v1701, 1.442695
        %v1714 = vpow.pop %v1713
        %v1715 = vmul.f32 %v1702, 1.442695
        %v1716 = vpow.pop %v1715
        %v1717 = vmul.f32 %v1703, 1.442695
        %v1718 = vpow.pop %v1717
        %v1719 = vmul.f32 %v1704, 1.442695
        %v1720 = vpow.pop %v1719
        %v1721 = vsel %vm572, %v1706, 0.0
        %1722 = vadd.xlane.f32.xlu0 %v1721
        %v1723 = vpop.xlane.xlu0 %1722
        %v1724 = vsel %vm572, %v1708, 0.0
        %1725 = vadd.xlane.f32.xlu0 %v1724
        %v1726 = vpop.xlane.xlu0 %1725
        %v1727 = vsel %vm572, %v1710, 0.0
        %1728 = vadd.xlane.f32.xlu0 %v1727
        %v1729 = vpop.xlane.xlu0 %1728
        %v1730 = vsel %vm572, %v1712, 0.0
        %1731 = vadd.xlane.f32.xlu0 %v1730
        %v1732 = vpop.xlane.xlu0 %1731
        %v1733 = vsel %vm572, %v1714, 0.0
        %1734 = vadd.xlane.f32.xlu0 %v1733
        %v1735 = vpop.xlane.xlu0 %1734
        %v1736 = vsel %vm572, %v1716, 0.0
        %1737 = vadd.xlane.f32.xlu0 %v1736
        %v1738 = vpop.xlane.xlu0 %1737
        %v1739 = vsel %vm572, %v1718, 0.0
        %1740 = vadd.xlane.f32.xlu0 %v1739
        %v1741 = vpop.xlane.xlu0 %1740
        %v1742 = vsel %vm572, %v1720, 0.0
        %1743 = vadd.xlane.f32.xlu0 %v1742
        %v1744 = vpop.xlane.xlu0 %1743
        %v1745 = vrcp.pop %v1723
        %v1746 = vrcp.pop %v1726
        %v1747 = vrcp.pop %v1729
        %v1748 = vrcp.pop %v1732
        %v1749 = vrcp.pop %v1735
        %v1750 = vrcp.pop %v1738
        %v1751 = vrcp.pop %v1741
        %v1752 = vrcp.pop %v1744
        %v1753 = vmul.f32 %v1706, %v1745
        %v1754 = vmul.f32 %v1708, %v1746
        %v1755 = vmul.f32 %v1710, %v1747
        %v1756 = vmul.f32 %v1712, %v1748
        %v1757 = vmul.f32 %v1714, %v1749
        %v1758 = vmul.f32 %v1716, %v1750
        %v1759 = vmul.f32 %v1718, %v1751
        %v1760 = vmul.f32 %v1720, %v1752
        %v1761 = vpack.c.bf16 %v1754, %v1753
        %v1762 = vpack.c.bf16 %v1756, %v1755
        %v1763 = vpack.c.bf16 %v1758, %v1757
        %v1764 = vpack.c.bf16 %v1760, %v1759
        %1769 = vrot.lane.b32.xlu0 %v1548, 32
        %v1770 = vpop.permute.xlu0 %1769
        %1771 = vrot.lane.b32.xlu0 %v1549, 32
        %v1772 = vpop.permute.xlu0 %1771
        %1773 = vrot.lane.b32.xlu0 %v1550, 32
        %v1774 = vpop.permute.xlu0 %1773
        %1775 = vrot.lane.b32.xlu0 %v1551, 32
        %v1776 = vpop.permute.xlu0 %1775
        %v1782 = vsel %vm572, %v1761, 0
        %v1785 = vsel %vm572, %v1762, 0
        %v1788 = vsel %vm572, %v1763, 0
        %v1791 = vsel %vm572, %v1764, 0
        %1793 = vmatprep.subr.bf16.mxu0 0
        %1794 = vmatpush1.bf16.msra.mxu0 %v1770
        %1795 = vmatprep.subr.bf16.mxu0 0
        %1796 = vmatpush1.bf16.msra.mxu0 %v1772
        %1797 = vmatprep.subr.bf16.mxu0 0
        %1798 = vmatpush1.bf16.msra.mxu0 %v1774
        %1799 = vmatprep.subr.bf16.mxu0 0
        %1800 = vmatpush1.bf16.msra.mxu0 %v1776
        %1801 = vmatprep.subr.bf16.mxu0 0
        %1802 = vmatpush1.bf16.msra.mxu0 0
        %1803 = vmatprep.subr.bf16.mxu0 0
        %1804 = vmatpush1.bf16.msra.mxu0 0
        %1805 = vmatprep.subr.bf16.mxu0 0
        %1806 = vmatpush1.bf16.msra.mxu0 0
        %1807 = vmatprep.subr.bf16.mxu0 0
        %1808 = vmatpush1.bf16.msra.mxu0 0
        %1809 = vmatprep.subr.bf16.mxu0 0
        %1810 = vmatpush1.bf16.msra.mxu0 0
        %1811 = vmatprep.subr.bf16.mxu0 0
        %1812 = vmatpush1.bf16.msra.mxu0 0
        %1813 = vmatprep.subr.bf16.mxu0 0
        %1814 = vmatpush1.bf16.msra.mxu0 0
        %1815 = vmatprep.subr.bf16.mxu0 0
        %1816 = vmatpush1.bf16.msra.mxu0 0
        %1817 = vmatprep.subr.bf16.mxu0 0
        %1818 = vmatpush1.bf16.msra.mxu0 0
        %1819 = vmatprep.subr.bf16.mxu0 0
        %1820 = vmatpush1.bf16.msra.mxu0 0
        %1821 = vmatprep.subr.bf16.mxu0 0
        %1822 = vmatpush1.bf16.msra.mxu0 0
        %1823 = vmatprep.subr.bf16.mxu0 0
        %1824 = vmatpush1.bf16.msra.mxu0 0
        %1825 = vmatprep.mubr.bf16.mxu0 0
        %1826 = vmatmul.mubr.bf16.gmra.mrb[0].mxu0 %v1782
        %v1827 = vpop.f32.mrb[0].mxu0
        %v1828 = vadd.f32 0.0, %v1827
        %v1829 = vpop.f32.mrb[0].mxu0
        %v1830 = vpop.f32.mrb[0].mxu0
        %v1831 = vadd.f32 0.0, %v1830
        %v1832 = vpop.f32.mrb[0].mxu0
        %1833 = vmatprep.mubr.bf16.mxu0 0
        %1834 = vmatmul.mubr.bf16.gmra.mrb[0].mxu0 %v1785
        %v1835 = vpop.f32.mrb[0].mxu0
        %v1836 = vadd.f32 0.0, %v1835
        %v1837 = vpop.f32.mrb[0].mxu0
        %v1838 = vpop.f32.mrb[0].mxu0
        %v1839 = vadd.f32 0.0, %v1838
        %v1840 = vpop.f32.mrb[0].mxu0
        %1841 = vmatprep.mubr.bf16.mxu0 0
        %1842 = vmatmul.mubr.bf16.gmra.mrb[0].mxu0 %v1788
        %v1843 = vpop.f32.mrb[0].mxu0
        %v1844 = vadd.f32 0.0, %v1843
        %v1845 = vpop.f32.mrb[0].mxu0
        %v1846 = vpop.f32.mrb[0].mxu0
        %v1847 = vadd.f32 0.0, %v1846
        %v1848 = vpop.f32.mrb[0].mxu0
        %1849 = vmatprep.mubr.bf16.mxu0 0
        %1850 = vmatmul.mubr.bf16.gmra.mrb[0].mxu0 %v1791
        %v1851 = vpop.f32.mrb[0].mxu0
        %v1852 = vadd.f32 0.0, %v1851
        %v1853 = vpop.f32.mrb[0].mxu0
        %v1854 = vpop.f32.mrb[0].mxu0
        %v1855 = vadd.f32 0.0, %v1854
        %v1856 = vpop.f32.mrb[0].mxu0
        %1857 = vdwg.mxu0
        %1866 = vrot.lane.b32.xlu0 %v1828, 96
        %v1867 = vpop.permute.xlu0 %1866
        %1868 = vrot.lane.b32.xlu0 %v1831, 96
        %v1869 = vpop.permute.xlu0 %1868
        %1870 = vrot.lane.b32.xlu0 %v1836, 96
        %v1871 = vpop.permute.xlu0 %1870
        %1872 = vrot.lane.b32.xlu0 %v1839, 96
        %v1873 = vpop.permute.xlu0 %1872
        %1874 = vrot.lane.b32.xlu0 %v1844, 96
        %v1875 = vpop.permute.xlu0 %1874
        %1876 = vrot.lane.b32.xlu0 %v1847, 96
        %v1877 = vpop.permute.xlu0 %1876
        %1878 = vrot.lane.b32.xlu0 %v1852, 96
        %v1879 = vpop.permute.xlu0 %1878
        %1880 = vrot.lane.b32.xlu0 %v1855, 96
        %v1881 = vpop.permute.xlu0 %1880
        %vm1890 = vcmask 1048320
        %1891 = vst.msk [vmem:[%s436] sm:$0xff] %vm1890, %v1867
        %1892 = vst.msk [vmem:[%s436 + $0x8] sm:$0xff] %vm1890, %v1869
        %1893 = vst.msk [vmem:[%s436 + $0x10] sm:$0xff] %vm1890, %v1871
        %1894 = vst.msk [vmem:[%s436 + $0x18] sm:$0xff] %vm1890, %v1873
        %1895 = vst.msk [vmem:[%s436 + $0x20] sm:$0xff] %vm1890, %v1875
        %1896 = vst.msk [vmem:[%s436 + $0x28] sm:$0xff] %vm1890, %v1877
        %1897 = vst.msk [vmem:[%s436 + $0x30] sm:$0xff] %vm1890, %v1879
        %1898 = vst.msk [vmem:[%s436 + $0x38] sm:$0xff] %vm1890, %v1881
        %p1899 = scmp.lt.s32.totalorder %s18, 1
        %s1900 = scalar_select %p1899, %s18, 1
        %p1901 = scmp.lt.s32.totalorder %s19, 0
        %s1902 = scalar_select %p1901, %s19, 0
        %s1903 = smul.addr %s1900, 8
        %s1904 = sadd.s32 %s1902, %s1903
        %s1905 = smul.addr %s1904, 8
        %s1906 = scalar_lea.vmem %s3, %s1905
        // Predicated region
        $region147: #{encoder_forward.10} parent=133 // pred_check
          %p1907 = pneg %p134
        $region148: #{encoder_forward.10} parent=133 // pred_check_branch
          %1909 = sbr.rel (%p1907) target = $region150
        $region149: #{encoder_forward.10} parent=133 // pred_region
          _
        $region150: #{encoder_forward.10} parent=133 // pred_fallthru
          _
      $region134: #{encoder_forward.10} parent=5 // pred_fallthru
        _
      %p1910 = scmp.le.s32.totalorder 2, %s9
      // Predicated region
      $region151: #{encoder_forward.10} parent=5 // pred_check
        %p1911 = pneg %p1910
      $region152: #{encoder_forward.10} parent=5 // pred_check_branch
        %1913 = sbr.rel (%p1911) target = $region154
      $region153: #{encoder_forward.10} parent=5 // pred_region
        %s1914 = ssub.s32 %s9, 2
        // Predicated region
        $region155: #{encoder_forward.10} parent=153 // pred_check
          %p1915 = pneg %p140
        $region156: #{encoder_forward.10} parent=153 // pred_check_branch
          %1917 = sbr.rel (%p1915) target = $region158
        $region157: #{encoder_forward.10} parent=153 // pred_region
          %p1918 = scmp.lt.s32.totalorder %s20, 1
          %s1919 = scalar_select %p1918, %s20, 1
          %p1920 = scmp.lt.s32.totalorder %s21, 0
          %s1921 = scalar_select %p1920, %s21, 0
          %s1922 = smul.addr %s1919, 8
          %s1923 = sadd.s32 %s1921, %s1922
          %s1924 = smul.addr %s1923, 8
          %s1925 = scalar_lea.vmem %s3, %s1924
        $region158: #{encoder_forward.10} parent=153 // pred_fallthru
          _
      $region154: #{encoder_forward.10} parent=5 // pred_fallthru
        _
    $region6: #{encoder_forward.10} parent=1 // loop_footer
      %s13 = sadd.s32 1, %s9
    $region7: #{encoder_forward.10} parent=1 // loop_footer_branch
      %8 = sbr.rel target = $region3
    $region8: #{encoder_forward.10} parent=1 // loop_exit
      _

// kernel: encoder_forward.17
$region0: #{encoder_forward.17}
  #allocation0 [shape = 'u32[]', space=smem, size = 0x4, offset = 0x4, fixed_abs, tag = 'smem constant byte address 0x4 - core index']
  #allocation1 [shape = 'u32[144,128]{1,0:T(1,128)}', space=vmem, size = 0x12000, scoped, tag = 'internal scratch']
  %s0 = inlined_call_operand.vmem [shape: f32[128,128], index: 0, kind: input, shape index: {}]
  %s1 = inlined_call_operand.vmem [shape: f32[1,128], index: 1, kind: input, shape index: {}]
  %s2 = inlined_call_operand.vmem [shape: f32[1,128], index: 2, kind: input, shape index: {}]
  %s3 = inlined_call_operand.hbm [shape: f32[128,128], index: 3, kind: output, shape index: {}]
  %s4 = sld [smem:[#allocation0]]
  $region22: #{encoder_forward.17} parent=0
    _
  %s6 = ssub.s32 1, %s4
  %s7 = scalar_select 0, %s6, %s4
  $region1: #{encoder_forward.17} parent=0
    #allocation2 [shape = 'u8[65536]{0}', space=vmem, size = 0x10000, scoped, tag = 'output window, operand 0, single buffered']
    #allocation3 [shape = 's32[1]{0}', space=sflag, size = 0x4, scoped, tag = 'scoped memory for encoder_forward.17']
    %8 = vsyncpa [#allocation3], 0
    // Predicated region
    $region2: #{encoder_forward.17} parent=1 // pred_check
      _
    $region3: #{encoder_forward.17} parent=1 // pred_check_branch
      %10 = sbr.rel (0) target = $region5
    $region4: #{encoder_forward.17} parent=1 // pred_region
      _
    $region5: #{encoder_forward.17} parent=1 // pred_fallthru
      _
    // Predicated region
    $region6: #{encoder_forward.17} parent=1 // pred_check
      _
    $region7: #{encoder_forward.17} parent=1 // pred_check_branch
      %12 = sbr.rel (0) target = $region9
    $region8: #{encoder_forward.17} parent=1 // pred_region
      _
    $region9: #{encoder_forward.17} parent=1 // pred_fallthru
      _
    // Predicated region
    $region10: #{encoder_forward.17} parent=1 // pred_check
      _
    $region11: #{encoder_forward.17} parent=1 // pred_check_branch
      %14 = sbr.rel (0) target = $region13
    $region12: #{encoder_forward.17} parent=1 // pred_region
      _
    $region13: #{encoder_forward.17} parent=1 // pred_fallthru
      _
    %v15 = vld [vmem:[%s0] sm:$0xff]
    %v16 = vld [vmem:[%s0 + $0x8] sm:$0xff]
    %v17 = vld [vmem:[%s0 + $0x10] sm:$0xff]
    %v18 = vld [vmem:[%s0 + $0x18] sm:$0xff]
    %v19 = vld [vmem:[%s0 + $0x20] sm:$0xff]
    %v20 = vld [vmem:[%s0 + $0x28] sm:$0xff]
    %v21 = vld [vmem:[%s0 + $0x30] sm:$0xff]
    %v22 = vld [vmem:[%s0 + $0x38] sm:$0xff]
    %v23 = vld [vmem:[%s0 + $0x40] sm:$0xff]
    %v24 = vld [vmem:[%s0 + $0x48] sm:$0xff]
    %v25 = vld [vmem:[%s0 + $0x50] sm:$0xff]
    %v26 = vld [vmem:[%s0 + $0x58] sm:$0xff]
    %v27 = vld [vmem:[%s0 + $0x60] sm:$0xff]
    %v28 = vld [vmem:[%s0 + $0x68] sm:$0xff]
    %v29 = vld [vmem:[%s0 + $0x70] sm:$0xff]
    %v30 = vld [vmem:[%s0 + $0x78] sm:$0xff]
    %31 = vadd.xlane.f32.xlu0 %v15
    %v32 = vpop.xlane.xlu0 %31
    %33 = vadd.xlane.f32.xlu0 %v16
    %v34 = vpop.xlane.xlu0 %33
    %35 = vadd.xlane.f32.xlu0 %v17
    %v36 = vpop.xlane.xlu0 %35
    %37 = vadd.xlane.f32.xlu0 %v18
    %v38 = vpop.xlane.xlu0 %37
    %39 = vadd.xlane.f32.xlu0 %v19
    %v40 = vpop.xlane.xlu0 %39
    %41 = vadd.xlane.f32.xlu0 %v20
    %v42 = vpop.xlane.xlu0 %41
    %43 = vadd.xlane.f32.xlu0 %v21
    %v44 = vpop.xlane.xlu0 %43
    %45 = vadd.xlane.f32.xlu0 %v22
    %v46 = vpop.xlane.xlu0 %45
    %47 = vadd.xlane.f32.xlu0 %v23
    %v48 = vpop.xlane.xlu0 %47
    %49 = vadd.xlane.f32.xlu0 %v24
    %v50 = vpop.xlane.xlu0 %49
    %51 = vadd.xlane.f32.xlu0 %v25
    %v52 = vpop.xlane.xlu0 %51
    %53 = vadd.xlane.f32.xlu0 %v26
    %v54 = vpop.xlane.xlu0 %53
    %55 = vadd.xlane.f32.xlu0 %v27
    %v56 = vpop.xlane.xlu0 %55
    %57 = vadd.xlane.f32.xlu0 %v28
    %v58 = vpop.xlane.xlu0 %57
    %59 = vadd.xlane.f32.xlu0 %v29
    %v60 = vpop.xlane.xlu0 %59
    %61 = vadd.xlane.f32.xlu0 %v30
    %v62 = vpop.xlane.xlu0 %61
    %v63 = vrcp.pop 128.0
    %v64 = vmul.f32 %v32, %v63
    %v65 = vmul.f32 %v34, %v63
    %v66 = vmul.f32 %v36, %v63
    %v67 = vmul.f32 %v38, %v63
    %v68 = vmul.f32 %v40, %v63
    %v69 = vmul.f32 %v42, %v63
    %v70 = vmul.f32 %v44, %v63
    %v71 = vmul.f32 %v46, %v63
    %v72 = vmul.f32 %v48, %v63
    %v73 = vmul.f32 %v50, %v63
    %v74 = vmul.f32 %v52, %v63
    %v75 = vmul.f32 %v54, %v63
    %v76 = vmul.f32 %v56, %v63
    %v77 = vmul.f32 %v58, %v63
    %v78 = vmul.f32 %v60, %v63
    %v79 = vmul.f32 %v62, %v63
    %v80 = vsub.f32 %v15, %v64
    %v81 = vsub.f32 %v16, %v65
    %v82 = vsub.f32 %v17, %v66
    %v83 = vsub.f32 %v18, %v67
    %v84 = vsub.f32 %v19, %v68
    %v85 = vsub.f32 %v20, %v69
    %v86 = vsub.f32 %v21, %v70
    %v87 = vsub.f32 %v22, %v71
    %v88 = vsub.f32 %v23, %v72
    %v89 = vsub.f32 %v24, %v73
    %v90 = vsub.f32 %v25, %v74
    %v91 = vsub.f32 %v26, %v75
    %v92 = vsub.f32 %v27, %v76
    %v93 = vsub.f32 %v28, %v77
    %v94 = vsub.f32 %v29, %v78
    %v95 = vsub.f32 %v30, %v79
    %v96 = vmul.f32 %v80, %v80
    %v97 = vmul.f32 %v81, %v81
    %v98 = vmul.f32 %v82, %v82
    %v99 = vmul.f32 %v83, %v83
    %v100 = vmul.f32 %v84, %v84
    %v101 = vmul.f32 %v85, %v85
    %v102 = vmul.f32 %v86, %v86
    %v103 = vmul.f32 %v87, %v87
    %v104 = vmul.f32 %v88, %v88
    %v105 = vmul.f32 %v89, %v89
    %v106 = vmul.f32 %v90, %v90
    %v107 = vmul.f32 %v91, %v91
    %v108 = vmul.f32 %v92, %v92
    %v109 = vmul.f32 %v93, %v93
    %v110 = vmul.f32 %v94, %v94
    %v111 = vmul.f32 %v95, %v95
    %112 = vadd.xlane.f32.xlu0 %v96
    %v113 = vpop.xlane.xlu0 %112
    %114 = vadd.xlane.f32.xlu0 %v97
    %v115 = vpop.xlane.xlu0 %114
    %116 = vadd.xlane.f32.xlu0 %v98
    %v117 = vpop.xlane.xlu0 %116
    %118 = vadd.xlane.f32.xlu0 %v99
    %v119 = vpop.xlane.xlu0 %118
    %120 = vadd.xlane.f32.xlu0 %v100
    %v121 = vpop.xlane.xlu0 %120
    %122 = vadd.xlane.f32.xlu0 %v101
    %v123 = vpop.xlane.xlu0 %122
    %124 = vadd.xlane.f32.xlu0 %v102
    %v125 = vpop.xlane.xlu0 %124
    %126 = vadd.xlane.f32.xlu0 %v103
    %v127 = vpop.xlane.xlu0 %126
    %128 = vadd.xlane.f32.xlu0 %v104
    %v129 = vpop.xlane.xlu0 %128
    %130 = vadd.xlane.f32.xlu0 %v105
    %v131 = vpop.xlane.xlu0 %130
    %132 = vadd.xlane.f32.xlu0 %v106
    %v133 = vpop.xlane.xlu0 %132
    %134 = vadd.xlane.f32.xlu0 %v107
    %v135 = vpop.xlane.xlu0 %134
    %136 = vadd.xlane.f32.xlu0 %v108
    %v137 = vpop.xlane.xlu0 %136
    %138 = vadd.xlane.f32.xlu0 %v109
    %v139 = vpop.xlane.xlu0 %138
    %140 = vadd.xlane.f32.xlu0 %v110
    %v141 = vpop.xlane.xlu0 %140
    %142 = vadd.xlane.f32.xlu0 %v111
    %v143 = vpop.xlane.xlu0 %142
    %v144 = vmul.f32 %v113, %v63
    %v145 = vmul.f32 %v115, %v63
    %v146 = vmul.f32 %v117, %v63
    %v147 = vmul.f32 %v119, %v63
    %v148 = vmul.f32 %v121, %v63
    %v149 = vmul.f32 %v123, %v63
    %v150 = vmul.f32 %v125, %v63
    %v151 = vmul.f32 %v127, %v63
    %v152 = vmul.f32 %v129, %v63
    %v153 = vmul.f32 %v131, %v63
    %v154 = vmul.f32 %v133, %v63
    %v155 = vmul.f32 %v135, %v63
    %v156 = vmul.f32 %v137, %v63
    %v157 = vmul.f32 %v139, %v63
    %v158 = vmul.f32 %v141, %v63
    %v159 = vmul.f32 %v143, %v63
    %v160 = vadd.f32 %v144, 1e-06
    %v161 = vadd.f32 %v145, 1e-06
    %v162 = vadd.f32 %v146, 1e-06
    %v163 = vadd.f32 %v147, 1e-06
    %v164 = vadd.f32 %v148, 1e-06
    %v165 = vadd.f32 %v149, 1e-06
    %v166 = vadd.f32 %v150, 1e-06
    %v167 = vadd.f32 %v151, 1e-06
    %v168 = vadd.f32 %v152, 1e-06
    %v169 = vadd.f32 %v153, 1e-06
    %v170 = vadd.f32 %v154, 1e-06
    %v171 = vadd.f32 %v155, 1e-06
    %v172 = vadd.f32 %v156, 1e-06
    %v173 = vadd.f32 %v157, 1e-06
    %v174 = vadd.f32 %v158, 1e-06
    %v175 = vadd.f32 %v159, 1e-06
    %v176 = vrsqrt.pop %v160
    %v177 = vrsqrt.pop %v161
    %v178 = vrsqrt.pop %v162
    %v179 = vrsqrt.pop %v163
    %v180 = vrsqrt.pop %v164
    %v181 = vrsqrt.pop %v165
    %v182 = vrsqrt.pop %v166
    %v183 = vrsqrt.pop %v167
    %v184 = vrsqrt.pop %v168
    %v185 = vrsqrt.pop %v169
    %v186 = vrsqrt.pop %v170
    %v187 = vrsqrt.pop %v171
    %v188 = vrsqrt.pop %v172
    %v189 = vrsqrt.pop %v173
    %v190 = vrsqrt.pop %v174
    %v191 = vrsqrt.pop %v175
    %v192 = vmul.f32 %v80, %v176
    %v193 = vmul.f32 %v81, %v177
    %v194 = vmul.f32 %v82, %v178
    %v195 = vmul.f32 %v83, %v179
    %v196 = vmul.f32 %v84, %v180
    %v197 = vmul.f32 %v85, %v181
    %v198 = vmul.f32 %v86, %v182
    %v199 = vmul.f32 %v87, %v183
    %v200 = vmul.f32 %v88, %v184
    %v201 = vmul.f32 %v89, %v185
    %v202 = vmul.f32 %v90, %v186
    %v203 = vmul.f32 %v91, %v187
    %v204 = vmul.f32 %v92, %v188
    %v205 = vmul.f32 %v93, %v189
    %v206 = vmul.f32 %v94, %v190
    %v207 = vmul.f32 %v95, %v191
    %v208 = vld [vmem:[%s1] sm:$0x1]
    %v210 = vlaneseq
    %v211 = vshrl.u32 %v210, 7
    %v212 = vsub.s32 0, %v211
    %v213 = vrot.slane %v208, %v212
    %v215 = vmul.f32 %v192, %v213
    %v216 = vmul.f32 %v193, %v213
    %v217 = vmul.f32 %v194, %v213
    %v218 = vmul.f32 %v195, %v213
    %v219 = vmul.f32 %v196, %v213
    %v220 = vmul.f32 %v197, %v213
    %v221 = vmul.f32 %v198, %v213
    %v222 = vmul.f32 %v199, %v213
    %v223 = vmul.f32 %v200, %v213
    %v224 = vmul.f32 %v201, %v213
    %v225 = vmul.f32 %v202, %v213
    %v226 = vmul.f32 %v203, %v213
    %v227 = vmul.f32 %v204, %v213
    %v228 = vmul.f32 %v205, %v213
    %v229 = vmul.f32 %v206, %v213
    %v230 = vmul.f32 %v207, %v213
    %v231 = vld [vmem:[%s2] sm:$0x1]
    %v233 = vlaneseq
    %v234 = vshrl.u32 %v233, 7
    %v235 = vsub.s32 0, %v234
    %v236 = vrot.slane %v231, %v235
    %v238 = vadd.f32 %v215, %v236
    %v239 = vadd.f32 %v216, %v236
    %v240 = vadd.f32 %v217, %v236
    %v241 = vadd.f32 %v218, %v236
    %v242 = vadd.f32 %v219, %v236
    %v243 = vadd.f32 %v220, %v236
    %v244 = vadd.f32 %v221, %v236
    %v245 = vadd.f32 %v222, %v236
    %v246 = vadd.f32 %v223, %v236
    %v247 = vadd.f32 %v224, %v236
    %v248 = vadd.f32 %v225, %v236
    %v249 = vadd.f32 %v226, %v236
    %v250 = vadd.f32 %v227, %v236
    %v251 = vadd.f32 %v228, %v236
    %v252 = vadd.f32 %v229, %v236
    %v253 = vadd.f32 %v230, %v236
    %254 = vst [vmem:[#allocation2] sm:$0xff] %v238
    %255 = vst [vmem:[#allocation2 + $0x8] sm:$0xff] %v239
    %256 = vst [vmem:[#allocation2 + $0x10] sm:$0xff] %v240
    %257 = vst [vmem:[#allocation2 + $0x18] sm:$0xff] %v241
    %258 = vst [vmem:[#allocation2 + $0x20] sm:$0xff] %v242
    %259 = vst [vmem:[#allocation2 + $0x28] sm:$0xff] %v243
    %260 = vst [vmem:[#allocation2 + $0x30] sm:$0xff] %v244
    %261 = vst [vmem:[#allocation2 + $0x38] sm:$0xff] %v245
    %262 = vst [vmem:[#allocation2 + $0x40] sm:$0xff] %v246
    %263 = vst [vmem:[#allocation2 + $0x48] sm:$0xff] %v247
    %264 = vst [vmem:[#allocation2 + $0x50] sm:$0xff] %v248
    %265 = vst [vmem:[#allocation2 + $0x58] sm:$0xff] %v249
    %266 = vst [vmem:[#allocation2 + $0x60] sm:$0xff] %v250
    %267 = vst [vmem:[#allocation2 + $0x68] sm:$0xff] %v251
    %268 = vst [vmem:[#allocation2 + $0x70] sm:$0xff] %v252
    %269 = vst [vmem:[#allocation2 + $0x78] sm:$0xff] %v253
    // Predicated region
    $region14: #{encoder_forward.17} parent=1 // pred_check
      _
    $region15: #{encoder_forward.17} parent=1 // pred_check_branch
      %271 = sbr.rel (0) target = $region17
    $region16: #{encoder_forward.17} parent=1 // pred_region
      %s273 = ssub.s32 2048, 2048
      %274 = vsyncadd [#allocation3], %s273
      %s275 = sshll.u32 [#allocation2], 4
      %s276 = int_to_ptr.vmem [resolvable:$true] %s275
      %281 = dma.vmem_to_hbm [thread:$0]  %s276, 2048, %s3, [#allocation3], 128, 128, 8
    $region17: #{encoder_forward.17} parent=1 // pred_fallthru
      _
    // Predicated region
    $region18: #{encoder_forward.17} parent=1 // pred_check
      _
    $region19: #{encoder_forward.17} parent=1 // pred_check_branch
      %283 = sbr.rel (0) target = $region21
    $region20: #{encoder_forward.17} parent=1 // pred_region
      %284 = dma.done [#allocation3], 2048
    $region21: #{encoder_forward.17} parent=1 // pred_fallthru
      _
    %285 = vsyncpa [#allocation3], 1

// kernel: encoder_forward.12
$region0: #{encoder_forward.12}
  #allocation0 [shape = 'u32[]', space=smem, size = 0x4, offset = 0x4, fixed_abs, tag = 'smem constant byte address 0x4 - core index']
  #allocation1 [shape = 'u32[144,128]{1,0:T(1,128)}', space=vmem, size = 0x12000, scoped, tag = 'internal scratch']
  #allocation2 [shape = 'bf16[128,128]{1,0:T(16,128)(2,1)}', space=vmem, size = 0x8000, scoped, tag = 'scratch operand']
  %s0 = inlined_call_operand.vmem [shape: f32[128,128], index: 0, kind: input, shape index: {}]
  %s1 = inlined_call_operand.vmem [shape: f32[1,128], index: 1, kind: input, shape index: {}]
  %s2 = inlined_call_operand.vmem [shape: f32[1,128], index: 2, kind: input, shape index: {}]
  %s3 = inlined_call_operand.vmem [shape: bf16[128,512], index: 3, kind: input, shape index: {}]
  %s4 = inlined_call_operand.vmem [shape: f32[1,512], index: 4, kind: input, shape index: {}]
  %s5 = inlined_call_operand.vmem [shape: bf16[512,128], index: 5, kind: input, shape index: {}]
  %s6 = inlined_call_operand.vmem [shape: f32[1,128], index: 6, kind: input, shape index: {}]
  %s7 = inlined_call_operand.vmem [shape: f32[128,128], index: 7, kind: output, shape index: {}]
  %s8 = sld [smem:[#allocation0]]
  $region42: #{encoder_forward.12} parent=0
    _
  %s10 = ssub.s32 1, %s8
  %s11 = scalar_select 0, %s10, %s8
  // Predicated region
  $region2: #{encoder_forward.12} parent=0 // pred_check
    _
  $region3: #{encoder_forward.12} parent=0 // pred_check_branch
    %13 = sbr.rel (0) target = $region5
  $region4: #{encoder_forward.12} parent=0 // pred_region
    _
  $region5: #{encoder_forward.12} parent=0 // pred_fallthru
    _
  // Predicated region
  $region6: #{encoder_forward.12} parent=0 // pred_check
    _
  $region7: #{encoder_forward.12} parent=0 // pred_check_branch
    %15 = sbr.rel (0) target = $region9
  $region8: #{encoder_forward.12} parent=0 // pred_region
    _
  $region9: #{encoder_forward.12} parent=0 // pred_fallthru
    _
  // Predicated region
  $region10: #{encoder_forward.12} parent=0 // pred_check
    _
  $region11: #{encoder_forward.12} parent=0 // pred_check_branch
    %17 = sbr.rel (0) target = $region13
  $region12: #{encoder_forward.12} parent=0 // pred_region
    _
  $region13: #{encoder_forward.12} parent=0 // pred_fallthru
    _
  // Predicated region
  $region14: #{encoder_forward.12} parent=0 // pred_check
    _
  $region15: #{encoder_forward.12} parent=0 // pred_check_branch
    %19 = sbr.rel (0) target = $region17
  $region16: #{encoder_forward.12} parent=0 // pred_region
    _
  $region17: #{encoder_forward.12} parent=0 // pred_fallthru
    _
  // Predicated region
  $region18: #{encoder_forward.12} parent=0 // pred_check
    _
  $region19: #{encoder_forward.12} parent=0 // pred_check_branch
    %21 = sbr.rel (0) target = $region21
  $region20: #{encoder_forward.12} parent=0 // pred_region
    _
  $region21: #{encoder_forward.12} parent=0 // pred_fallthru
    _
  // Predicated region
  $region22: #{encoder_forward.12} parent=0 // pred_check
    _
  $region23: #{encoder_forward.12} parent=0 // pred_check_branch
    %23 = sbr.rel (0) target = $region25
  $region24: #{encoder_forward.12} parent=0 // pred_region
    _
  $region25: #{encoder_forward.12} parent=0 // pred_fallthru
    _
  // Predicated region
  $region26: #{encoder_forward.12} parent=0 // pred_check
    _
  $region27: #{encoder_forward.12} parent=0 // pred_check_branch
    %25 = sbr.rel (0) target = $region29
  $region28: #{encoder_forward.12} parent=0 // pred_region
    _
  $region29: #{encoder_forward.12} parent=0 // pred_fallthru
    _
  %p27 = scmp.eq.s32.totalorder 0, 0
  // Predicated region
  $region30: #{encoder_forward.12} parent=0 // pred_check
    %p28 = pneg %p27
  $region31: #{encoder_forward.12} parent=0 // pred_check_branch
    %30 = sbr.rel (%p28) target = $region33
  $region32: #{encoder_forward.12} parent=0 // pred_region
    %v31 = vld [vmem:[%s0] sm:$0xff]
    %v32 = vld [vmem:[%s0 + $0x8] sm:$0xff]
    %v33 = vld [vmem:[%s0 + $0x10] sm:$0xff]
    %v34 = vld [vmem:[%s0 + $0x18] sm:$0xff]
    %v35 = vld [vmem:[%s0 + $0x20] sm:$0xff]
    %v36 = vld [vmem:[%s0 + $0x28] sm:$0xff]
    %v37 = vld [vmem:[%s0 + $0x30] sm:$0xff]
    %v38 = vld [vmem:[%s0 + $0x38] sm:$0xff]
    %v39 = vld [vmem:[%s0 + $0x40] sm:$0xff]
    %v40 = vld [vmem:[%s0 + $0x48] sm:$0xff]
    %v41 = vld [vmem:[%s0 + $0x50] sm:$0xff]
    %v42 = vld [vmem:[%s0 + $0x58] sm:$0xff]
    %v43 = vld [vmem:[%s0 + $0x60] sm:$0xff]
    %v44 = vld [vmem:[%s0 + $0x68] sm:$0xff]
    %v45 = vld [vmem:[%s0 + $0x70] sm:$0xff]
    %v46 = vld [vmem:[%s0 + $0x78] sm:$0xff]
    %47 = vadd.xlane.f32.xlu0 %v31
    %v48 = vpop.xlane.xlu0 %47
    %49 = vadd.xlane.f32.xlu0 %v32
    %v50 = vpop.xlane.xlu0 %49
    %51 = vadd.xlane.f32.xlu0 %v33
    %v52 = vpop.xlane.xlu0 %51
    %53 = vadd.xlane.f32.xlu0 %v34
    %v54 = vpop.xlane.xlu0 %53
    %55 = vadd.xlane.f32.xlu0 %v35
    %v56 = vpop.xlane.xlu0 %55
    %57 = vadd.xlane.f32.xlu0 %v36
    %v58 = vpop.xlane.xlu0 %57
    %59 = vadd.xlane.f32.xlu0 %v37
    %v60 = vpop.xlane.xlu0 %59
    %61 = vadd.xlane.f32.xlu0 %v38
    %v62 = vpop.xlane.xlu0 %61
    %63 = vadd.xlane.f32.xlu0 %v39
    %v64 = vpop.xlane.xlu0 %63
    %65 = vadd.xlane.f32.xlu0 %v40
    %v66 = vpop.xlane.xlu0 %65
    %67 = vadd.xlane.f32.xlu0 %v41
    %v68 = vpop.xlane.xlu0 %67
    %69 = vadd.xlane.f32.xlu0 %v42
    %v70 = vpop.xlane.xlu0 %69
    %71 = vadd.xlane.f32.xlu0 %v43
    %v72 = vpop.xlane.xlu0 %71
    %73 = vadd.xlane.f32.xlu0 %v44
    %v74 = vpop.xlane.xlu0 %73
    %75 = vadd.xlane.f32.xlu0 %v45
    %v76 = vpop.xlane.xlu0 %75
    %77 = vadd.xlane.f32.xlu0 %v46
    %v78 = vpop.xlane.xlu0 %77
    %v79 = vrcp.pop 128.0
    %v80 = vmul.f32 %v48, %v79
    %v81 = vmul.f32 %v50, %v79
    %v82 = vmul.f32 %v52, %v79
    %v83 = vmul.f32 %v54, %v79
    %v84 = vmul.f32 %v56, %v79
    %v85 = vmul.f32 %v58, %v79
    %v86 = vmul.f32 %v60, %v79
    %v87 = vmul.f32 %v62, %v79
    %v88 = vmul.f32 %v64, %v79
    %v89 = vmul.f32 %v66, %v79
    %v90 = vmul.f32 %v68, %v79
    %v91 = vmul.f32 %v70, %v79
    %v92 = vmul.f32 %v72, %v79
    %v93 = vmul.f32 %v74, %v79
    %v94 = vmul.f32 %v76, %v79
    %v95 = vmul.f32 %v78, %v79
    %v96 = vsub.f32 %v31, %v80
    %v97 = vsub.f32 %v32, %v81
    %v98 = vsub.f32 %v33, %v82
    %v99 = vsub.f32 %v34, %v83
    %v100 = vsub.f32 %v35, %v84
    %v101 = vsub.f32 %v36, %v85
    %v102 = vsub.f32 %v37, %v86
    %v103 = vsub.f32 %v38, %v87
    %v104 = vsub.f32 %v39, %v88
    %v105 = vsub.f32 %v40, %v89
    %v106 = vsub.f32 %v41, %v90
    %v107 = vsub.f32 %v42, %v91
    %v108 = vsub.f32 %v43, %v92
    %v109 = vsub.f32 %v44, %v93
    %v110 = vsub.f32 %v45, %v94
    %v111 = vsub.f32 %v46, %v95
    %v112 = vmul.f32 %v96, %v96
    %v113 = vmul.f32 %v97, %v97
    %v114 = vmul.f32 %v98, %v98
    %v115 = vmul.f32 %v99, %v99
    %v116 = vmul.f32 %v100, %v100
    %v117 = vmul.f32 %v101, %v101
    %v118 = vmul.f32 %v102, %v102
    %v119 = vmul.f32 %v103, %v103
    %v120 = vmul.f32 %v104, %v104
    %v121 = vmul.f32 %v105, %v105
    %v122 = vmul.f32 %v106, %v106
    %v123 = vmul.f32 %v107, %v107
    %v124 = vmul.f32 %v108, %v108
    %v125 = vmul.f32 %v109, %v109
    %v126 = vmul.f32 %v110, %v110
    %v127 = vmul.f32 %v111, %v111
    %128 = vadd.xlane.f32.xlu0 %v112
    %v129 = vpop.xlane.xlu0 %128
    %130 = vadd.xlane.f32.xlu0 %v113
    %v131 = vpop.xlane.xlu0 %130
    %132 = vadd.xlane.f32.xlu0 %v114
    %v133 = vpop.xlane.xlu0 %132
    %134 = vadd.xlane.f32.xlu0 %v115
    %v135 = vpop.xlane.xlu0 %134
    %136 = vadd.xlane.f32.xlu0 %v116
    %v137 = vpop.xlane.xlu0 %136
    %138 = vadd.xlane.f32.xlu0 %v117
    %v139 = vpop.xlane.xlu0 %138
    %140 = vadd.xlane.f32.xlu0 %v118
    %v141 = vpop.xlane.xlu0 %140
    %142 = vadd.xlane.f32.xlu0 %v119
    %v143 = vpop.xlane.xlu0 %142
    %144 = vadd.xlane.f32.xlu0 %v120
    %v145 = vpop.xlane.xlu0 %144
    %146 = vadd.xlane.f32.xlu0 %v121
    %v147 = vpop.xlane.xlu0 %146
    %148 = vadd.xlane.f32.xlu0 %v122
    %v149 = vpop.xlane.xlu0 %148
    %150 = vadd.xlane.f32.xlu0 %v123
    %v151 = vpop.xlane.xlu0 %150
    %152 = vadd.xlane.f32.xlu0 %v124
    %v153 = vpop.xlane.xlu0 %152
    %154 = vadd.xlane.f32.xlu0 %v125
    %v155 = vpop.xlane.xlu0 %154
    %156 = vadd.xlane.f32.xlu0 %v126
    %v157 = vpop.xlane.xlu0 %156
    %158 = vadd.xlane.f32.xlu0 %v127
    %v159 = vpop.xlane.xlu0 %158
    %v160 = vmul.f32 %v129, %v79
    %v161 = vmul.f32 %v131, %v79
    %v162 = vmul.f32 %v133, %v79
    %v163 = vmul.f32 %v135, %v79
    %v164 = vmul.f32 %v137, %v79
    %v165 = vmul.f32 %v139, %v79
    %v166 = vmul.f32 %v141, %v79
    %v167 = vmul.f32 %v143, %v79
    %v168 = vmul.f32 %v145, %v79
    %v169 = vmul.f32 %v147, %v79
    %v170 = vmul.f32 %v149, %v79
    %v171 = vmul.f32 %v151, %v79
    %v172 = vmul.f32 %v153, %v79
    %v173 = vmul.f32 %v155, %v79
    %v174 = vmul.f32 %v157, %v79
    %v175 = vmul.f32 %v159, %v79
    %v176 = vadd.f32 %v160, 1e-06
    %v177 = vadd.f32 %v161, 1e-06
    %v178 = vadd.f32 %v162, 1e-06
    %v179 = vadd.f32 %v163, 1e-06
    %v180 = vadd.f32 %v164, 1e-06
    %v181 = vadd.f32 %v165, 1e-06
    %v182 = vadd.f32 %v166, 1e-06
    %v183 = vadd.f32 %v167, 1e-06
    %v184 = vadd.f32 %v168, 1e-06
    %v185 = vadd.f32 %v169, 1e-06
    %v186 = vadd.f32 %v170, 1e-06
    %v187 = vadd.f32 %v171, 1e-06
    %v188 = vadd.f32 %v172, 1e-06
    %v189 = vadd.f32 %v173, 1e-06
    %v190 = vadd.f32 %v174, 1e-06
    %v191 = vadd.f32 %v175, 1e-06
    %v192 = vrsqrt.pop %v176
    %v193 = vrsqrt.pop %v177
    %v194 = vrsqrt.pop %v178
    %v195 = vrsqrt.pop %v179
    %v196 = vrsqrt.pop %v180
    %v197 = vrsqrt.pop %v181
    %v198 = vrsqrt.pop %v182
    %v199 = vrsqrt.pop %v183
    %v200 = vrsqrt.pop %v184
    %v201 = vrsqrt.pop %v185
    %v202 = vrsqrt.pop %v186
    %v203 = vrsqrt.pop %v187
    %v204 = vrsqrt.pop %v188
    %v205 = vrsqrt.pop %v189
    %v206 = vrsqrt.pop %v190
    %v207 = vrsqrt.pop %v191
    %v208 = vmul.f32 %v96, %v192
    %v209 = vmul.f32 %v97, %v193
    %v210 = vmul.f32 %v98, %v194
    %v211 = vmul.f32 %v99, %v195
    %v212 = vmul.f32 %v100, %v196
    %v213 = vmul.f32 %v101, %v197
    %v214 = vmul.f32 %v102, %v198
    %v215 = vmul.f32 %v103, %v199
    %v216 = vmul.f32 %v104, %v200
    %v217 = vmul.f32 %v105, %v201
    %v218 = vmul.f32 %v106, %v202
    %v219 = vmul.f32 %v107, %v203
    %v220 = vmul.f32 %v108, %v204
    %v221 = vmul.f32 %v109, %v205
    %v222 = vmul.f32 %v110, %v206
    %v223 = vmul.f32 %v111, %v207
    %v224 = vld [vmem:[%s1] sm:$0x1]
    %v226 = vlaneseq
    %v227 = vshrl.u32 %v226, 7
    %v228 = vsub.s32 0, %v227
    %v229 = vrot.slane %v224, %v228
    %v231 = vmul.f32 %v208, %v229
    %v232 = vmul.f32 %v209, %v229
    %v233 = vmul.f32 %v210, %v229
    %v234 = vmul.f32 %v211, %v229
    %v235 = vmul.f32 %v212, %v229
    %v236 = vmul.f32 %v213, %v229
    %v237 = vmul.f32 %v214, %v229
    %v238 = vmul.f32 %v215, %v229
    %v239 = vmul.f32 %v216, %v229
    %v240 = vmul.f32 %v217, %v229
    %v241 = vmul.f32 %v218, %v229
    %v242 = vmul.f32 %v219, %v229
    %v243 = vmul.f32 %v220, %v229
    %v244 = vmul.f32 %v221, %v229
    %v245 = vmul.f32 %v222, %v229
    %v246 = vmul.f32 %v223, %v229
    %v247 = vld [vmem:[%s2] sm:$0x1]
    %v249 = vlaneseq
    %v250 = vshrl.u32 %v249, 7
    %v251 = vsub.s32 0, %v250
    %v252 = vrot.slane %v247, %v251
    %v254 = vadd.f32 %v231, %v252
    %v255 = vadd.f32 %v232, %v252
    %v256 = vadd.f32 %v233, %v252
    %v257 = vadd.f32 %v234, %v252
    %v258 = vadd.f32 %v235, %v252
    %v259 = vadd.f32 %v236, %v252
    %v260 = vadd.f32 %v237, %v252
    %v261 = vadd.f32 %v238, %v252
    %v262 = vadd.f32 %v239, %v252
    %v263 = vadd.f32 %v240, %v252
    %v264 = vadd.f32 %v241, %v252
    %v265 = vadd.f32 %v242, %v252
    %v266 = vadd.f32 %v243, %v252
    %v267 = vadd.f32 %v244, %v252
    %v268 = vadd.f32 %v245, %v252
    %v269 = vadd.f32 %v246, %v252
    %v270 = vpack.c.bf16 %v255, %v254
    %v271 = vpack.c.bf16 %v257, %v256
    %v272 = vpack.c.bf16 %v259, %v258
    %v273 = vpack.c.bf16 %v261, %v260
    %v274 = vpack.c.bf16 %v263, %v262
    %v275 = vpack.c.bf16 %v265, %v264
    %v276 = vpack.c.bf16 %v267, %v266
    %v277 = vpack.c.bf16 %v269, %v268
    %278 = vst [vmem:[#allocation2] sm:$0xff] %v270
    %279 = vst [vmem:[#allocation2 + $0x8] sm:$0xff] %v271
    %280 = vst [vmem:[#allocation2 + $0x10] sm:$0xff] %v272
    %281 = vst [vmem:[#allocation2 + $0x18] sm:$0xff] %v273
    %282 = vst [vmem:[#allocation2 + $0x20] sm:$0xff] %v274
    %283 = vst [vmem:[#allocation2 + $0x28] sm:$0xff] %v275
    %284 = vst [vmem:[#allocation2 + $0x30] sm:$0xff] %v276
    %285 = vst [vmem:[#allocation2 + $0x38] sm:$0xff] %v277
    %v286 = vld [vmem:[%s6] sm:$0x1]
    %v288 = vlaneseq
    %v289 = vshrl.u32 %v288, 7
    %v290 = vsub.s32 0, %v289
    %v291 = vrot.slane %v286, %v290
    %v293 = vadd.f32 %v31, %v291
    %v294 = vadd.f32 %v32, %v291
    %v295 = vadd.f32 %v33, %v291
    %v296 = vadd.f32 %v34, %v291
    %v297 = vadd.f32 %v35, %v291
    %v298 = vadd.f32 %v36, %v291
    %v299 = vadd.f32 %v37, %v291
    %v300 = vadd.f32 %v38, %v291
    %v301 = vadd.f32 %v39, %v291
    %v302 = vadd.f32 %v40, %v291
    %v303 = vadd.f32 %v41, %v291
    %v304 = vadd.f32 %v42, %v291
    %v305 = vadd.f32 %v43, %v291
    %v306 = vadd.f32 %v44, %v291
    %v307 = vadd.f32 %v45, %v291
    %v308 = vadd.f32 %v46, %v291
    %309 = vst [vmem:[%s7] sm:$0xff] %v293
    %310 = vst [vmem:[%s7 + $0x8] sm:$0xff] %v294
    %311 = vst [vmem:[%s7 + $0x10] sm:$0xff] %v295
    %312 = vst [vmem:[%s7 + $0x18] sm:$0xff] %v296
    %313 = vst [vmem:[%s7 + $0x20] sm:$0xff] %v297
    %314 = vst [vmem:[%s7 + $0x28] sm:$0xff] %v298
    %315 = vst [vmem:[%s7 + $0x30] sm:$0xff] %v299
    %316 = vst [vmem:[%s7 + $0x38] sm:$0xff] %v300
    %317 = vst [vmem:[%s7 + $0x40] sm:$0xff] %v301
    %318 = vst [vmem:[%s7 + $0x48] sm:$0xff] %v302
    %319 = vst [vmem:[%s7 + $0x50] sm:$0xff] %v303
    %320 = vst [vmem:[%s7 + $0x58] sm:$0xff] %v304
    %321 = vst [vmem:[%s7 + $0x60] sm:$0xff] %v305
    %322 = vst [vmem:[%s7 + $0x68] sm:$0xff] %v306
    %323 = vst [vmem:[%s7 + $0x70] sm:$0xff] %v307
    %324 = vst [vmem:[%s7 + $0x78] sm:$0xff] %v308
  $region33: #{encoder_forward.12} parent=0 // pred_fallthru
    _
  %v325 = vld [vmem:[#allocation2] sm:$0xff]
  %v326 = vld [vmem:[#allocation2 + $0x8] sm:$0xff]
  %v327 = vld [vmem:[#allocation2 + $0x10] sm:$0xff]
  %v328 = vld [vmem:[#allocation2 + $0x18] sm:$0xff]
  %v329 = vld [vmem:[#allocation2 + $0x20] sm:$0xff]
  %v330 = vld [vmem:[#allocation2 + $0x28] sm:$0xff]
  %v331 = vld [vmem:[#allocation2 + $0x30] sm:$0xff]
  %v332 = vld [vmem:[#allocation2 + $0x38] sm:$0xff]
  %v333 = vld [vmem:[%s3] sm:$0xff]
  %v334 = vld [vmem:[%s3 + $0x8] sm:$0xff]
  %v335 = vld [vmem:[%s3 + $0x10] sm:$0xff]
  %v336 = vld [vmem:[%s3 + $0x18] sm:$0xff]
  %v337 = vld [vmem:[%s3 + $0x20] sm:$0xff]
  %v338 = vld [vmem:[%s3 + $0x28] sm:$0xff]
  %v339 = vld [vmem:[%s3 + $0x30] sm:$0xff]
  %v340 = vld [vmem:[%s3 + $0x38] sm:$0xff]
  %v341 = vld [vmem:[%s3 + $0x40] sm:$0xff]
  %v342 = vld [vmem:[%s3 + $0x48] sm:$0xff]
  %v343 = vld [vmem:[%s3 + $0x50] sm:$0xff]
  %v344 = vld [vmem:[%s3 + $0x58] sm:$0xff]
  %v345 = vld [vmem:[%s3 + $0x60] sm:$0xff]
  %v346 = vld [vmem:[%s3 + $0x68] sm:$0xff]
  %v347 = vld [vmem:[%s3 + $0x70] sm:$0xff]
  %v348 = vld [vmem:[%s3 + $0x78] sm:$0xff]
  %v349 = vld [vmem:[%s3 + $0x80] sm:$0xff]
  %v350 = vld [vmem:[%s3 + $0x88] sm:$0xff]
  %v351 = vld [vmem:[%s3 + $0x90] sm:$0xff]
  %v352 = vld [vmem:[%s3 + $0x98] sm:$0xff]
  %v353 = vld [vmem:[%s3 + $0xa0] sm:$0xff]
  %v354 = vld [vmem:[%s3 + $0xa8] sm:$0xff]
  %v355 = vld [vmem:[%s3 + $0xb0] sm:$0xff]
  %v356 = vld [vmem:[%s3 + $0xb8] sm:$0xff]
  %v357 = vld [vmem:[%s3 + $0xc0] sm:$0xff]
  %v358 = vld [vmem:[%s3 + $0xc8] sm:$0xff]
  %v359 = vld [vmem:[%s3 + $0xd0] sm:$0xff]
  %v360 = vld [vmem:[%s3 + $0xd8] sm:$0xff]
  %v361 = vld [vmem:[%s3 + $0xe0] sm:$0xff]
  %v362 = vld [vmem:[%s3 + $0xe8] sm:$0xff]
  %v363 = vld [vmem:[%s3 + $0xf0] sm:$0xff]
  %v364 = vld [vmem:[%s3 + $0xf8] sm:$0xff]
  %v365 = vld [vmem:[%s4] sm:$0xf]
  %v367 = vlaneseq
  %v368 = vshrl.u32 %v367, 7
  %v369 = vsub.s32 0, %v368
  %v370 = vrot.slane %v365, %v369
  %v371 = vlaneseq
  %v372 = vshrl.u32 %v371, 7
  %v373 = vsub.s32 1, %v372
  %v374 = vrot.slane %v365, %v373
  %v375 = vlaneseq
  %v376 = vshrl.u32 %v375, 7
  %v377 = vsub.s32 2, %v376
  %v378 = vrot.slane %v365, %v377
  %v379 = vlaneseq
  %v380 = vshrl.u32 %v379, 7
  %v381 = vsub.s32 3, %v380
  %v382 = vrot.slane %v365, %v381
  %v419 = vunpack.c.l.b16 %v333
  %v420 = vunpack.c.h.b16 %v333
  %v421 = vunpack.c.l.b16 %v334
  %v422 = vunpack.c.h.b16 %v334
  %v423 = vunpack.c.l.b16 %v335
  %v424 = vunpack.c.h.b16 %v335
  %v425 = vunpack.c.l.b16 %v336
  %v426 = vunpack.c.h.b16 %v336
  %v427 = vunpack.c.l.b16 %v337
  %v428 = vunpack.c.h.b16 %v337
  %v429 = vunpack.c.l.b16 %v338
  %v430 = vunpack.c.h.b16 %v338
  %v431 = vunpack.c.l.b16 %v339
  %v432 = vunpack.c.h.b16 %v339
  %v433 = vunpack.c.l.b16 %v340
  %v434 = vunpack.c.h.b16 %v340
  %v435 = vunpack.c.l.b16 %v341
  %v436 = vunpack.c.h.b16 %v341
  %v437 = vunpack.c.l.b16 %v342
  %v438 = vunpack.c.h.b16 %v342
  %v439 = vunpack.c.l.b16 %v343
  %v440 = vunpack.c.h.b16 %v343
  %v441 = vunpack.c.l.b16 %v344
  %v442 = vunpack.c.h.b16 %v344
  %v443 = vunpack.c.l.b16 %v345
  %v444 = vunpack.c.h.b16 %v345
  %v445 = vunpack.c.l.b16 %v346
  %v446 = vunpack.c.h.b16 %v346
  %v447 = vunpack.c.l.b16 %v347
  %v448 = vunpack.c.h.b16 %v347
  %v449 = vunpack.c.l.b16 %v348
  %v450 = vunpack.c.h.b16 %v348
  %v451 = vunpack.c.l.b16 %v349
  %v452 = vunpack.c.h.b16 %v349
  %v453 = vunpack.c.l.b16 %v350
  %v454 = vunpack.c.h.b16 %v350
  %v455 = vunpack.c.l.b16 %v351
  %v456 = vunpack.c.h.b16 %v351
  %v457 = vunpack.c.l.b16 %v352
  %v458 = vunpack.c.h.b16 %v352
  %v459 = vunpack.c.l.b16 %v353
  %v460 = vunpack.c.h.b16 %v353
  %v461 = vunpack.c.l.b16 %v354
  %v462 = vunpack.c.h.b16 %v354
  %v463 = vunpack.c.l.b16 %v355
  %v464 = vunpack.c.h.b16 %v355
  %v465 = vunpack.c.l.b16 %v356
  %v466 = vunpack.c.h.b16 %v356
  %v467 = vunpack.c.l.b16 %v357
  %v468 = vunpack.c.h.b16 %v357
  %v469 = vunpack.c.l.b16 %v358
  %v470 = vunpack.c.h.b16 %v358
  %v471 = vunpack.c.l.b16 %v359
  %v472 = vunpack.c.h.b16 %v359
  %v473 = vunpack.c.l.b16 %v360
  %v474 = vunpack.c.h.b16 %v360
  %v475 = vunpack.c.l.b16 %v361
  %v476 = vunpack.c.h.b16 %v361
  %v477 = vunpack.c.l.b16 %v362
  %v478 = vunpack.c.h.b16 %v362
  %v479 = vunpack.c.l.b16 %v363
  %v480 = vunpack.c.h.b16 %v363
  %v481 = vunpack.c.l.b16 %v364
  %v482 = vunpack.c.h.b16 %v364
  %v483 = vpack.c.b16 %v423, %v419
  %v484 = vpack.c.b16 %v424, %v420
  %v485 = vpack.c.b16 %v425, %v421
  %v486 = vpack.c.b16 %v426, %v422
  %v487 = vpack.c.b16 %v431, %v427
  %v488 = vpack.c.b16 %v432, %v428
  %v489 = vpack.c.b16 %v433, %v429
  %v490 = vpack.c.b16 %v434, %v430
  %v491 = vpack.c.b16 %v439, %v435
  %v492 = vpack.c.b16 %v440, %v436
  %v493 = vpack.c.b16 %v441, %v437
  %v494 = vpack.c.b16 %v442, %v438
  %v495 = vpack.c.b16 %v447, %v443
  %v496 = vpack.c.b16 %v448, %v444
  %v497 = vpack.c.b16 %v449, %v445
  %v498 = vpack.c.b16 %v450, %v446
  %v499 = vpack.c.b16 %v455, %v451
  %v500 = vpack.c.b16 %v456, %v452
  %v501 = vpack.c.b16 %v457, %v453
  %v502 = vpack.c.b16 %v458, %v454
  %v503 = vpack.c.b16 %v463, %v459
  %v504 = vpack.c.b16 %v464, %v460
  %v505 = vpack.c.b16 %v465, %v461
  %v506 = vpack.c.b16 %v466, %v462
  %v507 = vpack.c.b16 %v471, %v467
  %v508 = vpack.c.b16 %v472, %v468
  %v509 = vpack.c.b16 %v473, %v469
  %v510 = vpack.c.b16 %v474, %v470
  %v511 = vpack.c.b16 %v479, %v475
  %v512 = vpack.c.b16 %v480, %v476
  %v513 = vpack.c.b16 %v481, %v477
  %v514 = vpack.c.b16 %v482, %v478
  %547 = vmatprep.subr.bf16.mxu0 %v484
  %548 = vmatpush1.bf16.msra.mxu0 %v483
  %549 = vmatprep.subr.bf16.mxu0 %v488
  %550 = vmatpush1.bf16.msra.mxu0 %v487
  %551 = vmatprep.subr.bf16.mxu0 %v492
  %552 = vmatpush1.bf16.msra.mxu0 %v491
  %553 = vmatprep.subr.bf16.mxu0 %v496
  %554 = vmatpush1.bf16.msra.mxu0 %v495
  %555 = vmatprep.subr.bf16.mxu0 %v500
  %556 = vmatpush1.bf16.msra.mxu0 %v499
  %557 = vmatprep.subr.bf16.mxu0 %v504
  %558 = vmatpush1.bf16.msra.mxu0 %v503
  %559 = vmatprep.subr.bf16.mxu0 %v508
  %560 = vmatpush1.bf16.msra.mxu0 %v507
  %561 = vmatprep.subr.bf16.mxu0 %v512
  %562 = vmatpush1.bf16.msra.mxu0 %v511
  %563 = vmatprep.subr.bf16.mxu0 0
  %564 = vmatpush1.bf16.msra.mxu0 0
  %565 = vmatprep.subr.bf16.mxu0 0
  %566 = vmatpush1.bf16.msra.mxu0 0
  %567 = vmatprep.subr.bf16.mxu0 0
  %568 = vmatpush1.bf16.msra.mxu0 0
  %569 = vmatprep.subr.bf16.mxu0 0
  %570 = vmatpush1.bf16.msra.mxu0 0
  %571 = vmatprep.subr.bf16.mxu0 0
  %572 = vmatpush1.bf16.msra.mxu0 0
  %573 = vmatprep.subr.bf16.mxu0 0
  %574 = vmatpush1.bf16.msra.mxu0 0
  %575 = vmatprep.subr.bf16.mxu0 0
  %576 = vmatpush1.bf16.msra.mxu0 0
  %577 = vmatprep.subr.bf16.mxu0 0
  %578 = vmatpush1.bf16.msra.mxu0 0
  %579 = vmatprep.mubr.bf16.mxu0 0
  %580 = vmatmul.mubr.bf16.gmra.mrb[0].mxu0 %v325
  %v581 = vpop.f32.mrb[0].mxu0
  %v582 = vadd.f32 %v370, %v581
  %v583 = vpop.f32.mrb[0].mxu0
  %v584 = vadd.f32 %v374, %v583
  %v585 = vpop.f32.mrb[0].mxu0
  %v586 = vadd.f32 %v370, %v585
  %v587 = vpop.f32.mrb[0].mxu0
  %v588 = vadd.f32 %v374, %v587
  %589 = vmatprep.mubr.bf16.mxu0 0
  %590 = vmatmul.mubr.bf16.gmra.mrb[0].mxu0 %v326
  %v591 = vpop.f32.mrb[0].mxu0
  %v592 = vadd.f32 %v370, %v591
  %v593 = vpop.f32.mrb[0].mxu0
  %v594 = vadd.f32 %v374, %v593
  %v595 = vpop.f32.mrb[0].mxu0
  %v596 = vadd.f32 %v370, %v595
  %v597 = vpop.f32.mrb[0].mxu0
  %v598 = vadd.f32 %v374, %v597
  %599 = vmatprep.mubr.bf16.mxu0 0
  %600 = vmatmul.mubr.bf16.gmra.mrb[0].mxu0 %v327
  %v601 = vpop.f32.mrb[0].mxu0
  %v602 = vadd.f32 %v370, %v601
  %v603 = vpop.f32.mrb[0].mxu0
  %v604 = vadd.f32 %v374, %v603
  %v605 = vpop.f32.mrb[0].mxu0
  %v606 = vadd.f32 %v370, %v605
  %v607 = vpop.f32.mrb[0].mxu0
  %v608 = vadd.f32 %v374, %v607
  %609 = vmatprep.mubr.bf16.mxu0 0
  %610 = vmatmul.mubr.bf16.gmra.mrb[0].mxu0 %v328
  %v611 = vpop.f32.mrb[0].mxu0
  %v612 = vadd.f32 %v370, %v611
  %v613 = vpop.f32.mrb[0].mxu0
  %v614 = vadd.f32 %v374, %v613
  %v615 = vpop.f32.mrb[0].mxu0
  %v616 = vadd.f32 %v370, %v615
  %v617 = vpop.f32.mrb[0].mxu0
  %v618 = vadd.f32 %v374, %v617
  %619 = vmatprep.mubr.bf16.mxu0 0
  %620 = vmatmul.mubr.bf16.gmra.mrb[0].mxu0 %v329
  %v621 = vpop.f32.mrb[0].mxu0
  %v622 = vadd.f32 %v370, %v621
  %v623 = vpop.f32.mrb[0].mxu0
  %v624 = vadd.f32 %v374, %v623
  %v625 = vpop.f32.mrb[0].mxu0
  %v626 = vadd.f32 %v370, %v625
  %v627 = vpop.f32.mrb[0].mxu0
  %v628 = vadd.f32 %v374, %v627
  %629 = vmatprep.mubr.bf16.mxu0 0
  %630 = vmatmul.mubr.bf16.gmra.mrb[0].mxu0 %v330
  %v631 = vpop.f32.mrb[0].mxu0
  %v632 = vadd.f32 %v370, %v631
  %v633 = vpop.f32.mrb[0].mxu0
  %v634 = vadd.f32 %v374, %v633
  %v635 = vpop.f32.mrb[0].mxu0
  %v636 = vadd.f32 %v370, %v635
  %v637 = vpop.f32.mrb[0].mxu0
  %v638 = vadd.f32 %v374, %v637
  %639 = vmatprep.mubr.bf16.mxu0 0
  %640 = vmatmul.mubr.bf16.gmra.mrb[0].mxu0 %v331
  %v641 = vpop.f32.mrb[0].mxu0
  %v642 = vadd.f32 %v370, %v641
  %v643 = vpop.f32.mrb[0].mxu0
  %v644 = vadd.f32 %v374, %v643
  %v645 = vpop.f32.mrb[0].mxu0
  %v646 = vadd.f32 %v370, %v645
  %v647 = vpop.f32.mrb[0].mxu0
  %v648 = vadd.f32 %v374, %v647
  %649 = vmatprep.mubr.bf16.mxu0 0
  %650 = vmatmul.mubr.bf16.gmra.mrb[0].mxu0 %v332
  %v651 = vpop.f32.mrb[0].mxu0
  %v652 = vadd.f32 %v370, %v651
  %v653 = vpop.f32.mrb[0].mxu0
  %v654 = vadd.f32 %v374, %v653
  %v655 = vpop.f32.mrb[0].mxu0
  %v656 = vadd.f32 %v370, %v655
  %v657 = vpop.f32.mrb[0].mxu0
  %v658 = vadd.f32 %v374, %v657
  %659 = vdwg.mxu0
  %660 = vmatprep.subr.bf16.mxu0 %v486
  %661 = vmatpush1.bf16.msra.mxu0 %v485
  %662 = vmatprep.subr.bf16.mxu0 %v490
  %663 = vmatpush1.bf16.msra.mxu0 %v489
  %664 = vmatprep.subr.bf16.mxu0 %v494
  %665 = vmatpush1.bf16.msra.mxu0 %v493
  %666 = vmatprep.subr.bf16.mxu0 %v498
  %667 = vmatpush1.bf16.msra.mxu0 %v497
  %668 = vmatprep.subr.bf16.mxu0 %v502
  %669 = vmatpush1.bf16.msra.mxu0 %v501
  %670 = vmatprep.subr.bf16.mxu0 %v506
  %671 = vmatpush1.bf16.msra.mxu0 %v505
  %672 = vmatprep.subr.bf16.mxu0 %v510
  %673 = vmatpush1.bf16.msra.mxu0 %v509
  %674 = vmatprep.subr.bf16.mxu0 %v514
  %675 = vmatpush1.bf16.msra.mxu0 %v513
  %676 = vmatprep.subr.bf16.mxu0 0
  %677 = vmatpush1.bf16.msra.mxu0 0
  %678 = vmatprep.subr.bf16.mxu0 0
  %679 = vmatpush1.bf16.msra.mxu0 0
  %680 = vmatprep.subr.bf16.mxu0 0
  %681 = vmatpush1.bf16.msra.mxu0 0
  %682 = vmatprep.subr.bf16.mxu0 0
  %683 = vmatpush1.bf16.msra.mxu0 0
  %684 = vmatprep.subr.bf16.mxu0 0
  %685 = vmatpush1.bf16.msra.mxu0 0
  %686 = vmatprep.subr.bf16.mxu0 0
  %687 = vmatpush1.bf16.msra.mxu0 0
  %688 = vmatprep.subr.bf16.mxu0 0
  %689 = vmatpush1.bf16.msra.mxu0 0
  %690 = vmatprep.subr.bf16.mxu0 0
  %691 = vmatpush1.bf16.msra.mxu0 0
  %692 = vmatprep.mubr.bf16.mxu0 0
  %693 = vmatmul.mubr.bf16.gmra.mrb[0].mxu0 %v325
  %v694 = vpop.f32.mrb[0].mxu0
  %v695 = vadd.f32 %v378, %v694
  %v696 = vpop.f32.mrb[0].mxu0
  %v697 = vadd.f32 %v382, %v696
  %v698 = vpop.f32.mrb[0].mxu0
  %v699 = vadd.f32 %v378, %v698
  %v700 = vpop.f32.mrb[0].mxu0
  %v701 = vadd.f32 %v382, %v700
  %702 = vmatprep.mubr.bf16.mxu0 0
  %703 = vmatmul.mubr.bf16.gmra.mrb[0].mxu0 %v326
  %v704 = vpop.f32.mrb[0].mxu0
  %v705 = vadd.f32 %v378, %v704
  %v706 = vpop.f32.mrb[0].mxu0
  %v707 = vadd.f32 %v382, %v706
  %v708 = vpop.f32.mrb[0].mxu0
  %v709 = vadd.f32 %v378, %v708
  %v710 = vpop.f32.mrb[0].mxu0
  %v711 = vadd.f32 %v382, %v710
  %712 = vmatprep.mubr.bf16.mxu0 0
  %713 = vmatmul.mubr.bf16.gmra.mrb[0].mxu0 %v327
  %v714 = vpop.f32.mrb[0].mxu0
  %v715 = vadd.f32 %v378, %v714
  %v716 = vpop.f32.mrb[0].mxu0
  %v717 = vadd.f32 %v382, %v716
  %v718 = vpop.f32.mrb[0].mxu0
  %v719 = vadd.f32 %v378, %v718
  %v720 = vpop.f32.mrb[0].mxu0
  %v721 = vadd.f32 %v382, %v720
  %722 = vmatprep.mubr.bf16.mxu0 0
  %723 = vmatmul.mubr.bf16.gmra.mrb[0].mxu0 %v328
  %v724 = vpop.f32.mrb[0].mxu0
  %v725 = vadd.f32 %v378, %v724
  %v726 = vpop.f32.mrb[0].mxu0
  %v727 = vadd.f32 %v382, %v726
  %v728 = vpop.f32.mrb[0].mxu0
  %v729 = vadd.f32 %v378, %v728
  %v730 = vpop.f32.mrb[0].mxu0
  %v731 = vadd.f32 %v382, %v730
  %732 = vmatprep.mubr.bf16.mxu0 0
  %733 = vmatmul.mubr.bf16.gmra.mrb[0].mxu0 %v329
  %v734 = vpop.f32.mrb[0].mxu0
  %v735 = vadd.f32 %v378, %v734
  %v736 = vpop.f32.mrb[0].mxu0
  %v737 = vadd.f32 %v382, %v736
  %v738 = vpop.f32.mrb[0].mxu0
  %v739 = vadd.f32 %v378, %v738
  %v740 = vpop.f32.mrb[0].mxu0
  %v741 = vadd.f32 %v382, %v740
  %742 = vmatprep.mubr.bf16.mxu0 0
  %743 = vmatmul.mubr.bf16.gmra.mrb[0].mxu0 %v330
  %v744 = vpop.f32.mrb[0].mxu0
  %v745 = vadd.f32 %v378, %v744
  %v746 = vpop.f32.mrb[0].mxu0
  %v747 = vadd.f32 %v382, %v746
  %v748 = vpop.f32.mrb[0].mxu0
  %v749 = vadd.f32 %v378, %v748
  %v750 = vpop.f32.mrb[0].mxu0
  %v751 = vadd.f32 %v382, %v750
  %752 = vmatprep.mubr.bf16.mxu0 0
  %753 = vmatmul.mubr.bf16.gmra.mrb[0].mxu0 %v331
  %v754 = vpop.f32.mrb[0].mxu0
  %v755 = vadd.f32 %v378, %v754
  %v756 = vpop.f32.mrb[0].mxu0
  %v757 = vadd.f32 %v382, %v756
  %v758 = vpop.f32.mrb[0].mxu0
  %v759 = vadd.f32 %v378, %v758
  %v760 = vpop.f32.mrb[0].mxu0
  %v761 = vadd.f32 %v382, %v760
  %762 = vmatprep.mubr.bf16.mxu0 0
  %763 = vmatmul.mubr.bf16.gmra.mrb[0].mxu0 %v332
  %v764 = vpop.f32.mrb[0].mxu0
  %v765 = vadd.f32 %v378, %v764
  %v766 = vpop.f32.mrb[0].mxu0
  %v767 = vadd.f32 %v382, %v766
  %v768 = vpop.f32.mrb[0].mxu0
  %v769 = vadd.f32 %v378, %v768
  %v770 = vpop.f32.mrb[0].mxu0
  %v771 = vadd.f32 %v382, %v770
  %772 = vdwg.mxu0
  %v773 = vmul.f32 %v582, 0.70710677
  %v774 = vmul.f32 %v584, 0.70710677
  %v775 = vmul.f32 %v695, 0.70710677
  %v776 = vmul.f32 %v697, 0.70710677
  %v777 = vmul.f32 %v586, 0.70710677
  %v778 = vmul.f32 %v588, 0.70710677
  %v779 = vmul.f32 %v699, 0.70710677
  %v780 = vmul.f32 %v701, 0.70710677
  %v781 = vmul.f32 %v592, 0.70710677
  %v782 = vmul.f32 %v594, 0.70710677
  %v783 = vmul.f32 %v705, 0.70710677
  %v784 = vmul.f32 %v707, 0.70710677
  %v785 = vmul.f32 %v596, 0.70710677
  %v786 = vmul.f32 %v598, 0.70710677
  %v787 = vmul.f32 %v709, 0.70710677
  %v788 = vmul.f32 %v711, 0.70710677
  %v789 = vmul.f32 %v602, 0.70710677
  %v790 = vmul.f32 %v604, 0.70710677
  %v791 = vmul.f32 %v715, 0.70710677
  %v792 = vmul.f32 %v717, 0.70710677
  %v793 = vmul.f32 %v606, 0.70710677
  %v794 = vmul.f32 %v608, 0.70710677
  %v795 = vmul.f32 %v719, 0.70710677
  %v796 = vmul.f32 %v721, 0.70710677
  %v797 = vmul.f32 %v612, 0.70710677
  %v798 = vmul.f32 %v614, 0.70710677
  %v799 = vmul.f32 %v725, 0.70710677
  %v800 = vmul.f32 %v727, 0.70710677
  %v801 = vmul.f32 %v616, 0.70710677
  %v802 = vmul.f32 %v618, 0.70710677
  %v803 = vmul.f32 %v729, 0.70710677
  %v804 = vmul.f32 %v731, 0.70710677
  %v805 = vmul.f32 %v622, 0.70710677
  %v806 = vmul.f32 %v624, 0.70710677
  %v807 = vmul.f32 %v735, 0.70710677
  %v808 = vmul.f32 %v737, 0.70710677
  %v809 = vmul.f32 %v626, 0.70710677
  %v810 = vmul.f32 %v628, 0.70710677
  %v811 = vmul.f32 %v739, 0.70710677
  %v812 = vmul.f32 %v741, 0.70710677
  %v813 = vmul.f32 %v632, 0.70710677
  %v814 = vmul.f32 %v634, 0.70710677
  %v815 = vmul.f32 %v745, 0.70710677
  %v816 = vmul.f32 %v747, 0.70710677
  %v817 = vmul.f32 %v636, 0.70710677
  %v818 = vmul.f32 %v638, 0.70710677
  %v819 = vmul.f32 %v749, 0.70710677
  %v820 = vmul.f32 %v751, 0.70710677
  %v821 = vmul.f32 %v642, 0.70710677
  %v822 = vmul.f32 %v644, 0.70710677
  %v823 = vmul.f32 %v755, 0.70710677
  %v824 = vmul.f32 %v757, 0.70710677
  %v825 = vmul.f32 %v646, 0.70710677
  %v826 = vmul.f32 %v648, 0.70710677
  %v827 = vmul.f32 %v759, 0.70710677
  %v828 = vmul.f32 %v761, 0.70710677
  %v829 = vmul.f32 %v652, 0.70710677
  %v830 = vmul.f32 %v654, 0.70710677
  %v831 = vmul.f32 %v765, 0.70710677
  %v832 = vmul.f32 %v767, 0.70710677
  %v833 = vmul.f32 %v656, 0.70710677
  %v834 = vmul.f32 %v658, 0.70710677
  %v835 = vmul.f32 %v769, 0.70710677
  %v836 = vmul.f32 %v771, 0.70710677
  %v837 = vand.u32 2147483647, %v773
  %v838 = vand.u32 2147483647, %v774
  %v839 = vand.u32 2147483647, %v775
  %v840 = vand.u32 2147483647, %v776
  %v841 = vand.u32 2147483647, %v777
  %v842 = vand.u32 2147483647, %v778
  %v843 = vand.u32 2147483647, %v779
  %v844 = vand.u32 2147483647, %v780
  %v845 = vand.u32 2147483647, %v781
  %v846 = vand.u32 2147483647, %v782
  %v847 = vand.u32 2147483647, %v783
  %v848 = vand.u32 2147483647, %v784
  %v849 = vand.u32 2147483647, %v785
  %v850 = vand.u32 2147483647, %v786
  %v851 = vand.u32 2147483647, %v787
  %v852 = vand.u32 2147483647, %v788
  %v853 = vand.u32 2147483647, %v789
  %v854 = vand.u32 2147483647, %v790
  %v855 = vand.u32 2147483647, %v791
  %v856 = vand.u32 2147483647, %v792
  %v857 = vand.u32 2147483647, %v793
  %v858 = vand.u32 2147483647, %v794
  %v859 = vand.u32 2147483647, %v795
  %v860 = vand.u32 2147483647, %v796
  %v861 = vand.u32 2147483647, %v797
  %v862 = vand.u32 2147483647, %v798
  %v863 = vand.u32 2147483647, %v799
  %v864 = vand.u32 2147483647, %v800
  %v865 = vand.u32 2147483647, %v801
  %v866 = vand.u32 2147483647, %v802
  %v867 = vand.u32 2147483647, %v803
  %v868 = vand.u32 2147483647, %v804
  %v869 = vand.u32 2147483647, %v805
  %v870 = vand.u32 2147483647, %v806
  %v871 = vand.u32 2147483647, %v807
  %v872 = vand.u32 2147483647, %v808
  %v873 = vand.u32 2147483647, %v809
  %v874 = vand.u32 2147483647, %v810
  %v875 = vand.u32 2147483647, %v811
  %v876 = vand.u32 2147483647, %v812
  %v877 = vand.u32 2147483647, %v813
  %v878 = vand.u32 2147483647, %v814
  %v879 = vand.u32 2147483647, %v815
  %v880 = vand.u32 2147483647, %v816
  %v881 = vand.u32 2147483647, %v817
  %v882 = vand.u32 2147483647, %v818
  %v883 = vand.u32 2147483647, %v819
  %v884 = vand.u32 2147483647, %v820
  %v885 = vand.u32 2147483647, %v821
  %v886 = vand.u32 2147483647, %v822
  %v887 = vand.u32 2147483647, %v823
  %v888 = vand.u32 2147483647, %v824
  %v889 = vand.u32 2147483647, %v825
  %v890 = vand.u32 2147483647, %v826
  %v891 = vand.u32 2147483647, %v827
  %v892 = vand.u32 2147483647, %v828
  %v893 = vand.u32 2147483647, %v829
  %v894 = vand.u32 2147483647, %v830
  %v895 = vand.u32 2147483647, %v831
  %v896 = vand.u32 2147483647, %v832
  %v897 = vand.u32 2147483647, %v833
  %v898 = vand.u32 2147483647, %v834
  %v899 = vand.u32 2147483647, %v835
  %v900 = vand.u32 2147483647, %v836
  %v901 = vmul.f32 %v837, 0.3275911
  %v902 = vmul.f32 %v838, 0.3275911
  %v903 = vmul.f32 %v839, 0.3275911
  %v904 = vmul.f32 %v840, 0.3275911
  %v905 = vmul.f32 %v841, 0.3275911
  %v906 = vmul.f32 %v842, 0.3275911
  %v907 = vmul.f32 %v843, 0.3275911
  %v908 = vmul.f32 %v844, 0.3275911
  %v909 = vmul.f32 %v845, 0.3275911
  %v910 = vmul.f32 %v846, 0.3275911
  %v911 = vmul.f32 %v847, 0.3275911
  %v912 = vmul.f32 %v848, 0.3275911
  %v913 = vmul.f32 %v849, 0.3275911
  %v914 = vmul.f32 %v850, 0.3275911
  %v915 = vmul.f32 %v851, 0.3275911
  %v916 = vmul.f32 %v852, 0.3275911
  %v917 = vmul.f32 %v853, 0.3275911
  %v918 = vmul.f32 %v854, 0.3275911
  %v919 = vmul.f32 %v855, 0.3275911
  %v920 = vmul.f32 %v856, 0.3275911
  %v921 = vmul.f32 %v857, 0.3275911
  %v922 = vmul.f32 %v858, 0.3275911
  %v923 = vmul.f32 %v859, 0.3275911
  %v924 = vmul.f32 %v860, 0.3275911
  %v925 = vmul.f32 %v861, 0.3275911
  %v926 = vmul.f32 %v862, 0.3275911
  %v927 = vmul.f32 %v863, 0.3275911
  %v928 = vmul.f32 %v864, 0.3275911
  %v929 = vmul.f32 %v865, 0.3275911
  %v930 = vmul.f32 %v866, 0.3275911
  %v931 = vmul.f32 %v867, 0.3275911
  %v932 = vmul.f32 %v868, 0.3275911
  %v933 = vmul.f32 %v869, 0.3275911
  %v934 = vmul.f32 %v870, 0.3275911
  %v935 = vmul.f32 %v871, 0.3275911
  %v936 = vmul.f32 %v872, 0.3275911
  %v937 = vmul.f32 %v873, 0.3275911
  %v938 = vmul.f32 %v874, 0.3275911
  %v939 = vmul.f32 %v875, 0.3275911
  %v940 = vmul.f32 %v876, 0.3275911
  %v941 = vmul.f32 %v877, 0.3275911
  %v942 = vmul.f32 %v878, 0.3275911
  %v943 = vmul.f32 %v879, 0.3275911
  %v944 = vmul.f32 %v880, 0.3275911
  %v945 = vmul.f32 %v881, 0.3275911
  %v946 = vmul.f32 %v882, 0.3275911
  %v947 = vmul.f32 %v883, 0.3275911
  %v948 = vmul.f32 %v884, 0.3275911
  %v949 = vmul.f32 %v885, 0.3275911
  %v950 = vmul.f32 %v886, 0.3275911
  %v951 = vmul.f32 %v887, 0.3275911
  %v952 = vmul.f32 %v888, 0.3275911
  %v953 = vmul.f32 %v889, 0.3275911
  %v954 = vmul.f32 %v890, 0.3275911
  %v955 = vmul.f32 %v891, 0.3275911
  %v956 = vmul.f32 %v892, 0.3275911
  %v957 = vmul.f32 %v893, 0.3275911
  %v958 = vmul.f32 %v894, 0.3275911
  %v959 = vmul.f32 %v895, 0.3275911
  %v960 = vmul.f32 %v896, 0.3275911
  %v961 = vmul.f32 %v897, 0.3275911
  %v962 = vmul.f32 %v898, 0.3275911
  %v963 = vmul.f32 %v899, 0.3275911
  %v964 = vmul.f32 %v900, 0.3275911
  %v965 = vadd.f32 %v901, 1.0
  %v966 = vadd.f32 %v902, 1.0
  %v967 = vadd.f32 %v903, 1.0
  %v968 = vadd.f32 %v904, 1.0
  %v969 = vadd.f32 %v905, 1.0
  %v970 = vadd.f32 %v906, 1.0
  %v971 = vadd.f32 %v907, 1.0
  %v972 = vadd.f32 %v908, 1.0
  %v973 = vadd.f32 %v909, 1.0
  %v974 = vadd.f32 %v910, 1.0
  %v975 = vadd.f32 %v911, 1.0
  %v976 = vadd.f32 %v912, 1.0
  %v977 = vadd.f32 %v913, 1.0
  %v978 = vadd.f32 %v914, 1.0
  %v979 = vadd.f32 %v915, 1.0
  %v980 = vadd.f32 %v916, 1.0
  %v981 = vadd.f32 %v917, 1.0
  %v982 = vadd.f32 %v918, 1.0
  %v983 = vadd.f32 %v919, 1.0
  %v984 = vadd.f32 %v920, 1.0
  %v985 = vadd.f32 %v921, 1.0
  %v986 = vadd.f32 %v922, 1.0
  %v987 = vadd.f32 %v923, 1.0
  %v988 = vadd.f32 %v924, 1.0
  %v989 = vadd.f32 %v925, 1.0
  %v990 = vadd.f32 %v926, 1.0
  %v991 = vadd.f32 %v927, 1.0
  %v992 = vadd.f32 %v928, 1.0
  %v993 = vadd.f32 %v929, 1.0
  %v994 = vadd.f32 %v930, 1.0
  %v995 = vadd.f32 %v931, 1.0
  %v996 = vadd.f32 %v932, 1.0
  %v997 = vadd.f32 %v933, 1.0
  %v998 = vadd.f32 %v934, 1.0
  %v999 = vadd.f32 %v935, 1.0
  %v1000 = vadd.f32 %v936, 1.0
  %v1001 = vadd.f32 %v937, 1.0
  %v1002 = vadd.f32 %v938, 1.0
  %v1003 = vadd.f32 %v939, 1.0
  %v1004 = vadd.f32 %v940, 1.0
  %v1005 = vadd.f32 %v941, 1.0
  %v1006 = vadd.f32 %v942, 1.0
  %v1007 = vadd.f32 %v943, 1.0
  %v1008 = vadd.f32 %v944, 1.0
  %v1009 = vadd.f32 %v945, 1.0
  %v1010 = vadd.f32 %v946, 1.0
  %v1011 = vadd.f32 %v947, 1.0
  %v1012 = vadd.f32 %v948, 1.0
  %v1013 = vadd.f32 %v949, 1.0
  %v1014 = vadd.f32 %v950, 1.0
  %v1015 = vadd.f32 %v951, 1.0
  %v1016 = vadd.f32 %v952, 1.0
  %v1017 = vadd.f32 %v953, 1.0
  %v1018 = vadd.f32 %v954, 1.0
  %v1019 = vadd.f32 %v955, 1.0
  %v1020 = vadd.f32 %v956, 1.0
  %v1021 = vadd.f32 %v957, 1.0
  %v1022 = vadd.f32 %v958, 1.0
  %v1023 = vadd.f32 %v959, 1.0
  %v1024 = vadd.f32 %v960, 1.0
  %v1025 = vadd.f32 %v961, 1.0
  %v1026 = vadd.f32 %v962, 1.0
  %v1027 = vadd.f32 %v963, 1.0
  %v1028 = vadd.f32 %v964, 1.0
  %v1029 = vrcp.pop %v965
  %v1030 = vmul.f32 1.0, %v1029
  %v1031 = vrcp.pop %v966
  %v1032 = vmul.f32 1.0, %v1031
  %v1033 = vrcp.pop %v967
  %v1034 = vmul.f32 1.0, %v1033
  %v1035 = vrcp.pop %v968
  %v1036 = vmul.f32 1.0, %v1035
  %v1037 = vrcp.pop %v969
  %v1038 = vmul.f32 1.0, %v1037
  %v1039 = vrcp.pop %v970
  %v1040 = vmul.f32 1.0, %v1039
  %v1041 = vrcp.pop %v971
  %v1042 = vmul.f32 1.0, %v1041
  %v1043 = vrcp.pop %v972
  %v1044 = vmul.f32 1.0, %v1043
  %v1045 = vrcp.pop %v973
  %v1046 = vmul.f32 1.0, %v1045
  %v1047 = vrcp.pop %v974
  %v1048 = vmul.f32 1.0, %v1047
  %v1049 = vrcp.pop %v975
  %v1050 = vmul.f32 1.0, %v1049
  %v1051 = vrcp.pop %v976
  %v1052 = vmul.f32 1.0, %v1051
  %v1053 = vrcp.pop %v977
  %v1054 = vmul.f32 1.0, %v1053
  %v1055 = vrcp.pop %v978
  %v1056 = vmul.f32 1.0, %v1055
  %v1057 = vrcp.pop %v979
  %v1058 = vmul.f32 1.0, %v1057
  %v1059 = vrcp.pop %v980
  %v1060 = vmul.f32 1.0, %v1059
  %v1061 = vrcp.pop %v981
  %v1062 = vmul.f32 1.0, %v1061
  %v1063 = vrcp.pop %v982
  %v1064 = vmul.f32 1.0, %v1063
  %v1065 = vrcp.pop %v983
  %v1066 = vmul.f32 1.0, %v1065
  %v1067 = vrcp.pop %v984
  %v1068 = vmul.f32 1.0, %v1067
  %v1069 = vrcp.pop %v985
  %v1070 = vmul.f32 1.0, %v1069
  %v1071 = vrcp.pop %v986
  %v1072 = vmul.f32 1.0, %v1071
  %v1073 = vrcp.pop %v987
  %v1074 = vmul.f32 1.0, %v1073
  %v1075 = vrcp.pop %v988
  %v1076 = vmul.f32 1.0, %v1075
  %v1077 = vrcp.pop %v989
  %v1078 = vmul.f32 1.0, %v1077
  %v1079 = vrcp.pop %v990
  %v1080 = vmul.f32 1.0, %v1079
  %v1081 = vrcp.pop %v991
  %v1082 = vmul.f32 1.0, %v1081
  %v1083 = vrcp.pop %v992
  %v1084 = vmul.f32 1.0, %v1083
  %v1085 = vrcp.pop %v993
  %v1086 = vmul.f32 1.0, %v1085
  %v1087 = vrcp.pop %v994
  %v1088 = vmul.f32 1.0, %v1087
  %v1089 = vrcp.pop %v995
  %v1090 = vmul.f32 1.0, %v1089
  %v1091 = vrcp.pop %v996
  %v1092 = vmul.f32 1.0, %v1091
  %v1093 = vrcp.pop %v997
  %v1094 = vmul.f32 1.0, %v1093
  %v1095 = vrcp.pop %v998
  %v1096 = vmul.f32 1.0, %v1095
  %v1097 = vrcp.pop %v999
  %v1098 = vmul.f32 1.0, %v1097
  %v1099 = vrcp.pop %v1000
  %v1100 = vmul.f32 1.0, %v1099
  %v1101 = vrcp.pop %v1001
  %v1102 = vmul.f32 1.0, %v1101
  %v1103 = vrcp.pop %v1002
  %v1104 = vmul.f32 1.0, %v1103
  %v1105 = vrcp.pop %v1003
  %v1106 = vmul.f32 1.0, %v1105
  %v1107 = vrcp.pop %v1004
  %v1108 = vmul.f32 1.0, %v1107
  %v1109 = vrcp.pop %v1005
  %v1110 = vmul.f32 1.0, %v1109
  %v1111 = vrcp.pop %v1006
  %v1112 = vmul.f32 1.0, %v1111
  %v1113 = vrcp.pop %v1007
  %v1114 = vmul.f32 1.0, %v1113
  %v1115 = vrcp.pop %v1008
  %v1116 = vmul.f32 1.0, %v1115
  %v1117 = vrcp.pop %v1009
  %v1118 = vmul.f32 1.0, %v1117
  %v1119 = vrcp.pop %v1010
  %v1120 = vmul.f32 1.0, %v1119
  %v1121 = vrcp.pop %v1011
  %v1122 = vmul.f32 1.0, %v1121
  %v1123 = vrcp.pop %v1012
  %v1124 = vmul.f32 1.0, %v1123
  %v1125 = vrcp.pop %v1013
  %v1126 = vmul.f32 1.0, %v1125
  %v1127 = vrcp.pop %v1014
  %v1128 = vmul.f32 1.0, %v1127
  %v1129 = vrcp.pop %v1015
  %v1130 = vmul.f32 1.0, %v1129
  %v1131 = vrcp.pop %v1016
  %v1132 = vmul.f32 1.0, %v1131
  %v1133 = vrcp.pop %v1017
  %v1134 = vmul.f32 1.0, %v1133
  %v1135 = vrcp.pop %v1018
  %v1136 = vmul.f32 1.0, %v1135
  %v1137 = vrcp.pop %v1019
  %v1138 = vmul.f32 1.0, %v1137
  %v1139 = vrcp.pop %v1020
  %v1140 = vmul.f32 1.0, %v1139
  %v1141 = vrcp.pop %v1021
  %v1142 = vmul.f32 1.0, %v1141
  %v1143 = vrcp.pop %v1022
  %v1144 = vmul.f32 1.0, %v1143
  %v1145 = vrcp.pop %v1023
  %v1146 = vmul.f32 1.0, %v1145
  %v1147 = vrcp.pop %v1024
  %v1148 = vmul.f32 1.0, %v1147
  %v1149 = vrcp.pop %v1025
  %v1150 = vmul.f32 1.0, %v1149
  %v1151 = vrcp.pop %v1026
  %v1152 = vmul.f32 1.0, %v1151
  %v1153 = vrcp.pop %v1027
  %v1154 = vmul.f32 1.0, %v1153
  %v1155 = vrcp.pop %v1028
  %v1156 = vmul.f32 1.0, %v1155
  %v1157 = vmul.f32 %v1030, 1.0614054
  %v1158 = vmul.f32 %v1032, 1.0614054
  %v1159 = vmul.f32 %v1034, 1.0614054
  %v1160 = vmul.f32 %v1036, 1.0614054
  %v1161 = vmul.f32 %v1038, 1.0614054
  %v1162 = vmul.f32 %v1040, 1.0614054
  %v1163 = vmul.f32 %v1042, 1.0614054
  %v1164 = vmul.f32 %v1044, 1.0614054
  %v1165 = vmul.f32 %v1046, 1.0614054
  %v1166 = vmul.f32 %v1048, 1.0614054
  %v1167 = vmul.f32 %v1050, 1.0614054
  %v1168 = vmul.f32 %v1052, 1.0614054
  %v1169 = vmul.f32 %v1054, 1.0614054
  %v1170 = vmul.f32 %v1056, 1.0614054
  %v1171 = vmul.f32 %v1058, 1.0614054
  %v1172 = vmul.f32 %v1060, 1.0614054
  %v1173 = vmul.f32 %v1062, 1.0614054
  %v1174 = vmul.f32 %v1064, 1.0614054
  %v1175 = vmul.f32 %v1066, 1.0614054
  %v1176 = vmul.f32 %v1068, 1.0614054
  %v1177 = vmul.f32 %v1070, 1.0614054
  %v1178 = vmul.f32 %v1072, 1.0614054
  %v1179 = vmul.f32 %v1074, 1.0614054
  %v1180 = vmul.f32 %v1076, 1.0614054
  %v1181 = vmul.f32 %v1078, 1.0614054
  %v1182 = vmul.f32 %v1080, 1.0614054
  %v1183 = vmul.f32 %v1082, 1.0614054
  %v1184 = vmul.f32 %v1084, 1.0614054
  %v1185 = vmul.f32 %v1086, 1.0614054
  %v1186 = vmul.f32 %v1088, 1.0614054
  %v1187 = vmul.f32 %v1090, 1.0614054
  %v1188 = vmul.f32 %v1092, 1.0614054
  %v1189 = vmul.f32 %v1094, 1.0614054
  %v1190 = vmul.f32 %v1096, 1.0614054
  %v1191 = vmul.f32 %v1098, 1.0614054
  %v1192 = vmul.f32 %v1100, 1.0614054
  %v1193 = vmul.f32 %v1102, 1.0614054
  %v1194 = vmul.f32 %v1104, 1.0614054
  %v1195 = vmul.f32 %v1106, 1.0614054
  %v1196 = vmul.f32 %v1108, 1.0614054
  %v1197 = vmul.f32 %v1110, 1.0614054
  %v1198 = vmul.f32 %v1112, 1.0614054
  %v1199 = vmul.f32 %v1114, 1.0614054
  %v1200 = vmul.f32 %v1116, 1.0614054
  %v1201 = vmul.f32 %v1118, 1.0614054
  %v1202 = vmul.f32 %v1120, 1.0614054
  %v1203 = vmul.f32 %v1122, 1.0614054
  %v1204 = vmul.f32 %v1124, 1.0614054
  %v1205 = vmul.f32 %v1126, 1.0614054
  %v1206 = vmul.f32 %v1128, 1.0614054
  %v1207 = vmul.f32 %v1130, 1.0614054
  %v1208 = vmul.f32 %v1132, 1.0614054
  %v1209 = vmul.f32 %v1134, 1.0614054
  %v1210 = vmul.f32 %v1136, 1.0614054
  %v1211 = vmul.f32 %v1138, 1.0614054
  %v1212 = vmul.f32 %v1140, 1.0614054
  %v1213 = vmul.f32 %v1142, 1.0614054
  %v1214 = vmul.f32 %v1144, 1.0614054
  %v1215 = vmul.f32 %v1146, 1.0614054
  %v1216 = vmul.f32 %v1148, 1.0614054
  %v1217 = vmul.f32 %v1150, 1.0614054
  %v1218 = vmul.f32 %v1152, 1.0614054
  %v1219 = vmul.f32 %v1154, 1.0614054
  %v1220 = vmul.f32 %v1156, 1.0614054
  %v1221 = vadd.f32 %v1157, -1.4531521
  %v1222 = vadd.f32 %v1158, -1.4531521
  %v1223 = vadd.f32 %v1159, -1.4531521
  %v1224 = vadd.f32 %v1160, -1.4531521
  %v1225 = vadd.f32 %v1161, -1.4531521
  %v1226 = vadd.f32 %v1162, -1.4531521
  %v1227 = vadd.f32 %v1163, -1.4531521
  %v1228 = vadd.f32 %v1164, -1.4531521
  %v1229 = vadd.f32 %v1165, -1.4531521
  %v1230 = vadd.f32 %v1166, -1.4531521
  %v1231 = vadd.f32 %v1167, -1.4531521
  %v1232 = vadd.f32 %v1168, -1.4531521
  %v1233 = vadd.f32 %v1169, -1.4531521
  %v1234 = vadd.f32 %v1170, -1.4531521
  %v1235 = vadd.f32 %v1171, -1.4531521
  %v1236 = vadd.f32 %v1172, -1.4531521
  %v1237 = vadd.f32 %v1173, -1.4531521
  %v1238 = vadd.f32 %v1174, -1.4531521
  %v1239 = vadd.f32 %v1175, -1.4531521
  %v1240 = vadd.f32 %v1176, -1.4531521
  %v1241 = vadd.f32 %v1177, -1.4531521
  %v1242 = vadd.f32 %v1178, -1.4531521
  %v1243 = vadd.f32 %v1179, -1.4531521
  %v1244 = vadd.f32 %v1180, -1.4531521
  %v1245 = vadd.f32 %v1181, -1.4531521
  %v1246 = vadd.f32 %v1182, -1.4531521
  %v1247 = vadd.f32 %v1183, -1.4531521
  %v1248 = vadd.f32 %v1184, -1.4531521
  %v1249 = vadd.f32 %v1185, -1.4531521
  %v1250 = vadd.f32 %v1186, -1.4531521
  %v1251 = vadd.f32 %v1187, -1.4531521
  %v1252 = vadd.f32 %v1188, -1.4531521
  %v1253 = vadd.f32 %v1189, -1.4531521
  %v1254 = vadd.f32 %v1190, -1.4531521
  %v1255 = vadd.f32 %v1191, -1.4531521
  %v1256 = vadd.f32 %v1192, -1.4531521
  %v1257 = vadd.f32 %v1193, -1.4531521
  %v1258 = vadd.f32 %v1194, -1.4531521
  %v1259 = vadd.f32 %v1195, -1.4531521
  %v1260 = vadd.f32 %v1196, -1.4531521
  %v1261 = vadd.f32 %v1197, -1.4531521
  %v1262 = vadd.f32 %v1198, -1.4531521
  %v1263 = vadd.f32 %v1199, -1.4531521
  %v1264 = vadd.f32 %v1200, -1.4531521
  %v1265 = vadd.f32 %v1201, -1.4531521
  %v1266 = vadd.f32 %v1202, -1.4531521
  %v1267 = vadd.f32 %v1203, -1.4531521
  %v1268 = vadd.f32 %v1204, -1.4531521
  %v1269 = vadd.f32 %v1205, -1.4531521
  %v1270 = vadd.f32 %v1206, -1.4531521
  %v1271 = vadd.f32 %v1207, -1.4531521
  %v1272 = vadd.f32 %v1208, -1.4531521
  %v1273 = vadd.f32 %v1209, -1.4531521
  %v1274 = vadd.f32 %v1210, -1.4531521
  %v1275 = vadd.f32 %v1211, -1.4531521
  %v1276 = vadd.f32 %v1212, -1.4531521
  %v1277 = vadd.f32 %v1213, -1.4531521
  %v1278 = vadd.f32 %v1214, -1.4531521
  %v1279 = vadd.f32 %v1215, -1.4531521
  %v1280 = vadd.f32 %v1216, -1.4531521
  %v1281 = vadd.f32 %v1217, -1.4531521
  %v1282 = vadd.f32 %v1218, -1.4531521
  %v1283 = vadd.f32 %v1219, -1.4531521
  %v1284 = vadd.f32 %v1220, -1.4531521
  %v1285 = vmul.f32 %v1030, %v1221
  %v1286 = vmul.f32 %v1032, %v1222
  %v1287 = vmul.f32 %v1034, %v1223
  %v1288 = vmul.f32 %v1036, %v1224
  %v1289 = vmul.f32 %v1038, %v1225
  %v1290 = vmul.f32 %v1040, %v1226
  %v1291 = vmul.f32 %v1042, %v1227
  %v1292 = vmul.f32 %v1044, %v1228
  %v1293 = vmul.f32 %v1046, %v1229
  %v1294 = vmul.f32 %v1048, %v1230
  %v1295 = vmul.f32 %v1050, %v1231
  %v1296 = vmul.f32 %v1052, %v1232
  %v1297 = vmul.f32 %v1054, %v1233
  %v1298 = vmul.f32 %v1056, %v1234
  %v1299 = vmul.f32 %v1058, %v1235
  %v1300 = vmul.f32 %v1060, %v1236
  %v1301 = vmul.f32 %v1062, %v1237
  %v1302 = vmul.f32 %v1064, %v1238
  %v1303 = vmul.f32 %v1066, %v1239
  %v1304 = vmul.f32 %v1068, %v1240
  %v1305 = vmul.f32 %v1070, %v1241
  %v1306 = vmul.f32 %v1072, %v1242
  %v1307 = vmul.f32 %v1074, %v1243
  %v1308 = vmul.f32 %v1076, %v1244
  %v1309 = vmul.f32 %v1078, %v1245
  %v1310 = vmul.f32 %v1080, %v1246
  %v1311 = vmul.f32 %v1082, %v1247
  %v1312 = vmul.f32 %v1084, %v1248
  %v1313 = vmul.f32 %v1086, %v1249
  %v1314 = vmul.f32 %v1088, %v1250
  %v1315 = vmul.f32 %v1090, %v1251
  %v1316 = vmul.f32 %v1092, %v1252
  %v1317 = vmul.f32 %v1094, %v1253
  %v1318 = vmul.f32 %v1096, %v1254
  %v1319 = vmul.f32 %v1098, %v1255
  %v1320 = vmul.f32 %v1100, %v1256
  %v1321 = vmul.f32 %v1102, %v1257
  %v1322 = vmul.f32 %v1104, %v1258
  %v1323 = vmul.f32 %v1106, %v1259
  %v1324 = vmul.f32 %v1108, %v1260
  %v1325 = vmul.f32 %v1110, %v1261
  %v1326 = vmul.f32 %v1112, %v1262
  %v1327 = vmul.f32 %v1114, %v1263
  %v1328 = vmul.f32 %v1116, %v1264
  %v1329 = vmul.f32 %v1118, %v1265
  %v1330 = vmul.f32 %v1120, %v1266
  %v1331 = vmul.f32 %v1122, %v1267
  %v1332 = vmul.f32 %v1124, %v1268
  %v1333 = vmul.f32 %v1126, %v1269
  %v1334 = vmul.f32 %v1128, %v1270
  %v1335 = vmul.f32 %v1130, %v1271
  %v1336 = vmul.f32 %v1132, %v1272
  %v1337 = vmul.f32 %v1134, %v1273
  %v1338 = vmul.f32 %v1136, %v1274
  %v1339 = vmul.f32 %v1138, %v1275
  %v1340 = vmul.f32 %v1140, %v1276
  %v1341 = vmul.f32 %v1142, %v1277
  %v1342 = vmul.f32 %v1144, %v1278
  %v1343 = vmul.f32 %v1146, %v1279
  %v1344 = vmul.f32 %v1148, %v1280
  %v1345 = vmul.f32 %v1150, %v1281
  %v1346 = vmul.f32 %v1152, %v1282
  %v1347 = vmul.f32 %v1154, %v1283
  %v1348 = vmul.f32 %v1156, %v1284
  %v1349 = vadd.f32 %v1285, 1.4214138
  %v1350 = vadd.f32 %v1286, 1.4214138
  %v1351 = vadd.f32 %v1287, 1.4214138
  %v1352 = vadd.f32 %v1288, 1.4214138
  %v1353 = vadd.f32 %v1289, 1.4214138
  %v1354 = vadd.f32 %v1290, 1.4214138
  %v1355 = vadd.f32 %v1291, 1.4214138
  %v1356 = vadd.f32 %v1292, 1.4214138
  %v1357 = vadd.f32 %v1293, 1.4214138
  %v1358 = vadd.f32 %v1294, 1.4214138
  %v1359 = vadd.f32 %v1295, 1.4214138
  %v1360 = vadd.f32 %v1296, 1.4214138
  %v1361 = vadd.f32 %v1297, 1.4214138
  %v1362 = vadd.f32 %v1298, 1.4214138
  %v1363 = vadd.f32 %v1299, 1.4214138
  %v1364 = vadd.f32 %v1300, 1.4214138
  %v1365 = vadd.f32 %v1301, 1.4214138
  %v1366 = vadd.f32 %v1302, 1.4214138
  %v1367 = vadd.f32 %v1303, 1.4214138
  %v1368 = vadd.f32 %v1304, 1.4214138
  %v1369 = vadd.f32 %v1305, 1.4214138
  %v1370 = vadd.f32 %v1306, 1.4214138
  %v1371 = vadd.f32 %v1307, 1.4214138
  %v1372 = vadd.f32 %v1308, 1.4214138
  %v1373 = vadd.f32 %v1309, 1.4214138
  %v1374 = vadd.f32 %v1310, 1.4214138
  %v1375 = vadd.f32 %v1311, 1.4214138
  %v1376 = vadd.f32 %v1312, 1.4214138
  %v1377 = vadd.f32 %v1313, 1.4214138
  %v1378 = vadd.f32 %v1314, 1.4214138
  %v1379 = vadd.f32 %v1315, 1.4214138
  %v1380 = vadd.f32 %v1316, 1.4214138
  %v1381 = vadd.f32 %v1317, 1.4214138
  %v1382 = vadd.f32 %v1318, 1.4214138
  %v1383 = vadd.f32 %v1319, 1.4214138
  %v1384 = vadd.f32 %v1320, 1.4214138
  %v1385 = vadd.f32 %v1321, 1.4214138
  %v1386 = vadd.f32 %v1322, 1.4214138
  %v1387 = vadd.f32 %v1323, 1.4214138
  %v1388 = vadd.f32 %v1324, 1.4214138
  %v1389 = vadd.f32 %v1325, 1.4214138
  %v1390 = vadd.f32 %v1326, 1.4214138
  %v1391 = vadd.f32 %v1327, 1.4214138
  %v1392 = vadd.f32 %v1328, 1.4214138
  %v1393 = vadd.f32 %v1329, 1.4214138
  %v1394 = vadd.f32 %v1330, 1.4214138
  %v1395 = vadd.f32 %v1331, 1.4214138
  %v1396 = vadd.f32 %v1332, 1.4214138
  %v1397 = vadd.f32 %v1333, 1.4214138
  %v1398 = vadd.f32 %v1334, 1.4214138
  %v1399 = vadd.f32 %v1335, 1.4214138
  %v1400 = vadd.f32 %v1336, 1.4214138
  %v1401 = vadd.f32 %v1337, 1.4214138
  %v1402 = vadd.f32 %v1338, 1.4214138
  %v1403 = vadd.f32 %v1339, 1.4214138
  %v1404 = vadd.f32 %v1340, 1.4214138
  %v1405 = vadd.f32 %v1341, 1.4214138
  %v1406 = vadd.f32 %v1342, 1.4214138
  %v1407 = vadd.f32 %v1343, 1.4214138
  %v1408 = vadd.f32 %v1344, 1.4214138
  %v1409 = vadd.f32 %v1345, 1.4214138
  %v1410 = vadd.f32 %v1346, 1.4214138
  %v1411 = vadd.f32 %v1347, 1.4214138
  %v1412 = vadd.f32 %v1348, 1.4214138
  %v1413 = vmul.f32 %v1030, %v1349
  %v1414 = vmul.f32 %v1032, %v1350
  %v1415 = vmul.f32 %v1034, %v1351
  %v1416 = vmul.f32 %v1036, %v1352
  %v1417 = vmul.f32 %v1038, %v1353
  %v1418 = vmul.f32 %v1040, %v1354
  %v1419 = vmul.f32 %v1042, %v1355
  %v1420 = vmul.f32 %v1044, %v1356
  %v1421 = vmul.f32 %v1046, %v1357
  %v1422 = vmul.f32 %v1048, %v1358
  %v1423 = vmul.f32 %v1050, %v1359
  %v1424 = vmul.f32 %v1052, %v1360
  %v1425 = vmul.f32 %v1054, %v1361
  %v1426 = vmul.f32 %v1056, %v1362
  %v1427 = vmul.f32 %v1058, %v1363
  %v1428 = vmul.f32 %v1060, %v1364
  %v1429 = vmul.f32 %v1062, %v1365
  %v1430 = vmul.f32 %v1064, %v1366
  %v1431 = vmul.f32 %v1066, %v1367
  %v1432 = vmul.f32 %v1068, %v1368
  %v1433 = vmul.f32 %v1070, %v1369
  %v1434 = vmul.f32 %v1072, %v1370
  %v1435 = vmul.f32 %v1074, %v1371
  %v1436 = vmul.f32 %v1076, %v1372
  %v1437 = vmul.f32 %v1078, %v1373
  %v1438 = vmul.f32 %v1080, %v1374
  %v1439 = vmul.f32 %v1082, %v1375
  %v1440 = vmul.f32 %v1084, %v1376
  %v1441 = vmul.f32 %v1086, %v1377
  %v1442 = vmul.f32 %v1088, %v1378
  %v1443 = vmul.f32 %v1090, %v1379
  %v1444 = vmul.f32 %v1092, %v1380
  %v1445 = vmul.f32 %v1094, %v1381
  %v1446 = vmul.f32 %v1096, %v1382
  %v1447 = vmul.f32 %v1098, %v1383
  %v1448 = vmul.f32 %v1100, %v1384
  %v1449 = vmul.f32 %v1102, %v1385
  %v1450 = vmul.f32 %v1104, %v1386
  %v1451 = vmul.f32 %v1106, %v1387
  %v1452 = vmul.f32 %v1108, %v1388
  %v1453 = vmul.f32 %v1110, %v1389
  %v1454 = vmul.f32 %v1112, %v1390
  %v1455 = vmul.f32 %v1114, %v1391
  %v1456 = vmul.f32 %v1116, %v1392
  %v1457 = vmul.f32 %v1118, %v1393
  %v1458 = vmul.f32 %v1120, %v1394
  %v1459 = vmul.f32 %v1122, %v1395
  %v1460 = vmul.f32 %v1124, %v1396
  %v1461 = vmul.f32 %v1126, %v1397
  %v1462 = vmul.f32 %v1128, %v1398
  %v1463 = vmul.f32 %v1130, %v1399
  %v1464 = vmul.f32 %v1132, %v1400
  %v1465 = vmul.f32 %v1134, %v1401
  %v1466 = vmul.f32 %v1136, %v1402
  %v1467 = vmul.f32 %v1138, %v1403
  %v1468 = vmul.f32 %v1140, %v1404
  %v1469 = vmul.f32 %v1142, %v1405
  %v1470 = vmul.f32 %v1144, %v1406
  %v1471 = vmul.f32 %v1146, %v1407
  %v1472 = vmul.f32 %v1148, %v1408
  %v1473 = vmul.f32 %v1150, %v1409
  %v1474 = vmul.f32 %v1152, %v1410
  %v1475 = vmul.f32 %v1154, %v1411
  %v1476 = vmul.f32 %v1156, %v1412
  %v1477 = vadd.f32 %v1413, -0.28449672
  %v1478 = vadd.f32 %v1414, -0.28449672
  %v1479 = vadd.f32 %v1415, -0.28449672
  %v1480 = vadd.f32 %v1416, -0.28449672
  %v1481 = vadd.f32 %v1417, -0.28449672
  %v1482 = vadd.f32 %v1418, -0.28449672
  %v1483 = vadd.f32 %v1419, -0.28449672
  %v1484 = vadd.f32 %v1420, -0.28449672
  %v1485 = vadd.f32 %v1421, -0.28449672
  %v1486 = vadd.f32 %v1422, -0.28449672
  %v1487 = vadd.f32 %v1423, -0.28449672
  %v1488 = vadd.f32 %v1424, -0.28449672
  %v1489 = vadd.f32 %v1425, -0.28449672
  %v1490 = vadd.f32 %v1426, -0.28449672
  %v1491 = vadd.f32 %v1427, -0.28449672
  %v1492 = vadd.f32 %v1428, -0.28449672
  %v1493 = vadd.f32 %v1429, -0.28449672
  %v1494 = vadd.f32 %v1430, -0.28449672
  %v1495 = vadd.f32 %v1431, -0.28449672
  %v1496 = vadd.f32 %v1432, -0.28449672
  %v1497 = vadd.f32 %v1433, -0.28449672
  %v1498 = vadd.f32 %v1434, -0.28449672
  %v1499 = vadd.f32 %v1435, -0.28449672
  %v1500 = vadd.f32 %v1436, -0.28449672
  %v1501 = vadd.f32 %v1437, -0.28449672
  %v1502 = vadd.f32 %v1438, -0.28449672
  %v1503 = vadd.f32 %v1439, -0.28449672
  %v1504 = vadd.f32 %v1440, -0.28449672
  %v1505 = vadd.f32 %v1441, -0.28449672
  %v1506 = vadd.f32 %v1442, -0.28449672
  %v1507 = vadd.f32 %v1443, -0.28449672
  %v1508 = vadd.f32 %v1444, -0.28449672
  %v1509 = vadd.f32 %v1445, -0.28449672
  %v1510 = vadd.f32 %v1446, -0.28449672
  %v1511 = vadd.f32 %v1447, -0.28449672
  %v1512 = vadd.f32 %v1448, -0.28449672
  %v1513 = vadd.f32 %v1449, -0.28449672
  %v1514 = vadd.f32 %v1450, -0.28449672
  %v1515 = vadd.f32 %v1451, -0.28449672
  %v1516 = vadd.f32 %v1452, -0.28449672
  %v1517 = vadd.f32 %v1453, -0.28449672
  %v1518 = vadd.f32 %v1454, -0.28449672
  %v1519 = vadd.f32 %v1455, -0.28449672
  %v1520 = vadd.f32 %v1456, -0.28449672
  %v1521 = vadd.f32 %v1457, -0.28449672
  %v1522 = vadd.f32 %v1458, -0.28449672
  %v1523 = vadd.f32 %v1459, -0.28449672
  %v1524 = vadd.f32 %v1460, -0.28449672
  %v1525 = vadd.f32 %v1461, -0.28449672
  %v1526 = vadd.f32 %v1462, -0.28449672
  %v1527 = vadd.f32 %v1463, -0.28449672
  %v1528 = vadd.f32 %v1464, -0.28449672
  %v1529 = vadd.f32 %v1465, -0.28449672
  %v1530 = vadd.f32 %v1466, -0.28449672
  %v1531 = vadd.f32 %v1467, -0.28449672
  %v1532 = vadd.f32 %v1468, -0.28449672
  %v1533 = vadd.f32 %v1469, -0.28449672
  %v1534 = vadd.f32 %v1470, -0.28449672
  %v1535 = vadd.f32 %v1471, -0.28449672
  %v1536 = vadd.f32 %v1472, -0.28449672
  %v1537 = vadd.f32 %v1473, -0.28449672
  %v1538 = vadd.f32 %v1474, -0.28449672
  %v1539 = vadd.f32 %v1475, -0.28449672
  %v1540 = vadd.f32 %v1476, -0.28449672
  %v1541 = vmul.f32 %v1030, %v1477
  %v1542 = vmul.f32 %v1032, %v1478
  %v1543 = vmul.f32 %v1034, %v1479
  %v1544 = vmul.f32 %v1036, %v1480
  %v1545 = vmul.f32 %v1038, %v1481
  %v1546 = vmul.f32 %v1040, %v1482
  %v1547 = vmul.f32 %v1042, %v1483
  %v1548 = vmul.f32 %v1044, %v1484
  %v1549 = vmul.f32 %v1046, %v1485
  %v1550 = vmul.f32 %v1048, %v1486
  %v1551 = vmul.f32 %v1050, %v1487
  %v1552 = vmul.f32 %v1052, %v1488
  %v1553 = vmul.f32 %v1054, %v1489
  %v1554 = vmul.f32 %v1056, %v1490
  %v1555 = vmul.f32 %v1058, %v1491
  %v1556 = vmul.f32 %v1060, %v1492
  %v1557 = vmul.f32 %v1062, %v1493
  %v1558 = vmul.f32 %v1064, %v1494
  %v1559 = vmul.f32 %v1066, %v1495
  %v1560 = vmul.f32 %v1068, %v1496
  %v1561 = vmul.f32 %v1070, %v1497
  %v1562 = vmul.f32 %v1072, %v1498
  %v1563 = vmul.f32 %v1074, %v1499
  %v1564 = vmul.f32 %v1076, %v1500
  %v1565 = vmul.f32 %v1078, %v1501
  %v1566 = vmul.f32 %v1080, %v1502
  %v1567 = vmul.f32 %v1082, %v1503
  %v1568 = vmul.f32 %v1084, %v1504
  %v1569 = vmul.f32 %v1086, %v1505
  %v1570 = vmul.f32 %v1088, %v1506
  %v1571 = vmul.f32 %v1090, %v1507
  %v1572 = vmul.f32 %v1092, %v1508
  %v1573 = vmul.f32 %v1094, %v1509
  %v1574 = vmul.f32 %v1096, %v1510
  %v1575 = vmul.f32 %v1098, %v1511
  %v1576 = vmul.f32 %v1100, %v1512
  %v1577 = vmul.f32 %v1102, %v1513
  %v1578 = vmul.f32 %v1104, %v1514
  %v1579 = vmul.f32 %v1106, %v1515
  %v1580 = vmul.f32 %v1108, %v1516
  %v1581 = vmul.f32 %v1110, %v1517
  %v1582 = vmul.f32 %v1112, %v1518
  %v1583 = vmul.f32 %v1114, %v1519
  %v1584 = vmul.f32 %v1116, %v1520
  %v1585 = vmul.f32 %v1118, %v1521
  %v1586 = vmul.f32 %v1120, %v1522
  %v1587 = vmul.f32 %v1122, %v1523
  %v1588 = vmul.f32 %v1124, %v1524
  %v1589 = vmul.f32 %v1126, %v1525
  %v1590 = vmul.f32 %v1128, %v1526
  %v1591 = vmul.f32 %v1130, %v1527
  %v1592 = vmul.f32 %v1132, %v1528
  %v1593 = vmul.f32 %v1134, %v1529
  %v1594 = vmul.f32 %v1136, %v1530
  %v1595 = vmul.f32 %v1138, %v1531
  %v1596 = vmul.f32 %v1140, %v1532
  %v1597 = vmul.f32 %v1142, %v1533
  %v1598 = vmul.f32 %v1144, %v1534
  %v1599 = vmul.f32 %v1146, %v1535
  %v1600 = vmul.f32 %v1148, %v1536
  %v1601 = vmul.f32 %v1150, %v1537
  %v1602 = vmul.f32 %v1152, %v1538
  %v1603 = vmul.f32 %v1154, %v1539
  %v1604 = vmul.f32 %v1156, %v1540
  %v1605 = vadd.f32 %v1541, 0.2548296
  %v1606 = vadd.f32 %v1542, 0.2548296
  %v1607 = vadd.f32 %v1543, 0.2548296
  %v1608 = vadd.f32 %v1544, 0.2548296
  %v1609 = vadd.f32 %v1545, 0.2548296
  %v1610 = vadd.f32 %v1546, 0.2548296
  %v1611 = vadd.f32 %v1547, 0.2548296
  %v1612 = vadd.f32 %v1548, 0.2548296
  %v1613 = vadd.f32 %v1549, 0.2548296
  %v1614 = vadd.f32 %v1550, 0.2548296
  %v1615 = vadd.f32 %v1551, 0.2548296
  %v1616 = vadd.f32 %v1552, 0.2548296
  %v1617 = vadd.f32 %v1553, 0.2548296
  %v1618 = vadd.f32 %v1554, 0.2548296
  %v1619 = vadd.f32 %v1555, 0.2548296
  %v1620 = vadd.f32 %v1556, 0.2548296
  %v1621 = vadd.f32 %v1557, 0.2548296
  %v1622 = vadd.f32 %v1558, 0.2548296
  %v1623 = vadd.f32 %v1559, 0.2548296
  %v1624 = vadd.f32 %v1560, 0.2548296
  %v1625 = vadd.f32 %v1561, 0.2548296
  %v1626 = vadd.f32 %v1562, 0.2548296
  %v1627 = vadd.f32 %v1563, 0.2548296
  %v1628 = vadd.f32 %v1564, 0.2548296
  %v1629 = vadd.f32 %v1565, 0.2548296
  %v1630 = vadd.f32 %v1566, 0.2548296
  %v1631 = vadd.f32 %v1567, 0.2548296
  %v1632 = vadd.f32 %v1568, 0.2548296
  %v1633 = vadd.f32 %v1569, 0.2548296
  %v1634 = vadd.f32 %v1570, 0.2548296
  %v1635 = vadd.f32 %v1571, 0.2548296
  %v1636 = vadd.f32 %v1572, 0.2548296
  %v1637 = vadd.f32 %v1573, 0.2548296
  %v1638 = vadd.f32 %v1574, 0.2548296
  %v1639 = vadd.f32 %v1575, 0.2548296
  %v1640 = vadd.f32 %v1576, 0.2548296
  %v1641 = vadd.f32 %v1577, 0.2548296
  %v1642 = vadd.f32 %v1578, 0.2548296
  %v1643 = vadd.f32 %v1579, 0.2548296
  %v1644 = vadd.f32 %v1580, 0.2548296
  %v1645 = vadd.f32 %v1581, 0.2548296
  %v1646 = vadd.f32 %v1582, 0.2548296
  %v1647 = vadd.f32 %v1583, 0.2548296
  %v1648 = vadd.f32 %v1584, 0.2548296
  %v1649 = vadd.f32 %v1585, 0.2548296
  %v1650 = vadd.f32 %v1586, 0.2548296
  %v1651 = vadd.f32 %v1587, 0.2548296
  %v1652 = vadd.f32 %v1588, 0.2548296
  %v1653 = vadd.f32 %v1589, 0.2548296
  %v1654 = vadd.f32 %v1590, 0.2548296
  %v1655 = vadd.f32 %v1591, 0.2548296
  %v1656 = vadd.f32 %v1592, 0.2548296
  %v1657 = vadd.f32 %v1593, 0.2548296
  %v1658 = vadd.f32 %v1594, 0.2548296
  %v1659 = vadd.f32 %v1595, 0.2548296
  %v1660 = vadd.f32 %v1596, 0.2548296
  %v1661 = vadd.f32 %v1597, 0.2548296
  %v1662 = vadd.f32 %v1598, 0.2548296
  %v1663 = vadd.f32 %v1599, 0.2548296
  %v1664 = vadd.f32 %v1600, 0.2548296
  %v1665 = vadd.f32 %v1601, 0.2548296
  %v1666 = vadd.f32 %v1602, 0.2548296
  %v1667 = vadd.f32 %v1603, 0.2548296
  %v1668 = vadd.f32 %v1604, 0.2548296
  %v1669 = vmul.f32 %v1030, %v1605
  %v1670 = vmul.f32 %v1032, %v1606
  %v1671 = vmul.f32 %v1034, %v1607
  %v1672 = vmul.f32 %v1036, %v1608
  %v1673 = vmul.f32 %v1038, %v1609
  %v1674 = vmul.f32 %v1040, %v1610
  %v1675 = vmul.f32 %v1042, %v1611
  %v1676 = vmul.f32 %v1044, %v1612
  %v1677 = vmul.f32 %v1046, %v1613
  %v1678 = vmul.f32 %v1048, %v1614
  %v1679 = vmul.f32 %v1050, %v1615
  %v1680 = vmul.f32 %v1052, %v1616
  %v1681 = vmul.f32 %v1054, %v1617
  %v1682 = vmul.f32 %v1056, %v1618
  %v1683 = vmul.f32 %v1058, %v1619
  %v1684 = vmul.f32 %v1060, %v1620
  %v1685 = vmul.f32 %v1062, %v1621
  %v1686 = vmul.f32 %v1064, %v1622
  %v1687 = vmul.f32 %v1066, %v1623
  %v1688 = vmul.f32 %v1068, %v1624
  %v1689 = vmul.f32 %v1070, %v1625
  %v1690 = vmul.f32 %v1072, %v1626
  %v1691 = vmul.f32 %v1074, %v1627
  %v1692 = vmul.f32 %v1076, %v1628
  %v1693 = vmul.f32 %v1078, %v1629
  %v1694 = vmul.f32 %v1080, %v1630
  %v1695 = vmul.f32 %v1082, %v1631
  %v1696 = vmul.f32 %v1084, %v1632
  %v1697 = vmul.f32 %v1086, %v1633
  %v1698 = vmul.f32 %v1088, %v1634
  %v1699 = vmul.f32 %v1090, %v1635
  %v1700 = vmul.f32 %v1092, %v1636
  %v1701 = vmul.f32 %v1094, %v1637
  %v1702 = vmul.f32 %v1096, %v1638
  %v1703 = vmul.f32 %v1098, %v1639
  %v1704 = vmul.f32 %v1100, %v1640
  %v1705 = vmul.f32 %v1102, %v1641
  %v1706 = vmul.f32 %v1104, %v1642
  %v1707 = vmul.f32 %v1106, %v1643
  %v1708 = vmul.f32 %v1108, %v1644
  %v1709 = vmul.f32 %v1110, %v1645
  %v1710 = vmul.f32 %v1112, %v1646
  %v1711 = vmul.f32 %v1114, %v1647
  %v1712 = vmul.f32 %v1116, %v1648
  %v1713 = vmul.f32 %v1118, %v1649
  %v1714 = vmul.f32 %v1120, %v1650
  %v1715 = vmul.f32 %v1122, %v1651
  %v1716 = vmul.f32 %v1124, %v1652
  %v1717 = vmul.f32 %v1126, %v1653
  %v1718 = vmul.f32 %v1128, %v1654
  %v1719 = vmul.f32 %v1130, %v1655
  %v1720 = vmul.f32 %v1132, %v1656
  %v1721 = vmul.f32 %v1134, %v1657
  %v1722 = vmul.f32 %v1136, %v1658
  %v1723 = vmul.f32 %v1138, %v1659
  %v1724 = vmul.f32 %v1140, %v1660
  %v1725 = vmul.f32 %v1142, %v1661
  %v1726 = vmul.f32 %v1144, %v1662
  %v1727 = vmul.f32 %v1146, %v1663
  %v1728 = vmul.f32 %v1148, %v1664
  %v1729 = vmul.f32 %v1150, %v1665
  %v1730 = vmul.f32 %v1152, %v1666
  %v1731 = vmul.f32 %v1154, %v1667
  %v1732 = vmul.f32 %v1156, %v1668
  %v1733 = vsub.f32 0.0, %v837
  %v1734 = vsub.f32 0.0, %v838
  %v1735 = vsub.f32 0.0, %v839
  %v1736 = vsub.f32 0.0, %v840
  %v1737 = vsub.f32 0.0, %v841
  %v1738 = vsub.f32 0.0, %v842
  %v1739 = vsub.f32 0.0, %v843
  %v1740 = vsub.f32 0.0, %v844
  %v1741 = vsub.f32 0.0, %v845
  %v1742 = vsub.f32 0.0, %v846
  %v1743 = vsub.f32 0.0, %v847
  %v1744 = vsub.f32 0.0, %v848
  %v1745 = vsub.f32 0.0, %v849
  %v1746 = vsub.f32 0.0, %v850
  %v1747 = vsub.f32 0.0, %v851
  %v1748 = vsub.f32 0.0, %v852
  %v1749 = vsub.f32 0.0, %v853
  %v1750 = vsub.f32 0.0, %v854
  %v1751 = vsub.f32 0.0, %v855
  %v1752 = vsub.f32 0.0, %v856
  %v1753 = vsub.f32 0.0, %v857
  %v1754 = vsub.f32 0.0, %v858
  %v1755 = vsub.f32 0.0, %v859
  %v1756 = vsub.f32 0.0, %v860
  %v1757 = vsub.f32 0.0, %v861
  %v1758 = vsub.f32 0.0, %v862
  %v1759 = vsub.f32 0.0, %v863
  %v1760 = vsub.f32 0.0, %v864
  %v1761 = vsub.f32 0.0, %v865
  %v1762 = vsub.f32 0.0, %v866
  %v1763 = vsub.f32 0.0, %v867
  %v1764 = vsub.f32 0.0, %v868
  %v1765 = vsub.f32 0.0, %v869
  %v1766 = vsub.f32 0.0, %v870
  %v1767 = vsub.f32 0.0, %v871
  %v1768 = vsub.f32 0.0, %v872
  %v1769 = vsub.f32 0.0, %v873
  %v1770 = vsub.f32 0.0, %v874
  %v1771 = vsub.f32 0.0, %v875
  %v1772 = vsub.f32 0.0, %v876
  %v1773 = vsub.f32 0.0, %v877
  %v1774 = vsub.f32 0.0, %v878
  %v1775 = vsub.f32 0.0, %v879
  %v1776 = vsub.f32 0.0, %v880
  %v1777 = vsub.f32 0.0, %v881
  %v1778 = vsub.f32 0.0, %v882
  %v1779 = vsub.f32 0.0, %v883
  %v1780 = vsub.f32 0.0, %v884
  %v1781 = vsub.f32 0.0, %v885
  %v1782 = vsub.f32 0.0, %v886
  %v1783 = vsub.f32 0.0, %v887
  %v1784 = vsub.f32 0.0, %v888
  %v1785 = vsub.f32 0.0, %v889
  %v1786 = vsub.f32 0.0, %v890
  %v1787 = vsub.f32 0.0, %v891
  %v1788 = vsub.f32 0.0, %v892
  %v1789 = vsub.f32 0.0, %v893
  %v1790 = vsub.f32 0.0, %v894
  %v1791 = vsub.f32 0.0, %v895
  %v1792 = vsub.f32 0.0, %v896
  %v1793 = vsub.f32 0.0, %v897
  %v1794 = vsub.f32 0.0, %v898
  %v1795 = vsub.f32 0.0, %v899
  %v1796 = vsub.f32 0.0, %v900
  %v1797 = vmul.f32 %v1733, %v837
  %v1798 = vmul.f32 %v1734, %v838
  %v1799 = vmul.f32 %v1735, %v839
  %v1800 = vmul.f32 %v1736, %v840
  %v1801 = vmul.f32 %v1737, %v841
  %v1802 = vmul.f32 %v1738, %v842
  %v1803 = vmul.f32 %v1739, %v843
  %v1804 = vmul.f32 %v1740, %v844
  %v1805 = vmul.f32 %v1741, %v845
  %v1806 = vmul.f32 %v1742, %v846
  %v1807 = vmul.f32 %v1743, %v847
  %v1808 = vmul.f32 %v1744, %v848
  %v1809 = vmul.f32 %v1745, %v849
  %v1810 = vmul.f32 %v1746, %v850
  %v1811 = vmul.f32 %v1747, %v851
  %v1812 = vmul.f32 %v1748, %v852
  %v1813 = vmul.f32 %v1749, %v853
  %v1814 = vmul.f32 %v1750, %v854
  %v1815 = vmul.f32 %v1751, %v855
  %v1816 = vmul.f32 %v1752, %v856
  %v1817 = vmul.f32 %v1753, %v857
  %v1818 = vmul.f32 %v1754, %v858
  %v1819 = vmul.f32 %v1755, %v859
  %v1820 = vmul.f32 %v1756, %v860
  %v1821 = vmul.f32 %v1757, %v861
  %v1822 = vmul.f32 %v1758, %v862
  %v1823 = vmul.f32 %v1759, %v863
  %v1824 = vmul.f32 %v1760, %v864
  %v1825 = vmul.f32 %v1761, %v865
  %v1826 = vmul.f32 %v1762, %v866
  %v1827 = vmul.f32 %v1763, %v867
  %v1828 = vmul.f32 %v1764, %v868
  %v1829 = vmul.f32 %v1765, %v869
  %v1830 = vmul.f32 %v1766, %v870
  %v1831 = vmul.f32 %v1767, %v871
  %v1832 = vmul.f32 %v1768, %v872
  %v1833 = vmul.f32 %v1769, %v873
  %v1834 = vmul.f32 %v1770, %v874
  %v1835 = vmul.f32 %v1771, %v875
  %v1836 = vmul.f32 %v1772, %v876
  %v1837 = vmul.f32 %v1773, %v877
  %v1838 = vmul.f32 %v1774, %v878
  %v1839 = vmul.f32 %v1775, %v879
  %v1840 = vmul.f32 %v1776, %v880
  %v1841 = vmul.f32 %v1777, %v881
  %v1842 = vmul.f32 %v1778, %v882
  %v1843 = vmul.f32 %v1779, %v883
  %v1844 = vmul.f32 %v1780, %v884
  %v1845 = vmul.f32 %v1781, %v885
  %v1846 = vmul.f32 %v1782, %v886
  %v1847 = vmul.f32 %v1783, %v887
  %v1848 = vmul.f32 %v1784, %v888
  %v1849 = vmul.f32 %v1785, %v889
  %v1850 = vmul.f32 %v1786, %v890
  %v1851 = vmul.f32 %v1787, %v891
  %v1852 = vmul.f32 %v1788, %v892
  %v1853 = vmul.f32 %v1789, %v893
  %v1854 = vmul.f32 %v1790, %v894
  %v1855 = vmul.f32 %v1791, %v895
  %v1856 = vmul.f32 %v1792, %v896
  %v1857 = vmul.f32 %v1793, %v897
  %v1858 = vmul.f32 %v1794, %v898
  %v1859 = vmul.f32 %v1795, %v899
  %v1860 = vmul.f32 %v1796, %v900
  %v1861 = vmul.f32 %v1797, 1.442695
  %v1862 = vpow.pop %v1861
  %v1863 = vmul.f32 %v1798, 1.442695
  %v1864 = vpow.pop %v1863
  %v1865 = vmul.f32 %v1799, 1.442695
  %v1866 = vpow.pop %v1865
  %v1867 = vmul.f32 %v1800, 1.442695
  %v1868 = vpow.pop %v1867
  %v1869 = vmul.f32 %v1801, 1.442695
  %v1870 = vpow.pop %v1869
  %v1871 = vmul.f32 %v1802, 1.442695
  %v1872 = vpow.pop %v1871
  %v1873 = vmul.f32 %v1803, 1.442695
  %v1874 = vpow.pop %v1873
  %v1875 = vmul.f32 %v1804, 1.442695
  %v1876 = vpow.pop %v1875
  %v1877 = vmul.f32 %v1805, 1.442695
  %v1878 = vpow.pop %v1877
  %v1879 = vmul.f32 %v1806, 1.442695
  %v1880 = vpow.pop %v1879
  %v1881 = vmul.f32 %v1807, 1.442695
  %v1882 = vpow.pop %v1881
  %v1883 = vmul.f32 %v1808, 1.442695
  %v1884 = vpow.pop %v1883
  %v1885 = vmul.f32 %v1809, 1.442695
  %v1886 = vpow.pop %v1885
  %v1887 = vmul.f32 %v1810, 1.442695
  %v1888 = vpow.pop %v1887
  %v1889 = vmul.f32 %v1811, 1.442695
  %v1890 = vpow.pop %v1889
  %v1891 = vmul.f32 %v1812, 1.442695
  %v1892 = vpow.pop %v1891
  %v1893 = vmul.f32 %v1813, 1.442695
  %v1894 = vpow.pop %v1893
  %v1895 = vmul.f32 %v1814, 1.442695
  %v1896 = vpow.pop %v1895
  %v1897 = vmul.f32 %v1815, 1.442695
  %v1898 = vpow.pop %v1897
  %v1899 = vmul.f32 %v1816, 1.442695
  %v1900 = vpow.pop %v1899
  %v1901 = vmul.f32 %v1817, 1.442695
  %v1902 = vpow.pop %v1901
  %v1903 = vmul.f32 %v1818, 1.442695
  %v1904 = vpow.pop %v1903
  %v1905 = vmul.f32 %v1819, 1.442695
  %v1906 = vpow.pop %v1905
  %v1907 = vmul.f32 %v1820, 1.442695
  %v1908 = vpow.pop %v1907
  %v1909 = vmul.f32 %v1821, 1.442695
  %v1910 = vpow.pop %v1909
  %v1911 = vmul.f32 %v1822, 1.442695
  %v1912 = vpow.pop %v1911
  %v1913 = vmul.f32 %v1823, 1.442695
  %v1914 = vpow.pop %v1913
  %v1915 = vmul.f32 %v1824, 1.442695
  %v1916 = vpow.pop %v1915
  %v1917 = vmul.f32 %v1825, 1.442695
  %v1918 = vpow.pop %v1917
  %v1919 = vmul.f32 %v1826, 1.442695
  %v1920 = vpow.pop %v1919
  %v1921 = vmul.f32 %v1827, 1.442695
  %v1922 = vpow.pop %v1921
  %v1923 = vmul.f32 %v1828, 1.442695
  %v1924 = vpow.pop %v1923
  %v1925 = vmul.f32 %v1829, 1.442695
  %v1926 = vpow.pop %v1925
  %v1927 = vmul.f32 %v1830, 1.442695
  %v1928 = vpow.pop %v1927
  %v1929 = vmul.f32 %v1831, 1.442695
  %v1930 = vpow.pop %v1929
  %v1931 = vmul.f32 %v1832, 1.442695
  %v1932 = vpow.pop %v1931
  %v1933 = vmul.f32 %v1833, 1.442695
  %v1934 = vpow.pop %v1933
  %v1935 = vmul.f32 %v1834, 1.442695
  %v1936 = vpow.pop %v1935
  %v1937 = vmul.f32 %v1835, 1.442695
  %v1938 = vpow.pop %v1937
  %v1939 = vmul.f32 %v1836, 1.442695
  %v1940 = vpow.pop %v1939
  %v1941 = vmul.f32 %v1837, 1.442695
  %v1942 = vpow.pop %v1941
  %v1943 = vmul.f32 %v1838, 1.442695
  %v1944 = vpow.pop %v1943
  %v1945 = vmul.f32 %v1839, 1.442695
  %v1946 = vpow.pop %v1945
  %v1947 = vmul.f32 %v1840, 1.442695
  %v1948 = vpow.pop %v1947
  %v1949 = vmul.f32 %v1841, 1.442695
  %v1950 = vpow.pop %v1949
  %v1951 = vmul.f32 %v1842, 1.442695
  %v1952 = vpow.pop %v1951
  %v1953 = vmul.f32 %v1843, 1.442695
  %v1954 = vpow.pop %v1953
  %v1955 = vmul.f32 %v1844, 1.442695
  %v1956 = vpow.pop %v1955
  %v1957 = vmul.f32 %v1845, 1.442695
  %v1958 = vpow.pop %v1957
  %v1959 = vmul.f32 %v1846, 1.442695
  %v1960 = vpow.pop %v1959
  %v1961 = vmul.f32 %v1847, 1.442695
  %v1962 = vpow.pop %v1961
  %v1963 = vmul.f32 %v1848, 1.442695
  %v1964 = vpow.pop %v1963
  %v1965 = vmul.f32 %v1849, 1.442695
  %v1966 = vpow.pop %v1965
  %v1967 = vmul.f32 %v1850, 1.442695
  %v1968 = vpow.pop %v1967
  %v1969 = vmul.f32 %v1851, 1.442695
  %v1970 = vpow.pop %v1969
  %v1971 = vmul.f32 %v1852, 1.442695
  %v1972 = vpow.pop %v1971
  %v1973 = vmul.f32 %v1853, 1.442695
  %v1974 = vpow.pop %v1973
  %v1975 = vmul.f32 %v1854, 1.442695
  %v1976 = vpow.pop %v1975
  %v1977 = vmul.f32 %v1855, 1.442695
  %v1978 = vpow.pop %v1977
  %v1979 = vmul.f32 %v1856, 1.442695
  %v1980 = vpow.pop %v1979
  %v1981 = vmul.f32 %v1857, 1.442695
  %v1982 = vpow.pop %v1981
  %v1983 = vmul.f32 %v1858, 1.442695
  %v1984 = vpow.pop %v1983
  %v1985 = vmul.f32 %v1859, 1.442695
  %v1986 = vpow.pop %v1985
  %v1987 = vmul.f32 %v1860, 1.442695
  %v1988 = vpow.pop %v1987
  %v1989 = vmul.f32 %v1669, %v1862
  %v1990 = vmul.f32 %v1670, %v1864
  %v1991 = vmul.f32 %v1671, %v1866
  %v1992 = vmul.f32 %v1672, %v1868
  %v1993 = vmul.f32 %v1673, %v1870
  %v1994 = vmul.f32 %v1674, %v1872
  %v1995 = vmul.f32 %v1675, %v1874
  %v1996 = vmul.f32 %v1676, %v1876
  %v1997 = vmul.f32 %v1677, %v1878
  %v1998 = vmul.f32 %v1678, %v1880
  %v1999 = vmul.f32 %v1679, %v1882
  %v2000 = vmul.f32 %v1680, %v1884
  %v2001 = vmul.f32 %v1681, %v1886
  %v2002 = vmul.f32 %v1682, %v1888
  %v2003 = vmul.f32 %v1683, %v1890
  %v2004 = vmul.f32 %v1684, %v1892
  %v2005 = vmul.f32 %v1685, %v1894
  %v2006 = vmul.f32 %v1686, %v1896
  %v2007 = vmul.f32 %v1687, %v1898
  %v2008 = vmul.f32 %v1688, %v1900
  %v2009 = vmul.f32 %v1689, %v1902
  %v2010 = vmul.f32 %v1690, %v1904
  %v2011 = vmul.f32 %v1691, %v1906
  %v2012 = vmul.f32 %v1692, %v1908
  %v2013 = vmul.f32 %v1693, %v1910
  %v2014 = vmul.f32 %v1694, %v1912
  %v2015 = vmul.f32 %v1695, %v1914
  %v2016 = vmul.f32 %v1696, %v1916
  %v2017 = vmul.f32 %v1697, %v1918
  %v2018 = vmul.f32 %v1698, %v1920
  %v2019 = vmul.f32 %v1699, %v1922
  %v2020 = vmul.f32 %v1700, %v1924
  %v2021 = vmul.f32 %v1701, %v1926
  %v2022 = vmul.f32 %v1702, %v1928
  %v2023 = vmul.f32 %v1703, %v1930
  %v2024 = vmul.f32 %v1704, %v1932
  %v2025 = vmul.f32 %v1705, %v1934
  %v2026 = vmul.f32 %v1706, %v1936
  %v2027 = vmul.f32 %v1707, %v1938
  %v2028 = vmul.f32 %v1708, %v1940
  %v2029 = vmul.f32 %v1709, %v1942
  %v2030 = vmul.f32 %v1710, %v1944
  %v2031 = vmul.f32 %v1711, %v1946
  %v2032 = vmul.f32 %v1712, %v1948
  %v2033 = vmul.f32 %v1713, %v1950
  %v2034 = vmul.f32 %v1714, %v1952
  %v2035 = vmul.f32 %v1715, %v1954
  %v2036 = vmul.f32 %v1716, %v1956
  %v2037 = vmul.f32 %v1717, %v1958
  %v2038 = vmul.f32 %v1718, %v1960
  %v2039 = vmul.f32 %v1719, %v1962
  %v2040 = vmul.f32 %v1720, %v1964
  %v2041 = vmul.f32 %v1721, %v1966
  %v2042 = vmul.f32 %v1722, %v1968
  %v2043 = vmul.f32 %v1723, %v1970
  %v2044 = vmul.f32 %v1724, %v1972
  %v2045 = vmul.f32 %v1725, %v1974
  %v2046 = vmul.f32 %v1726, %v1976
  %v2047 = vmul.f32 %v1727, %v1978
  %v2048 = vmul.f32 %v1728, %v1980
  %v2049 = vmul.f32 %v1729, %v1982
  %v2050 = vmul.f32 %v1730, %v1984
  %v2051 = vmul.f32 %v1731, %v1986
  %v2052 = vmul.f32 %v1732, %v1988
  %v2053 = vsub.f32 1.0, %v1989
  %v2054 = vsub.f32 1.0, %v1990
  %v2055 = vsub.f32 1.0, %v1991
  %v2056 = vsub.f32 1.0, %v1992
  %v2057 = vsub.f32 1.0, %v1993
  %v2058 = vsub.f32 1.0, %v1994
  %v2059 = vsub.f32 1.0, %v1995
  %v2060 = vsub.f32 1.0, %v1996
  %v2061 = vsub.f32 1.0, %v1997
  %v2062 = vsub.f32 1.0, %v1998
  %v2063 = vsub.f32 1.0, %v1999
  %v2064 = vsub.f32 1.0, %v2000
  %v2065 = vsub.f32 1.0, %v2001
  %v2066 = vsub.f32 1.0, %v2002
  %v2067 = vsub.f32 1.0, %v2003
  %v2068 = vsub.f32 1.0, %v2004
  %v2069 = vsub.f32 1.0, %v2005
  %v2070 = vsub.f32 1.0, %v2006
  %v2071 = vsub.f32 1.0, %v2007
  %v2072 = vsub.f32 1.0, %v2008
  %v2073 = vsub.f32 1.0, %v2009
  %v2074 = vsub.f32 1.0, %v2010
  %v2075 = vsub.f32 1.0, %v2011
  %v2076 = vsub.f32 1.0, %v2012
  %v2077 = vsub.f32 1.0, %v2013
  %v2078 = vsub.f32 1.0, %v2014
  %v2079 = vsub.f32 1.0, %v2015
  %v2080 = vsub.f32 1.0, %v2016
  %v2081 = vsub.f32 1.0, %v2017
  %v2082 = vsub.f32 1.0, %v2018
  %v2083 = vsub.f32 1.0, %v2019
  %v2084 = vsub.f32 1.0, %v2020
  %v2085 = vsub.f32 1.0, %v2021
  %v2086 = vsub.f32 1.0, %v2022
  %v2087 = vsub.f32 1.0, %v2023
  %v2088 = vsub.f32 1.0, %v2024
  %v2089 = vsub.f32 1.0, %v2025
  %v2090 = vsub.f32 1.0, %v2026
  %v2091 = vsub.f32 1.0, %v2027
  %v2092 = vsub.f32 1.0, %v2028
  %v2093 = vsub.f32 1.0, %v2029
  %v2094 = vsub.f32 1.0, %v2030
  %v2095 = vsub.f32 1.0, %v2031
  %v2096 = vsub.f32 1.0, %v2032
  %v2097 = vsub.f32 1.0, %v2033
  %v2098 = vsub.f32 1.0, %v2034
  %v2099 = vsub.f32 1.0, %v2035
  %v2100 = vsub.f32 1.0, %v2036
  %v2101 = vsub.f32 1.0, %v2037
  %v2102 = vsub.f32 1.0, %v2038
  %v2103 = vsub.f32 1.0, %v2039
  %v2104 = vsub.f32 1.0, %v2040
  %v2105 = vsub.f32 1.0, %v2041
  %v2106 = vsub.f32 1.0, %v2042
  %v2107 = vsub.f32 1.0, %v2043
  %v2108 = vsub.f32 1.0, %v2044
  %v2109 = vsub.f32 1.0, %v2045
  %v2110 = vsub.f32 1.0, %v2046
  %v2111 = vsub.f32 1.0, %v2047
  %v2112 = vsub.f32 1.0, %v2048
  %v2113 = vsub.f32 1.0, %v2049
  %v2114 = vsub.f32 1.0, %v2050
  %v2115 = vsub.f32 1.0, %v2051
  %v2116 = vsub.f32 1.0, %v2052
  %vm2117 = vcmp.ge.f32.partialorder %v773, 0.0
  %vm2118 = vcmp.ge.f32.partialorder %v774, 0.0
  %vm2119 = vcmp.ge.f32.partialorder %v775, 0.0
  %vm2120 = vcmp.ge.f32.partialorder %v776, 0.0
  %vm2121 = vcmp.ge.f32.partialorder %v777, 0.0
  %vm2122 = vcmp.ge.f32.partialorder %v778, 0.0
  %vm2123 = vcmp.ge.f32.partialorder %v779, 0.0
  %vm2124 = vcmp.ge.f32.partialorder %v780, 0.0
  %vm2125 = vcmp.ge.f32.partialorder %v781, 0.0
  %vm2126 = vcmp.ge.f32.partialorder %v782, 0.0
  %vm2127 = vcmp.ge.f32.partialorder %v783, 0.0
  %vm2128 = vcmp.ge.f32.partialorder %v784, 0.0
  %vm2129 = vcmp.ge.f32.partialorder %v785, 0.0
  %vm2130 = vcmp.ge.f32.partialorder %v786, 0.0
  %vm2131 = vcmp.ge.f32.partialorder %v787, 0.0
  %vm2132 = vcmp.ge.f32.partialorder %v788, 0.0
  %vm2133 = vcmp.ge.f32.partialorder %v789, 0.0
  %vm2134 = vcmp.ge.f32.partialorder %v790, 0.0
  %vm2135 = vcmp.ge.f32.partialorder %v791, 0.0
  %vm2136 = vcmp.ge.f32.partialorder %v792, 0.0
  %vm2137 = vcmp.ge.f32.partialorder %v793, 0.0
  %vm2138 = vcmp.ge.f32.partialorder %v794, 0.0
  %vm2139 = vcmp.ge.f32.partialorder %v795, 0.0
  %vm2140 = vcmp.ge.f32.partialorder %v796, 0.0
  %vm2141 = vcmp.ge.f32.partialorder %v797, 0.0
  %vm2142 = vcmp.ge.f32.partialorder %v798, 0.0
  %vm2143 = vcmp.ge.f32.partialorder %v799, 0.0
  %vm2144 = vcmp.ge.f32.partialorder %v800, 0.0
  %vm2145 = vcmp.ge.f32.partialorder %v801, 0.0
  %vm2146 = vcmp.ge.f32.partialorder %v802, 0.0
  %vm2147 = vcmp.ge.f32.partialorder %v803, 0.0
  %vm2148 = vcmp.ge.f32.partialorder %v804, 0.0
  %vm2149 = vcmp.ge.f32.partialorder %v805, 0.0
  %vm2150 = vcmp.ge.f32.partialorder %v806, 0.0
  %vm2151 = vcmp.ge.f32.partialorder %v807, 0.0
  %vm2152 = vcmp.ge.f32.partialorder %v808, 0.0
  %vm2153 = vcmp.ge.f32.partialorder %v809, 0.0
  %vm2154 = vcmp.ge.f32.partialorder %v810, 0.0
  %vm2155 = vcmp.ge.f32.partialorder %v811, 0.0
  %vm2156 = vcmp.ge.f32.partialorder %v812, 0.0
  %vm2157 = vcmp.ge.f32.partialorder %v813, 0.0
  %vm2158 = vcmp.ge.f32.partialorder %v814, 0.0
  %vm2159 = vcmp.ge.f32.partialorder %v815, 0.0
  %vm2160 = vcmp.ge.f32.partialorder %v816, 0.0
  %vm2161 = vcmp.ge.f32.partialorder %v817, 0.0
  %vm2162 = vcmp.ge.f32.partialorder %v818, 0.0
  %vm2163 = vcmp.ge.f32.partialorder %v819, 0.0
  %vm2164 = vcmp.ge.f32.partialorder %v820, 0.0
  %vm2165 = vcmp.ge.f32.partialorder %v821, 0.0
  %vm2166 = vcmp.ge.f32.partialorder %v822, 0.0
  %vm2167 = vcmp.ge.f32.partialorder %v823, 0.0
  %vm2168 = vcmp.ge.f32.partialorder %v824, 0.0
  %vm2169 = vcmp.ge.f32.partialorder %v825, 0.0
  %vm2170 = vcmp.ge.f32.partialorder %v826, 0.0
  %vm2171 = vcmp.ge.f32.partialorder %v827, 0.0
  %vm2172 = vcmp.ge.f32.partialorder %v828, 0.0
  %vm2173 = vcmp.ge.f32.partialorder %v829, 0.0
  %vm2174 = vcmp.ge.f32.partialorder %v830, 0.0
  %vm2175 = vcmp.ge.f32.partialorder %v831, 0.0
  %vm2176 = vcmp.ge.f32.partialorder %v832, 0.0
  %vm2177 = vcmp.ge.f32.partialorder %v833, 0.0
  %vm2178 = vcmp.ge.f32.partialorder %v834, 0.0
  %vm2179 = vcmp.ge.f32.partialorder %v835, 0.0
  %vm2180 = vcmp.ge.f32.partialorder %v836, 0.0
  %v2181 = vsub.f32 0.0, %v2053
  %v2182 = vsub.f32 0.0, %v2054
  %v2183 = vsub.f32 0.0, %v2055
  %v2184 = vsub.f32 0.0, %v2056
  %v2185 = vsub.f32 0.0, %v2057
  %v2186 = vsub.f32 0.0, %v2058
  %v2187 = vsub.f32 0.0, %v2059
  %v2188 = vsub.f32 0.0, %v2060
  %v2189 = vsub.f32 0.0, %v2061
  %v2190 = vsub.f32 0.0, %v2062
  %v2191 = vsub.f32 0.0, %v2063
  %v2192 = vsub.f32 0.0, %v2064
  %v2193 = vsub.f32 0.0, %v2065
  %v2194 = vsub.f32 0.0, %v2066
  %v2195 = vsub.f32 0.0, %v2067
  %v2196 = vsub.f32 0.0, %v2068
  %v2197 = vsub.f32 0.0, %v2069
  %v2198 = vsub.f32 0.0, %v2070
  %v2199 = vsub.f32 0.0, %v2071
  %v2200 = vsub.f32 0.0, %v2072
  %v2201 = vsub.f32 0.0, %v2073
  %v2202 = vsub.f32 0.0, %v2074
  %v2203 = vsub.f32 0.0, %v2075
  %v2204 = vsub.f32 0.0, %v2076
  %v2205 = vsub.f32 0.0, %v2077
  %v2206 = vsub.f32 0.0, %v2078
  %v2207 = vsub.f32 0.0, %v2079
  %v2208 = vsub.f32 0.0, %v2080
  %v2209 = vsub.f32 0.0, %v2081
  %v2210 = vsub.f32 0.0, %v2082
  %v2211 = vsub.f32 0.0, %v2083
  %v2212 = vsub.f32 0.0, %v2084
  %v2213 = vsub.f32 0.0, %v2085
  %v2214 = vsub.f32 0.0, %v2086
  %v2215 = vsub.f32 0.0, %v2087
  %v2216 = vsub.f32 0.0, %v2088
  %v2217 = vsub.f32 0.0, %v2089
  %v2218 = vsub.f32 0.0, %v2090
  %v2219 = vsub.f32 0.0, %v2091
  %v2220 = vsub.f32 0.0, %v2092
  %v2221 = vsub.f32 0.0, %v2093
  %v2222 = vsub.f32 0.0, %v2094
  %v2223 = vsub.f32 0.0, %v2095
  %v2224 = vsub.f32 0.0, %v2096
  %v2225 = vsub.f32 0.0, %v2097
  %v2226 = vsub.f32 0.0, %v2098
  %v2227 = vsub.f32 0.0, %v2099
  %v2228 = vsub.f32 0.0, %v2100
  %v2229 = vsub.f32 0.0, %v2101
  %v2230 = vsub.f32 0.0, %v2102
  %v2231 = vsub.f32 0.0, %v2103
  %v2232 = vsub.f32 0.0, %v2104
  %v2233 = vsub.f32 0.0, %v2105
  %v2234 = vsub.f32 0.0, %v2106
  %v2235 = vsub.f32 0.0, %v2107
  %v2236 = vsub.f32 0.0, %v2108
  %v2237 = vsub.f32 0.0, %v2109
  %v2238 = vsub.f32 0.0, %v2110
  %v2239 = vsub.f32 0.0, %v2111
  %v2240 = vsub.f32 0.0, %v2112
  %v2241 = vsub.f32 0.0, %v2113
  %v2242 = vsub.f32 0.0, %v2114
  %v2243 = vsub.f32 0.0, %v2115
  %v2244 = vsub.f32 0.0, %v2116
  %v2245 = vsel %vm2117, %v2053, %v2181
  %v2246 = vsel %vm2118, %v2054, %v2182
  %v2247 = vsel %vm2119, %v2055, %v2183
  %v2248 = vsel %vm2120, %v2056, %v2184
  %v2249 = vsel %vm2121, %v2057, %v2185
  %v2250 = vsel %vm2122, %v2058, %v2186
  %v2251 = vsel %vm2123, %v2059, %v2187
  %v2252 = vsel %vm2124, %v2060, %v2188
  %v2253 = vsel %vm2125, %v2061, %v2189
  %v2254 = vsel %vm2126, %v2062, %v2190
  %v2255 = vsel %vm2127, %v2063, %v2191
  %v2256 = vsel %vm2128, %v2064, %v2192
  %v2257 = vsel %vm2129, %v2065, %v2193
  %v2258 = vsel %vm2130, %v2066, %v2194
  %v2259 = vsel %vm2131, %v2067, %v2195
  %v2260 = vsel %vm2132, %v2068, %v2196
  %v2261 = vsel %vm2133, %v2069, %v2197
  %v2262 = vsel %vm2134, %v2070, %v2198
  %v2263 = vsel %vm2135, %v2071, %v2199
  %v2264 = vsel %vm2136, %v2072, %v2200
  %v2265 = vsel %vm2137, %v2073, %v2201
  %v2266 = vsel %vm2138, %v2074, %v2202
  %v2267 = vsel %vm2139, %v2075, %v2203
  %v2268 = vsel %vm2140, %v2076, %v2204
  %v2269 = vsel %vm2141, %v2077, %v2205
  %v2270 = vsel %vm2142, %v2078, %v2206
  %v2271 = vsel %vm2143, %v2079, %v2207
  %v2272 = vsel %vm2144, %v2080, %v2208
  %v2273 = vsel %vm2145, %v2081, %v2209
  %v2274 = vsel %vm2146, %v2082, %v2210
  %v2275 = vsel %vm2147, %v2083, %v2211
  %v2276 = vsel %vm2148, %v2084, %v2212
  %v2277 = vsel %vm2149, %v2085, %v2213
  %v2278 = vsel %vm2150, %v2086, %v2214
  %v2279 = vsel %vm2151, %v2087, %v2215
  %v2280 = vsel %vm2152, %v2088, %v2216
  %v2281 = vsel %vm2153, %v2089, %v2217
  %v2282 = vsel %vm2154, %v2090, %v2218
  %v2283 = vsel %vm2155, %v2091, %v2219
  %v2284 = vsel %vm2156, %v2092, %v2220
  %v2285 = vsel %vm2157, %v2093, %v2221
  %v2286 = vsel %vm2158, %v2094, %v2222
  %v2287 = vsel %vm2159, %v2095, %v2223
  %v2288 = vsel %vm2160, %v2096, %v2224
  %v2289 = vsel %vm2161, %v2097, %v2225
  %v2290 = vsel %vm2162, %v2098, %v2226
  %v2291 = vsel %vm2163, %v2099, %v2227
  %v2292 = vsel %vm2164, %v2100, %v2228
  %v2293 = vsel %vm2165, %v2101, %v2229
  %v2294 = vsel %vm2166, %v2102, %v2230
  %v2295 = vsel %vm2167, %v2103, %v2231
  %v2296 = vsel %vm2168, %v2104, %v2232
  %v2297 = vsel %vm2169, %v2105, %v2233
  %v2298 = vsel %vm2170, %v2106, %v2234
  %v2299 = vsel %vm2171, %v2107, %v2235
  %v2300 = vsel %vm2172, %v2108, %v2236
  %v2301 = vsel %vm2173, %v2109, %v2237
  %v2302 = vsel %vm2174, %v2110, %v2238
  %v2303 = vsel %vm2175, %v2111, %v2239
  %v2304 = vsel %vm2176, %v2112, %v2240
  %v2305 = vsel %vm2177, %v2113, %v2241
  %v2306 = vsel %vm2178, %v2114, %v2242
  %v2307 = vsel %vm2179, %v2115, %v2243
  %v2308 = vsel %vm2180, %v2116, %v2244
  %v2309 = vmul.f32 %v582, 0.5
  %v2310 = vmul.f32 %v584, 0.5
  %v2311 = vmul.f32 %v695, 0.5
  %v2312 = vmul.f32 %v697, 0.5
  %v2313 = vmul.f32 %v586, 0.5
  %v2314 = vmul.f32 %v588, 0.5
  %v2315 = vmul.f32 %v699, 0.5
  %v2316 = vmul.f32 %v701, 0.5
  %v2317 = vmul.f32 %v592, 0.5
  %v2318 = vmul.f32 %v594, 0.5
  %v2319 = vmul.f32 %v705, 0.5
  %v2320 = vmul.f32 %v707, 0.5
  %v2321 = vmul.f32 %v596, 0.5
  %v2322 = vmul.f32 %v598, 0.5
  %v2323 = vmul.f32 %v709, 0.5
  %v2324 = vmul.f32 %v711, 0.5
  %v2325 = vmul.f32 %v602, 0.5
  %v2326 = vmul.f32 %v604, 0.5
  %v2327 = vmul.f32 %v715, 0.5
  %v2328 = vmul.f32 %v717, 0.5
  %v2329 = vmul.f32 %v606, 0.5
  %v2330 = vmul.f32 %v608, 0.5
  %v2331 = vmul.f32 %v719, 0.5
  %v2332 = vmul.f32 %v721, 0.5
  %v2333 = vmul.f32 %v612, 0.5
  %v2334 = vmul.f32 %v614, 0.5
  %v2335 = vmul.f32 %v725, 0.5
  %v2336 = vmul.f32 %v727, 0.5
  %v2337 = vmul.f32 %v616, 0.5
  %v2338 = vmul.f32 %v618, 0.5
  %v2339 = vmul.f32 %v729, 0.5
  %v2340 = vmul.f32 %v731, 0.5
  %v2341 = vmul.f32 %v622, 0.5
  %v2342 = vmul.f32 %v624, 0.5
  %v2343 = vmul.f32 %v735, 0.5
  %v2344 = vmul.f32 %v737, 0.5
  %v2345 = vmul.f32 %v626, 0.5
  %v2346 = vmul.f32 %v628, 0.5
  %v2347 = vmul.f32 %v739, 0.5
  %v2348 = vmul.f32 %v741, 0.5
  %v2349 = vmul.f32 %v632, 0.5
  %v2350 = vmul.f32 %v634, 0.5
  %v2351 = vmul.f32 %v745, 0.5
  %v2352 = vmul.f32 %v747, 0.5
  %v2353 = vmul.f32 %v636, 0.5
  %v2354 = vmul.f32 %v638, 0.5
  %v2355 = vmul.f32 %v749, 0.5
  %v2356 = vmul.f32 %v751, 0.5
  %v2357 = vmul.f32 %v642, 0.5
  %v2358 = vmul.f32 %v644, 0.5
  %v2359 = vmul.f32 %v755, 0.5
  %v2360 = vmul.f32 %v757, 0.5
  %v2361 = vmul.f32 %v646, 0.5
  %v2362 = vmul.f32 %v648, 0.5
  %v2363 = vmul.f32 %v759, 0.5
  %v2364 = vmul.f32 %v761, 0.5
  %v2365 = vmul.f32 %v652, 0.5
  %v2366 = vmul.f32 %v654, 0.5
  %v2367 = vmul.f32 %v765, 0.5
  %v2368 = vmul.f32 %v767, 0.5
  %v2369 = vmul.f32 %v656, 0.5
  %v2370 = vmul.f32 %v658, 0.5
  %v2371 = vmul.f32 %v769, 0.5
  %v2372 = vmul.f32 %v771, 0.5
  %v2373 = vadd.f32 %v2245, 1.0
  %v2374 = vadd.f32 %v2246, 1.0
  %v2375 = vadd.f32 %v2247, 1.0
  %v2376 = vadd.f32 %v2248, 1.0
  %v2377 = vadd.f32 %v2249, 1.0
  %v2378 = vadd.f32 %v2250, 1.0
  %v2379 = vadd.f32 %v2251, 1.0
  %v2380 = vadd.f32 %v2252, 1.0
  %v2381 = vadd.f32 %v2253, 1.0
  %v2382 = vadd.f32 %v2254, 1.0
  %v2383 = vadd.f32 %v2255, 1.0
  %v2384 = vadd.f32 %v2256, 1.0
  %v2385 = vadd.f32 %v2257, 1.0
  %v2386 = vadd.f32 %v2258, 1.0
  %v2387 = vadd.f32 %v2259, 1.0
  %v2388 = vadd.f32 %v2260, 1.0
  %v2389 = vadd.f32 %v2261, 1.0
  %v2390 = vadd.f32 %v2262, 1.0
  %v2391 = vadd.f32 %v2263, 1.0
  %v2392 = vadd.f32 %v2264, 1.0
  %v2393 = vadd.f32 %v2265, 1.0
  %v2394 = vadd.f32 %v2266, 1.0
  %v2395 = vadd.f32 %v2267, 1.0
  %v2396 = vadd.f32 %v2268, 1.0
  %v2397 = vadd.f32 %v2269, 1.0
  %v2398 = vadd.f32 %v2270, 1.0
  %v2399 = vadd.f32 %v2271, 1.0
  %v2400 = vadd.f32 %v2272, 1.0
  %v2401 = vadd.f32 %v2273, 1.0
  %v2402 = vadd.f32 %v2274, 1.0
  %v2403 = vadd.f32 %v2275, 1.0
  %v2404 = vadd.f32 %v2276, 1.0
  %v2405 = vadd.f32 %v2277, 1.0
  %v2406 = vadd.f32 %v2278, 1.0
  %v2407 = vadd.f32 %v2279, 1.0
  %v2408 = vadd.f32 %v2280, 1.0
  %v2409 = vadd.f32 %v2281, 1.0
  %v2410 = vadd.f32 %v2282, 1.0
  %v2411 = vadd.f32 %v2283, 1.0
  %v2412 = vadd.f32 %v2284, 1.0
  %v2413 = vadd.f32 %v2285, 1.0
  %v2414 = vadd.f32 %v2286, 1.0
  %v2415 = vadd.f32 %v2287, 1.0
  %v2416 = vadd.f32 %v2288, 1.0
  %v2417 = vadd.f32 %v2289, 1.0
  %v2418 = vadd.f32 %v2290, 1.0
  %v2419 = vadd.f32 %v2291, 1.0
  %v2420 = vadd.f32 %v2292, 1.0
  %v2421 = vadd.f32 %v2293, 1.0
  %v2422 = vadd.f32 %v2294, 1.0
  %v2423 = vadd.f32 %v2295, 1.0
  %v2424 = vadd.f32 %v2296, 1.0
  %v2425 = vadd.f32 %v2297, 1.0
  %v2426 = vadd.f32 %v2298, 1.0
  %v2427 = vadd.f32 %v2299, 1.0
  %v2428 = vadd.f32 %v2300, 1.0
  %v2429 = vadd.f32 %v2301, 1.0
  %v2430 = vadd.f32 %v2302, 1.0
  %v2431 = vadd.f32 %v2303, 1.0
  %v2432 = vadd.f32 %v2304, 1.0
  %v2433 = vadd.f32 %v2305, 1.0
  %v2434 = vadd.f32 %v2306, 1.0
  %v2435 = vadd.f32 %v2307, 1.0
  %v2436 = vadd.f32 %v2308, 1.0
  %v2437 = vmul.f32 %v2309, %v2373
  %v2438 = vmul.f32 %v2310, %v2374
  %v2439 = vmul.f32 %v2311, %v2375
  %v2440 = vmul.f32 %v2312, %v2376
  %v2441 = vmul.f32 %v2313, %v2377
  %v2442 = vmul.f32 %v2314, %v2378
  %v2443 = vmul.f32 %v2315, %v2379
  %v2444 = vmul.f32 %v2316, %v2380
  %v2445 = vmul.f32 %v2317, %v2381
  %v2446 = vmul.f32 %v2318, %v2382
  %v2447 = vmul.f32 %v2319, %v2383
  %v2448 = vmul.f32 %v2320, %v2384
  %v2449 = vmul.f32 %v2321, %v2385
  %v2450 = vmul.f32 %v2322, %v2386
  %v2451 = vmul.f32 %v2323, %v2387
  %v2452 = vmul.f32 %v2324, %v2388
  %v2453 = vmul.f32 %v2325, %v2389
  %v2454 = vmul.f32 %v2326, %v2390
  %v2455 = vmul.f32 %v2327, %v2391
  %v2456 = vmul.f32 %v2328, %v2392
  %v2457 = vmul.f32 %v2329, %v2393
  %v2458 = vmul.f32 %v2330, %v2394
  %v2459 = vmul.f32 %v2331, %v2395
  %v2460 = vmul.f32 %v2332, %v2396
  %v2461 = vmul.f32 %v2333, %v2397
  %v2462 = vmul.f32 %v2334, %v2398
  %v2463 = vmul.f32 %v2335, %v2399
  %v2464 = vmul.f32 %v2336, %v2400
  %v2465 = vmul.f32 %v2337, %v2401
  %v2466 = vmul.f32 %v2338, %v2402
  %v2467 = vmul.f32 %v2339, %v2403
  %v2468 = vmul.f32 %v2340, %v2404
  %v2469 = vmul.f32 %v2341, %v2405
  %v2470 = vmul.f32 %v2342, %v2406
  %v2471 = vmul.f32 %v2343, %v2407
  %v2472 = vmul.f32 %v2344, %v2408
  %v2473 = vmul.f32 %v2345, %v2409
  %v2474 = vmul.f32 %v2346, %v2410
  %v2475 = vmul.f32 %v2347, %v2411
  %v2476 = vmul.f32 %v2348, %v2412
  %v2477 = vmul.f32 %v2349, %v2413
  %v2478 = vmul.f32 %v2350, %v2414
  %v2479 = vmul.f32 %v2351, %v2415
  %v2480 = vmul.f32 %v2352, %v2416
  %v2481 = vmul.f32 %v2353, %v2417
  %v2482 = vmul.f32 %v2354, %v2418
  %v2483 = vmul.f32 %v2355, %v2419
  %v2484 = vmul.f32 %v2356, %v2420
  %v2485 = vmul.f32 %v2357, %v2421
  %v2486 = vmul.f32 %v2358, %v2422
  %v2487 = vmul.f32 %v2359, %v2423
  %v2488 = vmul.f32 %v2360, %v2424
  %v2489 = vmul.f32 %v2361, %v2425
  %v2490 = vmul.f32 %v2362, %v2426
  %v2491 = vmul.f32 %v2363, %v2427
  %v2492 = vmul.f32 %v2364, %v2428
  %v2493 = vmul.f32 %v2365, %v2429
  %v2494 = vmul.f32 %v2366, %v2430
  %v2495 = vmul.f32 %v2367, %v2431
  %v2496 = vmul.f32 %v2368, %v2432
  %v2497 = vmul.f32 %v2369, %v2433
  %v2498 = vmul.f32 %v2370, %v2434
  %v2499 = vmul.f32 %v2371, %v2435
  %v2500 = vmul.f32 %v2372, %v2436
  %v2501 = vld [vmem:[%s7] sm:$0xff]
  %v2502 = vld [vmem:[%s7 + $0x8] sm:$0xff]
  %v2503 = vld [vmem:[%s7 + $0x10] sm:$0xff]
  %v2504 = vld [vmem:[%s7 + $0x18] sm:$0xff]
  %v2505 = vld [vmem:[%s7 + $0x20] sm:$0xff]
  %v2506 = vld [vmem:[%s7 + $0x28] sm:$0xff]
  %v2507 = vld [vmem:[%s7 + $0x30] sm:$0xff]
  %v2508 = vld [vmem:[%s7 + $0x38] sm:$0xff]
  %v2509 = vld [vmem:[%s7 + $0x40] sm:$0xff]
  %v2510 = vld [vmem:[%s7 + $0x48] sm:$0xff]
  %v2511 = vld [vmem:[%s7 + $0x50] sm:$0xff]
  %v2512 = vld [vmem:[%s7 + $0x58] sm:$0xff]
  %v2513 = vld [vmem:[%s7 + $0x60] sm:$0xff]
  %v2514 = vld [vmem:[%s7 + $0x68] sm:$0xff]
  %v2515 = vld [vmem:[%s7 + $0x70] sm:$0xff]
  %v2516 = vld [vmem:[%s7 + $0x78] sm:$0xff]
  %v2517 = vpack.c.bf16 %v2441, %v2437
  %v2518 = vpack.c.bf16 %v2442, %v2438
  %v2519 = vpack.c.bf16 %v2443, %v2439
  %v2520 = vpack.c.bf16 %v2444, %v2440
  %v2521 = vpack.c.bf16 %v2449, %v2445
  %v2522 = vpack.c.bf16 %v2450, %v2446
  %v2523 = vpack.c.bf16 %v2451, %v2447
  %v2524 = vpack.c.bf16 %v2452, %v2448
  %v2525 = vpack.c.bf16 %v2457, %v2453
  %v2526 = vpack.c.bf16 %v2458, %v2454
  %v2527 = vpack.c.bf16 %v2459, %v2455
  %v2528 = vpack.c.bf16 %v2460, %v2456
  %v2529 = vpack.c.bf16 %v2465, %v2461
  %v2530 = vpack.c.bf16 %v2466, %v2462
  %v2531 = vpack.c.bf16 %v2467, %v2463
  %v2532 = vpack.c.bf16 %v2468, %v2464
  %v2533 = vpack.c.bf16 %v2473, %v2469
  %v2534 = vpack.c.bf16 %v2474, %v2470
  %v2535 = vpack.c.bf16 %v2475, %v2471
  %v2536 = vpack.c.bf16 %v2476, %v2472
  %v2537 = vpack.c.bf16 %v2481, %v2477
  %v2538 = vpack.c.bf16 %v2482, %v2478
  %v2539 = vpack.c.bf16 %v2483, %v2479
  %v2540 = vpack.c.bf16 %v2484, %v2480
  %v2541 = vpack.c.bf16 %v2489, %v2485
  %v2542 = vpack.c.bf16 %v2490, %v2486
  %v2543 = vpack.c.bf16 %v2491, %v2487
  %v2544 = vpack.c.bf16 %v2492, %v2488
  %v2545 = vpack.c.bf16 %v2497, %v2493
  %v2546 = vpack.c.bf16 %v2498, %v2494
  %v2547 = vpack.c.bf16 %v2499, %v2495
  %v2548 = vpack.c.bf16 %v2500, %v2496
  %v2549 = vld [vmem:[%s5] sm:$0xf]
  %v2550 = vld [vmem:[%s5 + $0x4] sm:$0xf]
  %v2551 = vld [vmem:[%s5 + $0x8] sm:$0xf]
  %v2552 = vld [vmem:[%s5 + $0xc] sm:$0xf]
  %v2553 = vld [vmem:[%s5 + $0x10] sm:$0xf]
  %v2554 = vld [vmem:[%s5 + $0x14] sm:$0xf]
  %v2555 = vld [vmem:[%s5 + $0x18] sm:$0xf]
  %v2556 = vld [vmem:[%s5 + $0x1c] sm:$0xf]
  %v2557 = vld [vmem:[%s5 + $0x20] sm:$0xf]
  %v2558 = vld [vmem:[%s5 + $0x24] sm:$0xf]
  %v2559 = vld [vmem:[%s5 + $0x28] sm:$0xf]
  %v2560 = vld [vmem:[%s5 + $0x2c] sm:$0xf]
  %v2561 = vld [vmem:[%s5 + $0x30] sm:$0xf]
  %v2562 = vld [vmem:[%s5 + $0x34] sm:$0xf]
  %v2563 = vld [vmem:[%s5 + $0x38] sm:$0xf]
  %v2564 = vld [vmem:[%s5 + $0x3c] sm:$0xf]
  %v2565 = vld [vmem:[%s5 + $0x40] sm:$0xf]
  %v2566 = vld [vmem:[%s5 + $0x44] sm:$0xf]
  %v2567 = vld [vmem:[%s5 + $0x48] sm:$0xf]
  %v2568 = vld [vmem:[%s5 + $0x4c] sm:$0xf]
  %v2569 = vld [vmem:[%s5 + $0x50] sm:$0xf]
  %v2570 = vld [vmem:[%s5 + $0x54] sm:$0xf]
  %v2571 = vld [vmem:[%s5 + $0x58] sm:$0xf]
  %v2572 = vld [vmem:[%s5 + $0x5c] sm:$0xf]
  %v2573 = vld [vmem:[%s5 + $0x60] sm:$0xf]
  %v2574 = vld [vmem:[%s5 + $0x64] sm:$0xf]
  %v2575 = vld [vmem:[%s5 + $0x68] sm:$0xf]
  %v2576 = vld [vmem:[%s5 + $0x6c] sm:$0xf]
  %v2577 = vld [vmem:[%s5 + $0x70] sm:$0xf]
  %v2578 = vld [vmem:[%s5 + $0x74] sm:$0xf]
  %v2579 = vld [vmem:[%s5 + $0x78] sm:$0xf]
  %v2580 = vld [vmem:[%s5 + $0x7c] sm:$0xf]
  %v2581 = vld [vmem:[%s5 + $0x80] sm:$0xf]
  %v2582 = vld [vmem:[%s5 + $0x84] sm:$0xf]
  %v2583 = vld [vmem:[%s5 + $0x88] sm:$0xf]
  %v2584 = vld [vmem:[%s5 + $0x8c] sm:$0xf]
  %v2585 = vld [vmem:[%s5 + $0x90] sm:$0xf]
  %v2586 = vld [vmem:[%s5 + $0x94] sm:$0xf]
  %v2587 = vld [vmem:[%s5 + $0x98] sm:$0xf]
  %v2588 = vld [vmem:[%s5 + $0x9c] sm:$0xf]
  %v2589 = vld [vmem:[%s5 + $0xa0] sm:$0xf]
  %v2590 = vld [vmem:[%s5 + $0xa4] sm:$0xf]
  %v2591 = vld [vmem:[%s5 + $0xa8] sm:$0xf]
  %v2592 = vld [vmem:[%s5 + $0xac] sm:$0xf]
  %v2593 = vld [vmem:[%s5 + $0xb0] sm:$0xf]
  %v2594 = vld [vmem:[%s5 + $0xb4] sm:$0xf]
  %v2595 = vld [vmem:[%s5 + $0xb8] sm:$0xf]
  %v2596 = vld [vmem:[%s5 + $0xbc] sm:$0xf]
  %v2597 = vld [vmem:[%s5 + $0xc0] sm:$0xf]
  %v2598 = vld [vmem:[%s5 + $0xc4] sm:$0xf]
  %v2599 = vld [vmem:[%s5 + $0xc8] sm:$0xf]
  %v2600 = vld [vmem:[%s5 + $0xcc] sm:$0xf]
  %v2601 = vld [vmem:[%s5 + $0xd0] sm:$0xf]
  %v2602 = vld [vmem:[%s5 + $0xd4] sm:$0xf]
  %v2603 = vld [vmem:[%s5 + $0xd8] sm:$0xf]
  %v2604 = vld [vmem:[%s5 + $0xdc] sm:$0xf]
  %v2605 = vld [vmem:[%s5 + $0xe0] sm:$0xf]
  %v2606 = vld [vmem:[%s5 + $0xe4] sm:$0xf]
  %v2607 = vld [vmem:[%s5 + $0xe8] sm:$0xf]
  %v2608 = vld [vmem:[%s5 + $0xec] sm:$0xf]
  %v2609 = vld [vmem:[%s5 + $0xf0] sm:$0xf]
  %v2610 = vld [vmem:[%s5 + $0xf4] sm:$0xf]
  %v2611 = vld [vmem:[%s5 + $0xf8] sm:$0xf]
  %v2612 = vld [vmem:[%s5 + $0xfc] sm:$0xf]
  %v2677 = vunpack.c.l.b16 %v2549
  %v2678 = vunpack.c.l.b16 %v2550
  %v2679 = vunpack.c.l.b16 %v2551
  %v2680 = vunpack.c.l.b16 %v2552
  %v2681 = vunpack.c.l.b16 %v2553
  %v2682 = vunpack.c.l.b16 %v2554
  %v2683 = vunpack.c.l.b16 %v2555
  %v2684 = vunpack.c.l.b16 %v2556
  %v2685 = vunpack.c.l.b16 %v2557
  %v2686 = vunpack.c.l.b16 %v2558
  %v2687 = vunpack.c.l.b16 %v2559
  %v2688 = vunpack.c.l.b16 %v2560
  %v2689 = vunpack.c.l.b16 %v2561
  %v2690 = vunpack.c.l.b16 %v2562
  %v2691 = vunpack.c.l.b16 %v2563
  %v2692 = vunpack.c.l.b16 %v2564
  %v2693 = vunpack.c.l.b16 %v2565
  %v2694 = vunpack.c.l.b16 %v2566
  %v2695 = vunpack.c.l.b16 %v2567
  %v2696 = vunpack.c.l.b16 %v2568
  %v2697 = vunpack.c.l.b16 %v2569
  %v2698 = vunpack.c.l.b16 %v2570
  %v2699 = vunpack.c.l.b16 %v2571
  %v2700 = vunpack.c.l.b16 %v2572
  %v2701 = vunpack.c.l.b16 %v2573
  %v2702 = vunpack.c.l.b16 %v2574
  %v2703 = vunpack.c.l.b16 %v2575
  %v2704 = vunpack.c.l.b16 %v2576
  %v2705 = vunpack.c.l.b16 %v2577
  %v2706 = vunpack.c.l.b16 %v2578
  %v2707 = vunpack.c.l.b16 %v2579
  %v2708 = vunpack.c.l.b16 %v2580
  %v2709 = vunpack.c.l.b16 %v2581
  %v2710 = vunpack.c.l.b16 %v2582
  %v2711 = vunpack.c.l.b16 %v2583
  %v2712 = vunpack.c.l.b16 %v2584
  %v2713 = vunpack.c.l.b16 %v2585
  %v2714 = vunpack.c.l.b16 %v2586
  %v2715 = vunpack.c.l.b16 %v2587
  %v2716 = vunpack.c.l.b16 %v2588
  %v2717 = vunpack.c.l.b16 %v2589
  %v2718 = vunpack.c.l.b16 %v2590
  %v2719 = vunpack.c.l.b16 %v2591
  %v2720 = vunpack.c.l.b16 %v2592
  %v2721 = vunpack.c.l.b16 %v2593
  %v2722 = vunpack.c.l.b16 %v2594
  %v2723 = vunpack.c.l.b16 %v2595
  %v2724 = vunpack.c.l.b16 %v2596
  %v2725 = vunpack.c.l.b16 %v2597
  %v2726 = vunpack.c.l.b16 %v2598
  %v2727 = vunpack.c.l.b16 %v2599
  %v2728 = vunpack.c.l.b16 %v2600
  %v2729 = vunpack.c.l.b16 %v2601
  %v2730 = vunpack.c.l.b16 %v2602
  %v2731 = vunpack.c.l.b16 %v2603
  %v2732 = vunpack.c.l.b16 %v2604
  %v2733 = vunpack.c.l.b16 %v2605
  %v2734 = vunpack.c.l.b16 %v2606
  %v2735 = vunpack.c.l.b16 %v2607
  %v2736 = vunpack.c.l.b16 %v2608
  %v2737 = vunpack.c.l.b16 %v2609
  %v2738 = vunpack.c.l.b16 %v2610
  %v2739 = vunpack.c.l.b16 %v2611
  %v2740 = vunpack.c.l.b16 %v2612
  %v2741 = vpack.c.b16 %v2678, %v2677
  %v2742 = vpack.c.b16 %v2680, %v2679
  %v2743 = vpack.c.b16 %v2682, %v2681
  %v2744 = vpack.c.b16 %v2684, %v2683
  %v2745 = vpack.c.b16 %v2686, %v2685
  %v2746 = vpack.c.b16 %v2688, %v2687
  %v2747 = vpack.c.b16 %v2690, %v2689
  %v2748 = vpack.c.b16 %v2692, %v2691
  %v2749 = vpack.c.b16 %v2694, %v2693
  %v2750 = vpack.c.b16 %v2696, %v2695
  %v2751 = vpack.c.b16 %v2698, %v2697
  %v2752 = vpack.c.b16 %v2700, %v2699
  %v2753 = vpack.c.b16 %v2702, %v2701
  %v2754 = vpack.c.b16 %v2704, %v2703
  %v2755 = vpack.c.b16 %v2706, %v2705
  %v2756 = vpack.c.b16 %v2708, %v2707
  %v2757 = vpack.c.b16 %v2710, %v2709
  %v2758 = vpack.c.b16 %v2712, %v2711
  %v2759 = vpack.c.b16 %v2714, %v2713
  %v2760 = vpack.c.b16 %v2716, %v2715
  %v2761 = vpack.c.b16 %v2718, %v2717
  %v2762 = vpack.c.b16 %v2720, %v2719
  %v2763 = vpack.c.b16 %v2722, %v2721
  %v2764 = vpack.c.b16 %v2724, %v2723
  %v2765 = vpack.c.b16 %v2726, %v2725
  %v2766 = vpack.c.b16 %v2728, %v2727
  %v2767 = vpack.c.b16 %v2730, %v2729
  %v2768 = vpack.c.b16 %v2732, %v2731
  %v2769 = vpack.c.b16 %v2734, %v2733
  %v2770 = vpack.c.b16 %v2736, %v2735
  %v2771 = vpack.c.b16 %v2738, %v2737
  %v2772 = vpack.c.b16 %v2740, %v2739
  %2805 = vmatprep.subr.bf16.mxu0 0
  %2806 = vmatpush1.bf16.msra.mxu0 %v2741
  %2807 = vmatprep.subr.bf16.mxu0 0
  %2808 = vmatpush1.bf16.msra.mxu0 %v2742
  %2809 = vmatprep.subr.bf16.mxu0 0
  %2810 = vmatpush1.bf16.msra.mxu0 %v2743
  %2811 = vmatprep.subr.bf16.mxu0 0
  %2812 = vmatpush1.bf16.msra.mxu0 %v2744
  %2813 = vmatprep.subr.bf16.mxu0 0
  %2814 = vmatpush1.bf16.msra.mxu0 %v2745
  %2815 = vmatprep.subr.bf16.mxu0 0
  %2816 = vmatpush1.bf16.msra.mxu0 %v2746
  %2817 = vmatprep.subr.bf16.mxu0 0
  %2818 = vmatpush1.bf16.msra.mxu0 %v2747
  %2819 = vmatprep.subr.bf16.mxu0 0
  %2820 = vmatpush1.bf16.msra.mxu0 %v2748
  %2821 = vmatprep.subr.bf16.mxu0 0
  %2822 = vmatpush1.bf16.msra.mxu0 %v2749
  %2823 = vmatprep.subr.bf16.mxu0 0
  %2824 = vmatpush1.bf16.msra.mxu0 %v2750
  %2825 = vmatprep.subr.bf16.mxu0 0
  %2826 = vmatpush1.bf16.msra.mxu0 %v2751
  %2827 = vmatprep.subr.bf16.mxu0 0
  %2828 = vmatpush1.bf16.msra.mxu0 %v2752
  %2829 = vmatprep.subr.bf16.mxu0 0
  %2830 = vmatpush1.bf16.msra.mxu0 %v2753
  %2831 = vmatprep.subr.bf16.mxu0 0
  %2832 = vmatpush1.bf16.msra.mxu0 %v2754
  %2833 = vmatprep.subr.bf16.mxu0 0
  %2834 = vmatpush1.bf16.msra.mxu0 %v2755
  %2835 = vmatprep.subr.bf16.mxu0 0
  %2836 = vmatpush1.bf16.msra.mxu0 %v2756
  %2837 = vmatprep.mubr.bf16.mxu0 %v2518
  %2838 = vmatmul.mubr.bf16.gmra.mrb[0].mxu0 %v2517
  %v2839 = vpop.f32.mrb[0].mxu0
  %v2840 = vadd.f32 0.0, %v2839
  %v2841 = vpop.f32.mrb[0].mxu0
  %v2842 = vpop.f32.mrb[0].mxu0
  %v2843 = vadd.f32 0.0, %v2842
  %v2844 = vpop.f32.mrb[0].mxu0
  %2845 = vmatprep.mubr.bf16.mxu0 %v2522
  %2846 = vmatmul.mubr.bf16.gmra.mrb[0].mxu0 %v2521
  %v2847 = vpop.f32.mrb[0].mxu0
  %v2848 = vadd.f32 0.0, %v2847
  %v2849 = vpop.f32.mrb[0].mxu0
  %v2850 = vpop.f32.mrb[0].mxu0
  %v2851 = vadd.f32 0.0, %v2850
  %v2852 = vpop.f32.mrb[0].mxu0
  %2853 = vmatprep.mubr.bf16.mxu0 %v2526
  %2854 = vmatmul.mubr.bf16.gmra.mrb[0].mxu0 %v2525
  %v2855 = vpop.f32.mrb[0].mxu0
  %v2856 = vadd.f32 0.0, %v2855
  %v2857 = vpop.f32.mrb[0].mxu0
  %v2858 = vpop.f32.mrb[0].mxu0
  %v2859 = vadd.f32 0.0, %v2858
  %v2860 = vpop.f32.mrb[0].mxu0
  %2861 = vmatprep.mubr.bf16.mxu0 %v2530
  %2862 = vmatmul.mubr.bf16.gmra.mrb[0].mxu0 %v2529
  %v2863 = vpop.f32.mrb[0].mxu0
  %v2864 = vadd.f32 0.0, %v2863
  %v2865 = vpop.f32.mrb[0].mxu0
  %v2866 = vpop.f32.mrb[0].mxu0
  %v2867 = vadd.f32 0.0, %v2866
  %v2868 = vpop.f32.mrb[0].mxu0
  %2869 = vmatprep.mubr.bf16.mxu0 %v2534
  %2870 = vmatmul.mubr.bf16.gmra.mrb[0].mxu0 %v2533
  %v2871 = vpop.f32.mrb[0].mxu0
  %v2872 = vadd.f32 0.0, %v2871
  %v2873 = vpop.f32.mrb[0].mxu0
  %v2874 = vpop.f32.mrb[0].mxu0
  %v2875 = vadd.f32 0.0, %v2874
  %v2876 = vpop.f32.mrb[0].mxu0
  %2877 = vmatprep.mubr.bf16.mxu0 %v2538
  %2878 = vmatmul.mubr.bf16.gmra.mrb[0].mxu0 %v2537
  %v2879 = vpop.f32.mrb[0].mxu0
  %v2880 = vadd.f32 0.0, %v2879
  %v2881 = vpop.f32.mrb[0].mxu0
  %v2882 = vpop.f32.mrb[0].mxu0
  %v2883 = vadd.f32 0.0, %v2882
  %v2884 = vpop.f32.mrb[0].mxu0
  %2885 = vmatprep.mubr.bf16.mxu0 %v2542
  %2886 = vmatmul.mubr.bf16.gmra.mrb[0].mxu0 %v2541
  %v2887 = vpop.f32.mrb[0].mxu0
  %v2888 = vadd.f32 0.0, %v2887
  %v2889 = vpop.f32.mrb[0].mxu0
  %v2890 = vpop.f32.mrb[0].mxu0
  %v2891 = vadd.f32 0.0, %v2890
  %v2892 = vpop.f32.mrb[0].mxu0
  %2893 = vmatprep.mubr.bf16.mxu0 %v2546
  %2894 = vmatmul.mubr.bf16.gmra.mrb[0].mxu0 %v2545
  %v2895 = vpop.f32.mrb[0].mxu0
  %v2896 = vadd.f32 0.0, %v2895
  %v2897 = vpop.f32.mrb[0].mxu0
  %v2898 = vpop.f32.mrb[0].mxu0
  %v2899 = vadd.f32 0.0, %v2898
  %v2900 = vpop.f32.mrb[0].mxu0
  %2901 = vdwg.mxu0
  %2902 = vmatprep.subr.bf16.mxu0 0
  %2903 = vmatpush1.bf16.msra.mxu0 %v2757
  %2904 = vmatprep.subr.bf16.mxu0 0
  %2905 = vmatpush1.bf16.msra.mxu0 %v2758
  %2906 = vmatprep.subr.bf16.mxu0 0
  %2907 = vmatpush1.bf16.msra.mxu0 %v2759
  %2908 = vmatprep.subr.bf16.mxu0 0
  %2909 = vmatpush1.bf16.msra.mxu0 %v2760
  %2910 = vmatprep.subr.bf16.mxu0 0
  %2911 = vmatpush1.bf16.msra.mxu0 %v2761
  %2912 = vmatprep.subr.bf16.mxu0 0
  %2913 = vmatpush1.bf16.msra.mxu0 %v2762
  %2914 = vmatprep.subr.bf16.mxu0 0
  %2915 = vmatpush1.bf16.msra.mxu0 %v2763
  %2916 = vmatprep.subr.bf16.mxu0 0
  %2917 = vmatpush1.bf16.msra.mxu0 %v2764
  %2918 = vmatprep.subr.bf16.mxu0 0
  %2919 = vmatpush1.bf16.msra.mxu0 %v2765
  %2920 = vmatprep.subr.bf16.mxu0 0
  %2921 = vmatpush1.bf16.msra.mxu0 %v2766
  %2922 = vmatprep.subr.bf16.mxu0 0
  %2923 = vmatpush1.bf16.msra.mxu0 %v2767
  %2924 = vmatprep.subr.bf16.mxu0 0
  %2925 = vmatpush1.bf16.msra.mxu0 %v2768
  %2926 = vmatprep.subr.bf16.mxu0 0
  %2927 = vmatpush1.bf16.msra.mxu0 %v2769
  %2928 = vmatprep.subr.bf16.mxu0 0
  %2929 = vmatpush1.bf16.msra.mxu0 %v2770
  %2930 = vmatprep.subr.bf16.mxu0 0
  %2931 = vmatpush1.bf16.msra.mxu0 %v2771
  %2932 = vmatprep.subr.bf16.mxu0 0
  %2933 = vmatpush1.bf16.msra.mxu0 %v2772
  %2934 = vmatprep.mubr.bf16.mxu0 %v2520
  %2935 = vmatmul.mubr.bf16.gmra.mrb[0].mxu0 %v2519
  %v2936 = vpop.f32.mrb[0].mxu0
  %v2937 = vadd.f32 %v2840, %v2936
  %v2938 = vpop.f32.mrb[0].mxu0
  %v2939 = vpop.f32.mrb[0].mxu0
  %v2940 = vadd.f32 %v2843, %v2939
  %v2941 = vpop.f32.mrb[0].mxu0
  %2942 = vmatprep.mubr.bf16.mxu0 %v2524
  %2943 = vmatmul.mubr.bf16.gmra.mrb[0].mxu0 %v2523
  %v2944 = vpop.f32.mrb[0].mxu0
  %v2945 = vadd.f32 %v2848, %v2944
  %v2946 = vpop.f32.mrb[0].mxu0
  %v2947 = vpop.f32.mrb[0].mxu0
  %v2948 = vadd.f32 %v2851, %v2947
  %v2949 = vpop.f32.mrb[0].mxu0
  %2950 = vmatprep.mubr.bf16.mxu0 %v2528
  %2951 = vmatmul.mubr.bf16.gmra.mrb[0].mxu0 %v2527
  %v2952 = vpop.f32.mrb[0].mxu0
  %v2953 = vadd.f32 %v2856, %v2952
  %v2954 = vpop.f32.mrb[0].mxu0
  %v2955 = vpop.f32.mrb[0].mxu0
  %v2956 = vadd.f32 %v2859, %v2955
  %v2957 = vpop.f32.mrb[0].mxu0
  %2958 = vmatprep.mubr.bf16.mxu0 %v2532
  %2959 = vmatmul.mubr.bf16.gmra.mrb[0].mxu0 %v2531
  %v2960 = vpop.f32.mrb[0].mxu0
  %v2961 = vadd.f32 %v2864, %v2960
  %v2962 = vpop.f32.mrb[0].mxu0
  %v2963 = vpop.f32.mrb[0].mxu0
  %v2964 = vadd.f32 %v2867, %v2963
  %v2965 = vpop.f32.mrb[0].mxu0
  %2966 = vmatprep.mubr.bf16.mxu0 %v2536
  %2967 = vmatmul.mubr.bf16.gmra.mrb[0].mxu0 %v2535
  %v2968 = vpop.f32.mrb[0].mxu0
  %v2969 = vadd.f32 %v2872, %v2968
  %v2970 = vpop.f32.mrb[0].mxu0
  %v2971 = vpop.f32.mrb[0].mxu0
  %v2972 = vadd.f32 %v2875, %v2971
  %v2973 = vpop.f32.mrb[0].mxu0
  %2974 = vmatprep.mubr.bf16.mxu0 %v2540
  %2975 = vmatmul.mubr.bf16.gmra.mrb[0].mxu0 %v2539
  %v2976 = vpop.f32.mrb[0].mxu0
  %v2977 = vadd.f32 %v2880, %v2976
  %v2978 = vpop.f32.mrb[0].mxu0
  %v2979 = vpop.f32.mrb[0].mxu0
  %v2980 = vadd.f32 %v2883, %v2979
  %v2981 = vpop.f32.mrb[0].mxu0
  %2982 = vmatprep.mubr.bf16.mxu0 %v2544
  %2983 = vmatmul.mubr.bf16.gmra.mrb[0].mxu0 %v2543
  %v2984 = vpop.f32.mrb[0].mxu0
  %v2985 = vadd.f32 %v2888, %v2984
  %v2986 = vpop.f32.mrb[0].mxu0
  %v2987 = vpop.f32.mrb[0].mxu0
  %v2988 = vadd.f32 %v2891, %v2987
  %v2989 = vpop.f32.mrb[0].mxu0
  %2990 = vmatprep.mubr.bf16.mxu0 %v2548
  %2991 = vmatmul.mubr.bf16.gmra.mrb[0].mxu0 %v2547
  %v2992 = vpop.f32.mrb[0].mxu0
  %v2993 = vadd.f32 %v2896, %v2992
  %v2994 = vpop.f32.mrb[0].mxu0
  %v2995 = vpop.f32.mrb[0].mxu0
  %v2996 = vadd.f32 %v2899, %v2995
  %v2997 = vpop.f32.mrb[0].mxu0
  %2998 = vdwg.mxu0
  %v2999 = vadd.f32 %v2501, %v2937
  %v3000 = vadd.f32 %v2502, %v2940
  %v3001 = vadd.f32 %v2503, %v2945
  %v3002 = vadd.f32 %v2504, %v2948
  %v3003 = vadd.f32 %v2505, %v2953
  %v3004 = vadd.f32 %v2506, %v2956
  %v3005 = vadd.f32 %v2507, %v2961
  %v3006 = vadd.f32 %v2508, %v2964
  %v3007 = vadd.f32 %v2509, %v2969
  %v3008 = vadd.f32 %v2510, %v2972
  %v3009 = vadd.f32 %v2511, %v2977
  %v3010 = vadd.f32 %v2512, %v2980
  %v3011 = vadd.f32 %v2513, %v2985
  %v3012 = vadd.f32 %v2514, %v2988
  %v3013 = vadd.f32 %v2515, %v2993
  %v3014 = vadd.f32 %v2516, %v2996
  %3015 = vst [vmem:[%s7] sm:$0xff] %v2999
  %3016 = vst [vmem:[%s7 + $0x8] sm:$0xff] %v3000
  %3017 = vst [vmem:[%s7 + $0x10] sm:$0xff] %v3001
  %3018 = vst [vmem:[%s7 + $0x18] sm:$0xff] %v3002
  %3019 = vst [vmem:[%s7 + $0x20] sm:$0xff] %v3003
  %3020 = vst [vmem:[%s7 + $0x28] sm:$0xff] %v3004
  %3021 = vst [vmem:[%s7 + $0x30] sm:$0xff] %v3005
  %3022 = vst [vmem:[%s7 + $0x38] sm:$0xff] %v3006
  %3023 = vst [vmem:[%s7 + $0x40] sm:$0xff] %v3007
  %3024 = vst [vmem:[%s7 + $0x48] sm:$0xff] %v3008
  %3025 = vst [vmem:[%s7 + $0x50] sm:$0xff] %v3009
  %3026 = vst [vmem:[%s7 + $0x58] sm:$0xff] %v3010
  %3027 = vst [vmem:[%s7 + $0x60] sm:$0xff] %v3011
  %3028 = vst [vmem:[%s7 + $0x68] sm:$0xff] %v3012
  %3029 = vst [vmem:[%s7 + $0x70] sm:$0xff] %v3013
  %3030 = vst [vmem:[%s7 + $0x78] sm:$0xff] %v3014
  // Predicated region
  $region34: #{encoder_forward.12} parent=0 // pred_check
    _
  $region35: #{encoder_forward.12} parent=0 // pred_check_branch
    %3032 = sbr.rel (0) target = $region37
  $region36: #{encoder_forward.12} parent=0 // pred_region
    _
  $region37: #{encoder_forward.12} parent=0 // pred_fallthru
    _
  // Predicated region
  $region38: #{encoder_forward.12} parent=0 // pred_check
    _
  $region39: #{encoder_forward.12} parent=0 // pred_check_branch
    %3034 = sbr.rel (0) target = $region41
  $region40: #{encoder_forward.12} parent=0 // pred_region
    _
  $region41: #{encoder_forward.12} parent=0 // pred_fallthru
    _

// kernel: encoder_forward.13
$region0: #{encoder_forward.13}
  #allocation0 [shape = 'u32[]', space=smem, size = 0x4, offset = 0x4, fixed_abs, tag = 'smem constant byte address 0x4 - core index']
  #allocation1 [shape = 'u32[144,128]{1,0:T(1,128)}', space=vmem, size = 0x12000, scoped, tag = 'internal scratch']
  #allocation2 [shape = 'bf16[128,128]{1,0:T(16,128)(2,1)}', space=vmem, size = 0x8000, scoped, tag = 'scratch operand']
  %s0 = inlined_call_operand.vmem [shape: f32[128,128], index: 0, kind: input, shape index: {}]
  %s1 = inlined_call_operand.vmem [shape: f32[1,128], index: 1, kind: input, shape index: {}]
  %s2 = inlined_call_operand.vmem [shape: f32[1,128], index: 2, kind: input, shape index: {}]
  %s3 = inlined_call_operand.vmem [shape: bf16[128,384], index: 3, kind: input, shape index: {}]
  %s4 = inlined_call_operand.vmem [shape: f32[1,384], index: 4, kind: input, shape index: {}]
  %s5 = inlined_call_operand.vmem [shape: f32[128,384], index: 5, kind: output, shape index: {}]
  %s6 = sld [smem:[#allocation0]]
  $region34: #{encoder_forward.13} parent=0
    _
  %s8 = ssub.s32 1, %s6
  %s9 = scalar_select 0, %s8, %s6
  // Predicated region
  $region2: #{encoder_forward.13} parent=0 // pred_check
    _
  $region3: #{encoder_forward.13} parent=0 // pred_check_branch
    %11 = sbr.rel (0) target = $region5
  $region4: #{encoder_forward.13} parent=0 // pred_region
    _
  $region5: #{encoder_forward.13} parent=0 // pred_fallthru
    _
  // Predicated region
  $region6: #{encoder_forward.13} parent=0 // pred_check
    _
  $region7: #{encoder_forward.13} parent=0 // pred_check_branch
    %13 = sbr.rel (0) target = $region9
  $region8: #{encoder_forward.13} parent=0 // pred_region
    _
  $region9: #{encoder_forward.13} parent=0 // pred_fallthru
    _
  // Predicated region
  $region10: #{encoder_forward.13} parent=0 // pred_check
    _
  $region11: #{encoder_forward.13} parent=0 // pred_check_branch
    %15 = sbr.rel (0) target = $region13
  $region12: #{encoder_forward.13} parent=0 // pred_region
    _
  $region13: #{encoder_forward.13} parent=0 // pred_fallthru
    _
  // Predicated region
  $region14: #{encoder_forward.13} parent=0 // pred_check
    _
  $region15: #{encoder_forward.13} parent=0 // pred_check_branch
    %17 = sbr.rel (0) target = $region17
  $region16: #{encoder_forward.13} parent=0 // pred_region
    _
  $region17: #{encoder_forward.13} parent=0 // pred_fallthru
    _
  // Predicated region
  $region18: #{encoder_forward.13} parent=0 // pred_check
    _
  $region19: #{encoder_forward.13} parent=0 // pred_check_branch
    %19 = sbr.rel (0) target = $region21
  $region20: #{encoder_forward.13} parent=0 // pred_region
    _
  $region21: #{encoder_forward.13} parent=0 // pred_fallthru
    _
  %p21 = scmp.eq.s32.totalorder 0, 0
  // Predicated region
  $region22: #{encoder_forward.13} parent=0 // pred_check
    %p22 = pneg %p21
  $region23: #{encoder_forward.13} parent=0 // pred_check_branch
    %24 = sbr.rel (%p22) target = $region25
  $region24: #{encoder_forward.13} parent=0 // pred_region
    %v25 = vld [vmem:[%s0] sm:$0xff]
    %v26 = vld [vmem:[%s0 + $0x8] sm:$0xff]
    %v27 = vld [vmem:[%s0 + $0x10] sm:$0xff]
    %v28 = vld [vmem:[%s0 + $0x18] sm:$0xff]
    %v29 = vld [vmem:[%s0 + $0x20] sm:$0xff]
    %v30 = vld [vmem:[%s0 + $0x28] sm:$0xff]
    %v31 = vld [vmem:[%s0 + $0x30] sm:$0xff]
    %v32 = vld [vmem:[%s0 + $0x38] sm:$0xff]
    %v33 = vld [vmem:[%s0 + $0x40] sm:$0xff]
    %v34 = vld [vmem:[%s0 + $0x48] sm:$0xff]
    %v35 = vld [vmem:[%s0 + $0x50] sm:$0xff]
    %v36 = vld [vmem:[%s0 + $0x58] sm:$0xff]
    %v37 = vld [vmem:[%s0 + $0x60] sm:$0xff]
    %v38 = vld [vmem:[%s0 + $0x68] sm:$0xff]
    %v39 = vld [vmem:[%s0 + $0x70] sm:$0xff]
    %v40 = vld [vmem:[%s0 + $0x78] sm:$0xff]
    %41 = vadd.xlane.f32.xlu0 %v25
    %v42 = vpop.xlane.xlu0 %41
    %43 = vadd.xlane.f32.xlu0 %v26
    %v44 = vpop.xlane.xlu0 %43
    %45 = vadd.xlane.f32.xlu0 %v27
    %v46 = vpop.xlane.xlu0 %45
    %47 = vadd.xlane.f32.xlu0 %v28
    %v48 = vpop.xlane.xlu0 %47
    %49 = vadd.xlane.f32.xlu0 %v29
    %v50 = vpop.xlane.xlu0 %49
    %51 = vadd.xlane.f32.xlu0 %v30
    %v52 = vpop.xlane.xlu0 %51
    %53 = vadd.xlane.f32.xlu0 %v31
    %v54 = vpop.xlane.xlu0 %53
    %55 = vadd.xlane.f32.xlu0 %v32
    %v56 = vpop.xlane.xlu0 %55
    %57 = vadd.xlane.f32.xlu0 %v33
    %v58 = vpop.xlane.xlu0 %57
    %59 = vadd.xlane.f32.xlu0 %v34
    %v60 = vpop.xlane.xlu0 %59
    %61 = vadd.xlane.f32.xlu0 %v35
    %v62 = vpop.xlane.xlu0 %61
    %63 = vadd.xlane.f32.xlu0 %v36
    %v64 = vpop.xlane.xlu0 %63
    %65 = vadd.xlane.f32.xlu0 %v37
    %v66 = vpop.xlane.xlu0 %65
    %67 = vadd.xlane.f32.xlu0 %v38
    %v68 = vpop.xlane.xlu0 %67
    %69 = vadd.xlane.f32.xlu0 %v39
    %v70 = vpop.xlane.xlu0 %69
    %71 = vadd.xlane.f32.xlu0 %v40
    %v72 = vpop.xlane.xlu0 %71
    %v73 = vrcp.pop 128.0
    %v74 = vmul.f32 %v42, %v73
    %v75 = vmul.f32 %v44, %v73
    %v76 = vmul.f32 %v46, %v73
    %v77 = vmul.f32 %v48, %v73
    %v78 = vmul.f32 %v50, %v73
    %v79 = vmul.f32 %v52, %v73
    %v80 = vmul.f32 %v54, %v73
    %v81 = vmul.f32 %v56, %v73
    %v82 = vmul.f32 %v58, %v73
    %v83 = vmul.f32 %v60, %v73
    %v84 = vmul.f32 %v62, %v73
    %v85 = vmul.f32 %v64, %v73
    %v86 = vmul.f32 %v66, %v73
    %v87 = vmul.f32 %v68, %v73
    %v88 = vmul.f32 %v70, %v73
    %v89 = vmul.f32 %v72, %v73
    %v90 = vsub.f32 %v25, %v74
    %v91 = vsub.f32 %v26, %v75
    %v92 = vsub.f32 %v27, %v76
    %v93 = vsub.f32 %v28, %v77
    %v94 = vsub.f32 %v29, %v78
    %v95 = vsub.f32 %v30, %v79
    %v96 = vsub.f32 %v31, %v80
    %v97 = vsub.f32 %v32, %v81
    %v98 = vsub.f32 %v33, %v82
    %v99 = vsub.f32 %v34, %v83
    %v100 = vsub.f32 %v35, %v84
    %v101 = vsub.f32 %v36, %v85
    %v102 = vsub.f32 %v37, %v86
    %v103 = vsub.f32 %v38, %v87
    %v104 = vsub.f32 %v39, %v88
    %v105 = vsub.f32 %v40, %v89
    %v106 = vmul.f32 %v90, %v90
    %v107 = vmul.f32 %v91, %v91
    %v108 = vmul.f32 %v92, %v92
    %v109 = vmul.f32 %v93, %v93
    %v110 = vmul.f32 %v94, %v94
    %v111 = vmul.f32 %v95, %v95
    %v112 = vmul.f32 %v96, %v96
    %v113 = vmul.f32 %v97, %v97
    %v114 = vmul.f32 %v98, %v98
    %v115 = vmul.f32 %v99, %v99
    %v116 = vmul.f32 %v100, %v100
    %v117 = vmul.f32 %v101, %v101
    %v118 = vmul.f32 %v102, %v102
    %v119 = vmul.f32 %v103, %v103
    %v120 = vmul.f32 %v104, %v104
    %v121 = vmul.f32 %v105, %v105
    %122 = vadd.xlane.f32.xlu0 %v106
    %v123 = vpop.xlane.xlu0 %122
    %124 = vadd.xlane.f32.xlu0 %v107
    %v125 = vpop.xlane.xlu0 %124
    %126 = vadd.xlane.f32.xlu0 %v108
    %v127 = vpop.xlane.xlu0 %126
    %128 = vadd.xlane.f32.xlu0 %v109
    %v129 = vpop.xlane.xlu0 %128
    %130 = vadd.xlane.f32.xlu0 %v110
    %v131 = vpop.xlane.xlu0 %130
    %132 = vadd.xlane.f32.xlu0 %v111
    %v133 = vpop.xlane.xlu0 %132
    %134 = vadd.xlane.f32.xlu0 %v112
    %v135 = vpop.xlane.xlu0 %134
    %136 = vadd.xlane.f32.xlu0 %v113
    %v137 = vpop.xlane.xlu0 %136
    %138 = vadd.xlane.f32.xlu0 %v114
    %v139 = vpop.xlane.xlu0 %138
    %140 = vadd.xlane.f32.xlu0 %v115
    %v141 = vpop.xlane.xlu0 %140
    %142 = vadd.xlane.f32.xlu0 %v116
    %v143 = vpop.xlane.xlu0 %142
    %144 = vadd.xlane.f32.xlu0 %v117
    %v145 = vpop.xlane.xlu0 %144
    %146 = vadd.xlane.f32.xlu0 %v118
    %v147 = vpop.xlane.xlu0 %146
    %148 = vadd.xlane.f32.xlu0 %v119
    %v149 = vpop.xlane.xlu0 %148
    %150 = vadd.xlane.f32.xlu0 %v120
    %v151 = vpop.xlane.xlu0 %150
    %152 = vadd.xlane.f32.xlu0 %v121
    %v153 = vpop.xlane.xlu0 %152
    %v154 = vmul.f32 %v123, %v73
    %v155 = vmul.f32 %v125, %v73
    %v156 = vmul.f32 %v127, %v73
    %v157 = vmul.f32 %v129, %v73
    %v158 = vmul.f32 %v131, %v73
    %v159 = vmul.f32 %v133, %v73
    %v160 = vmul.f32 %v135, %v73
    %v161 = vmul.f32 %v137, %v73
    %v162 = vmul.f32 %v139, %v73
    %v163 = vmul.f32 %v141, %v73
    %v164 = vmul.f32 %v143, %v73
    %v165 = vmul.f32 %v145, %v73
    %v166 = vmul.f32 %v147, %v73
    %v167 = vmul.f32 %v149, %v73
    %v168 = vmul.f32 %v151, %v73
    %v169 = vmul.f32 %v153, %v73
    %v170 = vadd.f32 %v154, 1e-06
    %v171 = vadd.f32 %v155, 1e-06
    %v172 = vadd.f32 %v156, 1e-06
    %v173 = vadd.f32 %v157, 1e-06
    %v174 = vadd.f32 %v158, 1e-06
    %v175 = vadd.f32 %v159, 1e-06
    %v176 = vadd.f32 %v160, 1e-06
    %v177 = vadd.f32 %v161, 1e-06
    %v178 = vadd.f32 %v162, 1e-06
    %v179 = vadd.f32 %v163, 1e-06
    %v180 = vadd.f32 %v164, 1e-06
    %v181 = vadd.f32 %v165, 1e-06
    %v182 = vadd.f32 %v166, 1e-06
    %v183 = vadd.f32 %v167, 1e-06
    %v184 = vadd.f32 %v168, 1e-06
    %v185 = vadd.f32 %v169, 1e-06
    %v186 = vrsqrt.pop %v170
    %v187 = vrsqrt.pop %v171
    %v188 = vrsqrt.pop %v172
    %v189 = vrsqrt.pop %v173
    %v190 = vrsqrt.pop %v174
    %v191 = vrsqrt.pop %v175
    %v192 = vrsqrt.pop %v176
    %v193 = vrsqrt.pop %v177
    %v194 = vrsqrt.pop %v178
    %v195 = vrsqrt.pop %v179
    %v196 = vrsqrt.pop %v180
    %v197 = vrsqrt.pop %v181
    %v198 = vrsqrt.pop %v182
    %v199 = vrsqrt.pop %v183
    %v200 = vrsqrt.pop %v184
    %v201 = vrsqrt.pop %v185
    %v202 = vmul.f32 %v90, %v186
    %v203 = vmul.f32 %v91, %v187
    %v204 = vmul.f32 %v92, %v188
    %v205 = vmul.f32 %v93, %v189
    %v206 = vmul.f32 %v94, %v190
    %v207 = vmul.f32 %v95, %v191
    %v208 = vmul.f32 %v96, %v192
    %v209 = vmul.f32 %v97, %v193
    %v210 = vmul.f32 %v98, %v194
    %v211 = vmul.f32 %v99, %v195
    %v212 = vmul.f32 %v100, %v196
    %v213 = vmul.f32 %v101, %v197
    %v214 = vmul.f32 %v102, %v198
    %v215 = vmul.f32 %v103, %v199
    %v216 = vmul.f32 %v104, %v200
    %v217 = vmul.f32 %v105, %v201
    %v218 = vld [vmem:[%s1] sm:$0x1]
    %v220 = vlaneseq
    %v221 = vshrl.u32 %v220, 7
    %v222 = vsub.s32 0, %v221
    %v223 = vrot.slane %v218, %v222
    %v225 = vmul.f32 %v202, %v223
    %v226 = vmul.f32 %v203, %v223
    %v227 = vmul.f32 %v204, %v223
    %v228 = vmul.f32 %v205, %v223
    %v229 = vmul.f32 %v206, %v223
    %v230 = vmul.f32 %v207, %v223
    %v231 = vmul.f32 %v208, %v223
    %v232 = vmul.f32 %v209, %v223
    %v233 = vmul.f32 %v210, %v223
    %v234 = vmul.f32 %v211, %v223
    %v235 = vmul.f32 %v212, %v223
    %v236 = vmul.f32 %v213, %v223
    %v237 = vmul.f32 %v214, %v223
    %v238 = vmul.f32 %v215, %v223
    %v239 = vmul.f32 %v216, %v223
    %v240 = vmul.f32 %v217, %v223
    %v241 = vld [vmem:[%s2] sm:$0x1]
    %v243 = vlaneseq
    %v244 = vshrl.u32 %v243, 7
    %v245 = vsub.s32 0, %v244
    %v246 = vrot.slane %v241, %v245
    %v248 = vadd.f32 %v225, %v246
    %v249 = vadd.f32 %v226, %v246
    %v250 = vadd.f32 %v227, %v246
    %v251 = vadd.f32 %v228, %v246
    %v252 = vadd.f32 %v229, %v246
    %v253 = vadd.f32 %v230, %v246
    %v254 = vadd.f32 %v231, %v246
    %v255 = vadd.f32 %v232, %v246
    %v256 = vadd.f32 %v233, %v246
    %v257 = vadd.f32 %v234, %v246
    %v258 = vadd.f32 %v235, %v246
    %v259 = vadd.f32 %v236, %v246
    %v260 = vadd.f32 %v237, %v246
    %v261 = vadd.f32 %v238, %v246
    %v262 = vadd.f32 %v239, %v246
    %v263 = vadd.f32 %v240, %v246
    %v264 = vpack.c.bf16 %v249, %v248
    %v265 = vpack.c.bf16 %v251, %v250
    %v266 = vpack.c.bf16 %v253, %v252
    %v267 = vpack.c.bf16 %v255, %v254
    %v268 = vpack.c.bf16 %v257, %v256
    %v269 = vpack.c.bf16 %v259, %v258
    %v270 = vpack.c.bf16 %v261, %v260
    %v271 = vpack.c.bf16 %v263, %v262
    %272 = vst [vmem:[#allocation2] sm:$0xff] %v264
    %273 = vst [vmem:[#allocation2 + $0x8] sm:$0xff] %v265
    %274 = vst [vmem:[#allocation2 + $0x10] sm:$0xff] %v266
    %275 = vst [vmem:[#allocation2 + $0x18] sm:$0xff] %v267
    %276 = vst [vmem:[#allocation2 + $0x20] sm:$0xff] %v268
    %277 = vst [vmem:[#allocation2 + $0x28] sm:$0xff] %v269
    %278 = vst [vmem:[#allocation2 + $0x30] sm:$0xff] %v270
    %279 = vst [vmem:[#allocation2 + $0x38] sm:$0xff] %v271
  $region25: #{encoder_forward.13} parent=0 // pred_fallthru
    _
  %v280 = vld [vmem:[#allocation2] sm:$0xff]
  %v281 = vld [vmem:[#allocation2 + $0x8] sm:$0xff]
  %v282 = vld [vmem:[#allocation2 + $0x10] sm:$0xff]
  %v283 = vld [vmem:[#allocation2 + $0x18] sm:$0xff]
  %v284 = vld [vmem:[#allocation2 + $0x20] sm:$0xff]
  %v285 = vld [vmem:[#allocation2 + $0x28] sm:$0xff]
  %v286 = vld [vmem:[#allocation2 + $0x30] sm:$0xff]
  %v287 = vld [vmem:[#allocation2 + $0x38] sm:$0xff]
  %v288 = vld [vmem:[%s3] sm:$0xff]
  %v289 = vld [vmem:[%s3 + $0x8] sm:$0xf]
  %v290 = vld [vmem:[%s3 + $0xc] sm:$0xff]
  %v291 = vld [vmem:[%s3 + $0x14] sm:$0xf]
  %v292 = vld [vmem:[%s3 + $0x18] sm:$0xff]
  %v293 = vld [vmem:[%s3 + $0x20] sm:$0xf]
  %v294 = vld [vmem:[%s3 + $0x24] sm:$0xff]
  %v295 = vld [vmem:[%s3 + $0x2c] sm:$0xf]
  %v296 = vld [vmem:[%s3 + $0x30] sm:$0xff]
  %v297 = vld [vmem:[%s3 + $0x38] sm:$0xf]
  %v298 = vld [vmem:[%s3 + $0x3c] sm:$0xff]
  %v299 = vld [vmem:[%s3 + $0x44] sm:$0xf]
  %v300 = vld [vmem:[%s3 + $0x48] sm:$0xff]
  %v301 = vld [vmem:[%s3 + $0x50] sm:$0xf]
  %v302 = vld [vmem:[%s3 + $0x54] sm:$0xff]
  %v303 = vld [vmem:[%s3 + $0x5c] sm:$0xf]
  %v304 = vld [vmem:[%s3 + $0x60] sm:$0xff]
  %v305 = vld [vmem:[%s3 + $0x68] sm:$0xf]
  %v306 = vld [vmem:[%s3 + $0x6c] sm:$0xff]
  %v307 = vld [vmem:[%s3 + $0x74] sm:$0xf]
  %v308 = vld [vmem:[%s3 + $0x78] sm:$0xff]
  %v309 = vld [vmem:[%s3 + $0x80] sm:$0xf]
  %v310 = vld [vmem:[%s3 + $0x84] sm:$0xff]
  %v311 = vld [vmem:[%s3 + $0x8c] sm:$0xf]
  %v312 = vld [vmem:[%s3 + $0x90] sm:$0xff]
  %v313 = vld [vmem:[%s3 + $0x98] sm:$0xf]
  %v314 = vld [vmem:[%s3 + $0x9c] sm:$0xff]
  %v315 = vld [vmem:[%s3 + $0xa4] sm:$0xf]
  %v316 = vld [vmem:[%s3 + $0xa8] sm:$0xff]
  %v317 = vld [vmem:[%s3 + $0xb0] sm:$0xf]
  %v318 = vld [vmem:[%s3 + $0xb4] sm:$0xff]
  %v319 = vld [vmem:[%s3 + $0xbc] sm:$0xf]
  %v320 = vld [vmem:[%s4] sm:$0x7]
  %v322 = vlaneseq
  %v323 = vshrl.u32 %v322, 7
  %v324 = vsub.s32 0, %v323
  %v325 = vrot.slane %v320, %v324
  %v326 = vlaneseq
  %v327 = vshrl.u32 %v326, 7
  %v328 = vsub.s32 1, %v327
  %v329 = vrot.slane %v320, %v328
  %v330 = vlaneseq
  %v331 = vshrl.u32 %v330, 7
  %v332 = vsub.s32 2, %v331
  %v333 = vrot.slane %v320, %v332
  %v369 = vunpack.c.l.b16 %v288
  %v370 = vunpack.c.h.b16 %v288
  %v371 = vunpack.c.l.b16 %v289
  %v372 = vunpack.c.l.b16 %v290
  %v373 = vunpack.c.h.b16 %v290
  %v374 = vunpack.c.l.b16 %v291
  %v375 = vunpack.c.l.b16 %v292
  %v376 = vunpack.c.h.b16 %v292
  %v377 = vunpack.c.l.b16 %v293
  %v378 = vunpack.c.l.b16 %v294
  %v379 = vunpack.c.h.b16 %v294
  %v380 = vunpack.c.l.b16 %v295
  %v381 = vunpack.c.l.b16 %v296
  %v382 = vunpack.c.h.b16 %v296
  %v383 = vunpack.c.l.b16 %v297
  %v384 = vunpack.c.l.b16 %v298
  %v385 = vunpack.c.h.b16 %v298
  %v386 = vunpack.c.l.b16 %v299
  %v387 = vunpack.c.l.b16 %v300
  %v388 = vunpack.c.h.b16 %v300
  %v389 = vunpack.c.l.b16 %v301
  %v390 = vunpack.c.l.b16 %v302
  %v391 = vunpack.c.h.b16 %v302
  %v392 = vunpack.c.l.b16 %v303
  %v393 = vunpack.c.l.b16 %v304
  %v394 = vunpack.c.h.b16 %v304
  %v395 = vunpack.c.l.b16 %v305
  %v396 = vunpack.c.l.b16 %v306
  %v397 = vunpack.c.h.b16 %v306
  %v398 = vunpack.c.l.b16 %v307
  %v399 = vunpack.c.l.b16 %v308
  %v400 = vunpack.c.h.b16 %v308
  %v401 = vunpack.c.l.b16 %v309
  %v402 = vunpack.c.l.b16 %v310
  %v403 = vunpack.c.h.b16 %v310
  %v404 = vunpack.c.l.b16 %v311
  %v405 = vunpack.c.l.b16 %v312
  %v406 = vunpack.c.h.b16 %v312
  %v407 = vunpack.c.l.b16 %v313
  %v408 = vunpack.c.l.b16 %v314
  %v409 = vunpack.c.h.b16 %v314
  %v410 = vunpack.c.l.b16 %v315
  %v411 = vunpack.c.l.b16 %v316
  %v412 = vunpack.c.h.b16 %v316
  %v413 = vunpack.c.l.b16 %v317
  %v414 = vunpack.c.l.b16 %v318
  %v415 = vunpack.c.h.b16 %v318
  %v416 = vunpack.c.l.b16 %v319
  %v417 = vpack.c.b16 %v372, %v369
  %v418 = vpack.c.b16 %v373, %v370
  %v419 = vpack.c.b16 %v374, %v371
  %v420 = vpack.c.b16 %v378, %v375
  %v421 = vpack.c.b16 %v379, %v376
  %v422 = vpack.c.b16 %v380, %v377
  %v423 = vpack.c.b16 %v384, %v381
  %v424 = vpack.c.b16 %v385, %v382
  %v425 = vpack.c.b16 %v386, %v383
  %v426 = vpack.c.b16 %v390, %v387
  %v427 = vpack.c.b16 %v391, %v388
  %v428 = vpack.c.b16 %v392, %v389
  %v429 = vpack.c.b16 %v396, %v393
  %v430 = vpack.c.b16 %v397, %v394
  %v431 = vpack.c.b16 %v398, %v395
  %v432 = vpack.c.b16 %v402, %v399
  %v433 = vpack.c.b16 %v403, %v400
  %v434 = vpack.c.b16 %v404, %v401
  %v435 = vpack.c.b16 %v408, %v405
  %v436 = vpack.c.b16 %v409, %v406
  %v437 = vpack.c.b16 %v410, %v407
  %v438 = vpack.c.b16 %v414, %v411
  %v439 = vpack.c.b16 %v415, %v412
  %v440 = vpack.c.b16 %v416, %v413
  %465 = vmatprep.subr.bf16.mxu0 %v418
  %466 = vmatpush1.bf16.msra.mxu0 %v417
  %467 = vmatprep.subr.bf16.mxu0 %v421
  %468 = vmatpush1.bf16.msra.mxu0 %v420
  %469 = vmatprep.subr.bf16.mxu0 %v424
  %470 = vmatpush1.bf16.msra.mxu0 %v423
  %471 = vmatprep.subr.bf16.mxu0 %v427
  %472 = vmatpush1.bf16.msra.mxu0 %v426
  %473 = vmatprep.subr.bf16.mxu0 %v430
  %474 = vmatpush1.bf16.msra.mxu0 %v429
  %475 = vmatprep.subr.bf16.mxu0 %v433
  %476 = vmatpush1.bf16.msra.mxu0 %v432
  %477 = vmatprep.subr.bf16.mxu0 %v436
  %478 = vmatpush1.bf16.msra.mxu0 %v435
  %479 = vmatprep.subr.bf16.mxu0 %v439
  %480 = vmatpush1.bf16.msra.mxu0 %v438
  %481 = vmatprep.subr.bf16.mxu0 0
  %482 = vmatpush1.bf16.msra.mxu0 0
  %483 = vmatprep.subr.bf16.mxu0 0
  %484 = vmatpush1.bf16.msra.mxu0 0
  %485 = vmatprep.subr.bf16.mxu0 0
  %486 = vmatpush1.bf16.msra.mxu0 0
  %487 = vmatprep.subr.bf16.mxu0 0
  %488 = vmatpush1.bf16.msra.mxu0 0
  %489 = vmatprep.subr.bf16.mxu0 0
  %490 = vmatpush1.bf16.msra.mxu0 0
  %491 = vmatprep.subr.bf16.mxu0 0
  %492 = vmatpush1.bf16.msra.mxu0 0
  %493 = vmatprep.subr.bf16.mxu0 0
  %494 = vmatpush1.bf16.msra.mxu0 0
  %495 = vmatprep.subr.bf16.mxu0 0
  %496 = vmatpush1.bf16.msra.mxu0 0
  %497 = vmatprep.mubr.bf16.mxu0 0
  %498 = vmatmul.mubr.bf16.gmra.mrb[0].mxu0 %v280
  %v499 = vpop.f32.mrb[0].mxu0
  %v500 = vadd.f32 %v325, %v499
  %v501 = vpop.f32.mrb[0].mxu0
  %v502 = vadd.f32 %v329, %v501
  %v503 = vpop.f32.mrb[0].mxu0
  %v504 = vadd.f32 %v325, %v503
  %v505 = vpop.f32.mrb[0].mxu0
  %v506 = vadd.f32 %v329, %v505
  %507 = vmatprep.mubr.bf16.mxu0 0
  %508 = vmatmul.mubr.bf16.gmra.mrb[0].mxu0 %v281
  %v509 = vpop.f32.mrb[0].mxu0
  %v510 = vadd.f32 %v325, %v509
  %v511 = vpop.f32.mrb[0].mxu0
  %v512 = vadd.f32 %v329, %v511
  %v513 = vpop.f32.mrb[0].mxu0
  %v514 = vadd.f32 %v325, %v513
  %v515 = vpop.f32.mrb[0].mxu0
  %v516 = vadd.f32 %v329, %v515
  %517 = vmatprep.mubr.bf16.mxu0 0
  %518 = vmatmul.mubr.bf16.gmra.mrb[0].mxu0 %v282
  %v519 = vpop.f32.mrb[0].mxu0
  %v520 = vadd.f32 %v325, %v519
  %v521 = vpop.f32.mrb[0].mxu0
  %v522 = vadd.f32 %v329, %v521
  %v523 = vpop.f32.mrb[0].mxu0
  %v524 = vadd.f32 %v325, %v523
  %v525 = vpop.f32.mrb[0].mxu0
  %v526 = vadd.f32 %v329, %v525
  %527 = vmatprep.mubr.bf16.mxu0 0
  %528 = vmatmul.mubr.bf16.gmra.mrb[0].mxu0 %v283
  %v529 = vpop.f32.mrb[0].mxu0
  %v530 = vadd.f32 %v325, %v529
  %v531 = vpop.f32.mrb[0].mxu0
  %v532 = vadd.f32 %v329, %v531
  %v533 = vpop.f32.mrb[0].mxu0
  %v534 = vadd.f32 %v325, %v533
  %v535 = vpop.f32.mrb[0].mxu0
  %v536 = vadd.f32 %v329, %v535
  %537 = vmatprep.mubr.bf16.mxu0 0
  %538 = vmatmul.mubr.bf16.gmra.mrb[0].mxu0 %v284
  %v539 = vpop.f32.mrb[0].mxu0
  %v540 = vadd.f32 %v325, %v539
  %v541 = vpop.f32.mrb[0].mxu0
  %v542 = vadd.f32 %v329, %v541
  %v543 = vpop.f32.mrb[0].mxu0
  %v544 = vadd.f32 %v325, %v543
  %v545 = vpop.f32.mrb[0].mxu0
  %v546 = vadd.f32 %v329, %v545
  %547 = vmatprep.mubr.bf16.mxu0 0
  %548 = vmatmul.mubr.bf16.gmra.mrb[0].mxu0 %v285
  %v549 = vpop.f32.mrb[0].mxu0
  %v550 = vadd.f32 %v325, %v549
  %v551 = vpop.f32.mrb[0].mxu0
  %v552 = vadd.f32 %v329, %v551
  %v553 = vpop.f32.mrb[0].mxu0
  %v554 = vadd.f32 %v325, %v553
  %v555 = vpop.f32.mrb[0].mxu0
  %v556 = vadd.f32 %v329, %v555
  %557 = vmatprep.mubr.bf16.mxu0 0
  %558 = vmatmul.mubr.bf16.gmra.mrb[0].mxu0 %v286
  %v559 = vpop.f32.mrb[0].mxu0
  %v560 = vadd.f32 %v325, %v559
  %v561 = vpop.f32.mrb[0].mxu0
  %v562 = vadd.f32 %v329, %v561
  %v563 = vpop.f32.mrb[0].mxu0
  %v564 = vadd.f32 %v325, %v563
  %v565 = vpop.f32.mrb[0].mxu0
  %v566 = vadd.f32 %v329, %v565
  %567 = vmatprep.mubr.bf16.mxu0 0
  %568 = vmatmul.mubr.bf16.gmra.mrb[0].mxu0 %v287
  %v569 = vpop.f32.mrb[0].mxu0
  %v570 = vadd.f32 %v325, %v569
  %v571 = vpop.f32.mrb[0].mxu0
  %v572 = vadd.f32 %v329, %v571
  %v573 = vpop.f32.mrb[0].mxu0
  %v574 = vadd.f32 %v325, %v573
  %v575 = vpop.f32.mrb[0].mxu0
  %v576 = vadd.f32 %v329, %v575
  %577 = vdwg.mxu0
  %578 = vmatprep.subr.bf16.mxu0 0
  %579 = vmatpush1.bf16.msra.mxu0 %v419
  %580 = vmatprep.subr.bf16.mxu0 0
  %581 = vmatpush1.bf16.msra.mxu0 %v422
  %582 = vmatprep.subr.bf16.mxu0 0
  %583 = vmatpush1.bf16.msra.mxu0 %v425
  %584 = vmatprep.subr.bf16.mxu0 0
  %585 = vmatpush1.bf16.msra.mxu0 %v428
  %586 = vmatprep.subr.bf16.mxu0 0
  %587 = vmatpush1.bf16.msra.mxu0 %v431
  %588 = vmatprep.subr.bf16.mxu0 0
  %589 = vmatpush1.bf16.msra.mxu0 %v434
  %590 = vmatprep.subr.bf16.mxu0 0
  %591 = vmatpush1.bf16.msra.mxu0 %v437
  %592 = vmatprep.subr.bf16.mxu0 0
  %593 = vmatpush1.bf16.msra.mxu0 %v440
  %594 = vmatprep.subr.bf16.mxu0 0
  %595 = vmatpush1.bf16.msra.mxu0 0
  %596 = vmatprep.subr.bf16.mxu0 0
  %597 = vmatpush1.bf16.msra.mxu0 0
  %598 = vmatprep.subr.bf16.mxu0 0
  %599 = vmatpush1.bf16.msra.mxu0 0
  %600 = vmatprep.subr.bf16.mxu0 0
  %601 = vmatpush1.bf16.msra.mxu0 0
  %602 = vmatprep.subr.bf16.mxu0 0
  %603 = vmatpush1.bf16.msra.mxu0 0
  %604 = vmatprep.subr.bf16.mxu0 0
  %605 = vmatpush1.bf16.msra.mxu0 0
  %606 = vmatprep.subr.bf16.mxu0 0
  %607 = vmatpush1.bf16.msra.mxu0 0
  %608 = vmatprep.subr.bf16.mxu0 0
  %609 = vmatpush1.bf16.msra.mxu0 0
  %610 = vmatprep.mubr.bf16.mxu0 0
  %611 = vmatmul.mubr.bf16.gmra.mrb[0].mxu0 %v280
  %v612 = vpop.f32.mrb[0].mxu0
  %v613 = vadd.f32 %v333, %v612
  %v614 = vpop.f32.mrb[0].mxu0
  %v615 = vpop.f32.mrb[0].mxu0
  %v616 = vadd.f32 %v333, %v615
  %v617 = vpop.f32.mrb[0].mxu0
  %618 = vmatprep.mubr.bf16.mxu0 0
  %619 = vmatmul.mubr.bf16.gmra.mrb[0].mxu0 %v281
  %v620 = vpop.f32.mrb[0].mxu0
  %v621 = vadd.f32 %v333, %v620
  %v622 = vpop.f32.mrb[0].mxu0
  %v623 = vpop.f32.mrb[0].mxu0
  %v624 = vadd.f32 %v333, %v623
  %v625 = vpop.f32.mrb[0].mxu0
  %626 = vmatprep.mubr.bf16.mxu0 0
  %627 = vmatmul.mubr.bf16.gmra.mrb[0].mxu0 %v282
  %v628 = vpop.f32.mrb[0].mxu0
  %v629 = vadd.f32 %v333, %v628
  %v630 = vpop.f32.mrb[0].mxu0
  %v631 = vpop.f32.mrb[0].mxu0
  %v632 = vadd.f32 %v333, %v631
  %v633 = vpop.f32.mrb[0].mxu0
  %634 = vmatprep.mubr.bf16.mxu0 0
  %635 = vmatmul.mubr.bf16.gmra.mrb[0].mxu0 %v283
  %v636 = vpop.f32.mrb[0].mxu0
  %v637 = vadd.f32 %v333, %v636
  %v638 = vpop.f32.mrb[0].mxu0
  %v639 = vpop.f32.mrb[0].mxu0
  %v640 = vadd.f32 %v333, %v639
  %v641 = vpop.f32.mrb[0].mxu0
  %642 = vmatprep.mubr.bf16.mxu0 0
  %643 = vmatmul.mubr.bf16.gmra.mrb[0].mxu0 %v284
  %v644 = vpop.f32.mrb[0].mxu0
  %v645 = vadd.f32 %v333, %v644
  %v646 = vpop.f32.mrb[0].mxu0
  %v647 = vpop.f32.mrb[0].mxu0
  %v648 = vadd.f32 %v333, %v647
  %v649 = vpop.f32.mrb[0].mxu0
  %650 = vmatprep.mubr.bf16.mxu0 0
  %651 = vmatmul.mubr.bf16.gmra.mrb[0].mxu0 %v285
  %v652 = vpop.f32.mrb[0].mxu0
  %v653 = vadd.f32 %v333, %v652
  %v654 = vpop.f32.mrb[0].mxu0
  %v655 = vpop.f32.mrb[0].mxu0
  %v656 = vadd.f32 %v333, %v655
  %v657 = vpop.f32.mrb[0].mxu0
  %658 = vmatprep.mubr.bf16.mxu0 0
  %659 = vmatmul.mubr.bf16.gmra.mrb[0].mxu0 %v286
  %v660 = vpop.f32.mrb[0].mxu0
  %v661 = vadd.f32 %v333, %v660
  %v662 = vpop.f32.mrb[0].mxu0
  %v663 = vpop.f32.mrb[0].mxu0
  %v664 = vadd.f32 %v333, %v663
  %v665 = vpop.f32.mrb[0].mxu0
  %666 = vmatprep.mubr.bf16.mxu0 0
  %667 = vmatmul.mubr.bf16.gmra.mrb[0].mxu0 %v287
  %v668 = vpop.f32.mrb[0].mxu0
  %v669 = vadd.f32 %v333, %v668
  %v670 = vpop.f32.mrb[0].mxu0
  %v671 = vpop.f32.mrb[0].mxu0
  %v672 = vadd.f32 %v333, %v671
  %v673 = vpop.f32.mrb[0].mxu0
  %674 = vdwg.mxu0
  %675 = vst [vmem:[%s5] sm:$0xff] %v500
  %676 = vst [vmem:[%s5 + $0x8] sm:$0xff] %v502
  %677 = vst [vmem:[%s5 + $0x10] sm:$0xff] %v613
  %678 = vst [vmem:[%s5 + $0x18] sm:$0xff] %v504
  %679 = vst [vmem:[%s5 + $0x20] sm:$0xff] %v506
  %680 = vst [vmem:[%s5 + $0x28] sm:$0xff] %v616
  %681 = vst [vmem:[%s5 + $0x30] sm:$0xff] %v510
  %682 = vst [vmem:[%s5 + $0x38] sm:$0xff] %v512
  %683 = vst [vmem:[%s5 + $0x40] sm:$0xff] %v621
  %684 = vst [vmem:[%s5 + $0x48] sm:$0xff] %v514
  %685 = vst [vmem:[%s5 + $0x50] sm:$0xff] %v516
  %686 = vst [vmem:[%s5 + $0x58] sm:$0xff] %v624
  %687 = vst [vmem:[%s5 + $0x60] sm:$0xff] %v520
  %688 = vst [vmem:[%s5 + $0x68] sm:$0xff] %v522
  %689 = vst [vmem:[%s5 + $0x70] sm:$0xff] %v629
  %690 = vst [vmem:[%s5 + $0x78] sm:$0xff] %v524
  %691 = vst [vmem:[%s5 + $0x80] sm:$0xff] %v526
  %692 = vst [vmem:[%s5 + $0x88] sm:$0xff] %v632
  %693 = vst [vmem:[%s5 + $0x90] sm:$0xff] %v530
  %694 = vst [vmem:[%s5 + $0x98] sm:$0xff] %v532
  %695 = vst [vmem:[%s5 + $0xa0] sm:$0xff] %v637
  %696 = vst [vmem:[%s5 + $0xa8] sm:$0xff] %v534
  %697 = vst [vmem:[%s5 + $0xb0] sm:$0xff] %v536
  %698 = vst [vmem:[%s5 + $0xb8] sm:$0xff] %v640
  %699 = vst [vmem:[%s5 + $0xc0] sm:$0xff] %v540
  %700 = vst [vmem:[%s5 + $0xc8] sm:$0xff] %v542
  %701 = vst [vmem:[%s5 + $0xd0] sm:$0xff] %v645
  %702 = vst [vmem:[%s5 + $0xd8] sm:$0xff] %v544
  %703 = vst [vmem:[%s5 + $0xe0] sm:$0xff] %v546
  %704 = vst [vmem:[%s5 + $0xe8] sm:$0xff] %v648
  %705 = vst [vmem:[%s5 + $0xf0] sm:$0xff] %v550
  %706 = vst [vmem:[%s5 + $0xf8] sm:$0xff] %v552
  %707 = vst [vmem:[%s5 + $0x100] sm:$0xff] %v653
  %708 = vst [vmem:[%s5 + $0x108] sm:$0xff] %v554
  %709 = vst [vmem:[%s5 + $0x110] sm:$0xff] %v556
  %710 = vst [vmem:[%s5 + $0x118] sm:$0xff] %v656
  %711 = vst [vmem:[%s5 + $0x120] sm:$0xff] %v560
  %712 = vst [vmem:[%s5 + $0x128] sm:$0xff] %v562
  %713 = vst [vmem:[%s5 + $0x130] sm:$0xff] %v661
  %714 = vst [vmem:[%s5 + $0x138] sm:$0xff] %v564
  %715 = vst [vmem:[%s5 + $0x140] sm:$0xff] %v566
  %716 = vst [vmem:[%s5 + $0x148] sm:$0xff] %v664
  %717 = vst [vmem:[%s5 + $0x150] sm:$0xff] %v570
  %718 = vst [vmem:[%s5 + $0x158] sm:$0xff] %v572
  %719 = vst [vmem:[%s5 + $0x160] sm:$0xff] %v669
  %720 = vst [vmem:[%s5 + $0x168] sm:$0xff] %v574
  %721 = vst [vmem:[%s5 + $0x170] sm:$0xff] %v576
  %722 = vst [vmem:[%s5 + $0x178] sm:$0xff] %v672
  // Predicated region
  $region26: #{encoder_forward.13} parent=0 // pred_check
    _
  $region27: #{encoder_forward.13} parent=0 // pred_check_branch
    %724 = sbr.rel (0) target = $region29
  $region28: #{encoder_forward.13} parent=0 // pred_region
    _
  $region29: #{encoder_forward.13} parent=0 // pred_fallthru
    _
  // Predicated region
  $region30: #{encoder_forward.13} parent=0 // pred_check
    _
  $region31: #{encoder_forward.13} parent=0 // pred_check_branch
    %726 = sbr.rel (0) target = $region33
  $region32: #{encoder_forward.13} parent=0 // pred_region
    _
  $region33: #{encoder_forward.13} parent=0 // pred_fallthru
    _

</llo_original>
